<compile_context>
chip_gen: v5e
topology: v5e:2x2
jax: 0.10.0
libtpu: 0.0.40
codegen_flags: <defaults>
</compile_context>

<pallas_src>
import functools

import jax
import jax.numpy as jnp
from jax.experimental import pallas as pl
from jax.experimental.pallas import tpu as pltpu

COMPUTE_DTYPE = jnp.bfloat16          # MXU operand dtype; epilogue stays f32.
_VMEM_LIMIT = 32 * 1024 * 1024        # ample (usage ~6-8 MB); safe on v7x too.


# ---------------------------------------------------------------------------
# Fused generator kernel: one grid step == one batch element.
# ---------------------------------------------------------------------------
def _generator_kernel(x_ref, ffw_ref, ffb_ref, w1_ref, b1_ref, w2_ref, b2_ref,
                      w3_ref, b3_ref, w4_ref, b4_ref, o_ref, ff_s, c1_s, *, cs):
    f32 = jnp.float32
    dt = ffw_ref.dtype                 # bf16 MXU operand dtype
    c1 = cs // 2                       # conv1 output channels (128)

    # ---- FF: Linear(latent, 16*cs) + LeakyReLU(0.2) -----------------------
    # Sublane-broadcast the single latent row to 8 rows: same MXU cost, keeps
    # the LHS at a native 8-sublane tile; only row 0 is used afterwards.
    x = jnp.broadcast_to(x_ref[0], (8, x_ref.shape[-1])).astype(dt)
    h = jnp.dot(x, ffw_ref[...], preferred_element_type=f32) + ffb_ref[...]
    h = jnp.where(h > 0, h, 0.2 * h)                   # (8, 16*cs), cols (h4, w4, c)

    # In-VMEM "view(bs, cs, 4, 4) -> NHWC rows" scatter: 16 static slice-stores.
    for p in range(16):                                # p = h4*4 + w4
        ff_s[p:p + 1, :] = h[0:1, p * cs:(p + 1) * cs]

    # ---- conv1: ConvTranspose2d(cs, cs/2, k=s=4) + LeakyReLU ---------------
    h = jnp.dot(ff_s[...].astype(dt), w1_ref[...], preferred_element_type=f32) + b1_ref[...]
    h = jnp.where(h > 0, h, 0.2 * h)                   # (16, 16*c1), cols (kh1, kw1, c)

    # In-VMEM sub-pixel scatter: c1_s rows ordered (kh1, kw1, h4, w4).
    for s in range(16):                                # s = kh1*4 + kw1
        c1_s[s * 16:(s + 1) * 16, :] = h[:, s * c1:(s + 1) * c1]

    # ---- conv2: ConvTranspose2d(cs/2, cs/4, k=s=2) + LeakyReLU -------------
    h = jnp.dot(c1_s[...].astype(dt), w2_ref[...], preferred_element_type=f32) + b2_ref[...]
    h = jnp.where(h > 0, h, 0.2 * h)                   # (256, 256), cols (kh2, kw2, c)

    # ---- conv3: k=s=2, block-diag over conv2 sub-pixels + LeakyReLU --------
    h = jnp.dot(h.astype(dt), w3_ref[...], preferred_element_type=f32) + b3_ref[...]
    h = jnp.where(h > 0, h, 0.2 * h)                   # (256, 512), cols (kh2,kw2,kh3,kw3,c)

    # ---- conv4: k=s=1, block-diag, 3->8 channel pad, + sigmoid -------------
    h = jnp.dot(h.astype(dt), w4_ref[...], preferred_element_type=f32) + b4_ref[...]
    o_ref[...] = jax.nn.sigmoid(h).astype(o_ref.dtype)  # (256, 128), lane-dense


# ---------------------------------------------------------------------------
# Forward wrapper (single pallas_call + tiny NCHW un-scatter)
# ---------------------------------------------------------------------------
def generator_forward(params, x, channel_size=256):
    """x: (bs, latent_size) -> (bs, 3, 64, 64), matching the PyTorch module."""
    bs, latent = x.shape
    cs = channel_size
    c1 = cs // 2

    kern = functools.partial(_generator_kernel, cs=cs)
    out = pl.pallas_call(
        kern,
        out_shape=jax.ShapeDtypeStruct((bs * 256, 128), jnp.float32),
        grid_spec=pltpu.PrefetchScalarGridSpec(
            num_scalar_prefetch=0,
            grid=(bs,),                                    # >=2 parallel steps at bs>=2
            in_specs=[
                pl.BlockSpec((1, 1, latent), lambda b: (b, 0, 0)),          # x row
                pl.BlockSpec((latent, 16 * cs), lambda b: (0, 0)),          # ff_w
                pl.BlockSpec((1, 16 * cs), lambda b: (0, 0)),               # ff_b
                pl.BlockSpec((cs, 16 * c1), lambda b: (0, 0)),              # w1f
                pl.BlockSpec((1, 16 * c1), lambda b: (0, 0)),               # b1f
                pl.BlockSpec((c1, 4 * (cs // 4)), lambda b: (0, 0)),        # w2f
                pl.BlockSpec((1, 4 * (cs // 4)), lambda b: (0, 0)),         # b2f
                pl.BlockSpec((4 * (cs // 4), 16 * (cs // 8)), lambda b: (0, 0)),  # w3bd
                pl.BlockSpec((1, 16 * (cs // 8)), lambda b: (0, 0)),        # b3f
                pl.BlockSpec((16 * (cs // 8), 128), lambda b: (0, 0)),      # w4bd
                pl.BlockSpec((1, 128), lambda b: (0, 0)),                   # b4f
            ],
            out_specs=pl.BlockSpec((256, 128), lambda b: (b, 0)),
            scratch_shapes=[
                pltpu.VMEM((16, cs), jnp.float32),         # FF output as pixel rows
                pltpu.VMEM((256, c1), jnp.float32),        # conv1 output as sub-pixel rows
            ],
        ),
        compiler_params=pltpu.CompilerParams(
            dimension_semantics=("parallel",),
            vmem_limit_bytes=_VMEM_LIMIT,
        ),
    )(x.reshape(bs, 1, latent),
      params["ff_w"], params["ff_b"], params["w1f"], params["b1f"],
      params["w2f"], params["b2f"], params["w3bd"], params["b3f"],
      params["w4bd"], params["b4f"])

    # Un-scatter to NCHW and drop the 5 zero-padded conv4 channels.
    # rows of `out`: (kh1, kw1, h4, w4); cols: (kh2, kw2, kh3, kw3, c_pad8).
    h = out.reshape(bs, 256, 2, 2, 2, 2, 8)[..., :3]     # (b, r, kh2, kw2, kh3, kw3, c)
    h = h.transpose(0, 6, 1, 2, 4, 3, 5)                 # (b, c, r, kh2, kh3, kw2, kw3)
    h = h.reshape(bs, 3, 4, 4, 4, 4, 4, 4)               # (b, c, kh1, kw1, h4, w4, i, j)
    h = h.transpose(0, 1, 4, 2, 6, 5, 3, 7)              # (b, c, h4, kh1, i, w4, kw1, j)
    return h.reshape(bs, 3, 64, 64)


# ---------------------------------------------------------------------------
# Parameters: PyTorch-layout init + one-time preparation (flatten / permute /
# block-diagonalize / cast).  All layout work is hoisted out of the forward.
# ---------------------------------------------------------------------------
def init_torch_params(key, latent_size, channel_size=256):
    cs = channel_size
    keys = jax.random.split(key, 10)

    def rnd(k, shape):
        return (jax.random.normal(k, shape, jnp.float32) * 0.05).astype(jnp.float32)

    return {
        # FF: nn.Linear(latent, 4096) stored as (in, out).
        "ff_w": rnd(keys[0], (latent_size, 16 * cs)),
        "ff_b": rnd(keys[1], (16 * cs,)),
        # ConvTranspose2d weights in PyTorch layout (Cin, Cout, kH, kW).
        "w1": rnd(keys[2], (cs, cs // 2, 4, 4)),
        "b1": rnd(keys[3], (cs // 2,)),
        "w2": rnd(keys[4], (cs // 2, cs // 4, 2, 2)),
        "b2": rnd(keys[5], (cs // 4,)),
        "w3": rnd(keys[6], (cs // 4, cs // 8, 2, 2)),
        "b3": rnd(keys[7], (cs // 8,)),
        "w4": rnd(keys[8], (cs // 8, 3, 1, 1)),
        "b4": rnd(keys[9], (3,)),
    }


def prepare_params(tp, channel_size=256, compute_dtype=COMPUTE_DTYPE):
    cs = channel_size
    latent = tp["ff_w"].shape[0]
    f32 = jnp.float32

    # FF: permute output features from (C, 4, 4) [torch .view(bs, C, 4, 4)] to
    # (4, 4, C) so the FF output splits directly into conv1's NHWC pixel rows.
    ff_w = tp["ff_w"].reshape(latent, cs, 4, 4).transpose(0, 2, 3, 1).reshape(latent, 16 * cs)
    ff_b = tp["ff_b"].reshape(cs, 4, 4).transpose(1, 2, 0).reshape(16 * cs)

    def flat_ct(w):
        # (Cin, Cout, k, k) -> (Cin, k*k*Cout), columns ordered (kh, kw, cout).
        cin, cout, k, _ = w.shape
        return w.transpose(0, 2, 3, 1).reshape(cin, k * k * cout)

    w1f = flat_ct(tp["w1"])                                    # (256, 2048)
    b1f = jnp.tile(tp["b1"], 16)                               # (2048,)

    w2f = flat_ct(tp["w2"])                                    # (128, 256)
    b2f = jnp.tile(tp["b2"], 4)                                # (256,)

    w3f = flat_ct(tp["w3"])                                    # (64, 128)
    w3bd = jnp.kron(jnp.eye(4, dtype=f32), w3f)                # (256, 512) block-diag
    b3f = jnp.tile(tp["b3"], 16)                               # (512,)

    c4pad = 8                                                  # pad 3 -> 8 so 16*8 = 128 lanes
    w4f = tp["w4"].reshape(cs // 8, 3)                         # (32, 3), k = 1
    w4p = jnp.pad(w4f, ((0, 0), (0, c4pad - 3)))
    w4bd = jnp.kron(jnp.eye(16, dtype=f32), w4p)               # (512, 128) block-diag
    b4f = jnp.tile(jnp.pad(tp["b4"], (0, c4pad - 3)), 16)      # (128,)

    return {
        "ff_w": ff_w.astype(compute_dtype), "ff_b": ff_b.reshape(1, -1).astype(f32),
        "w1f": w1f.astype(compute_dtype),   "b1f": b1f.reshape(1, -1).astype(f32),
        "w2f": w2f.astype(compute_dtype),   "b2f": b2f.reshape(1, -1).astype(f32),
        "w3bd": w3bd.astype(compute_dtype), "b3f": b3f.reshape(1, -1).astype(f32),
        "w4bd": w4bd.astype(compute_dtype), "b4f": b4f.reshape(1, -1).astype(f32),
    }


# ---------------------------------------------------------------------------
# Pure-JAX f32 reference (independent of the kernel layout plumbing)
# ---------------------------------------------------------------------------
def reference_forward(tp, x, channel_size=256):
    cs = channel_size
    h = x @ tp["ff_w"] + tp["ff_b"]
    h = jnp.where(h > 0, h, 0.2 * h)
    h = h.reshape(x.shape[0], cs, 4, 4)

    def up(h, w, b, k, act):
        n, _, H, W = h.shape
        cout = w.shape[1]
        y = jnp.einsum("nihw,iokl->nohkwl", h, w) + b[None, :, None, None, None, None]
        y = y.reshape(n, cout, H * k, W * k)
        return jnp.where(y > 0, y, 0.2 * y) if act == "leaky" else jax.nn.sigmoid(y)

    h = up(h, tp["w1"], tp["b1"], 4, "leaky")
    h = up(h, tp["w2"], tp["b2"], 2, "leaky")
    h = up(h, tp["w3"], tp["b3"], 2, "leaky")
    h = up(h, tp["w4"], tp["b4"], 1, "sigmoid")
    return h


if __name__ == "__main__":
    key = jax.random.PRNGKey(0)
    pkey, xkey = jax.random.split(key)

    latent_size = 64          # small synthetic latent dim
    channel_size = 256        # fixed by the module (4096 = 256*4*4)
    bs = 2

    torch_params = init_torch_params(pkey, latent_size, channel_size)
    params = prepare_params(torch_params, channel_size)
    x = jax.random.normal(xkey, (bs, latent_size), jnp.float32)

    fwd = jax.jit(functools.partial(generator_forward, channel_size=channel_size))
    out = jax.block_until_ready(fwd(params, x))

    assert out.shape == (bs, 3, 64, 64), out.shape
    assert bool(jnp.all(jnp.isfinite(out)))
    assert bool(jnp.all((out >= 0.0) & (out <= 1.0)))   # sigmoid output range

    # Check vs a pure-JAX f32 reference (bf16 MXU operands => small error).
    ref = reference_forward(torch_params, x, channel_size)
    max_err = float(jnp.max(jnp.abs(out - ref)))
    assert max_err < 5e-2, max_err

    print("KERNEL_OK")
</pallas_src>

<mosaic_0001>
module attributes {stable_mosaic.version = 11 : i64} {
  func.func @_generator_kernel(%arg0: i32, %arg1: memref<1x1x64xf32, #tpu.memory_space<vmem>>, %arg2: memref<64x4096xbf16, #tpu.memory_space<vmem>>, %arg3: memref<1x4096xf32, #tpu.memory_space<vmem>>, %arg4: memref<256x2048xbf16, #tpu.memory_space<vmem>>, %arg5: memref<1x2048xf32, #tpu.memory_space<vmem>>, %arg6: memref<128x256xbf16, #tpu.memory_space<vmem>>, %arg7: memref<1x256xf32, #tpu.memory_space<vmem>>, %arg8: memref<256x512xbf16, #tpu.memory_space<vmem>>, %arg9: memref<1x512xf32, #tpu.memory_space<vmem>>, %arg10: memref<512x128xbf16, #tpu.memory_space<vmem>>, %arg11: memref<1x128xf32, #tpu.memory_space<vmem>>, %arg12: memref<256x128xf32, #tpu.memory_space<vmem>>, %arg13: memref<16x256xf32, #tpu.memory_space<vmem>>, %arg14: memref<256x128xf32, #tpu.memory_space<vmem>>) attributes {dimension_semantics = [#tpu.dimension_semantics<parallel>], iteration_bounds = array<i64: 2>, scalar_prefetch = 0 : i64, scratch_operands = 2 : i64, tpu.core_type = #tpu.core_type<tc>, window_params = [{transform_indices = @transform_0, window_bounds = array<i64: 1, 1, 64>}, {pipeline_mode = #tpu.pipeline_mode<synchronous>, transform_indices = @transform_1, window_bounds = array<i64: 64, 4096>}, {pipeline_mode = #tpu.pipeline_mode<synchronous>, transform_indices = @transform_2, window_bounds = array<i64: 1, 4096>}, {pipeline_mode = #tpu.pipeline_mode<synchronous>, transform_indices = @transform_3, window_bounds = array<i64: 256, 2048>}, {pipeline_mode = #tpu.pipeline_mode<synchronous>, transform_indices = @transform_4, window_bounds = array<i64: 1, 2048>}, {pipeline_mode = #tpu.pipeline_mode<synchronous>, transform_indices = @transform_5, window_bounds = array<i64: 128, 256>}, {pipeline_mode = #tpu.pipeline_mode<synchronous>, transform_indices = @transform_6, window_bounds = array<i64: 1, 256>}, {pipeline_mode = #tpu.pipeline_mode<synchronous>, transform_indices = @transform_7, window_bounds = array<i64: 256, 512>}, {pipeline_mode = #tpu.pipeline_mode<synchronous>, transform_indices = @transform_8, window_bounds = array<i64: 1, 512>}, {pipeline_mode = #tpu.pipeline_mode<synchronous>, transform_indices = @transform_9, window_bounds = array<i64: 512, 128>}, {pipeline_mode = #tpu.pipeline_mode<synchronous>, transform_indices = @transform_10, window_bounds = array<i64: 1, 128>}, {transform_indices = @transform_11, window_bounds = array<i64: 256, 128>}]} {
    %c0 = arith.constant 0 : index
    %c0_0 = arith.constant 0 : index
    %c0_1 = arith.constant 0 : index
    %0 = vector.load %arg1[%c0, %c0_0, %c0_1] : memref<1x1x64xf32, #tpu.memory_space<vmem>>, vector<1x1x64xf32>
    %1 = vector.shape_cast %0 : vector<1x1x64xf32> to vector<1x64xf32>
    %2 = vector.shape_cast %1 : vector<1x64xf32> to vector<1x64xf32>
    %3 = vector.broadcast %2 : vector<1x64xf32> to vector<8x64xf32>
    %4 = arith.truncf %3 : vector<8x64xf32> to vector<8x64xbf16>
    %c0_2 = arith.constant 0 : index
    %c0_3 = arith.constant 0 : index
    %5 = vector.load %arg2[%c0_2, %c0_3] : memref<64x4096xbf16, #tpu.memory_space<vmem>>, vector<64x4096xbf16>
    %cst = arith.constant dense<0.000000e+00> : vector<8x4096xf32>
    %6 = tpu.matmul %4, %5, %cst {dimension_numbers = #tpu.dot_dimension_numbers<[1], [0], [0], [1], [0, 0, 1, 1], [], []>} : vector<8x64xbf16>, vector<64x4096xbf16>, vector<8x4096xf32> -> vector<8x4096xf32>
    %c0_4 = arith.constant 0 : index
    %c0_5 = arith.constant 0 : index
    %7 = vector.load %arg3[%c0_4, %c0_5] : memref<1x4096xf32, #tpu.memory_space<vmem>>, vector<1x4096xf32>
    %8 = vector.broadcast %7 : vector<1x4096xf32> to vector<8x4096xf32>
    %9 = arith.addf %6, %8 : vector<8x4096xf32>
    %cst_6 = arith.constant 0.000000e+00 : f32
    %10 = vector.broadcast %cst_6 : f32 to vector<8x4096xf32>
    %11 = arith.cmpf ogt, %9, %10 : vector<8x4096xf32>
    %cst_7 = arith.constant 2.000000e-01 : f32
    %12 = vector.broadcast %cst_7 : f32 to vector<8x4096xf32>
    %13 = arith.mulf %12, %9 : vector<8x4096xf32>
    %14 = arith.select %11, %9, %13 : vector<8x4096xi1>, vector<8x4096xf32>
    %15 = vector.extract_strided_slice %14 {offsets = [0, 0], sizes = [1, 256], strides = [1, 1]} : vector<8x4096xf32> to vector<1x256xf32>
    %c0_8 = arith.constant 0 : index
    %c0_9 = arith.constant 0 : index
    %16 = vector.load %arg13[%c0_8, %c0_9] : memref<16x256xf32, #tpu.memory_space<vmem>>, vector<1x256xf32>
    tpu.vector_store %arg13[%c0_8, %c0_9], %15 {strides = array<i32>} : memref<16x256xf32, #tpu.memory_space<vmem>>, vector<1x256xf32>,
    %17 = vector.extract_strided_slice %14 {offsets = [0, 256], sizes = [1, 256], strides = [1, 1]} : vector<8x4096xf32> to vector<1x256xf32>
    %c1 = arith.constant 1 : index
    %c0_10 = arith.constant 0 : index
    %18 = vector.load %arg13[%c1, %c0_10] : memref<16x256xf32, #tpu.memory_space<vmem>>, vector<1x256xf32>
    tpu.vector_store %arg13[%c1, %c0_10], %17 {strides = array<i32>} : memref<16x256xf32, #tpu.memory_space<vmem>>, vector<1x256xf32>,
    %19 = vector.extract_strided_slice %14 {offsets = [0, 512], sizes = [1, 256], strides = [1, 1]} : vector<8x4096xf32> to vector<1x256xf32>
    %c2 = arith.constant 2 : index
    %c0_11 = arith.constant 0 : index
    %20 = vector.load %arg13[%c2, %c0_11] : memref<16x256xf32, #tpu.memory_space<vmem>>, vector<1x256xf32>
    tpu.vector_store %arg13[%c2, %c0_11], %19 {strides = array<i32>} : memref<16x256xf32, #tpu.memory_space<vmem>>, vector<1x256xf32>,
    %21 = vector.extract_strided_slice %14 {offsets = [0, 768], sizes = [1, 256], strides = [1, 1]} : vector<8x4096xf32> to vector<1x256xf32>
    %c3 = arith.constant 3 : index
    %c0_12 = arith.constant 0 : index
    %22 = vector.load %arg13[%c3, %c0_12] : memref<16x256xf32, #tpu.memory_space<vmem>>, vector<1x256xf32>
    tpu.vector_store %arg13[%c3, %c0_12], %21 {strides = array<i32>} : memref<16x256xf32, #tpu.memory_space<vmem>>, vector<1x256xf32>,
    %23 = vector.extract_strided_slice %14 {offsets = [0, 1024], sizes = [1, 256], strides = [1, 1]} : vector<8x4096xf32> to vector<1x256xf32>
    %c4 = arith.constant 4 : index
    %c0_13 = arith.constant 0 : index
    %24 = vector.load %arg13[%c4, %c0_13] : memref<16x256xf32, #tpu.memory_space<vmem>>, vector<1x256xf32>
    tpu.vector_store %arg13[%c4, %c0_13], %23 {strides = array<i32>} : memref<16x256xf32, #tpu.memory_space<vmem>>, vector<1x256xf32>,
    %25 = vector.extract_strided_slice %14 {offsets = [0, 1280], sizes = [1, 256], strides = [1, 1]} : vector<8x4096xf32> to vector<1x256xf32>
    %c5 = arith.constant 5 : index
    %c0_14 = arith.constant 0 : index
    %26 = vector.load %arg13[%c5, %c0_14] : memref<16x256xf32, #tpu.memory_space<vmem>>, vector<1x256xf32>
    tpu.vector_store %arg13[%c5, %c0_14], %25 {strides = array<i32>} : memref<16x256xf32, #tpu.memory_space<vmem>>, vector<1x256xf32>,
    %27 = vector.extract_strided_slice %14 {offsets = [0, 1536], sizes = [1, 256], strides = [1, 1]} : vector<8x4096xf32> to vector<1x256xf32>
    %c6 = arith.constant 6 : index
    %c0_15 = arith.constant 0 : index
    %28 = vector.load %arg13[%c6, %c0_15] : memref<16x256xf32, #tpu.memory_space<vmem>>, vector<1x256xf32>
    tpu.vector_store %arg13[%c6, %c0_15], %27 {strides = array<i32>} : memref<16x256xf32, #tpu.memory_space<vmem>>, vector<1x256xf32>,
    %29 = vector.extract_strided_slice %14 {offsets = [0, 1792], sizes = [1, 256], strides = [1, 1]} : vector<8x4096xf32> to vector<1x256xf32>
    %c7 = arith.constant 7 : index
    %c0_16 = arith.constant 0 : index
    %30 = vector.load %arg13[%c7, %c0_16] : memref<16x256xf32, #tpu.memory_space<vmem>>, vector<1x256xf32>
    tpu.vector_store %arg13[%c7, %c0_16], %29 {strides = array<i32>} : memref<16x256xf32, #tpu.memory_space<vmem>>, vector<1x256xf32>,
    %31 = vector.extract_strided_slice %14 {offsets = [0, 2048], sizes = [1, 256], strides = [1, 1]} : vector<8x4096xf32> to vector<1x256xf32>
    %c8 = arith.constant 8 : index
    %c0_17 = arith.constant 0 : index
    %32 = vector.load %arg13[%c8, %c0_17] : memref<16x256xf32, #tpu.memory_space<vmem>>, vector<1x256xf32>
    tpu.vector_store %arg13[%c8, %c0_17], %31 {strides = array<i32>} : memref<16x256xf32, #tpu.memory_space<vmem>>, vector<1x256xf32>,
    %33 = vector.extract_strided_slice %14 {offsets = [0, 2304], sizes = [1, 256], strides = [1, 1]} : vector<8x4096xf32> to vector<1x256xf32>
    %c9 = arith.constant 9 : index
    %c0_18 = arith.constant 0 : index
    %34 = vector.load %arg13[%c9, %c0_18] : memref<16x256xf32, #tpu.memory_space<vmem>>, vector<1x256xf32>
    tpu.vector_store %arg13[%c9, %c0_18], %33 {strides = array<i32>} : memref<16x256xf32, #tpu.memory_space<vmem>>, vector<1x256xf32>,
    %35 = vector.extract_strided_slice %14 {offsets = [0, 2560], sizes = [1, 256], strides = [1, 1]} : vector<8x4096xf32> to vector<1x256xf32>
    %c10 = arith.constant 10 : index
    %c0_19 = arith.constant 0 : index
    %36 = vector.load %arg13[%c10, %c0_19] : memref<16x256xf32, #tpu.memory_space<vmem>>, vector<1x256xf32>
    tpu.vector_store %arg13[%c10, %c0_19], %35 {strides = array<i32>} : memref<16x256xf32, #tpu.memory_space<vmem>>, vector<1x256xf32>,
    %37 = vector.extract_strided_slice %14 {offsets = [0, 2816], sizes = [1, 256], strides = [1, 1]} : vector<8x4096xf32> to vector<1x256xf32>
    %c11 = arith.constant 11 : index
    %c0_20 = arith.constant 0 : index
    %38 = vector.load %arg13[%c11, %c0_20] : memref<16x256xf32, #tpu.memory_space<vmem>>, vector<1x256xf32>
    tpu.vector_store %arg13[%c11, %c0_20], %37 {strides = array<i32>} : memref<16x256xf32, #tpu.memory_space<vmem>>, vector<1x256xf32>,
    %39 = vector.extract_strided_slice %14 {offsets = [0, 3072], sizes = [1, 256], strides = [1, 1]} : vector<8x4096xf32> to vector<1x256xf32>
    %c12 = arith.constant 12 : index
    %c0_21 = arith.constant 0 : index
    %40 = vector.load %arg13[%c12, %c0_21] : memref<16x256xf32, #tpu.memory_space<vmem>>, vector<1x256xf32>
    tpu.vector_store %arg13[%c12, %c0_21], %39 {strides = array<i32>} : memref<16x256xf32, #tpu.memory_space<vmem>>, vector<1x256xf32>,
    %41 = vector.extract_strided_slice %14 {offsets = [0, 3328], sizes = [1, 256], strides = [1, 1]} : vector<8x4096xf32> to vector<1x256xf32>
    %c13 = arith.constant 13 : index
    %c0_22 = arith.constant 0 : index
    %42 = vector.load %arg13[%c13, %c0_22] : memref<16x256xf32, #tpu.memory_space<vmem>>, vector<1x256xf32>
    tpu.vector_store %arg13[%c13, %c0_22], %41 {strides = array<i32>} : memref<16x256xf32, #tpu.memory_space<vmem>>, vector<1x256xf32>,
    %43 = vector.extract_strided_slice %14 {offsets = [0, 3584], sizes = [1, 256], strides = [1, 1]} : vector<8x4096xf32> to vector<1x256xf32>
    %c14 = arith.constant 14 : index
    %c0_23 = arith.constant 0 : index
    %44 = vector.load %arg13[%c14, %c0_23] : memref<16x256xf32, #tpu.memory_space<vmem>>, vector<1x256xf32>
    tpu.vector_store %arg13[%c14, %c0_23], %43 {strides = array<i32>} : memref<16x256xf32, #tpu.memory_space<vmem>>, vector<1x256xf32>,
    %45 = vector.extract_strided_slice %14 {offsets = [0, 3840], sizes = [1, 256], strides = [1, 1]} : vector<8x4096xf32> to vector<1x256xf32>
    %c15 = arith.constant 15 : index
    %c0_24 = arith.constant 0 : index
    %46 = vector.load %arg13[%c15, %c0_24] : memref<16x256xf32, #tpu.memory_space<vmem>>, vector<1x256xf32>
    tpu.vector_store %arg13[%c15, %c0_24], %45 {strides = array<i32>} : memref<16x256xf32, #tpu.memory_space<vmem>>, vector<1x256xf32>,
    %c0_25 = arith.constant 0 : index
    %c0_26 = arith.constant 0 : index
    %47 = vector.load %arg13[%c0_25, %c0_26] : memref<16x256xf32, #tpu.memory_space<vmem>>, vector<16x256xf32>
    %48 = arith.truncf %47 : vector<16x256xf32> to vector<16x256xbf16>
    %c0_27 = arith.constant 0 : index
    %c0_28 = arith.constant 0 : index
    %49 = vector.load %arg4[%c0_27, %c0_28] : memref<256x2048xbf16, #tpu.memory_space<vmem>>, vector<256x2048xbf16>
    %cst_29 = arith.constant dense<0.000000e+00> : vector<16x2048xf32>
    %50 = tpu.matmul %48, %49, %cst_29 {dimension_numbers = #tpu.dot_dimension_numbers<[1], [0], [0], [1], [0, 0, 1, 1], [], []>} : vector<16x256xbf16>, vector<256x2048xbf16>, vector<16x2048xf32> -> vector<16x2048xf32>
    %c0_30 = arith.constant 0 : index
    %c0_31 = arith.constant 0 : index
    %51 = vector.load %arg5[%c0_30, %c0_31] : memref<1x2048xf32, #tpu.memory_space<vmem>>, vector<1x2048xf32>
    %52 = vector.broadcast %51 : vector<1x2048xf32> to vector<16x2048xf32>
    %53 = arith.addf %50, %52 : vector<16x2048xf32>
    %cst_32 = arith.constant 0.000000e+00 : f32
    %54 = vector.broadcast %cst_32 : f32 to vector<16x2048xf32>
    %55 = arith.cmpf ogt, %53, %54 : vector<16x2048xf32>
    %cst_33 = arith.constant 2.000000e-01 : f32
    %56 = vector.broadcast %cst_33 : f32 to vector<16x2048xf32>
    %57 = arith.mulf %56, %53 : vector<16x2048xf32>
    %58 = arith.select %55, %53, %57 : vector<16x2048xi1>, vector<16x2048xf32>
    %59 = vector.extract_strided_slice %58 {offsets = [0, 0], sizes = [16, 128], strides = [1, 1]} : vector<16x2048xf32> to vector<16x128xf32>
    %c0_34 = arith.constant 0 : index
    %c0_35 = arith.constant 0 : index
    %60 = vector.load %arg14[%c0_34, %c0_35] : memref<256x128xf32, #tpu.memory_space<vmem>>, vector<16x128xf32>
    tpu.vector_store %arg14[%c0_34, %c0_35], %59 {strides = array<i32>} : memref<256x128xf32, #tpu.memory_space<vmem>>, vector<16x128xf32>,
    %61 = vector.extract_strided_slice %58 {offsets = [0, 128], sizes = [16, 128], strides = [1, 1]} : vector<16x2048xf32> to vector<16x128xf32>
    %c16 = arith.constant 16 : index
    %c0_36 = arith.constant 0 : index
    %62 = vector.load %arg14[%c16, %c0_36] : memref<256x128xf32, #tpu.memory_space<vmem>>, vector<16x128xf32>
    tpu.vector_store %arg14[%c16, %c0_36], %61 {strides = array<i32>} : memref<256x128xf32, #tpu.memory_space<vmem>>, vector<16x128xf32>,
    %63 = vector.extract_strided_slice %58 {offsets = [0, 256], sizes = [16, 128], strides = [1, 1]} : vector<16x2048xf32> to vector<16x128xf32>
    %c32 = arith.constant 32 : index
    %c0_37 = arith.constant 0 : index
    %64 = vector.load %arg14[%c32, %c0_37] : memref<256x128xf32, #tpu.memory_space<vmem>>, vector<16x128xf32>
    tpu.vector_store %arg14[%c32, %c0_37], %63 {strides = array<i32>} : memref<256x128xf32, #tpu.memory_space<vmem>>, vector<16x128xf32>,
    %65 = vector.extract_strided_slice %58 {offsets = [0, 384], sizes = [16, 128], strides = [1, 1]} : vector<16x2048xf32> to vector<16x128xf32>
    %c48 = arith.constant 48 : index
    %c0_38 = arith.constant 0 : index
    %66 = vector.load %arg14[%c48, %c0_38] : memref<256x128xf32, #tpu.memory_space<vmem>>, vector<16x128xf32>
    tpu.vector_store %arg14[%c48, %c0_38], %65 {strides = array<i32>} : memref<256x128xf32, #tpu.memory_space<vmem>>, vector<16x128xf32>,
    %67 = vector.extract_strided_slice %58 {offsets = [0, 512], sizes = [16, 128], strides = [1, 1]} : vector<16x2048xf32> to vector<16x128xf32>
    %c64 = arith.constant 64 : index
    %c0_39 = arith.constant 0 : index
    %68 = vector.load %arg14[%c64, %c0_39] : memref<256x128xf32, #tpu.memory_space<vmem>>, vector<16x128xf32>
    tpu.vector_store %arg14[%c64, %c0_39], %67 {strides = array<i32>} : memref<256x128xf32, #tpu.memory_space<vmem>>, vector<16x128xf32>,
    %69 = vector.extract_strided_slice %58 {offsets = [0, 640], sizes = [16, 128], strides = [1, 1]} : vector<16x2048xf32> to vector<16x128xf32>
    %c80 = arith.constant 80 : index
    %c0_40 = arith.constant 0 : index
    %70 = vector.load %arg14[%c80, %c0_40] : memref<256x128xf32, #tpu.memory_space<vmem>>, vector<16x128xf32>
    tpu.vector_store %arg14[%c80, %c0_40], %69 {strides = array<i32>} : memref<256x128xf32, #tpu.memory_space<vmem>>, vector<16x128xf32>,
    %71 = vector.extract_strided_slice %58 {offsets = [0, 768], sizes = [16, 128], strides = [1, 1]} : vector<16x2048xf32> to vector<16x128xf32>
    %c96 = arith.constant 96 : index
    %c0_41 = arith.constant 0 : index
    %72 = vector.load %arg14[%c96, %c0_41] : memref<256x128xf32, #tpu.memory_space<vmem>>, vector<16x128xf32>
    tpu.vector_store %arg14[%c96, %c0_41], %71 {strides = array<i32>} : memref<256x128xf32, #tpu.memory_space<vmem>>, vector<16x128xf32>,
    %73 = vector.extract_strided_slice %58 {offsets = [0, 896], sizes = [16, 128], strides = [1, 1]} : vector<16x2048xf32> to vector<16x128xf32>
    %c112 = arith.constant 112 : index
    %c0_42 = arith.constant 0 : index
    %74 = vector.load %arg14[%c112, %c0_42] : memref<256x128xf32, #tpu.memory_space<vmem>>, vector<16x128xf32>
    tpu.vector_store %arg14[%c112, %c0_42], %73 {strides = array<i32>} : memref<256x128xf32, #tpu.memory_space<vmem>>, vector<16x128xf32>,
    %75 = vector.extract_strided_slice %58 {offsets = [0, 1024], sizes = [16, 128], strides = [1, 1]} : vector<16x2048xf32> to vector<16x128xf32>
    %c128 = arith.constant 128 : index
    %c0_43 = arith.constant 0 : index
    %76 = vector.load %arg14[%c128, %c0_43] : memref<256x128xf32, #tpu.memory_space<vmem>>, vector<16x128xf32>
    tpu.vector_store %arg14[%c128, %c0_43], %75 {strides = array<i32>} : memref<256x128xf32, #tpu.memory_space<vmem>>, vector<16x128xf32>,
    %77 = vector.extract_strided_slice %58 {offsets = [0, 1152], sizes = [16, 128], strides = [1, 1]} : vector<16x2048xf32> to vector<16x128xf32>
    %c144 = arith.constant 144 : index
    %c0_44 = arith.constant 0 : index
    %78 = vector.load %arg14[%c144, %c0_44] : memref<256x128xf32, #tpu.memory_space<vmem>>, vector<16x128xf32>
    tpu.vector_store %arg14[%c144, %c0_44], %77 {strides = array<i32>} : memref<256x128xf32, #tpu.memory_space<vmem>>, vector<16x128xf32>,
    %79 = vector.extract_strided_slice %58 {offsets = [0, 1280], sizes = [16, 128], strides = [1, 1]} : vector<16x2048xf32> to vector<16x128xf32>
    %c160 = arith.constant 160 : index
    %c0_45 = arith.constant 0 : index
    %80 = vector.load %arg14[%c160, %c0_45] : memref<256x128xf32, #tpu.memory_space<vmem>>, vector<16x128xf32>
    tpu.vector_store %arg14[%c160, %c0_45], %79 {strides = array<i32>} : memref<256x128xf32, #tpu.memory_space<vmem>>, vector<16x128xf32>,
    %81 = vector.extract_strided_slice %58 {offsets = [0, 1408], sizes = [16, 128], strides = [1, 1]} : vector<16x2048xf32> to vector<16x128xf32>
    %c176 = arith.constant 176 : index
    %c0_46 = arith.constant 0 : index
    %82 = vector.load %arg14[%c176, %c0_46] : memref<256x128xf32, #tpu.memory_space<vmem>>, vector<16x128xf32>
    tpu.vector_store %arg14[%c176, %c0_46], %81 {strides = array<i32>} : memref<256x128xf32, #tpu.memory_space<vmem>>, vector<16x128xf32>,
    %83 = vector.extract_strided_slice %58 {offsets = [0, 1536], sizes = [16, 128], strides = [1, 1]} : vector<16x2048xf32> to vector<16x128xf32>
    %c192 = arith.constant 192 : index
    %c0_47 = arith.constant 0 : index
    %84 = vector.load %arg14[%c192, %c0_47] : memref<256x128xf32, #tpu.memory_space<vmem>>, vector<16x128xf32>
    tpu.vector_store %arg14[%c192, %c0_47], %83 {strides = array<i32>} : memref<256x128xf32, #tpu.memory_space<vmem>>, vector<16x128xf32>,
    %85 = vector.extract_strided_slice %58 {offsets = [0, 1664], sizes = [16, 128], strides = [1, 1]} : vector<16x2048xf32> to vector<16x128xf32>
    %c208 = arith.constant 208 : index
    %c0_48 = arith.constant 0 : index
    %86 = vector.load %arg14[%c208, %c0_48] : memref<256x128xf32, #tpu.memory_space<vmem>>, vector<16x128xf32>
    tpu.vector_store %arg14[%c208, %c0_48], %85 {strides = array<i32>} : memref<256x128xf32, #tpu.memory_space<vmem>>, vector<16x128xf32>,
    %87 = vector.extract_strided_slice %58 {offsets = [0, 1792], sizes = [16, 128], strides = [1, 1]} : vector<16x2048xf32> to vector<16x128xf32>
    %c224 = arith.constant 224 : index
    %c0_49 = arith.constant 0 : index
    %88 = vector.load %arg14[%c224, %c0_49] : memref<256x128xf32, #tpu.memory_space<vmem>>, vector<16x128xf32>
    tpu.vector_store %arg14[%c224, %c0_49], %87 {strides = array<i32>} : memref<256x128xf32, #tpu.memory_space<vmem>>, vector<16x128xf32>,
    %89 = vector.extract_strided_slice %58 {offsets = [0, 1920], sizes = [16, 128], strides = [1, 1]} : vector<16x2048xf32> to vector<16x128xf32>
    %c240 = arith.constant 240 : index
    %c0_50 = arith.constant 0 : index
    %90 = vector.load %arg14[%c240, %c0_50] : memref<256x128xf32, #tpu.memory_space<vmem>>, vector<16x128xf32>
    tpu.vector_store %arg14[%c240, %c0_50], %89 {strides = array<i32>} : memref<256x128xf32, #tpu.memory_space<vmem>>, vector<16x128xf32>,
    %c0_51 = arith.constant 0 : index
    %c0_52 = arith.constant 0 : index
    %91 = vector.load %arg14[%c0_51, %c0_52] : memref<256x128xf32, #tpu.memory_space<vmem>>, vector<256x128xf32>
    %92 = arith.truncf %91 : vector<256x128xf32> to vector<256x128xbf16>
    %c0_53 = arith.constant 0 : index
    %c0_54 = arith.constant 0 : index
    %93 = vector.load %arg6[%c0_53, %c0_54] : memref<128x256xbf16, #tpu.memory_space<vmem>>, vector<128x256xbf16>
    %cst_55 = arith.constant dense<0.000000e+00> : vector<256x256xf32>
    %94 = tpu.matmul %92, %93, %cst_55 {dimension_numbers = #tpu.dot_dimension_numbers<[1], [0], [0], [1], [0, 0, 1, 1], [], []>} : vector<256x128xbf16>, vector<128x256xbf16>, vector<256x256xf32> -> vector<256x256xf32>
    %c0_56 = arith.constant 0 : index
    %c0_57 = arith.constant 0 : index
    %95 = vector.load %arg7[%c0_56, %c0_57] : memref<1x256xf32, #tpu.memory_space<vmem>>, vector<1x256xf32>
    %96 = vector.broadcast %95 : vector<1x256xf32> to vector<256x256xf32>
    %97 = arith.addf %94, %96 : vector<256x256xf32>
    %cst_58 = arith.constant 0.000000e+00 : f32
    %98 = vector.broadcast %cst_58 : f32 to vector<256x256xf32>
    %99 = arith.cmpf ogt, %97, %98 : vector<256x256xf32>
    %cst_59 = arith.constant 2.000000e-01 : f32
    %100 = vector.broadcast %cst_59 : f32 to vector<256x256xf32>
    %101 = arith.mulf %100, %97 : vector<256x256xf32>
    %102 = arith.select %99, %97, %101 : vector<256x256xi1>, vector<256x256xf32>
    %103 = arith.truncf %102 : vector<256x256xf32> to vector<256x256xbf16>
    %c0_60 = arith.constant 0 : index
    %c0_61 = arith.constant 0 : index
    %104 = vector.load %arg8[%c0_60, %c0_61] : memref<256x512xbf16, #tpu.memory_space<vmem>>, vector<256x512xbf16>
    %cst_62 = arith.constant dense<0.000000e+00> : vector<256x512xf32>
    %105 = tpu.matmul %103, %104, %cst_62 {dimension_numbers = #tpu.dot_dimension_numbers<[1], [0], [0], [1], [0, 0, 1, 1], [], []>} : vector<256x256xbf16>, vector<256x512xbf16>, vector<256x512xf32> -> vector<256x512xf32>
    %c0_63 = arith.constant 0 : index
    %c0_64 = arith.constant 0 : index
    %106 = vector.load %arg9[%c0_63, %c0_64] : memref<1x512xf32, #tpu.memory_space<vmem>>, vector<1x512xf32>
    %107 = vector.broadcast %106 : vector<1x512xf32> to vector<256x512xf32>
    %108 = arith.addf %105, %107 : vector<256x512xf32>
    %cst_65 = arith.constant 0.000000e+00 : f32
    %109 = vector.broadcast %cst_65 : f32 to vector<256x512xf32>
    %110 = arith.cmpf ogt, %108, %109 : vector<256x512xf32>
    %cst_66 = arith.constant 2.000000e-01 : f32
    %111 = vector.broadcast %cst_66 : f32 to vector<256x512xf32>
    %112 = arith.mulf %111, %108 : vector<256x512xf32>
    %113 = arith.select %110, %108, %112 : vector<256x512xi1>, vector<256x512xf32>
    %114 = arith.truncf %113 : vector<256x512xf32> to vector<256x512xbf16>
    %c0_67 = arith.constant 0 : index
    %c0_68 = arith.constant 0 : index
    %115 = vector.load %arg10[%c0_67, %c0_68] : memref<512x128xbf16, #tpu.memory_space<vmem>>, vector<512x128xbf16>
    %cst_69 = arith.constant dense<0.000000e+00> : vector<256x128xf32>
    %116 = tpu.matmul %114, %115, %cst_69 {dimension_numbers = #tpu.dot_dimension_numbers<[1], [0], [0], [1], [0, 0, 1, 1], [], []>} : vector<256x512xbf16>, vector<512x128xbf16>, vector<256x128xf32> -> vector<256x128xf32>
    %c0_70 = arith.constant 0 : index
    %c0_71 = arith.constant 0 : index
    %117 = vector.load %arg11[%c0_70, %c0_71] : memref<1x128xf32, #tpu.memory_space<vmem>>, vector<1x128xf32>
    %118 = vector.broadcast %117 : vector<1x128xf32> to vector<256x128xf32>
    %119 = arith.addf %116, %118 : vector<256x128xf32>
    %120 = arith.negf %119 : vector<256x128xf32>
    %121 = math.exp %120 : vector<256x128xf32>
    %cst_72 = arith.constant 1.000000e+00 : f32
    %122 = vector.broadcast %cst_72 : f32 to vector<256x128xf32>
    %123 = arith.addf %122, %121 : vector<256x128xf32>
    %124 = arith.divf %122, %123 : vector<256x128xf32>
    %c0_73 = arith.constant 0 : index
    %c0_74 = arith.constant 0 : index
    %125 = vector.load %arg12[%c0_73, %c0_74] : memref<256x128xf32, #tpu.memory_space<vmem>>, vector<256x128xf32>
    tpu.vector_store %arg12[%c0_73, %c0_74], %124 {strides = array<i32>} : memref<256x128xf32, #tpu.memory_space<vmem>>, vector<256x128xf32>,
    return
  }
  func.func @transform_0(%arg0: i32) -> (i32, i32, i32) {
    %c0_i32 = arith.constant 0 : i32
    %c0_i32_0 = arith.constant 0 : i32
    %c0_i32_1 = arith.constant 0 : i32
    return %arg0, %c0_i32, %c0_i32_0 : i32, i32, i32
  }
  func.func @transform_1(%arg0: i32) -> (i32, i32) {
    %c0_i32 = arith.constant 0 : i32
    %c0_i32_0 = arith.constant 0 : i32
    %c0_i32_1 = arith.constant 0 : i32
    return %c0_i32, %c0_i32_0 : i32, i32
  }
  func.func @transform_2(%arg0: i32) -> (i32, i32) {
    %c0_i32 = arith.constant 0 : i32
    %c0_i32_0 = arith.constant 0 : i32
    %c0_i32_1 = arith.constant 0 : i32
    return %c0_i32, %c0_i32_0 : i32, i32
  }
  func.func @transform_3(%arg0: i32) -> (i32, i32) {
    %c0_i32 = arith.constant 0 : i32
    %c0_i32_0 = arith.constant 0 : i32
    %c0_i32_1 = arith.constant 0 : i32
    return %c0_i32, %c0_i32_0 : i32, i32
  }
  func.func @transform_4(%arg0: i32) -> (i32, i32) {
    %c0_i32 = arith.constant 0 : i32
    %c0_i32_0 = arith.constant 0 : i32
    %c0_i32_1 = arith.constant 0 : i32
    return %c0_i32, %c0_i32_0 : i32, i32
  }
  func.func @transform_5(%arg0: i32) -> (i32, i32) {
    %c0_i32 = arith.constant 0 : i32
    %c0_i32_0 = arith.constant 0 : i32
    %c0_i32_1 = arith.constant 0 : i32
    return %c0_i32, %c0_i32_0 : i32, i32
  }
  func.func @transform_6(%arg0: i32) -> (i32, i32) {
    %c0_i32 = arith.constant 0 : i32
    %c0_i32_0 = arith.constant 0 : i32
    %c0_i32_1 = arith.constant 0 : i32
    return %c0_i32, %c0_i32_0 : i32, i32
  }
  func.func @transform_7(%arg0: i32) -> (i32, i32) {
    %c0_i32 = arith.constant 0 : i32
    %c0_i32_0 = arith.constant 0 : i32
    %c0_i32_1 = arith.constant 0 : i32
    return %c0_i32, %c0_i32_0 : i32, i32
  }
  func.func @transform_8(%arg0: i32) -> (i32, i32) {
    %c0_i32 = arith.constant 0 : i32
    %c0_i32_0 = arith.constant 0 : i32
    %c0_i32_1 = arith.constant 0 : i32
    return %c0_i32, %c0_i32_0 : i32, i32
  }
  func.func @transform_9(%arg0: i32) -> (i32, i32) {
    %c0_i32 = arith.constant 0 : i32
    %c0_i32_0 = arith.constant 0 : i32
    %c0_i32_1 = arith.constant 0 : i32
    return %c0_i32, %c0_i32_0 : i32, i32
  }
  func.func @transform_10(%arg0: i32) -> (i32, i32) {
    %c0_i32 = arith.constant 0 : i32
    %c0_i32_0 = arith.constant 0 : i32
    %c0_i32_1 = arith.constant 0 : i32
    return %c0_i32, %c0_i32_0 : i32, i32
  }
  func.func @transform_11(%arg0: i32) -> (i32, i32) {
    %c0_i32 = arith.constant 0 : i32
    %c0_i32_0 = arith.constant 0 : i32
    return %arg0, %c0_i32 : i32, i32
  }
}

</mosaic_0001>

<llo_original>
// kernel: generator_forward.1
$region0: #{generator_forward.1}
  #allocation0 [shape = 'u32[]', space=smem, size = 0x4, offset = 0x4, fixed_abs, tag = 'smem constant byte address 0x4 - core index']
  #allocation1 [shape = 'u32[72,128]{1,0:T(1,128)}', space=vmem, size = 0x9000, scoped, tag = 'internal scratch']
  #allocation2 [shape = 'f32[16,256]{1,0:T(8,128)}', space=vmem, size = 0x4000, scoped, tag = 'scratch operand']
  #allocation3 [shape = 'f32[256,128]{1,0:T(8,128)}', space=vmem, size = 0x20000, scoped, tag = 'scratch operand']
  %s0 = inlined_call_operand.hbm [shape: f32[2,1,64], index: 0, kind: input, shape index: {}]
  %s1 = inlined_call_operand.hbm [shape: bf16[64,4096], index: 1, kind: input, shape index: {}]
  %s2 = inlined_call_operand.hbm [shape: f32[1,4096], index: 2, kind: input, shape index: {}]
  %s3 = inlined_call_operand.hbm [shape: bf16[256,2048], index: 3, kind: input, shape index: {}]
  %s4 = inlined_call_operand.hbm [shape: f32[1,2048], index: 4, kind: input, shape index: {}]
  %s5 = inlined_call_operand.hbm [shape: bf16[128,256], index: 5, kind: input, shape index: {}]
  %s6 = inlined_call_operand.hbm [shape: f32[1,256], index: 6, kind: input, shape index: {}]
  %s7 = inlined_call_operand.hbm [shape: bf16[256,512], index: 7, kind: input, shape index: {}]
  %s8 = inlined_call_operand.hbm [shape: f32[1,512], index: 8, kind: input, shape index: {}]
  %s9 = inlined_call_operand.hbm [shape: bf16[512,128], index: 9, kind: input, shape index: {}]
  %s10 = inlined_call_operand.hbm [shape: f32[1,128], index: 10, kind: input, shape index: {}]
  %s11 = inlined_call_operand.vmem [shape: f32[512,128], index: 11, kind: output, shape index: {}]
  %s12 = sld [smem:[#allocation0]]
  $region121: #{generator_forward.1} parent=0
    _
  %s14 = ssub.s32 1, %s12
  %s15 = scalar_select 0, %s14, %s12
  $region1: #{generator_forward.1} parent=0
    #allocation4 [shape = 'u8[1024]{0}', space=vmem, size = 0x400, scoped, tag = 'input window, operand 0']
    #allocation5 [shape = 's32[2]{0}', space=sflag, size = 0x8, scoped, tag = 'scoped memory for generator_forward.1']
    #allocation6 [shape = 'u8[524288]{0}', space=vmem, size = 0x80000, scoped, tag = 'input window, operand 1, single buffered']
    #allocation7 [shape = 's32[1]{0}', space=sflag, size = 0x4, scoped, tag = 'scoped memory for generator_forward.1']
    #allocation8 [shape = 'u8[16384]{0}', space=vmem, size = 0x4000, scoped, tag = 'input window, operand 2, single buffered']
    #allocation9 [shape = 'u8[1048576]{0}', space=vmem, size = 0x100000, scoped, tag = 'input window, operand 3, single buffered']
    #allocation10 [shape = 's32[1]{0}', space=sflag, size = 0x4, scoped, tag = 'scoped memory for generator_forward.1']
    #allocation11 [shape = 'u8[8192]{0}', space=vmem, size = 0x2000, scoped, tag = 'input window, operand 4, single buffered']
    #allocation12 [shape = 'u8[65536]{0}', space=vmem, size = 0x10000, scoped, tag = 'input window, operand 5, single buffered']
    #allocation13 [shape = 's32[1]{0}', space=sflag, size = 0x4, scoped, tag = 'scoped memory for generator_forward.1']
    #allocation14 [shape = 'u8[1024]{0}', space=vmem, size = 0x400, scoped, tag = 'input window, operand 6, single buffered']
    #allocation15 [shape = 'u8[262144]{0}', space=vmem, size = 0x40000, scoped, tag = 'input window, operand 7, single buffered']
    #allocation16 [shape = 's32[1]{0}', space=sflag, size = 0x4, scoped, tag = 'scoped memory for generator_forward.1']
    #allocation17 [shape = 'u8[2048]{0}', space=vmem, size = 0x800, scoped, tag = 'input window, operand 8, single buffered']
    #allocation18 [shape = 'u8[131072]{0}', space=vmem, size = 0x20000, scoped, tag = 'input window, operand 9, single buffered']
    #allocation19 [shape = 's32[1]{0}', space=sflag, size = 0x4, scoped, tag = 'scoped memory for generator_forward.1']
    #allocation20 [shape = 'u8[512]{0}', space=vmem, size = 0x400, scoped, tag = 'input window, operand 10, single buffered']
    %16 = vsyncpa [#allocation5], 0
    %s17 = scalar_lea.sflag [#allocation5], 1
    %18 = vsyncpa %s17, 0
    %19 = vsyncpa [#allocation7], 0
    %20 = vsyncpa [#allocation10], 0
    %21 = vsyncpa [#allocation13], 0
    %22 = vsyncpa [#allocation16], 0
    %23 = vsyncpa [#allocation19], 0
    loop: start=0, step=1, limit=4
    $region2: #{generator_forward.1} parent=1 // loop_pre_header
      _
    $region3: #{generator_forward.1} parent=1 // loop_header
      %s25 = sphi 0, %s29
      %p26 = scmp.ge.s32.totalorder %s25, 4
      %s35 = sphi 0, %s37
      %s38 = sphi 0, %s35
      %s39 = sphi 0, %s38
      %s55 = sphi 0, %s39
      %s59 = sphi 0, %s59
      %s61 = sphi 0, %s59
      %s62 = sphi 0, %s61
      %s76 = sphi 0, %s62
      %s80 = sphi 0, %s80
      %s82 = sphi 0, %s80
      %s83 = sphi 0, %s82
      %s97 = sphi 0, %s83
      %s101 = sphi 0, %s101
      %s103 = sphi 0, %s101
      %s104 = sphi 0, %s103
      %s118 = sphi 0, %s104
      %s122 = sphi 0, %s122
      %s124 = sphi 0, %s122
      %s125 = sphi 0, %s124
      %s139 = sphi 0, %s125
      %s143 = sphi 0, %s143
      %s145 = sphi 0, %s143
      %s146 = sphi 0, %s145
      %s160 = sphi 0, %s146
      %s164 = sphi 0, %s164
      %s166 = sphi 0, %s164
      %s167 = sphi 0, %s166
      %s181 = sphi 0, %s167
      %s185 = sphi 0, %s185
      %s187 = sphi 0, %s185
      %s188 = sphi 0, %s187
      %s202 = sphi 0, %s188
      %s206 = sphi 0, %s206
      %s208 = sphi 0, %s206
      %s209 = sphi 0, %s208
      %s223 = sphi 0, %s209
      %s227 = sphi 0, %s227
      %s229 = sphi 0, %s227
      %s230 = sphi 0, %s229
      %s244 = sphi 0, %s230
      %s248 = sphi 0, %s248
      %s250 = sphi 0, %s248
      %s251 = sphi 0, %s250
      %s265 = sphi 0, %s251
      %s271 = sphi 0, %s273
      %s274 = sphi 0, %s271
      %s275 = sphi 0, %s274
      %s291 = sphi 0, %s275
    $region4: #{generator_forward.1} parent=1 // loop_header_branch
      %28 = sbr.rel (%p26) target = $region8
    $region5: #{generator_forward.1} parent=1 // loop_body
      %s30 = ssub.s32 %s25, 1
      %s31 = ssub.s32 %s25, 2
      %s32 = sadd.s32 %s25, 1
      %s33 = ssub.s32 %s25, %s32
      %p34 = scmp.eq.s32.totalorder %s33, 0
      %s36 = sadd.s32 %s35, 1
      %s37 = scalar_select %p34, %s35, %s36
      %p40 = pneg %p34
      %p41 = scmp.eq.s32.totalorder %s25, 1
      %p42 = por %p40, %p41
      %p43 = scmp.ne.s32.totalorder %s35, %s38
      %p44 = scmp.eq.s32.totalorder %s25, 0
      %p45 = por %p43, %p44
      %p46 = scmp.ne.s32.totalorder %s35, %s38
      %p47 = scmp.eq.s32.totalorder %s30, 1
      %p48 = por %p46, %p47
      %p49 = scmp.ne.s32.totalorder %s38, %s39
      %p50 = scmp.eq.s32.totalorder %s30, 0
      %p51 = por %p49, %p50
      %p52 = scmp.ne.s32.totalorder %s38, %s39
      %p53 = scmp.eq.s32.totalorder %s31, 1
      %p54 = por %p52, %p53
      %p56 = scmp.ne.s32.totalorder %s39, %s55
      %p57 = scmp.eq.s32.totalorder %s31, 0
      %p58 = por %p56, %p57
      %s60 = sadd.s32 %s59, 1
      %p63 = scmp.eq.s32.totalorder %s25, 1
      %p64 = scmp.ne.s32.totalorder %s59, %s61
      %p65 = scmp.eq.s32.totalorder %s25, 0
      %p66 = por %p64, %p65
      %p67 = scmp.ne.s32.totalorder %s59, %s61
      %p68 = scmp.eq.s32.totalorder %s30, 1
      %p69 = por %p67, %p68
      %p70 = scmp.ne.s32.totalorder %s61, %s62
      %p71 = scmp.eq.s32.totalorder %s30, 0
      %p72 = por %p70, %p71
      %p73 = scmp.ne.s32.totalorder %s61, %s62
      %p74 = scmp.eq.s32.totalorder %s31, 1
      %p75 = por %p73, %p74
      %p77 = scmp.ne.s32.totalorder %s62, %s76
      %p78 = scmp.eq.s32.totalorder %s31, 0
      %p79 = por %p77, %p78
      %s81 = sadd.s32 %s80, 1
      %p84 = scmp.eq.s32.totalorder %s25, 1
      %p85 = scmp.ne.s32.totalorder %s80, %s82
      %p86 = scmp.eq.s32.totalorder %s25, 0
      %p87 = por %p85, %p86
      %p88 = scmp.ne.s32.totalorder %s80, %s82
      %p89 = scmp.eq.s32.totalorder %s30, 1
      %p90 = por %p88, %p89
      %p91 = scmp.ne.s32.totalorder %s82, %s83
      %p92 = scmp.eq.s32.totalorder %s30, 0
      %p93 = por %p91, %p92
      %p94 = scmp.ne.s32.totalorder %s82, %s83
      %p95 = scmp.eq.s32.totalorder %s31, 1
      %p96 = por %p94, %p95
      %p98 = scmp.ne.s32.totalorder %s83, %s97
      %p99 = scmp.eq.s32.totalorder %s31, 0
      %p100 = por %p98, %p99
      %s102 = sadd.s32 %s101, 1
      %p105 = scmp.eq.s32.totalorder %s25, 1
      %p106 = scmp.ne.s32.totalorder %s101, %s103
      %p107 = scmp.eq.s32.totalorder %s25, 0
      %p108 = por %p106, %p107
      %p109 = scmp.ne.s32.totalorder %s101, %s103
      %p110 = scmp.eq.s32.totalorder %s30, 1
      %p111 = por %p109, %p110
      %p112 = scmp.ne.s32.totalorder %s103, %s104
      %p113 = scmp.eq.s32.totalorder %s30, 0
      %p114 = por %p112, %p113
      %p115 = scmp.ne.s32.totalorder %s103, %s104
      %p116 = scmp.eq.s32.totalorder %s31, 1
      %p117 = por %p115, %p116
      %p119 = scmp.ne.s32.totalorder %s104, %s118
      %p120 = scmp.eq.s32.totalorder %s31, 0
      %p121 = por %p119, %p120
      %s123 = sadd.s32 %s122, 1
      %p126 = scmp.eq.s32.totalorder %s25, 1
      %p127 = scmp.ne.s32.totalorder %s122, %s124
      %p128 = scmp.eq.s32.totalorder %s25, 0
      %p129 = por %p127, %p128
      %p130 = scmp.ne.s32.totalorder %s122, %s124
      %p131 = scmp.eq.s32.totalorder %s30, 1
      %p132 = por %p130, %p131
      %p133 = scmp.ne.s32.totalorder %s124, %s125
      %p134 = scmp.eq.s32.totalorder %s30, 0
      %p135 = por %p133, %p134
      %p136 = scmp.ne.s32.totalorder %s124, %s125
      %p137 = scmp.eq.s32.totalorder %s31, 1
      %p138 = por %p136, %p137
      %p140 = scmp.ne.s32.totalorder %s125, %s139
      %p141 = scmp.eq.s32.totalorder %s31, 0
      %p142 = por %p140, %p141
      %s144 = sadd.s32 %s143, 1
      %p147 = scmp.eq.s32.totalorder %s25, 1
      %p148 = scmp.ne.s32.totalorder %s143, %s145
      %p149 = scmp.eq.s32.totalorder %s25, 0
      %p150 = por %p148, %p149
      %p151 = scmp.ne.s32.totalorder %s143, %s145
      %p152 = scmp.eq.s32.totalorder %s30, 1
      %p153 = por %p151, %p152
      %p154 = scmp.ne.s32.totalorder %s145, %s146
      %p155 = scmp.eq.s32.totalorder %s30, 0
      %p156 = por %p154, %p155
      %p157 = scmp.ne.s32.totalorder %s145, %s146
      %p158 = scmp.eq.s32.totalorder %s31, 1
      %p159 = por %p157, %p158
      %p161 = scmp.ne.s32.totalorder %s146, %s160
      %p162 = scmp.eq.s32.totalorder %s31, 0
      %p163 = por %p161, %p162
      %s165 = sadd.s32 %s164, 1
      %p168 = scmp.eq.s32.totalorder %s25, 1
      %p169 = scmp.ne.s32.totalorder %s164, %s166
      %p170 = scmp.eq.s32.totalorder %s25, 0
      %p171 = por %p169, %p170
      %p172 = scmp.ne.s32.totalorder %s164, %s166
      %p173 = scmp.eq.s32.totalorder %s30, 1
      %p174 = por %p172, %p173
      %p175 = scmp.ne.s32.totalorder %s166, %s167
      %p176 = scmp.eq.s32.totalorder %s30, 0
      %p177 = por %p175, %p176
      %p178 = scmp.ne.s32.totalorder %s166, %s167
      %p179 = scmp.eq.s32.totalorder %s31, 1
      %p180 = por %p178, %p179
      %p182 = scmp.ne.s32.totalorder %s167, %s181
      %p183 = scmp.eq.s32.totalorder %s31, 0
      %p184 = por %p182, %p183
      %s186 = sadd.s32 %s185, 1
      %p189 = scmp.eq.s32.totalorder %s25, 1
      %p190 = scmp.ne.s32.totalorder %s185, %s187
      %p191 = scmp.eq.s32.totalorder %s25, 0
      %p192 = por %p190, %p191
      %p193 = scmp.ne.s32.totalorder %s185, %s187
      %p194 = scmp.eq.s32.totalorder %s30, 1
      %p195 = por %p193, %p194
      %p196 = scmp.ne.s32.totalorder %s187, %s188
      %p197 = scmp.eq.s32.totalorder %s30, 0
      %p198 = por %p196, %p197
      %p199 = scmp.ne.s32.totalorder %s187, %s188
      %p200 = scmp.eq.s32.totalorder %s31, 1
      %p201 = por %p199, %p200
      %p203 = scmp.ne.s32.totalorder %s188, %s202
      %p204 = scmp.eq.s32.totalorder %s31, 0
      %p205 = por %p203, %p204
      %s207 = sadd.s32 %s206, 1
      %p210 = scmp.eq.s32.totalorder %s25, 1
      %p211 = scmp.ne.s32.totalorder %s206, %s208
      %p212 = scmp.eq.s32.totalorder %s25, 0
      %p213 = por %p211, %p212
      %p214 = scmp.ne.s32.totalorder %s206, %s208
      %p215 = scmp.eq.s32.totalorder %s30, 1
      %p216 = por %p214, %p215
      %p217 = scmp.ne.s32.totalorder %s208, %s209
      %p218 = scmp.eq.s32.totalorder %s30, 0
      %p219 = por %p217, %p218
      %p220 = scmp.ne.s32.totalorder %s208, %s209
      %p221 = scmp.eq.s32.totalorder %s31, 1
      %p222 = por %p220, %p221
      %p224 = scmp.ne.s32.totalorder %s209, %s223
      %p225 = scmp.eq.s32.totalorder %s31, 0
      %p226 = por %p224, %p225
      %s228 = sadd.s32 %s227, 1
      %p231 = scmp.eq.s32.totalorder %s25, 1
      %p232 = scmp.ne.s32.totalorder %s227, %s229
      %p233 = scmp.eq.s32.totalorder %s25, 0
      %p234 = por %p232, %p233
      %p235 = scmp.ne.s32.totalorder %s227, %s229
      %p236 = scmp.eq.s32.totalorder %s30, 1
      %p237 = por %p235, %p236
      %p238 = scmp.ne.s32.totalorder %s229, %s230
      %p239 = scmp.eq.s32.totalorder %s30, 0
      %p240 = por %p238, %p239
      %p241 = scmp.ne.s32.totalorder %s229, %s230
      %p242 = scmp.eq.s32.totalorder %s31, 1
      %p243 = por %p241, %p242
      %p245 = scmp.ne.s32.totalorder %s230, %s244
      %p246 = scmp.eq.s32.totalorder %s31, 0
      %p247 = por %p245, %p246
      %s249 = sadd.s32 %s248, 1
      %p252 = scmp.eq.s32.totalorder %s25, 1
      %p253 = scmp.ne.s32.totalorder %s248, %s250
      %p254 = scmp.eq.s32.totalorder %s25, 0
      %p255 = por %p253, %p254
      %p256 = scmp.ne.s32.totalorder %s248, %s250
      %p257 = scmp.eq.s32.totalorder %s30, 1
      %p258 = por %p256, %p257
      %p259 = scmp.ne.s32.totalorder %s250, %s251
      %p260 = scmp.eq.s32.totalorder %s30, 0
      %p261 = por %p259, %p260
      %p262 = scmp.ne.s32.totalorder %s250, %s251
      %p263 = scmp.eq.s32.totalorder %s31, 1
      %p264 = por %p262, %p263
      %p266 = scmp.ne.s32.totalorder %s251, %s265
      %p267 = scmp.eq.s32.totalorder %s31, 0
      %p268 = por %p266, %p267
      %s269 = ssub.s32 %s25, %s32
      %p270 = scmp.eq.s32.totalorder %s269, 0
      %s272 = sadd.s32 %s271, 1
      %s273 = scalar_select %p270, %s271, %s272
      %p276 = pneg %p270
      %p277 = scmp.eq.s32.totalorder %s25, 1
      %p278 = por %p276, %p277
      %p279 = scmp.ne.s32.totalorder %s271, %s274
      %p280 = scmp.eq.s32.totalorder %s25, 0
      %p281 = por %p279, %p280
      %p282 = scmp.ne.s32.totalorder %s271, %s274
      %p283 = scmp.eq.s32.totalorder %s30, 1
      %p284 = por %p282, %p283
      %p285 = scmp.ne.s32.totalorder %s274, %s275
      %p286 = scmp.eq.s32.totalorder %s30, 0
      %p287 = por %p285, %p286
      %p288 = scmp.ne.s32.totalorder %s274, %s275
      %p289 = scmp.eq.s32.totalorder %s31, 1
      %p290 = por %p288, %p289
      %p292 = scmp.ne.s32.totalorder %s275, %s291
      %p293 = scmp.eq.s32.totalorder %s31, 0
      %p294 = por %p292, %p293
      %p295 = scmp.le.s32.totalorder 1, %s25
      %p296 = scmp.lt.s32.totalorder %s25, 3
      %p297 = pnand %p295, %p296
      %p298 = pneg %p297
      // Predicated region
      $region9: #{generator_forward.1} parent=5 // pred_check
        _
      $region10: #{generator_forward.1} parent=5 // pred_check_branch
        %300 = sbr.rel (%p297) target = $region12
      $region11: #{generator_forward.1} parent=5 // pred_region
        %s301 = ssub.s32 %s25, 1
        // Predicated region
        $region13: #{generator_forward.1} parent=11 // pred_check
          %p302 = pneg %p72
        $region14: #{generator_forward.1} parent=11 // pred_check_branch
          %304 = sbr.rel (%p302) target = $region16
        $region15: #{generator_forward.1} parent=11 // pred_region
          %306 = vsyncadd [#allocation7], 0
          %s307 = sshll.u32 %s1, 4
          %s308 = int_to_ptr.hbm [resolvable:$true] %s307
          %s309 = sshll.u32 [#allocation6], 4
          %s310 = int_to_ptr.vmem [resolvable:$true] %s309
          %315 = dma.hbm_to_vmem [thread:$0]  %s308, 16384, %s310, [#allocation7], 2048, 2048, 128
        $region16: #{generator_forward.1} parent=11 // pred_fallthru
          _
        // Predicated region
        $region17: #{generator_forward.1} parent=11 // pred_check
          %p316 = pneg %p93
        $region18: #{generator_forward.1} parent=11 // pred_check_branch
          %318 = sbr.rel (%p316) target = $region20
        $region19: #{generator_forward.1} parent=11 // pred_region
          %320 = vsyncadd [#allocation7], 0
          %s322 = sshll.u32 %s2, 4
          %s323 = int_to_ptr.hbm [resolvable:$true] %s322
          %s324 = sshll.u32 [#allocation8], 4
          %s325 = int_to_ptr.vmem [resolvable:$true] %s324
          %327 = dma.hbm_to_vmem [thread:$0]  %s323, 512, %s325, [#allocation7]
        $region20: #{generator_forward.1} parent=11 // pred_fallthru
          _
        // Predicated region
        $region21: #{generator_forward.1} parent=11 // pred_check
          %p328 = pneg %p114
        $region22: #{generator_forward.1} parent=11 // pred_check_branch
          %330 = sbr.rel (%p328) target = $region24
        $region23: #{generator_forward.1} parent=11 // pred_region
          %332 = vsyncadd [#allocation10], 0
          %s333 = sshll.u32 %s3, 4
          %s334 = int_to_ptr.hbm [resolvable:$true] %s333
          %s335 = sshll.u32 [#allocation9], 4
          %s336 = int_to_ptr.vmem [resolvable:$true] %s335
          %341 = dma.hbm_to_vmem [thread:$0]  %s334, 32768, %s336, [#allocation10], 1024, 1024, 64
        $region24: #{generator_forward.1} parent=11 // pred_fallthru
          _
        // Predicated region
        $region25: #{generator_forward.1} parent=11 // pred_check
          %p342 = pneg %p135
        $region26: #{generator_forward.1} parent=11 // pred_check_branch
          %344 = sbr.rel (%p342) target = $region28
        $region27: #{generator_forward.1} parent=11 // pred_region
          %346 = vsyncadd [#allocation10], 0
          %s348 = sshll.u32 %s4, 4
          %s349 = int_to_ptr.hbm [resolvable:$true] %s348
          %s350 = sshll.u32 [#allocation11], 4
          %s351 = int_to_ptr.vmem [resolvable:$true] %s350
          %353 = dma.hbm_to_vmem [thread:$0]  %s349, 256, %s351, [#allocation10]
        $region28: #{generator_forward.1} parent=11 // pred_fallthru
          _
        // Predicated region
        $region29: #{generator_forward.1} parent=11 // pred_check
          %p354 = pneg %p156
        $region30: #{generator_forward.1} parent=11 // pred_check_branch
          %356 = sbr.rel (%p354) target = $region32
        $region31: #{generator_forward.1} parent=11 // pred_region
          %358 = vsyncadd [#allocation13], 0
          %s359 = sshll.u32 %s5, 4
          %s360 = int_to_ptr.hbm [resolvable:$true] %s359
          %s361 = sshll.u32 [#allocation12], 4
          %s362 = int_to_ptr.vmem [resolvable:$true] %s361
          %367 = dma.hbm_to_vmem [thread:$0]  %s360, 2048, %s362, [#allocation13], 128, 128, 8
        $region32: #{generator_forward.1} parent=11 // pred_fallthru
          _
        // Predicated region
        $region33: #{generator_forward.1} parent=11 // pred_check
          %p368 = pneg %p177
        $region34: #{generator_forward.1} parent=11 // pred_check_branch
          %370 = sbr.rel (%p368) target = $region36
        $region35: #{generator_forward.1} parent=11 // pred_region
          %372 = vsyncadd [#allocation13], 0
          %s374 = sshll.u32 %s6, 4
          %s375 = int_to_ptr.hbm [resolvable:$true] %s374
          %s376 = sshll.u32 [#allocation14], 4
          %s377 = int_to_ptr.vmem [resolvable:$true] %s376
          %379 = dma.hbm_to_vmem [thread:$0]  %s375, 32, %s377, [#allocation13]
        $region36: #{generator_forward.1} parent=11 // pred_fallthru
          _
        // Predicated region
        $region37: #{generator_forward.1} parent=11 // pred_check
          %p380 = pneg %p198
        $region38: #{generator_forward.1} parent=11 // pred_check_branch
          %382 = sbr.rel (%p380) target = $region40
        $region39: #{generator_forward.1} parent=11 // pred_region
          %384 = vsyncadd [#allocation16], 0
          %s385 = sshll.u32 %s7, 4
          %s386 = int_to_ptr.hbm [resolvable:$true] %s385
          %s387 = sshll.u32 [#allocation15], 4
          %s388 = int_to_ptr.vmem [resolvable:$true] %s387
          %393 = dma.hbm_to_vmem [thread:$0]  %s386, 8192, %s388, [#allocation16], 256, 256, 16
        $region40: #{generator_forward.1} parent=11 // pred_fallthru
          _
        // Predicated region
        $region41: #{generator_forward.1} parent=11 // pred_check
          %p394 = pneg %p219
        $region42: #{generator_forward.1} parent=11 // pred_check_branch
          %396 = sbr.rel (%p394) target = $region44
        $region43: #{generator_forward.1} parent=11 // pred_region
          %398 = vsyncadd [#allocation16], 0
          %s400 = sshll.u32 %s8, 4
          %s401 = int_to_ptr.hbm [resolvable:$true] %s400
          %s402 = sshll.u32 [#allocation17], 4
          %s403 = int_to_ptr.vmem [resolvable:$true] %s402
          %405 = dma.hbm_to_vmem [thread:$0]  %s401, 64, %s403, [#allocation16]
        $region44: #{generator_forward.1} parent=11 // pred_fallthru
          _
        // Predicated region
        $region45: #{generator_forward.1} parent=11 // pred_check
          %p406 = pneg %p240
        $region46: #{generator_forward.1} parent=11 // pred_check_branch
          %408 = sbr.rel (%p406) target = $region48
        $region47: #{generator_forward.1} parent=11 // pred_region
          %410 = vsyncadd [#allocation19], 0
          %s411 = sshll.u32 %s9, 4
          %s412 = int_to_ptr.hbm [resolvable:$true] %s411
          %s413 = sshll.u32 [#allocation18], 4
          %s414 = int_to_ptr.vmem [resolvable:$true] %s413
          %419 = dma.hbm_to_vmem [thread:$0]  %s412, 4096, %s414, [#allocation19], 64, 64, 4
        $region48: #{generator_forward.1} parent=11 // pred_fallthru
          _
        // Predicated region
        $region49: #{generator_forward.1} parent=11 // pred_check
          %p420 = pneg %p261
        $region50: #{generator_forward.1} parent=11 // pred_check_branch
          %422 = sbr.rel (%p420) target = $region52
        $region51: #{generator_forward.1} parent=11 // pred_region
          %424 = vsyncadd [#allocation19], 0
          %s426 = sshll.u32 %s10, 4
          %s427 = int_to_ptr.hbm [resolvable:$true] %s426
          %s428 = sshll.u32 [#allocation20], 4
          %s429 = int_to_ptr.vmem [resolvable:$true] %s428
          %431 = dma.hbm_to_vmem [thread:$0]  %s427, 16, %s429, [#allocation19]
        $region52: #{generator_forward.1} parent=11 // pred_fallthru
          _
      $region12: #{generator_forward.1} parent=5 // pred_fallthru
        _
      %p432 = scmp.lt.s32.totalorder %s25, 2
      // Predicated region
      $region53: #{generator_forward.1} parent=5 // pred_check
        %p433 = pneg %p432
      $region54: #{generator_forward.1} parent=5 // pred_check_branch
        %435 = sbr.rel (%p433) target = $region56
      $region55: #{generator_forward.1} parent=5 // pred_region
        // Predicated region
        $region57: #{generator_forward.1} parent=55 // pred_check
          %p436 = pneg %p45
        $region58: #{generator_forward.1} parent=55 // pred_check_branch
          %438 = sbr.rel (%p436) target = $region60
        $region59: #{generator_forward.1} parent=55 // pred_region
          %s439 = sand.u32 %s35, 1
          %s440 = scalar_lea.sflag [#allocation5], %s439
          %s441 = sand.u32 %s35, 1
          %s442 = scalar_lea.vmem [#allocation4], %s441
          %444 = vsyncadd %s440, 0
          %s445 = scalar_lea.hbm %s0, %s25
          %s447 = sshll.u32 %s445, 4
          %s448 = int_to_ptr.hbm [resolvable:$true] %s447
          %s449 = sshll.u32 %s442, 4
          %s450 = int_to_ptr.vmem [resolvable:$true] %s449
          %452 = dma.hbm_to_vmem [thread:$0]  %s448, 16, %s450, %s440
        $region60: #{generator_forward.1} parent=55 // pred_fallthru
          _
      $region56: #{generator_forward.1} parent=5 // pred_fallthru
        _
      %p453 = scmp.le.s32.totalorder 1, %s25
      %p454 = scmp.lt.s32.totalorder %s25, 3
      %p455 = pnand %p453, %p454
      %p456 = pneg %p455
      // Predicated region
      $region61: #{generator_forward.1} parent=5 // pred_check
        _
      $region62: #{generator_forward.1} parent=5 // pred_check_branch
        %458 = sbr.rel (%p455) target = $region64
      $region63: #{generator_forward.1} parent=5 // pred_region
        %s459 = ssub.s32 %s25, 1
        %s460 = sand.u32 %s38, 1
        %s461 = scalar_lea.sflag [#allocation5], %s460
        %s462 = sand.u32 %s38, 1
        %s463 = scalar_lea.vmem [#allocation4], %s462
        // Predicated region
        $region65: #{generator_forward.1} parent=63 // pred_check
          %p464 = pneg %p51
        $region66: #{generator_forward.1} parent=63 // pred_check_branch
          %466 = sbr.rel (%p464) target = $region68
        $region67: #{generator_forward.1} parent=63 // pred_region
          %468 = dma.done %s461, 16
        $region68: #{generator_forward.1} parent=63 // pred_fallthru
          _
        // Predicated region
        $region69: #{generator_forward.1} parent=63 // pred_check
          %p469 = pneg %p72
        $region70: #{generator_forward.1} parent=63 // pred_check_branch
          %471 = sbr.rel (%p469) target = $region72
        $region71: #{generator_forward.1} parent=63 // pred_region
          %473 = dma.done [#allocation7], 16384
        $region72: #{generator_forward.1} parent=63 // pred_fallthru
          _
        // Predicated region
        $region73: #{generator_forward.1} parent=63 // pred_check
          %p474 = pneg %p93
        $region74: #{generator_forward.1} parent=63 // pred_check_branch
          %476 = sbr.rel (%p474) target = $region76
        $region75: #{generator_forward.1} parent=63 // pred_region
          %478 = dma.done [#allocation7], 512
        $region76: #{generator_forward.1} parent=63 // pred_fallthru
          _
        // Predicated region
        $region77: #{generator_forward.1} parent=63 // pred_check
          %p479 = pneg %p114
        $region78: #{generator_forward.1} parent=63 // pred_check_branch
          %481 = sbr.rel (%p479) target = $region80
        $region79: #{generator_forward.1} parent=63 // pred_region
          %483 = dma.done [#allocation10], 32768
        $region80: #{generator_forward.1} parent=63 // pred_fallthru
          _
        // Predicated region
        $region81: #{generator_forward.1} parent=63 // pred_check
          %p484 = pneg %p135
        $region82: #{generator_forward.1} parent=63 // pred_check_branch
          %486 = sbr.rel (%p484) target = $region84
        $region83: #{generator_forward.1} parent=63 // pred_region
          %488 = dma.done [#allocation10], 256
        $region84: #{generator_forward.1} parent=63 // pred_fallthru
          _
        // Predicated region
        $region85: #{generator_forward.1} parent=63 // pred_check
          %p489 = pneg %p156
        $region86: #{generator_forward.1} parent=63 // pred_check_branch
          %491 = sbr.rel (%p489) target = $region88
        $region87: #{generator_forward.1} parent=63 // pred_region
          %493 = dma.done [#allocation13], 2048
        $region88: #{generator_forward.1} parent=63 // pred_fallthru
          _
        // Predicated region
        $region89: #{generator_forward.1} parent=63 // pred_check
          %p494 = pneg %p177
        $region90: #{generator_forward.1} parent=63 // pred_check_branch
          %496 = sbr.rel (%p494) target = $region92
        $region91: #{generator_forward.1} parent=63 // pred_region
          %498 = dma.done [#allocation13], 32
        $region92: #{generator_forward.1} parent=63 // pred_fallthru
          _
        // Predicated region
        $region93: #{generator_forward.1} parent=63 // pred_check
          %p499 = pneg %p198
        $region94: #{generator_forward.1} parent=63 // pred_check_branch
          %501 = sbr.rel (%p499) target = $region96
        $region95: #{generator_forward.1} parent=63 // pred_region
          %503 = dma.done [#allocation16], 8192
        $region96: #{generator_forward.1} parent=63 // pred_fallthru
          _
        // Predicated region
        $region97: #{generator_forward.1} parent=63 // pred_check
          %p504 = pneg %p219
        $region98: #{generator_forward.1} parent=63 // pred_check_branch
          %506 = sbr.rel (%p504) target = $region100
        $region99: #{generator_forward.1} parent=63 // pred_region
          %508 = dma.done [#allocation16], 64
        $region100: #{generator_forward.1} parent=63 // pred_fallthru
          _
        // Predicated region
        $region101: #{generator_forward.1} parent=63 // pred_check
          %p509 = pneg %p240
        $region102: #{generator_forward.1} parent=63 // pred_check_branch
          %511 = sbr.rel (%p509) target = $region104
        $region103: #{generator_forward.1} parent=63 // pred_region
          %513 = dma.done [#allocation19], 4096
        $region104: #{generator_forward.1} parent=63 // pred_fallthru
          _
        // Predicated region
        $region105: #{generator_forward.1} parent=63 // pred_check
          %p514 = pneg %p261
        $region106: #{generator_forward.1} parent=63 // pred_check_branch
          %516 = sbr.rel (%p514) target = $region108
        $region107: #{generator_forward.1} parent=63 // pred_region
          %518 = dma.done [#allocation19], 16
        $region108: #{generator_forward.1} parent=63 // pred_fallthru
          _
        %s519 = sand.u32 %s38, 1
        %s520 = scalar_lea.sflag [#allocation5], %s519
        %s521 = sand.u32 %s38, 1
        %s522 = scalar_lea.vmem [#allocation4], %s521
        %p523 = pneg %p51
        %p524 = pneg %p48
        %p525 = pneg %p72
        %p526 = pneg %p69
        %p527 = pneg %p93
        %p528 = pneg %p90
        %p529 = pneg %p114
        %p530 = pneg %p111
        %p531 = pneg %p135
        %p532 = pneg %p132
        %p533 = pneg %p156
        %p534 = pneg %p153
        %p535 = pneg %p177
        %p536 = pneg %p174
        %p537 = pneg %p198
        %p538 = pneg %p195
        %p539 = pneg %p219
        %p540 = pneg %p216
        %p541 = pneg %p240
        %p542 = pneg %p237
        %p543 = pneg %p261
        %p544 = pneg %p258
        %p545 = pneg %p287
        %p546 = pneg %p284
        %s547 = smul.u32 32, %s30
        %p548 = scmp.lt.s32.totalorder %s547, 63
        %s549 = scalar_select %p548, %s547, 63
        %s550 = smul.addr %s549, 8
        %s551 = scalar_lea.vmem %s11, %s550
        %s552 = smul.u32 32, %s30
        %p553 = scmp.lt.s32.totalorder %s552, 63
        %s554 = scalar_select %p553, %s552, 63
        %s555 = smul.addr %s554, 8
        %s556 = scalar_lea.vmem %s11, %s555
        %s557 = smul.u32 32, %s30
        %v559 = vld [vmem:[%s463] sm:$0x1]
        %v561 = vperm.slane %v559, 0
        %v563 = vpack.c.bf16 %v561, %v561
        %v564 = vld [vmem:[#allocation6] sm:$0xff]
        %v565 = vld [vmem:[#allocation6 + $0x8] sm:$0xff]
        %v566 = vld [vmem:[#allocation6 + $0x10] sm:$0xff]
        %v567 = vld [vmem:[#allocation6 + $0x18] sm:$0xff]
        %v568 = vld [vmem:[#allocation6 + $0x20] sm:$0xff]
        %v569 = vld [vmem:[#allocation6 + $0x28] sm:$0xff]
        %v570 = vld [vmem:[#allocation6 + $0x30] sm:$0xff]
        %v571 = vld [vmem:[#allocation6 + $0x38] sm:$0xff]
        %v572 = vld [vmem:[#allocation6 + $0x40] sm:$0xff]
        %v573 = vld [vmem:[#allocation6 + $0x48] sm:$0xff]
        %v574 = vld [vmem:[#allocation6 + $0x50] sm:$0xff]
        %v575 = vld [vmem:[#allocation6 + $0x58] sm:$0xff]
        %v576 = vld [vmem:[#allocation6 + $0x60] sm:$0xff]
        %v577 = vld [vmem:[#allocation6 + $0x68] sm:$0xff]
        %v578 = vld [vmem:[#allocation6 + $0x70] sm:$0xff]
        %v579 = vld [vmem:[#allocation6 + $0x78] sm:$0xff]
        %v580 = vld [vmem:[#allocation6 + $0x80] sm:$0xff]
        %v581 = vld [vmem:[#allocation6 + $0x88] sm:$0xff]
        %v582 = vld [vmem:[#allocation6 + $0x90] sm:$0xff]
        %v583 = vld [vmem:[#allocation6 + $0x98] sm:$0xff]
        %v584 = vld [vmem:[#allocation6 + $0xa0] sm:$0xff]
        %v585 = vld [vmem:[#allocation6 + $0xa8] sm:$0xff]
        %v586 = vld [vmem:[#allocation6 + $0xb0] sm:$0xff]
        %v587 = vld [vmem:[#allocation6 + $0xb8] sm:$0xff]
        %v588 = vld [vmem:[#allocation6 + $0xc0] sm:$0xff]
        %v589 = vld [vmem:[#allocation6 + $0xc8] sm:$0xff]
        %v590 = vld [vmem:[#allocation6 + $0xd0] sm:$0xff]
        %v591 = vld [vmem:[#allocation6 + $0xd8] sm:$0xff]
        %v592 = vld [vmem:[#allocation6 + $0xe0] sm:$0xff]
        %v593 = vld [vmem:[#allocation6 + $0xe8] sm:$0xff]
        %v594 = vld [vmem:[#allocation6 + $0xf0] sm:$0xff]
        %v595 = vld [vmem:[#allocation6 + $0xf8] sm:$0xff]
        %v596 = vld [vmem:[#allocation6 + $0x100] sm:$0xff]
        %v597 = vld [vmem:[#allocation6 + $0x108] sm:$0xff]
        %v598 = vld [vmem:[#allocation6 + $0x110] sm:$0xff]
        %v599 = vld [vmem:[#allocation6 + $0x118] sm:$0xff]
        %v600 = vld [vmem:[#allocation6 + $0x120] sm:$0xff]
        %v601 = vld [vmem:[#allocation6 + $0x128] sm:$0xff]
        %v602 = vld [vmem:[#allocation6 + $0x130] sm:$0xff]
        %v603 = vld [vmem:[#allocation6 + $0x138] sm:$0xff]
        %v604 = vld [vmem:[#allocation6 + $0x140] sm:$0xff]
        %v605 = vld [vmem:[#allocation6 + $0x148] sm:$0xff]
        %v606 = vld [vmem:[#allocation6 + $0x150] sm:$0xff]
        %v607 = vld [vmem:[#allocation6 + $0x158] sm:$0xff]
        %v608 = vld [vmem:[#allocation6 + $0x160] sm:$0xff]
        %v609 = vld [vmem:[#allocation6 + $0x168] sm:$0xff]
        %v610 = vld [vmem:[#allocation6 + $0x170] sm:$0xff]
        %v611 = vld [vmem:[#allocation6 + $0x178] sm:$0xff]
        %v612 = vld [vmem:[#allocation6 + $0x180] sm:$0xff]
        %v613 = vld [vmem:[#allocation6 + $0x188] sm:$0xff]
        %v614 = vld [vmem:[#allocation6 + $0x190] sm:$0xff]
        %v615 = vld [vmem:[#allocation6 + $0x198] sm:$0xff]
        %v616 = vld [vmem:[#allocation6 + $0x1a0] sm:$0xff]
        %v617 = vld [vmem:[#allocation6 + $0x1a8] sm:$0xff]
        %v618 = vld [vmem:[#allocation6 + $0x1b0] sm:$0xff]
        %v619 = vld [vmem:[#allocation6 + $0x1b8] sm:$0xff]
        %v620 = vld [vmem:[#allocation6 + $0x1c0] sm:$0xff]
        %v621 = vld [vmem:[#allocation6 + $0x1c8] sm:$0xff]
        %v622 = vld [vmem:[#allocation6 + $0x1d0] sm:$0xff]
        %v623 = vld [vmem:[#allocation6 + $0x1d8] sm:$0xff]
        %v624 = vld [vmem:[#allocation6 + $0x1e0] sm:$0xff]
        %v625 = vld [vmem:[#allocation6 + $0x1e8] sm:$0xff]
        %v626 = vld [vmem:[#allocation6 + $0x1f0] sm:$0xff]
        %v627 = vld [vmem:[#allocation6 + $0x1f8] sm:$0xff]
        %v628 = vld [vmem:[#allocation6 + $0x200] sm:$0xff]
        %v629 = vld [vmem:[#allocation6 + $0x208] sm:$0xff]
        %v630 = vld [vmem:[#allocation6 + $0x210] sm:$0xff]
        %v631 = vld [vmem:[#allocation6 + $0x218] sm:$0xff]
        %v632 = vld [vmem:[#allocation6 + $0x220] sm:$0xff]
        %v633 = vld [vmem:[#allocation6 + $0x228] sm:$0xff]
        %v634 = vld [vmem:[#allocation6 + $0x230] sm:$0xff]
        %v635 = vld [vmem:[#allocation6 + $0x238] sm:$0xff]
        %v636 = vld [vmem:[#allocation6 + $0x240] sm:$0xff]
        %v637 = vld [vmem:[#allocation6 + $0x248] sm:$0xff]
        %v638 = vld [vmem:[#allocation6 + $0x250] sm:$0xff]
        %v639 = vld [vmem:[#allocation6 + $0x258] sm:$0xff]
        %v640 = vld [vmem:[#allocation6 + $0x260] sm:$0xff]
        %v641 = vld [vmem:[#allocation6 + $0x268] sm:$0xff]
        %v642 = vld [vmem:[#allocation6 + $0x270] sm:$0xff]
        %v643 = vld [vmem:[#allocation6 + $0x278] sm:$0xff]
        %v644 = vld [vmem:[#allocation6 + $0x280] sm:$0xff]
        %v645 = vld [vmem:[#allocation6 + $0x288] sm:$0xff]
        %v646 = vld [vmem:[#allocation6 + $0x290] sm:$0xff]
        %v647 = vld [vmem:[#allocation6 + $0x298] sm:$0xff]
        %v648 = vld [vmem:[#allocation6 + $0x2a0] sm:$0xff]
        %v649 = vld [vmem:[#allocation6 + $0x2a8] sm:$0xff]
        %v650 = vld [vmem:[#allocation6 + $0x2b0] sm:$0xff]
        %v651 = vld [vmem:[#allocation6 + $0x2b8] sm:$0xff]
        %v652 = vld [vmem:[#allocation6 + $0x2c0] sm:$0xff]
        %v653 = vld [vmem:[#allocation6 + $0x2c8] sm:$0xff]
        %v654 = vld [vmem:[#allocation6 + $0x2d0] sm:$0xff]
        %v655 = vld [vmem:[#allocation6 + $0x2d8] sm:$0xff]
        %v656 = vld [vmem:[#allocation6 + $0x2e0] sm:$0xff]
        %v657 = vld [vmem:[#allocation6 + $0x2e8] sm:$0xff]
        %v658 = vld [vmem:[#allocation6 + $0x2f0] sm:$0xff]
        %v659 = vld [vmem:[#allocation6 + $0x2f8] sm:$0xff]
        %v660 = vld [vmem:[#allocation6 + $0x300] sm:$0xff]
        %v661 = vld [vmem:[#allocation6 + $0x308] sm:$0xff]
        %v662 = vld [vmem:[#allocation6 + $0x310] sm:$0xff]
        %v663 = vld [vmem:[#allocation6 + $0x318] sm:$0xff]
        %v664 = vld [vmem:[#allocation6 + $0x320] sm:$0xff]
        %v665 = vld [vmem:[#allocation6 + $0x328] sm:$0xff]
        %v666 = vld [vmem:[#allocation6 + $0x330] sm:$0xff]
        %v667 = vld [vmem:[#allocation6 + $0x338] sm:$0xff]
        %v668 = vld [vmem:[#allocation6 + $0x340] sm:$0xff]
        %v669 = vld [vmem:[#allocation6 + $0x348] sm:$0xff]
        %v670 = vld [vmem:[#allocation6 + $0x350] sm:$0xff]
        %v671 = vld [vmem:[#allocation6 + $0x358] sm:$0xff]
        %v672 = vld [vmem:[#allocation6 + $0x360] sm:$0xff]
        %v673 = vld [vmem:[#allocation6 + $0x368] sm:$0xff]
        %v674 = vld [vmem:[#allocation6 + $0x370] sm:$0xff]
        %v675 = vld [vmem:[#allocation6 + $0x378] sm:$0xff]
        %v676 = vld [vmem:[#allocation6 + $0x380] sm:$0xff]
        %v677 = vld [vmem:[#allocation6 + $0x388] sm:$0xff]
        %v678 = vld [vmem:[#allocation6 + $0x390] sm:$0xff]
        %v679 = vld [vmem:[#allocation6 + $0x398] sm:$0xff]
        %v680 = vld [vmem:[#allocation6 + $0x3a0] sm:$0xff]
        %v681 = vld [vmem:[#allocation6 + $0x3a8] sm:$0xff]
        %v682 = vld [vmem:[#allocation6 + $0x3b0] sm:$0xff]
        %v683 = vld [vmem:[#allocation6 + $0x3b8] sm:$0xff]
        %v684 = vld [vmem:[#allocation6 + $0x3c0] sm:$0xff]
        %v685 = vld [vmem:[#allocation6 + $0x3c8] sm:$0xff]
        %v686 = vld [vmem:[#allocation6 + $0x3d0] sm:$0xff]
        %v687 = vld [vmem:[#allocation6 + $0x3d8] sm:$0xff]
        %v688 = vld [vmem:[#allocation6 + $0x3e0] sm:$0xff]
        %v689 = vld [vmem:[#allocation6 + $0x3e8] sm:$0xff]
        %v690 = vld [vmem:[#allocation6 + $0x3f0] sm:$0xff]
        %v691 = vld [vmem:[#allocation6 + $0x3f8] sm:$0xff]
        %v692 = vld [vmem:[#allocation8] sm:$0xff]
        %v693 = vld [vmem:[#allocation8 + $0x8] sm:$0xff]
        %v694 = vld [vmem:[#allocation8 + $0x10] sm:$0xff]
        %v695 = vld [vmem:[#allocation8 + $0x18] sm:$0xff]
        %v700 = vperm.slane %v692, 0
        %v701 = vperm.slane %v692, 1
        %v702 = vperm.slane %v692, 2
        %v703 = vperm.slane %v692, 3
        %v704 = vperm.slane %v692, 4
        %v705 = vperm.slane %v692, 5
        %v706 = vperm.slane %v692, 6
        %v707 = vperm.slane %v692, 7
        %v708 = vperm.slane %v693, 0
        %v709 = vperm.slane %v693, 1
        %v710 = vperm.slane %v693, 2
        %v711 = vperm.slane %v693, 3
        %v712 = vperm.slane %v693, 4
        %v713 = vperm.slane %v693, 5
        %v714 = vperm.slane %v693, 6
        %v715 = vperm.slane %v693, 7
        %v716 = vperm.slane %v694, 0
        %v717 = vperm.slane %v694, 1
        %v718 = vperm.slane %v694, 2
        %v719 = vperm.slane %v694, 3
        %v720 = vperm.slane %v694, 4
        %v721 = vperm.slane %v694, 5
        %v722 = vperm.slane %v694, 6
        %v723 = vperm.slane %v694, 7
        %v724 = vperm.slane %v695, 0
        %v725 = vperm.slane %v695, 1
        %v726 = vperm.slane %v695, 2
        %v727 = vperm.slane %v695, 3
        %v728 = vperm.slane %v695, 4
        %v729 = vperm.slane %v695, 5
        %v730 = vperm.slane %v695, 6
        %v731 = vperm.slane %v695, 7
        %v892 = vunpack.c.l.b16 %v564
        %v893 = vunpack.c.h.b16 %v564
        %v894 = vunpack.c.l.b16 %v565
        %v895 = vunpack.c.h.b16 %v565
        %v896 = vunpack.c.l.b16 %v566
        %v897 = vunpack.c.h.b16 %v566
        %v898 = vunpack.c.l.b16 %v567
        %v899 = vunpack.c.h.b16 %v567
        %v900 = vunpack.c.l.b16 %v568
        %v901 = vunpack.c.h.b16 %v568
        %v902 = vunpack.c.l.b16 %v569
        %v903 = vunpack.c.h.b16 %v569
        %v904 = vunpack.c.l.b16 %v570
        %v905 = vunpack.c.h.b16 %v570
        %v906 = vunpack.c.l.b16 %v571
        %v907 = vunpack.c.h.b16 %v571
        %v908 = vunpack.c.l.b16 %v572
        %v909 = vunpack.c.h.b16 %v572
        %v910 = vunpack.c.l.b16 %v573
        %v911 = vunpack.c.h.b16 %v573
        %v912 = vunpack.c.l.b16 %v574
        %v913 = vunpack.c.h.b16 %v574
        %v914 = vunpack.c.l.b16 %v575
        %v915 = vunpack.c.h.b16 %v575
        %v916 = vunpack.c.l.b16 %v576
        %v917 = vunpack.c.h.b16 %v576
        %v918 = vunpack.c.l.b16 %v577
        %v919 = vunpack.c.h.b16 %v577
        %v920 = vunpack.c.l.b16 %v578
        %v921 = vunpack.c.h.b16 %v578
        %v922 = vunpack.c.l.b16 %v579
        %v923 = vunpack.c.h.b16 %v579
        %v924 = vunpack.c.l.b16 %v580
        %v925 = vunpack.c.h.b16 %v580
        %v926 = vunpack.c.l.b16 %v581
        %v927 = vunpack.c.h.b16 %v581
        %v928 = vunpack.c.l.b16 %v582
        %v929 = vunpack.c.h.b16 %v582
        %v930 = vunpack.c.l.b16 %v583
        %v931 = vunpack.c.h.b16 %v583
        %v932 = vunpack.c.l.b16 %v584
        %v933 = vunpack.c.h.b16 %v584
        %v934 = vunpack.c.l.b16 %v585
        %v935 = vunpack.c.h.b16 %v585
        %v936 = vunpack.c.l.b16 %v586
        %v937 = vunpack.c.h.b16 %v586
        %v938 = vunpack.c.l.b16 %v587
        %v939 = vunpack.c.h.b16 %v587
        %v940 = vunpack.c.l.b16 %v588
        %v941 = vunpack.c.h.b16 %v588
        %v942 = vunpack.c.l.b16 %v589
        %v943 = vunpack.c.h.b16 %v589
        %v944 = vunpack.c.l.b16 %v590
        %v945 = vunpack.c.h.b16 %v590
        %v946 = vunpack.c.l.b16 %v591
        %v947 = vunpack.c.h.b16 %v591
        %v948 = vunpack.c.l.b16 %v592
        %v949 = vunpack.c.h.b16 %v592
        %v950 = vunpack.c.l.b16 %v593
        %v951 = vunpack.c.h.b16 %v593
        %v952 = vunpack.c.l.b16 %v594
        %v953 = vunpack.c.h.b16 %v594
        %v954 = vunpack.c.l.b16 %v595
        %v955 = vunpack.c.h.b16 %v595
        %v956 = vunpack.c.l.b16 %v596
        %v957 = vunpack.c.h.b16 %v596
        %v958 = vunpack.c.l.b16 %v597
        %v959 = vunpack.c.h.b16 %v597
        %v960 = vunpack.c.l.b16 %v598
        %v961 = vunpack.c.h.b16 %v598
        %v962 = vunpack.c.l.b16 %v599
        %v963 = vunpack.c.h.b16 %v599
        %v964 = vunpack.c.l.b16 %v600
        %v965 = vunpack.c.h.b16 %v600
        %v966 = vunpack.c.l.b16 %v601
        %v967 = vunpack.c.h.b16 %v601
        %v968 = vunpack.c.l.b16 %v602
        %v969 = vunpack.c.h.b16 %v602
        %v970 = vunpack.c.l.b16 %v603
        %v971 = vunpack.c.h.b16 %v603
        %v972 = vunpack.c.l.b16 %v604
        %v973 = vunpack.c.h.b16 %v604
        %v974 = vunpack.c.l.b16 %v605
        %v975 = vunpack.c.h.b16 %v605
        %v976 = vunpack.c.l.b16 %v606
        %v977 = vunpack.c.h.b16 %v606
        %v978 = vunpack.c.l.b16 %v607
        %v979 = vunpack.c.h.b16 %v607
        %v980 = vunpack.c.l.b16 %v608
        %v981 = vunpack.c.h.b16 %v608
        %v982 = vunpack.c.l.b16 %v609
        %v983 = vunpack.c.h.b16 %v609
        %v984 = vunpack.c.l.b16 %v610
        %v985 = vunpack.c.h.b16 %v610
        %v986 = vunpack.c.l.b16 %v611
        %v987 = vunpack.c.h.b16 %v611
        %v988 = vunpack.c.l.b16 %v612
        %v989 = vunpack.c.h.b16 %v612
        %v990 = vunpack.c.l.b16 %v613
        %v991 = vunpack.c.h.b16 %v613
        %v992 = vunpack.c.l.b16 %v614
        %v993 = vunpack.c.h.b16 %v614
        %v994 = vunpack.c.l.b16 %v615
        %v995 = vunpack.c.h.b16 %v615
        %v996 = vunpack.c.l.b16 %v616
        %v997 = vunpack.c.h.b16 %v616
        %v998 = vunpack.c.l.b16 %v617
        %v999 = vunpack.c.h.b16 %v617
        %v1000 = vunpack.c.l.b16 %v618
        %v1001 = vunpack.c.h.b16 %v618
        %v1002 = vunpack.c.l.b16 %v619
        %v1003 = vunpack.c.h.b16 %v619
        %v1004 = vunpack.c.l.b16 %v620
        %v1005 = vunpack.c.h.b16 %v620
        %v1006 = vunpack.c.l.b16 %v621
        %v1007 = vunpack.c.h.b16 %v621
        %v1008 = vunpack.c.l.b16 %v622
        %v1009 = vunpack.c.h.b16 %v622
        %v1010 = vunpack.c.l.b16 %v623
        %v1011 = vunpack.c.h.b16 %v623
        %v1012 = vunpack.c.l.b16 %v624
        %v1013 = vunpack.c.h.b16 %v624
        %v1014 = vunpack.c.l.b16 %v625
        %v1015 = vunpack.c.h.b16 %v625
        %v1016 = vunpack.c.l.b16 %v626
        %v1017 = vunpack.c.h.b16 %v626
        %v1018 = vunpack.c.l.b16 %v627
        %v1019 = vunpack.c.h.b16 %v627
        %v1020 = vunpack.c.l.b16 %v628
        %v1021 = vunpack.c.h.b16 %v628
        %v1022 = vunpack.c.l.b16 %v629
        %v1023 = vunpack.c.h.b16 %v629
        %v1024 = vunpack.c.l.b16 %v630
        %v1025 = vunpack.c.h.b16 %v630
        %v1026 = vunpack.c.l.b16 %v631
        %v1027 = vunpack.c.h.b16 %v631
        %v1028 = vunpack.c.l.b16 %v632
        %v1029 = vunpack.c.h.b16 %v632
        %v1030 = vunpack.c.l.b16 %v633
        %v1031 = vunpack.c.h.b16 %v633
        %v1032 = vunpack.c.l.b16 %v634
        %v1033 = vunpack.c.h.b16 %v634
        %v1034 = vunpack.c.l.b16 %v635
        %v1035 = vunpack.c.h.b16 %v635
        %v1036 = vunpack.c.l.b16 %v636
        %v1037 = vunpack.c.h.b16 %v636
        %v1038 = vunpack.c.l.b16 %v637
        %v1039 = vunpack.c.h.b16 %v637
        %v1040 = vunpack.c.l.b16 %v638
        %v1041 = vunpack.c.h.b16 %v638
        %v1042 = vunpack.c.l.b16 %v639
        %v1043 = vunpack.c.h.b16 %v639
        %v1044 = vunpack.c.l.b16 %v640
        %v1045 = vunpack.c.h.b16 %v640
        %v1046 = vunpack.c.l.b16 %v641
        %v1047 = vunpack.c.h.b16 %v641
        %v1048 = vunpack.c.l.b16 %v642
        %v1049 = vunpack.c.h.b16 %v642
        %v1050 = vunpack.c.l.b16 %v643
        %v1051 = vunpack.c.h.b16 %v643
        %v1052 = vunpack.c.l.b16 %v644
        %v1053 = vunpack.c.h.b16 %v644
        %v1054 = vunpack.c.l.b16 %v645
        %v1055 = vunpack.c.h.b16 %v645
        %v1056 = vunpack.c.l.b16 %v646
        %v1057 = vunpack.c.h.b16 %v646
        %v1058 = vunpack.c.l.b16 %v647
        %v1059 = vunpack.c.h.b16 %v647
        %v1060 = vunpack.c.l.b16 %v648
        %v1061 = vunpack.c.h.b16 %v648
        %v1062 = vunpack.c.l.b16 %v649
        %v1063 = vunpack.c.h.b16 %v649
        %v1064 = vunpack.c.l.b16 %v650
        %v1065 = vunpack.c.h.b16 %v650
        %v1066 = vunpack.c.l.b16 %v651
        %v1067 = vunpack.c.h.b16 %v651
        %v1068 = vunpack.c.l.b16 %v652
        %v1069 = vunpack.c.h.b16 %v652
        %v1070 = vunpack.c.l.b16 %v653
        %v1071 = vunpack.c.h.b16 %v653
        %v1072 = vunpack.c.l.b16 %v654
        %v1073 = vunpack.c.h.b16 %v654
        %v1074 = vunpack.c.l.b16 %v655
        %v1075 = vunpack.c.h.b16 %v655
        %v1076 = vunpack.c.l.b16 %v656
        %v1077 = vunpack.c.h.b16 %v656
        %v1078 = vunpack.c.l.b16 %v657
        %v1079 = vunpack.c.h.b16 %v657
        %v1080 = vunpack.c.l.b16 %v658
        %v1081 = vunpack.c.h.b16 %v658
        %v1082 = vunpack.c.l.b16 %v659
        %v1083 = vunpack.c.h.b16 %v659
        %v1084 = vunpack.c.l.b16 %v660
        %v1085 = vunpack.c.h.b16 %v660
        %v1086 = vunpack.c.l.b16 %v661
        %v1087 = vunpack.c.h.b16 %v661
        %v1088 = vunpack.c.l.b16 %v662
        %v1089 = vunpack.c.h.b16 %v662
        %v1090 = vunpack.c.l.b16 %v663
        %v1091 = vunpack.c.h.b16 %v663
        %v1092 = vunpack.c.l.b16 %v664
        %v1093 = vunpack.c.h.b16 %v664
        %v1094 = vunpack.c.l.b16 %v665
        %v1095 = vunpack.c.h.b16 %v665
        %v1096 = vunpack.c.l.b16 %v666
        %v1097 = vunpack.c.h.b16 %v666
        %v1098 = vunpack.c.l.b16 %v667
        %v1099 = vunpack.c.h.b16 %v667
        %v1100 = vunpack.c.l.b16 %v668
        %v1101 = vunpack.c.h.b16 %v668
        %v1102 = vunpack.c.l.b16 %v669
        %v1103 = vunpack.c.h.b16 %v669
        %v1104 = vunpack.c.l.b16 %v670
        %v1105 = vunpack.c.h.b16 %v670
        %v1106 = vunpack.c.l.b16 %v671
        %v1107 = vunpack.c.h.b16 %v671
        %v1108 = vunpack.c.l.b16 %v672
        %v1109 = vunpack.c.h.b16 %v672
        %v1110 = vunpack.c.l.b16 %v673
        %v1111 = vunpack.c.h.b16 %v673
        %v1112 = vunpack.c.l.b16 %v674
        %v1113 = vunpack.c.h.b16 %v674
        %v1114 = vunpack.c.l.b16 %v675
        %v1115 = vunpack.c.h.b16 %v675
        %v1116 = vunpack.c.l.b16 %v676
        %v1117 = vunpack.c.h.b16 %v676
        %v1118 = vunpack.c.l.b16 %v677
        %v1119 = vunpack.c.h.b16 %v677
        %v1120 = vunpack.c.l.b16 %v678
        %v1121 = vunpack.c.h.b16 %v678
        %v1122 = vunpack.c.l.b16 %v679
        %v1123 = vunpack.c.h.b16 %v679
        %v1124 = vunpack.c.l.b16 %v680
        %v1125 = vunpack.c.h.b16 %v680
        %v1126 = vunpack.c.l.b16 %v681
        %v1127 = vunpack.c.h.b16 %v681
        %v1128 = vunpack.c.l.b16 %v682
        %v1129 = vunpack.c.h.b16 %v682
        %v1130 = vunpack.c.l.b16 %v683
        %v1131 = vunpack.c.h.b16 %v683
        %v1132 = vunpack.c.l.b16 %v684
        %v1133 = vunpack.c.h.b16 %v684
        %v1134 = vunpack.c.l.b16 %v685
        %v1135 = vunpack.c.h.b16 %v685
        %v1136 = vunpack.c.l.b16 %v686
        %v1137 = vunpack.c.h.b16 %v686
        %v1138 = vunpack.c.l.b16 %v687
        %v1139 = vunpack.c.h.b16 %v687
        %v1140 = vunpack.c.l.b16 %v688
        %v1141 = vunpack.c.h.b16 %v688
        %v1142 = vunpack.c.l.b16 %v689
        %v1143 = vunpack.c.h.b16 %v689
        %v1144 = vunpack.c.l.b16 %v690
        %v1145 = vunpack.c.h.b16 %v690
        %v1146 = vunpack.c.l.b16 %v691
        %v1147 = vunpack.c.h.b16 %v691
        %v1148 = vpack.c.b16 %v924, %v892
        %v1149 = vpack.c.b16 %v925, %v893
        %v1150 = vpack.c.b16 %v926, %v894
        %v1151 = vpack.c.b16 %v927, %v895
        %v1152 = vpack.c.b16 %v928, %v896
        %v1153 = vpack.c.b16 %v929, %v897
        %v1154 = vpack.c.b16 %v930, %v898
        %v1155 = vpack.c.b16 %v931, %v899
        %v1156 = vpack.c.b16 %v932, %v900
        %v1157 = vpack.c.b16 %v933, %v901
        %v1158 = vpack.c.b16 %v934, %v902
        %v1159 = vpack.c.b16 %v935, %v903
        %v1160 = vpack.c.b16 %v936, %v904
        %v1161 = vpack.c.b16 %v937, %v905
        %v1162 = vpack.c.b16 %v938, %v906
        %v1163 = vpack.c.b16 %v939, %v907
        %v1164 = vpack.c.b16 %v940, %v908
        %v1165 = vpack.c.b16 %v941, %v909
        %v1166 = vpack.c.b16 %v942, %v910
        %v1167 = vpack.c.b16 %v943, %v911
        %v1168 = vpack.c.b16 %v944, %v912
        %v1169 = vpack.c.b16 %v945, %v913
        %v1170 = vpack.c.b16 %v946, %v914
        %v1171 = vpack.c.b16 %v947, %v915
        %v1172 = vpack.c.b16 %v948, %v916
        %v1173 = vpack.c.b16 %v949, %v917
        %v1174 = vpack.c.b16 %v950, %v918
        %v1175 = vpack.c.b16 %v951, %v919
        %v1176 = vpack.c.b16 %v952, %v920
        %v1177 = vpack.c.b16 %v953, %v921
        %v1178 = vpack.c.b16 %v954, %v922
        %v1179 = vpack.c.b16 %v955, %v923
        %v1180 = vpack.c.b16 %v988, %v956
        %v1181 = vpack.c.b16 %v989, %v957
        %v1182 = vpack.c.b16 %v990, %v958
        %v1183 = vpack.c.b16 %v991, %v959
        %v1184 = vpack.c.b16 %v992, %v960
        %v1185 = vpack.c.b16 %v993, %v961
        %v1186 = vpack.c.b16 %v994, %v962
        %v1187 = vpack.c.b16 %v995, %v963
        %v1188 = vpack.c.b16 %v996, %v964
        %v1189 = vpack.c.b16 %v997, %v965
        %v1190 = vpack.c.b16 %v998, %v966
        %v1191 = vpack.c.b16 %v999, %v967
        %v1192 = vpack.c.b16 %v1000, %v968
        %v1193 = vpack.c.b16 %v1001, %v969
        %v1194 = vpack.c.b16 %v1002, %v970
        %v1195 = vpack.c.b16 %v1003, %v971
        %v1196 = vpack.c.b16 %v1004, %v972
        %v1197 = vpack.c.b16 %v1005, %v973
        %v1198 = vpack.c.b16 %v1006, %v974
        %v1199 = vpack.c.b16 %v1007, %v975
        %v1200 = vpack.c.b16 %v1008, %v976
        %v1201 = vpack.c.b16 %v1009, %v977
        %v1202 = vpack.c.b16 %v1010, %v978
        %v1203 = vpack.c.b16 %v1011, %v979
        %v1204 = vpack.c.b16 %v1012, %v980
        %v1205 = vpack.c.b16 %v1013, %v981
        %v1206 = vpack.c.b16 %v1014, %v982
        %v1207 = vpack.c.b16 %v1015, %v983
        %v1208 = vpack.c.b16 %v1016, %v984
        %v1209 = vpack.c.b16 %v1017, %v985
        %v1210 = vpack.c.b16 %v1018, %v986
        %v1211 = vpack.c.b16 %v1019, %v987
        %v1212 = vpack.c.b16 %v1052, %v1020
        %v1213 = vpack.c.b16 %v1053, %v1021
        %v1214 = vpack.c.b16 %v1054, %v1022
        %v1215 = vpack.c.b16 %v1055, %v1023
        %v1216 = vpack.c.b16 %v1056, %v1024
        %v1217 = vpack.c.b16 %v1057, %v1025
        %v1218 = vpack.c.b16 %v1058, %v1026
        %v1219 = vpack.c.b16 %v1059, %v1027
        %v1220 = vpack.c.b16 %v1060, %v1028
        %v1221 = vpack.c.b16 %v1061, %v1029
        %v1222 = vpack.c.b16 %v1062, %v1030
        %v1223 = vpack.c.b16 %v1063, %v1031
        %v1224 = vpack.c.b16 %v1064, %v1032
        %v1225 = vpack.c.b16 %v1065, %v1033
        %v1226 = vpack.c.b16 %v1066, %v1034
        %v1227 = vpack.c.b16 %v1067, %v1035
        %v1228 = vpack.c.b16 %v1068, %v1036
        %v1229 = vpack.c.b16 %v1069, %v1037
        %v1230 = vpack.c.b16 %v1070, %v1038
        %v1231 = vpack.c.b16 %v1071, %v1039
        %v1232 = vpack.c.b16 %v1072, %v1040
        %v1233 = vpack.c.b16 %v1073, %v1041
        %v1234 = vpack.c.b16 %v1074, %v1042
        %v1235 = vpack.c.b16 %v1075, %v1043
        %v1236 = vpack.c.b16 %v1076, %v1044
        %v1237 = vpack.c.b16 %v1077, %v1045
        %v1238 = vpack.c.b16 %v1078, %v1046
        %v1239 = vpack.c.b16 %v1079, %v1047
        %v1240 = vpack.c.b16 %v1080, %v1048
        %v1241 = vpack.c.b16 %v1081, %v1049
        %v1242 = vpack.c.b16 %v1082, %v1050
        %v1243 = vpack.c.b16 %v1083, %v1051
        %v1244 = vpack.c.b16 %v1116, %v1084
        %v1245 = vpack.c.b16 %v1117, %v1085
        %v1246 = vpack.c.b16 %v1118, %v1086
        %v1247 = vpack.c.b16 %v1119, %v1087
        %v1248 = vpack.c.b16 %v1120, %v1088
        %v1249 = vpack.c.b16 %v1121, %v1089
        %v1250 = vpack.c.b16 %v1122, %v1090
        %v1251 = vpack.c.b16 %v1123, %v1091
        %v1252 = vpack.c.b16 %v1124, %v1092
        %v1253 = vpack.c.b16 %v1125, %v1093
        %v1254 = vpack.c.b16 %v1126, %v1094
        %v1255 = vpack.c.b16 %v1127, %v1095
        %v1256 = vpack.c.b16 %v1128, %v1096
        %v1257 = vpack.c.b16 %v1129, %v1097
        %v1258 = vpack.c.b16 %v1130, %v1098
        %v1259 = vpack.c.b16 %v1131, %v1099
        %v1260 = vpack.c.b16 %v1132, %v1100
        %v1261 = vpack.c.b16 %v1133, %v1101
        %v1262 = vpack.c.b16 %v1134, %v1102
        %v1263 = vpack.c.b16 %v1135, %v1103
        %v1264 = vpack.c.b16 %v1136, %v1104
        %v1265 = vpack.c.b16 %v1137, %v1105
        %v1266 = vpack.c.b16 %v1138, %v1106
        %v1267 = vpack.c.b16 %v1139, %v1107
        %v1268 = vpack.c.b16 %v1140, %v1108
        %v1269 = vpack.c.b16 %v1141, %v1109
        %v1270 = vpack.c.b16 %v1142, %v1110
        %v1271 = vpack.c.b16 %v1143, %v1111
        %v1272 = vpack.c.b16 %v1144, %v1112
        %v1273 = vpack.c.b16 %v1145, %v1113
        %v1274 = vpack.c.b16 %v1146, %v1114
        %v1275 = vpack.c.b16 %v1147, %v1115
        %vm1404 = vcmask 523264
        %v1406 = vsel %vm1404, %v563, 0
        %1408 = vmatpush.bf16.msra.mxu0 0
        %1409 = vmatpush.bf16.msra.mxu0 0
        %1410 = vmatpush.bf16.msra.mxu0 0
        %1411 = vmatpush.bf16.msra.mxu0 0
        %1412 = vmatpush.bf16.msra.mxu0 %v1244
        %1413 = vmatpush.bf16.msra.mxu0 %v1212
        %1414 = vmatpush.bf16.msra.mxu0 %v1180
        %1415 = vmatpush.bf16.msra.mxu0 %v1148
        %1416 = vmatmul.bf16.gmra.mxu0 %v1406
        %v1417 = vpop.f32.mrf.mxu0
        %v1418 = vadd.f32 %v700, %v1417
        %v1419 = vpop.f32.mrf.mxu0
        %1420 = vdwg.mxu0
        %1421 = vmatpush.bf16.msra.mxu0 0
        %1422 = vmatpush.bf16.msra.mxu0 0
        %1423 = vmatpush.bf16.msra.mxu0 0
        %1424 = vmatpush.bf16.msra.mxu0 0
        %1425 = vmatpush.bf16.msra.mxu0 %v1245
        %1426 = vmatpush.bf16.msra.mxu0 %v1213
        %1427 = vmatpush.bf16.msra.mxu0 %v1181
        %1428 = vmatpush.bf16.msra.mxu0 %v1149
        %1429 = vmatmul.bf16.gmra.mxu0 %v1406
        %v1430 = vpop.f32.mrf.mxu0
        %v1431 = vadd.f32 %v701, %v1430
        %v1432 = vpop.f32.mrf.mxu0
        %1433 = vdwg.mxu0
        %1434 = vmatpush.bf16.msra.mxu0 0
        %1435 = vmatpush.bf16.msra.mxu0 0
        %1436 = vmatpush.bf16.msra.mxu0 0
        %1437 = vmatpush.bf16.msra.mxu0 0
        %1438 = vmatpush.bf16.msra.mxu0 %v1246
        %1439 = vmatpush.bf16.msra.mxu0 %v1214
        %1440 = vmatpush.bf16.msra.mxu0 %v1182
        %1441 = vmatpush.bf16.msra.mxu0 %v1150
        %1442 = vmatmul.bf16.gmra.mxu0 %v1406
        %v1443 = vpop.f32.mrf.mxu0
        %v1444 = vadd.f32 %v702, %v1443
        %v1445 = vpop.f32.mrf.mxu0
        %1446 = vdwg.mxu0
        %1447 = vmatpush.bf16.msra.mxu0 0
        %1448 = vmatpush.bf16.msra.mxu0 0
        %1449 = vmatpush.bf16.msra.mxu0 0
        %1450 = vmatpush.bf16.msra.mxu0 0
        %1451 = vmatpush.bf16.msra.mxu0 %v1247
        %1452 = vmatpush.bf16.msra.mxu0 %v1215
        %1453 = vmatpush.bf16.msra.mxu0 %v1183
        %1454 = vmatpush.bf16.msra.mxu0 %v1151
        %1455 = vmatmul.bf16.gmra.mxu0 %v1406
        %v1456 = vpop.f32.mrf.mxu0
        %v1457 = vadd.f32 %v703, %v1456
        %v1458 = vpop.f32.mrf.mxu0
        %1459 = vdwg.mxu0
        %1460 = vmatpush.bf16.msra.mxu0 0
        %1461 = vmatpush.bf16.msra.mxu0 0
        %1462 = vmatpush.bf16.msra.mxu0 0
        %1463 = vmatpush.bf16.msra.mxu0 0
        %1464 = vmatpush.bf16.msra.mxu0 %v1248
        %1465 = vmatpush.bf16.msra.mxu0 %v1216
        %1466 = vmatpush.bf16.msra.mxu0 %v1184
        %1467 = vmatpush.bf16.msra.mxu0 %v1152
        %1468 = vmatmul.bf16.gmra.mxu0 %v1406
        %v1469 = vpop.f32.mrf.mxu0
        %v1470 = vadd.f32 %v704, %v1469
        %v1471 = vpop.f32.mrf.mxu0
        %1472 = vdwg.mxu0
        %1473 = vmatpush.bf16.msra.mxu0 0
        %1474 = vmatpush.bf16.msra.mxu0 0
        %1475 = vmatpush.bf16.msra.mxu0 0
        %1476 = vmatpush.bf16.msra.mxu0 0
        %1477 = vmatpush.bf16.msra.mxu0 %v1249
        %1478 = vmatpush.bf16.msra.mxu0 %v1217
        %1479 = vmatpush.bf16.msra.mxu0 %v1185
        %1480 = vmatpush.bf16.msra.mxu0 %v1153
        %1481 = vmatmul.bf16.gmra.mxu0 %v1406
        %v1482 = vpop.f32.mrf.mxu0
        %v1483 = vadd.f32 %v705, %v1482
        %v1484 = vpop.f32.mrf.mxu0
        %1485 = vdwg.mxu0
        %1486 = vmatpush.bf16.msra.mxu0 0
        %1487 = vmatpush.bf16.msra.mxu0 0
        %1488 = vmatpush.bf16.msra.mxu0 0
        %1489 = vmatpush.bf16.msra.mxu0 0
        %1490 = vmatpush.bf16.msra.mxu0 %v1250
        %1491 = vmatpush.bf16.msra.mxu0 %v1218
        %1492 = vmatpush.bf16.msra.mxu0 %v1186
        %1493 = vmatpush.bf16.msra.mxu0 %v1154
        %1494 = vmatmul.bf16.gmra.mxu0 %v1406
        %v1495 = vpop.f32.mrf.mxu0
        %v1496 = vadd.f32 %v706, %v1495
        %v1497 = vpop.f32.mrf.mxu0
        %1498 = vdwg.mxu0
        %1499 = vmatpush.bf16.msra.mxu0 0
        %1500 = vmatpush.bf16.msra.mxu0 0
        %1501 = vmatpush.bf16.msra.mxu0 0
        %1502 = vmatpush.bf16.msra.mxu0 0
        %1503 = vmatpush.bf16.msra.mxu0 %v1251
        %1504 = vmatpush.bf16.msra.mxu0 %v1219
        %1505 = vmatpush.bf16.msra.mxu0 %v1187
        %1506 = vmatpush.bf16.msra.mxu0 %v1155
        %1507 = vmatmul.bf16.gmra.mxu0 %v1406
        %v1508 = vpop.f32.mrf.mxu0
        %v1509 = vadd.f32 %v707, %v1508
        %v1510 = vpop.f32.mrf.mxu0
        %1511 = vdwg.mxu0
        %1512 = vmatpush.bf16.msra.mxu0 0
        %1513 = vmatpush.bf16.msra.mxu0 0
        %1514 = vmatpush.bf16.msra.mxu0 0
        %1515 = vmatpush.bf16.msra.mxu0 0
        %1516 = vmatpush.bf16.msra.mxu0 %v1252
        %1517 = vmatpush.bf16.msra.mxu0 %v1220
        %1518 = vmatpush.bf16.msra.mxu0 %v1188
        %1519 = vmatpush.bf16.msra.mxu0 %v1156
        %1520 = vmatmul.bf16.gmra.mxu0 %v1406
        %v1521 = vpop.f32.mrf.mxu0
        %v1522 = vadd.f32 %v708, %v1521
        %v1523 = vpop.f32.mrf.mxu0
        %1524 = vdwg.mxu0
        %1525 = vmatpush.bf16.msra.mxu0 0
        %1526 = vmatpush.bf16.msra.mxu0 0
        %1527 = vmatpush.bf16.msra.mxu0 0
        %1528 = vmatpush.bf16.msra.mxu0 0
        %1529 = vmatpush.bf16.msra.mxu0 %v1253
        %1530 = vmatpush.bf16.msra.mxu0 %v1221
        %1531 = vmatpush.bf16.msra.mxu0 %v1189
        %1532 = vmatpush.bf16.msra.mxu0 %v1157
        %1533 = vmatmul.bf16.gmra.mxu0 %v1406
        %v1534 = vpop.f32.mrf.mxu0
        %v1535 = vadd.f32 %v709, %v1534
        %v1536 = vpop.f32.mrf.mxu0
        %1537 = vdwg.mxu0
        %1538 = vmatpush.bf16.msra.mxu0 0
        %1539 = vmatpush.bf16.msra.mxu0 0
        %1540 = vmatpush.bf16.msra.mxu0 0
        %1541 = vmatpush.bf16.msra.mxu0 0
        %1542 = vmatpush.bf16.msra.mxu0 %v1254
        %1543 = vmatpush.bf16.msra.mxu0 %v1222
        %1544 = vmatpush.bf16.msra.mxu0 %v1190
        %1545 = vmatpush.bf16.msra.mxu0 %v1158
        %1546 = vmatmul.bf16.gmra.mxu0 %v1406
        %v1547 = vpop.f32.mrf.mxu0
        %v1548 = vadd.f32 %v710, %v1547
        %v1549 = vpop.f32.mrf.mxu0
        %1550 = vdwg.mxu0
        %1551 = vmatpush.bf16.msra.mxu0 0
        %1552 = vmatpush.bf16.msra.mxu0 0
        %1553 = vmatpush.bf16.msra.mxu0 0
        %1554 = vmatpush.bf16.msra.mxu0 0
        %1555 = vmatpush.bf16.msra.mxu0 %v1255
        %1556 = vmatpush.bf16.msra.mxu0 %v1223
        %1557 = vmatpush.bf16.msra.mxu0 %v1191
        %1558 = vmatpush.bf16.msra.mxu0 %v1159
        %1559 = vmatmul.bf16.gmra.mxu0 %v1406
        %v1560 = vpop.f32.mrf.mxu0
        %v1561 = vadd.f32 %v711, %v1560
        %v1562 = vpop.f32.mrf.mxu0
        %1563 = vdwg.mxu0
        %1564 = vmatpush.bf16.msra.mxu0 0
        %1565 = vmatpush.bf16.msra.mxu0 0
        %1566 = vmatpush.bf16.msra.mxu0 0
        %1567 = vmatpush.bf16.msra.mxu0 0
        %1568 = vmatpush.bf16.msra.mxu0 %v1256
        %1569 = vmatpush.bf16.msra.mxu0 %v1224
        %1570 = vmatpush.bf16.msra.mxu0 %v1192
        %1571 = vmatpush.bf16.msra.mxu0 %v1160
        %1572 = vmatmul.bf16.gmra.mxu0 %v1406
        %v1573 = vpop.f32.mrf.mxu0
        %v1574 = vadd.f32 %v712, %v1573
        %v1575 = vpop.f32.mrf.mxu0
        %1576 = vdwg.mxu0
        %1577 = vmatpush.bf16.msra.mxu0 0
        %1578 = vmatpush.bf16.msra.mxu0 0
        %1579 = vmatpush.bf16.msra.mxu0 0
        %1580 = vmatpush.bf16.msra.mxu0 0
        %1581 = vmatpush.bf16.msra.mxu0 %v1257
        %1582 = vmatpush.bf16.msra.mxu0 %v1225
        %1583 = vmatpush.bf16.msra.mxu0 %v1193
        %1584 = vmatpush.bf16.msra.mxu0 %v1161
        %1585 = vmatmul.bf16.gmra.mxu0 %v1406
        %v1586 = vpop.f32.mrf.mxu0
        %v1587 = vadd.f32 %v713, %v1586
        %v1588 = vpop.f32.mrf.mxu0
        %1589 = vdwg.mxu0
        %1590 = vmatpush.bf16.msra.mxu0 0
        %1591 = vmatpush.bf16.msra.mxu0 0
        %1592 = vmatpush.bf16.msra.mxu0 0
        %1593 = vmatpush.bf16.msra.mxu0 0
        %1594 = vmatpush.bf16.msra.mxu0 %v1258
        %1595 = vmatpush.bf16.msra.mxu0 %v1226
        %1596 = vmatpush.bf16.msra.mxu0 %v1194
        %1597 = vmatpush.bf16.msra.mxu0 %v1162
        %1598 = vmatmul.bf16.gmra.mxu0 %v1406
        %v1599 = vpop.f32.mrf.mxu0
        %v1600 = vadd.f32 %v714, %v1599
        %v1601 = vpop.f32.mrf.mxu0
        %1602 = vdwg.mxu0
        %1603 = vmatpush.bf16.msra.mxu0 0
        %1604 = vmatpush.bf16.msra.mxu0 0
        %1605 = vmatpush.bf16.msra.mxu0 0
        %1606 = vmatpush.bf16.msra.mxu0 0
        %1607 = vmatpush.bf16.msra.mxu0 %v1259
        %1608 = vmatpush.bf16.msra.mxu0 %v1227
        %1609 = vmatpush.bf16.msra.mxu0 %v1195
        %1610 = vmatpush.bf16.msra.mxu0 %v1163
        %1611 = vmatmul.bf16.gmra.mxu0 %v1406
        %v1612 = vpop.f32.mrf.mxu0
        %v1613 = vadd.f32 %v715, %v1612
        %v1614 = vpop.f32.mrf.mxu0
        %1615 = vdwg.mxu0
        %1616 = vmatpush.bf16.msra.mxu0 0
        %1617 = vmatpush.bf16.msra.mxu0 0
        %1618 = vmatpush.bf16.msra.mxu0 0
        %1619 = vmatpush.bf16.msra.mxu0 0
        %1620 = vmatpush.bf16.msra.mxu0 %v1260
        %1621 = vmatpush.bf16.msra.mxu0 %v1228
        %1622 = vmatpush.bf16.msra.mxu0 %v1196
        %1623 = vmatpush.bf16.msra.mxu0 %v1164
        %1624 = vmatmul.bf16.gmra.mxu0 %v1406
        %v1625 = vpop.f32.mrf.mxu0
        %v1626 = vadd.f32 %v716, %v1625
        %v1627 = vpop.f32.mrf.mxu0
        %1628 = vdwg.mxu0
        %1629 = vmatpush.bf16.msra.mxu0 0
        %1630 = vmatpush.bf16.msra.mxu0 0
        %1631 = vmatpush.bf16.msra.mxu0 0
        %1632 = vmatpush.bf16.msra.mxu0 0
        %1633 = vmatpush.bf16.msra.mxu0 %v1261
        %1634 = vmatpush.bf16.msra.mxu0 %v1229
        %1635 = vmatpush.bf16.msra.mxu0 %v1197
        %1636 = vmatpush.bf16.msra.mxu0 %v1165
        %1637 = vmatmul.bf16.gmra.mxu0 %v1406
        %v1638 = vpop.f32.mrf.mxu0
        %v1639 = vadd.f32 %v717, %v1638
        %v1640 = vpop.f32.mrf.mxu0
        %1641 = vdwg.mxu0
        %1642 = vmatpush.bf16.msra.mxu0 0
        %1643 = vmatpush.bf16.msra.mxu0 0
        %1644 = vmatpush.bf16.msra.mxu0 0
        %1645 = vmatpush.bf16.msra.mxu0 0
        %1646 = vmatpush.bf16.msra.mxu0 %v1262
        %1647 = vmatpush.bf16.msra.mxu0 %v1230
        %1648 = vmatpush.bf16.msra.mxu0 %v1198
        %1649 = vmatpush.bf16.msra.mxu0 %v1166
        %1650 = vmatmul.bf16.gmra.mxu0 %v1406
        %v1651 = vpop.f32.mrf.mxu0
        %v1652 = vadd.f32 %v718, %v1651
        %v1653 = vpop.f32.mrf.mxu0
        %1654 = vdwg.mxu0
        %1655 = vmatpush.bf16.msra.mxu0 0
        %1656 = vmatpush.bf16.msra.mxu0 0
        %1657 = vmatpush.bf16.msra.mxu0 0
        %1658 = vmatpush.bf16.msra.mxu0 0
        %1659 = vmatpush.bf16.msra.mxu0 %v1263
        %1660 = vmatpush.bf16.msra.mxu0 %v1231
        %1661 = vmatpush.bf16.msra.mxu0 %v1199
        %1662 = vmatpush.bf16.msra.mxu0 %v1167
        %1663 = vmatmul.bf16.gmra.mxu0 %v1406
        %v1664 = vpop.f32.mrf.mxu0
        %v1665 = vadd.f32 %v719, %v1664
        %v1666 = vpop.f32.mrf.mxu0
        %1667 = vdwg.mxu0
        %1668 = vmatpush.bf16.msra.mxu0 0
        %1669 = vmatpush.bf16.msra.mxu0 0
        %1670 = vmatpush.bf16.msra.mxu0 0
        %1671 = vmatpush.bf16.msra.mxu0 0
        %1672 = vmatpush.bf16.msra.mxu0 %v1264
        %1673 = vmatpush.bf16.msra.mxu0 %v1232
        %1674 = vmatpush.bf16.msra.mxu0 %v1200
        %1675 = vmatpush.bf16.msra.mxu0 %v1168
        %1676 = vmatmul.bf16.gmra.mxu0 %v1406
        %v1677 = vpop.f32.mrf.mxu0
        %v1678 = vadd.f32 %v720, %v1677
        %v1679 = vpop.f32.mrf.mxu0
        %1680 = vdwg.mxu0
        %1681 = vmatpush.bf16.msra.mxu0 0
        %1682 = vmatpush.bf16.msra.mxu0 0
        %1683 = vmatpush.bf16.msra.mxu0 0
        %1684 = vmatpush.bf16.msra.mxu0 0
        %1685 = vmatpush.bf16.msra.mxu0 %v1265
        %1686 = vmatpush.bf16.msra.mxu0 %v1233
        %1687 = vmatpush.bf16.msra.mxu0 %v1201
        %1688 = vmatpush.bf16.msra.mxu0 %v1169
        %1689 = vmatmul.bf16.gmra.mxu0 %v1406
        %v1690 = vpop.f32.mrf.mxu0
        %v1691 = vadd.f32 %v721, %v1690
        %v1692 = vpop.f32.mrf.mxu0
        %1693 = vdwg.mxu0
        %1694 = vmatpush.bf16.msra.mxu0 0
        %1695 = vmatpush.bf16.msra.mxu0 0
        %1696 = vmatpush.bf16.msra.mxu0 0
        %1697 = vmatpush.bf16.msra.mxu0 0
        %1698 = vmatpush.bf16.msra.mxu0 %v1266
        %1699 = vmatpush.bf16.msra.mxu0 %v1234
        %1700 = vmatpush.bf16.msra.mxu0 %v1202
        %1701 = vmatpush.bf16.msra.mxu0 %v1170
        %1702 = vmatmul.bf16.gmra.mxu0 %v1406
        %v1703 = vpop.f32.mrf.mxu0
        %v1704 = vadd.f32 %v722, %v1703
        %v1705 = vpop.f32.mrf.mxu0
        %1706 = vdwg.mxu0
        %1707 = vmatpush.bf16.msra.mxu0 0
        %1708 = vmatpush.bf16.msra.mxu0 0
        %1709 = vmatpush.bf16.msra.mxu0 0
        %1710 = vmatpush.bf16.msra.mxu0 0
        %1711 = vmatpush.bf16.msra.mxu0 %v1267
        %1712 = vmatpush.bf16.msra.mxu0 %v1235
        %1713 = vmatpush.bf16.msra.mxu0 %v1203
        %1714 = vmatpush.bf16.msra.mxu0 %v1171
        %1715 = vmatmul.bf16.gmra.mxu0 %v1406
        %v1716 = vpop.f32.mrf.mxu0
        %v1717 = vadd.f32 %v723, %v1716
        %v1718 = vpop.f32.mrf.mxu0
        %1719 = vdwg.mxu0
        %1720 = vmatpush.bf16.msra.mxu0 0
        %1721 = vmatpush.bf16.msra.mxu0 0
        %1722 = vmatpush.bf16.msra.mxu0 0
        %1723 = vmatpush.bf16.msra.mxu0 0
        %1724 = vmatpush.bf16.msra.mxu0 %v1268
        %1725 = vmatpush.bf16.msra.mxu0 %v1236
        %1726 = vmatpush.bf16.msra.mxu0 %v1204
        %1727 = vmatpush.bf16.msra.mxu0 %v1172
        %1728 = vmatmul.bf16.gmra.mxu0 %v1406
        %v1729 = vpop.f32.mrf.mxu0
        %v1730 = vadd.f32 %v724, %v1729
        %v1731 = vpop.f32.mrf.mxu0
        %1732 = vdwg.mxu0
        %1733 = vmatpush.bf16.msra.mxu0 0
        %1734 = vmatpush.bf16.msra.mxu0 0
        %1735 = vmatpush.bf16.msra.mxu0 0
        %1736 = vmatpush.bf16.msra.mxu0 0
        %1737 = vmatpush.bf16.msra.mxu0 %v1269
        %1738 = vmatpush.bf16.msra.mxu0 %v1237
        %1739 = vmatpush.bf16.msra.mxu0 %v1205
        %1740 = vmatpush.bf16.msra.mxu0 %v1173
        %1741 = vmatmul.bf16.gmra.mxu0 %v1406
        %v1742 = vpop.f32.mrf.mxu0
        %v1743 = vadd.f32 %v725, %v1742
        %v1744 = vpop.f32.mrf.mxu0
        %1745 = vdwg.mxu0
        %1746 = vmatpush.bf16.msra.mxu0 0
        %1747 = vmatpush.bf16.msra.mxu0 0
        %1748 = vmatpush.bf16.msra.mxu0 0
        %1749 = vmatpush.bf16.msra.mxu0 0
        %1750 = vmatpush.bf16.msra.mxu0 %v1270
        %1751 = vmatpush.bf16.msra.mxu0 %v1238
        %1752 = vmatpush.bf16.msra.mxu0 %v1206
        %1753 = vmatpush.bf16.msra.mxu0 %v1174
        %1754 = vmatmul.bf16.gmra.mxu0 %v1406
        %v1755 = vpop.f32.mrf.mxu0
        %v1756 = vadd.f32 %v726, %v1755
        %v1757 = vpop.f32.mrf.mxu0
        %1758 = vdwg.mxu0
        %1759 = vmatpush.bf16.msra.mxu0 0
        %1760 = vmatpush.bf16.msra.mxu0 0
        %1761 = vmatpush.bf16.msra.mxu0 0
        %1762 = vmatpush.bf16.msra.mxu0 0
        %1763 = vmatpush.bf16.msra.mxu0 %v1271
        %1764 = vmatpush.bf16.msra.mxu0 %v1239
        %1765 = vmatpush.bf16.msra.mxu0 %v1207
        %1766 = vmatpush.bf16.msra.mxu0 %v1175
        %1767 = vmatmul.bf16.gmra.mxu0 %v1406
        %v1768 = vpop.f32.mrf.mxu0
        %v1769 = vadd.f32 %v727, %v1768
        %v1770 = vpop.f32.mrf.mxu0
        %1771 = vdwg.mxu0
        %1772 = vmatpush.bf16.msra.mxu0 0
        %1773 = vmatpush.bf16.msra.mxu0 0
        %1774 = vmatpush.bf16.msra.mxu0 0
        %1775 = vmatpush.bf16.msra.mxu0 0
        %1776 = vmatpush.bf16.msra.mxu0 %v1272
        %1777 = vmatpush.bf16.msra.mxu0 %v1240
        %1778 = vmatpush.bf16.msra.mxu0 %v1208
        %1779 = vmatpush.bf16.msra.mxu0 %v1176
        %1780 = vmatmul.bf16.gmra.mxu0 %v1406
        %v1781 = vpop.f32.mrf.mxu0
        %v1782 = vadd.f32 %v728, %v1781
        %v1783 = vpop.f32.mrf.mxu0
        %1784 = vdwg.mxu0
        %1785 = vmatpush.bf16.msra.mxu0 0
        %1786 = vmatpush.bf16.msra.mxu0 0
        %1787 = vmatpush.bf16.msra.mxu0 0
        %1788 = vmatpush.bf16.msra.mxu0 0
        %1789 = vmatpush.bf16.msra.mxu0 %v1273
        %1790 = vmatpush.bf16.msra.mxu0 %v1241
        %1791 = vmatpush.bf16.msra.mxu0 %v1209
        %1792 = vmatpush.bf16.msra.mxu0 %v1177
        %1793 = vmatmul.bf16.gmra.mxu0 %v1406
        %v1794 = vpop.f32.mrf.mxu0
        %v1795 = vadd.f32 %v729, %v1794
        %v1796 = vpop.f32.mrf.mxu0
        %1797 = vdwg.mxu0
        %1798 = vmatpush.bf16.msra.mxu0 0
        %1799 = vmatpush.bf16.msra.mxu0 0
        %1800 = vmatpush.bf16.msra.mxu0 0
        %1801 = vmatpush.bf16.msra.mxu0 0
        %1802 = vmatpush.bf16.msra.mxu0 %v1274
        %1803 = vmatpush.bf16.msra.mxu0 %v1242
        %1804 = vmatpush.bf16.msra.mxu0 %v1210
        %1805 = vmatpush.bf16.msra.mxu0 %v1178
        %1806 = vmatmul.bf16.gmra.mxu0 %v1406
        %v1807 = vpop.f32.mrf.mxu0
        %v1808 = vadd.f32 %v730, %v1807
        %v1809 = vpop.f32.mrf.mxu0
        %1810 = vdwg.mxu0
        %1811 = vmatpush.bf16.msra.mxu0 0
        %1812 = vmatpush.bf16.msra.mxu0 0
        %1813 = vmatpush.bf16.msra.mxu0 0
        %1814 = vmatpush.bf16.msra.mxu0 0
        %1815 = vmatpush.bf16.msra.mxu0 %v1275
        %1816 = vmatpush.bf16.msra.mxu0 %v1243
        %1817 = vmatpush.bf16.msra.mxu0 %v1211
        %1818 = vmatpush.bf16.msra.mxu0 %v1179
        %1819 = vmatmul.bf16.gmra.mxu0 %v1406
        %v1820 = vpop.f32.mrf.mxu0
        %v1821 = vadd.f32 %v731, %v1820
        %v1822 = vpop.f32.mrf.mxu0
        %1823 = vdwg.mxu0
        %vm1824 = vcmp.gt.f32.partialorder %v1418, 0.0
        %vm1825 = vcmp.gt.f32.partialorder %v1431, 0.0
        %vm1826 = vcmp.gt.f32.partialorder %v1444, 0.0
        %vm1827 = vcmp.gt.f32.partialorder %v1457, 0.0
        %vm1828 = vcmp.gt.f32.partialorder %v1470, 0.0
        %vm1829 = vcmp.gt.f32.partialorder %v1483, 0.0
        %vm1830 = vcmp.gt.f32.partialorder %v1496, 0.0
        %vm1831 = vcmp.gt.f32.partialorder %v1509, 0.0
        %vm1832 = vcmp.gt.f32.partialorder %v1522, 0.0
        %vm1833 = vcmp.gt.f32.partialorder %v1535, 0.0
        %vm1834 = vcmp.gt.f32.partialorder %v1548, 0.0
        %vm1835 = vcmp.gt.f32.partialorder %v1561, 0.0
        %vm1836 = vcmp.gt.f32.partialorder %v1574, 0.0
        %vm1837 = vcmp.gt.f32.partialorder %v1587, 0.0
        %vm1838 = vcmp.gt.f32.partialorder %v1600, 0.0
        %vm1839 = vcmp.gt.f32.partialorder %v1613, 0.0
        %vm1840 = vcmp.gt.f32.partialorder %v1626, 0.0
        %vm1841 = vcmp.gt.f32.partialorder %v1639, 0.0
        %vm1842 = vcmp.gt.f32.partialorder %v1652, 0.0
        %vm1843 = vcmp.gt.f32.partialorder %v1665, 0.0
        %vm1844 = vcmp.gt.f32.partialorder %v1678, 0.0
        %vm1845 = vcmp.gt.f32.partialorder %v1691, 0.0
        %vm1846 = vcmp.gt.f32.partialorder %v1704, 0.0
        %vm1847 = vcmp.gt.f32.partialorder %v1717, 0.0
        %vm1848 = vcmp.gt.f32.partialorder %v1730, 0.0
        %vm1849 = vcmp.gt.f32.partialorder %v1743, 0.0
        %vm1850 = vcmp.gt.f32.partialorder %v1756, 0.0
        %vm1851 = vcmp.gt.f32.partialorder %v1769, 0.0
        %vm1852 = vcmp.gt.f32.partialorder %v1782, 0.0
        %vm1853 = vcmp.gt.f32.partialorder %v1795, 0.0
        %vm1854 = vcmp.gt.f32.partialorder %v1808, 0.0
        %vm1855 = vcmp.gt.f32.partialorder %v1821, 0.0
        %v1856 = vmul.f32 %v1418, 0.2
        %v1857 = vmul.f32 %v1431, 0.2
        %v1858 = vmul.f32 %v1444, 0.2
        %v1859 = vmul.f32 %v1457, 0.2
        %v1860 = vmul.f32 %v1470, 0.2
        %v1861 = vmul.f32 %v1483, 0.2
        %v1862 = vmul.f32 %v1496, 0.2
        %v1863 = vmul.f32 %v1509, 0.2
        %v1864 = vmul.f32 %v1522, 0.2
        %v1865 = vmul.f32 %v1535, 0.2
        %v1866 = vmul.f32 %v1548, 0.2
        %v1867 = vmul.f32 %v1561, 0.2
        %v1868 = vmul.f32 %v1574, 0.2
        %v1869 = vmul.f32 %v1587, 0.2
        %v1870 = vmul.f32 %v1600, 0.2
        %v1871 = vmul.f32 %v1613, 0.2
        %v1872 = vmul.f32 %v1626, 0.2
        %v1873 = vmul.f32 %v1639, 0.2
        %v1874 = vmul.f32 %v1652, 0.2
        %v1875 = vmul.f32 %v1665, 0.2
        %v1876 = vmul.f32 %v1678, 0.2
        %v1877 = vmul.f32 %v1691, 0.2
        %v1878 = vmul.f32 %v1704, 0.2
        %v1879 = vmul.f32 %v1717, 0.2
        %v1880 = vmul.f32 %v1730, 0.2
        %v1881 = vmul.f32 %v1743, 0.2
        %v1882 = vmul.f32 %v1756, 0.2
        %v1883 = vmul.f32 %v1769, 0.2
        %v1884 = vmul.f32 %v1782, 0.2
        %v1885 = vmul.f32 %v1795, 0.2
        %v1886 = vmul.f32 %v1808, 0.2
        %v1887 = vmul.f32 %v1821, 0.2
        %v1888 = vsel %vm1824, %v1418, %v1856
        %v1889 = vsel %vm1825, %v1431, %v1857
        %v1890 = vsel %vm1826, %v1444, %v1858
        %v1891 = vsel %vm1827, %v1457, %v1859
        %v1892 = vsel %vm1828, %v1470, %v1860
        %v1893 = vsel %vm1829, %v1483, %v1861
        %v1894 = vsel %vm1830, %v1496, %v1862
        %v1895 = vsel %vm1831, %v1509, %v1863
        %v1896 = vsel %vm1832, %v1522, %v1864
        %v1897 = vsel %vm1833, %v1535, %v1865
        %v1898 = vsel %vm1834, %v1548, %v1866
        %v1899 = vsel %vm1835, %v1561, %v1867
        %v1900 = vsel %vm1836, %v1574, %v1868
        %v1901 = vsel %vm1837, %v1587, %v1869
        %v1902 = vsel %vm1838, %v1600, %v1870
        %v1903 = vsel %vm1839, %v1613, %v1871
        %v1904 = vsel %vm1840, %v1626, %v1872
        %v1905 = vsel %vm1841, %v1639, %v1873
        %v1906 = vsel %vm1842, %v1652, %v1874
        %v1907 = vsel %vm1843, %v1665, %v1875
        %v1908 = vsel %vm1844, %v1678, %v1876
        %v1909 = vsel %vm1845, %v1691, %v1877
        %v1910 = vsel %vm1846, %v1704, %v1878
        %v1911 = vsel %vm1847, %v1717, %v1879
        %v1912 = vsel %vm1848, %v1730, %v1880
        %v1913 = vsel %vm1849, %v1743, %v1881
        %v1914 = vsel %vm1850, %v1756, %v1882
        %v1915 = vsel %vm1851, %v1769, %v1883
        %v1916 = vsel %vm1852, %v1782, %v1884
        %v1917 = vsel %vm1853, %v1795, %v1885
        %v1918 = vsel %vm1854, %v1808, %v1886
        %v1919 = vsel %vm1855, %v1821, %v1887
        %v1922 = vrot.slane %v1889, 7
        %vm1923 = vcmask 1040384
        %v1924 = vsel %vm1923, %v1888, %v1922
        %v1926 = vlaneseq
        %vm1927 = vcmp.ge.s32.totalorder %v1926, 0
        %vm1928 = vcmp.lt.s32.totalorder %v1926, 256
        %vm1929 = vmand %vm1927, %vm1928
        %1930 = vst.msk [vmem:[#allocation2] ss:$8 sm:$0x3] %vm1929, %v1924
        %1931 = vst.msk [vmem:[#allocation2] ss:$8 sm:$0x0] %vm1929, %v1924
        %v1934 = vrot.slane %v1891, 7
        %v1935 = vsel %vm1923, %v1890, %v1934
        %s1937 = scalar_lea.vmem [#allocation2], 1
        %1938 = vst.msk [vmem:[%s1937] ss:$8 sm:$0x3] %vm1929, %v1935
        %1939 = vst.msk [vmem:[%s1937] ss:$8 sm:$0x0] %vm1929, %v1935
        %v1942 = vrot.slane %v1893, 7
        %v1943 = vsel %vm1923, %v1892, %v1942
        %s1945 = scalar_lea.vmem [#allocation2], 2
        %1946 = vst.msk [vmem:[%s1945] ss:$8 sm:$0x3] %vm1929, %v1943
        %1947 = vst.msk [vmem:[%s1945] ss:$8 sm:$0x0] %vm1929, %v1943
        %v1950 = vrot.slane %v1895, 7
        %v1951 = vsel %vm1923, %v1894, %v1950
        %s1953 = scalar_lea.vmem [#allocation2], 3
        %1954 = vst.msk [vmem:[%s1953] ss:$8 sm:$0x3] %vm1929, %v1951
        %1955 = vst.msk [vmem:[%s1953] ss:$8 sm:$0x0] %vm1929, %v1951
        %v1958 = vrot.slane %v1897, 7
        %v1959 = vsel %vm1923, %v1896, %v1958
        %s1961 = scalar_lea.vmem [#allocation2], 4
        %1962 = vst.msk [vmem:[%s1961] ss:$8 sm:$0x3] %vm1929, %v1959
        %1963 = vst.msk [vmem:[%s1961] ss:$8 sm:$0x0] %vm1929, %v1959
        %v1966 = vrot.slane %v1899, 7
        %v1967 = vsel %vm1923, %v1898, %v1966
        %s1969 = scalar_lea.vmem [#allocation2], 5
        %1970 = vst.msk [vmem:[%s1969] ss:$8 sm:$0x3] %vm1929, %v1967
        %1971 = vst.msk [vmem:[%s1969] ss:$8 sm:$0x0] %vm1929, %v1967
        %v1974 = vrot.slane %v1901, 7
        %v1975 = vsel %vm1923, %v1900, %v1974
        %s1977 = scalar_lea.vmem [#allocation2], 6
        %1978 = vst.msk [vmem:[%s1977] ss:$8 sm:$0x3] %vm1929, %v1975
        %1979 = vst.msk [vmem:[%s1977] ss:$8 sm:$0x0] %vm1929, %v1975
        %v1982 = vrot.slane %v1903, 7
        %v1983 = vsel %vm1923, %v1902, %v1982
        %s1985 = scalar_lea.vmem [#allocation2], 7
        %1986 = vst.msk [vmem:[%s1985] ss:$8 sm:$0x3] %vm1929, %v1983
        %1987 = vst.msk [vmem:[%s1985] ss:$8 sm:$0x0] %vm1929, %v1983
        %v1990 = vrot.slane %v1905, 7
        %v1991 = vsel %vm1923, %v1904, %v1990
        %s1993 = scalar_lea.vmem [#allocation2], 16
        %1994 = vst.msk [vmem:[%s1993] ss:$8 sm:$0x3] %vm1929, %v1991
        %1995 = vst.msk [vmem:[%s1993] ss:$8 sm:$0x0] %vm1929, %v1991
        %v1998 = vrot.slane %v1907, 7
        %v1999 = vsel %vm1923, %v1906, %v1998
        %s2001 = scalar_lea.vmem [#allocation2], 17
        %2002 = vst.msk [vmem:[%s2001] ss:$8 sm:$0x3] %vm1929, %v1999
        %2003 = vst.msk [vmem:[%s2001] ss:$8 sm:$0x0] %vm1929, %v1999
        %v2006 = vrot.slane %v1909, 7
        %v2007 = vsel %vm1923, %v1908, %v2006
        %s2009 = scalar_lea.vmem [#allocation2], 18
        %2010 = vst.msk [vmem:[%s2009] ss:$8 sm:$0x3] %vm1929, %v2007
        %2011 = vst.msk [vmem:[%s2009] ss:$8 sm:$0x0] %vm1929, %v2007
        %v2014 = vrot.slane %v1911, 7
        %v2015 = vsel %vm1923, %v1910, %v2014
        %s2017 = scalar_lea.vmem [#allocation2], 19
        %2018 = vst.msk [vmem:[%s2017] ss:$8 sm:$0x3] %vm1929, %v2015
        %2019 = vst.msk [vmem:[%s2017] ss:$8 sm:$0x0] %vm1929, %v2015
        %v2022 = vrot.slane %v1913, 7
        %v2023 = vsel %vm1923, %v1912, %v2022
        %s2025 = scalar_lea.vmem [#allocation2], 20
        %2026 = vst.msk [vmem:[%s2025] ss:$8 sm:$0x3] %vm1929, %v2023
        %2027 = vst.msk [vmem:[%s2025] ss:$8 sm:$0x0] %vm1929, %v2023
        %v2030 = vrot.slane %v1915, 7
        %v2031 = vsel %vm1923, %v1914, %v2030
        %s2033 = scalar_lea.vmem [#allocation2], 21
        %2034 = vst.msk [vmem:[%s2033] ss:$8 sm:$0x3] %vm1929, %v2031
        %2035 = vst.msk [vmem:[%s2033] ss:$8 sm:$0x0] %vm1929, %v2031
        %v2038 = vrot.slane %v1917, 7
        %v2039 = vsel %vm1923, %v1916, %v2038
        %s2041 = scalar_lea.vmem [#allocation2], 22
        %2042 = vst.msk [vmem:[%s2041] ss:$8 sm:$0x3] %vm1929, %v2039
        %2043 = vst.msk [vmem:[%s2041] ss:$8 sm:$0x0] %vm1929, %v2039
        %v2046 = vrot.slane %v1919, 7
        %v2047 = vsel %vm1923, %v1918, %v2046
        %s2049 = scalar_lea.vmem [#allocation2], 23
        %2050 = vst.msk [vmem:[%s2049] ss:$8 sm:$0x3] %vm1929, %v2047
        %2051 = vst.msk [vmem:[%s2049] ss:$8 sm:$0x0] %vm1929, %v2047
        %v2052 = vld [vmem:[#allocation2] sm:$0xff]
        %v2053 = vld [vmem:[#allocation2 + $0x8] sm:$0xff]
        %v2054 = vld [vmem:[#allocation2 + $0x10] sm:$0xff]
        %v2055 = vld [vmem:[#allocation2 + $0x18] sm:$0xff]
        %v2056 = vpack.c.bf16 %v2054, %v2052
        %v2057 = vpack.c.bf16 %v2055, %v2053
        %v2058 = vld [vmem:[#allocation9] sm:$0xff]
        %v2059 = vld [vmem:[#allocation9 + $0x8] sm:$0xff]
        %v2060 = vld [vmem:[#allocation9 + $0x10] sm:$0xff]
        %v2061 = vld [vmem:[#allocation9 + $0x18] sm:$0xff]
        %v2062 = vld [vmem:[#allocation9 + $0x20] sm:$0xff]
        %v2063 = vld [vmem:[#allocation9 + $0x28] sm:$0xff]
        %v2064 = vld [vmem:[#allocation9 + $0x30] sm:$0xff]
        %v2065 = vld [vmem:[#allocation9 + $0x38] sm:$0xff]
        %v2066 = vld [vmem:[#allocation9 + $0x40] sm:$0xff]
        %v2067 = vld [vmem:[#allocation9 + $0x48] sm:$0xff]
        %v2068 = vld [vmem:[#allocation9 + $0x50] sm:$0xff]
        %v2069 = vld [vmem:[#allocation9 + $0x58] sm:$0xff]
        %v2070 = vld [vmem:[#allocation9 + $0x60] sm:$0xff]
        %v2071 = vld [vmem:[#allocation9 + $0x68] sm:$0xff]
        %v2072 = vld [vmem:[#allocation9 + $0x70] sm:$0xff]
        %v2073 = vld [vmem:[#allocation9 + $0x78] sm:$0xff]
        %v2074 = vld [vmem:[#allocation9 + $0x80] sm:$0xff]
        %v2075 = vld [vmem:[#allocation9 + $0x88] sm:$0xff]
        %v2076 = vld [vmem:[#allocation9 + $0x90] sm:$0xff]
        %v2077 = vld [vmem:[#allocation9 + $0x98] sm:$0xff]
        %v2078 = vld [vmem:[#allocation9 + $0xa0] sm:$0xff]
        %v2079 = vld [vmem:[#allocation9 + $0xa8] sm:$0xff]
        %v2080 = vld [vmem:[#allocation9 + $0xb0] sm:$0xff]
        %v2081 = vld [vmem:[#allocation9 + $0xb8] sm:$0xff]
        %v2082 = vld [vmem:[#allocation9 + $0xc0] sm:$0xff]
        %v2083 = vld [vmem:[#allocation9 + $0xc8] sm:$0xff]
        %v2084 = vld [vmem:[#allocation9 + $0xd0] sm:$0xff]
        %v2085 = vld [vmem:[#allocation9 + $0xd8] sm:$0xff]
        %v2086 = vld [vmem:[#allocation9 + $0xe0] sm:$0xff]
        %v2087 = vld [vmem:[#allocation9 + $0xe8] sm:$0xff]
        %v2088 = vld [vmem:[#allocation9 + $0xf0] sm:$0xff]
        %v2089 = vld [vmem:[#allocation9 + $0xf8] sm:$0xff]
        %v2090 = vld [vmem:[#allocation9 + $0x100] sm:$0xff]
        %v2091 = vld [vmem:[#allocation9 + $0x108] sm:$0xff]
        %v2092 = vld [vmem:[#allocation9 + $0x110] sm:$0xff]
        %v2093 = vld [vmem:[#allocation9 + $0x118] sm:$0xff]
        %v2094 = vld [vmem:[#allocation9 + $0x120] sm:$0xff]
        %v2095 = vld [vmem:[#allocation9 + $0x128] sm:$0xff]
        %v2096 = vld [vmem:[#allocation9 + $0x130] sm:$0xff]
        %v2097 = vld [vmem:[#allocation9 + $0x138] sm:$0xff]
        %v2098 = vld [vmem:[#allocation9 + $0x140] sm:$0xff]
        %v2099 = vld [vmem:[#allocation9 + $0x148] sm:$0xff]
        %v2100 = vld [vmem:[#allocation9 + $0x150] sm:$0xff]
        %v2101 = vld [vmem:[#allocation9 + $0x158] sm:$0xff]
        %v2102 = vld [vmem:[#allocation9 + $0x160] sm:$0xff]
        %v2103 = vld [vmem:[#allocation9 + $0x168] sm:$0xff]
        %v2104 = vld [vmem:[#allocation9 + $0x170] sm:$0xff]
        %v2105 = vld [vmem:[#allocation9 + $0x178] sm:$0xff]
        %v2106 = vld [vmem:[#allocation9 + $0x180] sm:$0xff]
        %v2107 = vld [vmem:[#allocation9 + $0x188] sm:$0xff]
        %v2108 = vld [vmem:[#allocation9 + $0x190] sm:$0xff]
        %v2109 = vld [vmem:[#allocation9 + $0x198] sm:$0xff]
        %v2110 = vld [vmem:[#allocation9 + $0x1a0] sm:$0xff]
        %v2111 = vld [vmem:[#allocation9 + $0x1a8] sm:$0xff]
        %v2112 = vld [vmem:[#allocation9 + $0x1b0] sm:$0xff]
        %v2113 = vld [vmem:[#allocation9 + $0x1b8] sm:$0xff]
        %v2114 = vld [vmem:[#allocation9 + $0x1c0] sm:$0xff]
        %v2115 = vld [vmem:[#allocation9 + $0x1c8] sm:$0xff]
        %v2116 = vld [vmem:[#allocation9 + $0x1d0] sm:$0xff]
        %v2117 = vld [vmem:[#allocation9 + $0x1d8] sm:$0xff]
        %v2118 = vld [vmem:[#allocation9 + $0x1e0] sm:$0xff]
        %v2119 = vld [vmem:[#allocation9 + $0x1e8] sm:$0xff]
        %v2120 = vld [vmem:[#allocation9 + $0x1f0] sm:$0xff]
        %v2121 = vld [vmem:[#allocation9 + $0x1f8] sm:$0xff]
        %v2122 = vld [vmem:[#allocation9 + $0x200] sm:$0xff]
        %v2123 = vld [vmem:[#allocation9 + $0x208] sm:$0xff]
        %v2124 = vld [vmem:[#allocation9 + $0x210] sm:$0xff]
        %v2125 = vld [vmem:[#allocation9 + $0x218] sm:$0xff]
        %v2126 = vld [vmem:[#allocation9 + $0x220] sm:$0xff]
        %v2127 = vld [vmem:[#allocation9 + $0x228] sm:$0xff]
        %v2128 = vld [vmem:[#allocation9 + $0x230] sm:$0xff]
        %v2129 = vld [vmem:[#allocation9 + $0x238] sm:$0xff]
        %v2130 = vld [vmem:[#allocation9 + $0x240] sm:$0xff]
        %v2131 = vld [vmem:[#allocation9 + $0x248] sm:$0xff]
        %v2132 = vld [vmem:[#allocation9 + $0x250] sm:$0xff]
        %v2133 = vld [vmem:[#allocation9 + $0x258] sm:$0xff]
        %v2134 = vld [vmem:[#allocation9 + $0x260] sm:$0xff]
        %v2135 = vld [vmem:[#allocation9 + $0x268] sm:$0xff]
        %v2136 = vld [vmem:[#allocation9 + $0x270] sm:$0xff]
        %v2137 = vld [vmem:[#allocation9 + $0x278] sm:$0xff]
        %v2138 = vld [vmem:[#allocation9 + $0x280] sm:$0xff]
        %v2139 = vld [vmem:[#allocation9 + $0x288] sm:$0xff]
        %v2140 = vld [vmem:[#allocation9 + $0x290] sm:$0xff]
        %v2141 = vld [vmem:[#allocation9 + $0x298] sm:$0xff]
        %v2142 = vld [vmem:[#allocation9 + $0x2a0] sm:$0xff]
        %v2143 = vld [vmem:[#allocation9 + $0x2a8] sm:$0xff]
        %v2144 = vld [vmem:[#allocation9 + $0x2b0] sm:$0xff]
        %v2145 = vld [vmem:[#allocation9 + $0x2b8] sm:$0xff]
        %v2146 = vld [vmem:[#allocation9 + $0x2c0] sm:$0xff]
        %v2147 = vld [vmem:[#allocation9 + $0x2c8] sm:$0xff]
        %v2148 = vld [vmem:[#allocation9 + $0x2d0] sm:$0xff]
        %v2149 = vld [vmem:[#allocation9 + $0x2d8] sm:$0xff]
        %v2150 = vld [vmem:[#allocation9 + $0x2e0] sm:$0xff]
        %v2151 = vld [vmem:[#allocation9 + $0x2e8] sm:$0xff]
        %v2152 = vld [vmem:[#allocation9 + $0x2f0] sm:$0xff]
        %v2153 = vld [vmem:[#allocation9 + $0x2f8] sm:$0xff]
        %v2154 = vld [vmem:[#allocation9 + $0x300] sm:$0xff]
        %v2155 = vld [vmem:[#allocation9 + $0x308] sm:$0xff]
        %v2156 = vld [vmem:[#allocation9 + $0x310] sm:$0xff]
        %v2157 = vld [vmem:[#allocation9 + $0x318] sm:$0xff]
        %v2158 = vld [vmem:[#allocation9 + $0x320] sm:$0xff]
        %v2159 = vld [vmem:[#allocation9 + $0x328] sm:$0xff]
        %v2160 = vld [vmem:[#allocation9 + $0x330] sm:$0xff]
        %v2161 = vld [vmem:[#allocation9 + $0x338] sm:$0xff]
        %v2162 = vld [vmem:[#allocation9 + $0x340] sm:$0xff]
        %v2163 = vld [vmem:[#allocation9 + $0x348] sm:$0xff]
        %v2164 = vld [vmem:[#allocation9 + $0x350] sm:$0xff]
        %v2165 = vld [vmem:[#allocation9 + $0x358] sm:$0xff]
        %v2166 = vld [vmem:[#allocation9 + $0x360] sm:$0xff]
        %v2167 = vld [vmem:[#allocation9 + $0x368] sm:$0xff]
        %v2168 = vld [vmem:[#allocation9 + $0x370] sm:$0xff]
        %v2169 = vld [vmem:[#allocation9 + $0x378] sm:$0xff]
        %v2170 = vld [vmem:[#allocation9 + $0x380] sm:$0xff]
        %v2171 = vld [vmem:[#allocation9 + $0x388] sm:$0xff]
        %v2172 = vld [vmem:[#allocation9 + $0x390] sm:$0xff]
        %v2173 = vld [vmem:[#allocation9 + $0x398] sm:$0xff]
        %v2174 = vld [vmem:[#allocation9 + $0x3a0] sm:$0xff]
        %v2175 = vld [vmem:[#allocation9 + $0x3a8] sm:$0xff]
        %v2176 = vld [vmem:[#allocation9 + $0x3b0] sm:$0xff]
        %v2177 = vld [vmem:[#allocation9 + $0x3b8] sm:$0xff]
        %v2178 = vld [vmem:[#allocation9 + $0x3c0] sm:$0xff]
        %v2179 = vld [vmem:[#allocation9 + $0x3c8] sm:$0xff]
        %v2180 = vld [vmem:[#allocation9 + $0x3d0] sm:$0xff]
        %v2181 = vld [vmem:[#allocation9 + $0x3d8] sm:$0xff]
        %v2182 = vld [vmem:[#allocation9 + $0x3e0] sm:$0xff]
        %v2183 = vld [vmem:[#allocation9 + $0x3e8] sm:$0xff]
        %v2184 = vld [vmem:[#allocation9 + $0x3f0] sm:$0xff]
        %v2185 = vld [vmem:[#allocation9 + $0x3f8] sm:$0xff]
        %v2186 = vld [vmem:[#allocation9 + $0x400] sm:$0xff]
        %v2187 = vld [vmem:[#allocation9 + $0x408] sm:$0xff]
        %v2188 = vld [vmem:[#allocation9 + $0x410] sm:$0xff]
        %v2189 = vld [vmem:[#allocation9 + $0x418] sm:$0xff]
        %v2190 = vld [vmem:[#allocation9 + $0x420] sm:$0xff]
        %v2191 = vld [vmem:[#allocation9 + $0x428] sm:$0xff]
        %v2192 = vld [vmem:[#allocation9 + $0x430] sm:$0xff]
        %v2193 = vld [vmem:[#allocation9 + $0x438] sm:$0xff]
        %v2194 = vld [vmem:[#allocation9 + $0x440] sm:$0xff]
        %v2195 = vld [vmem:[#allocation9 + $0x448] sm:$0xff]
        %v2196 = vld [vmem:[#allocation9 + $0x450] sm:$0xff]
        %v2197 = vld [vmem:[#allocation9 + $0x458] sm:$0xff]
        %v2198 = vld [vmem:[#allocation9 + $0x460] sm:$0xff]
        %v2199 = vld [vmem:[#allocation9 + $0x468] sm:$0xff]
        %v2200 = vld [vmem:[#allocation9 + $0x470] sm:$0xff]
        %v2201 = vld [vmem:[#allocation9 + $0x478] sm:$0xff]
        %v2202 = vld [vmem:[#allocation9 + $0x480] sm:$0xff]
        %v2203 = vld [vmem:[#allocation9 + $0x488] sm:$0xff]
        %v2204 = vld [vmem:[#allocation9 + $0x490] sm:$0xff]
        %v2205 = vld [vmem:[#allocation9 + $0x498] sm:$0xff]
        %v2206 = vld [vmem:[#allocation9 + $0x4a0] sm:$0xff]
        %v2207 = vld [vmem:[#allocation9 + $0x4a8] sm:$0xff]
        %v2208 = vld [vmem:[#allocation9 + $0x4b0] sm:$0xff]
        %v2209 = vld [vmem:[#allocation9 + $0x4b8] sm:$0xff]
        %v2210 = vld [vmem:[#allocation9 + $0x4c0] sm:$0xff]
        %v2211 = vld [vmem:[#allocation9 + $0x4c8] sm:$0xff]
        %v2212 = vld [vmem:[#allocation9 + $0x4d0] sm:$0xff]
        %v2213 = vld [vmem:[#allocation9 + $0x4d8] sm:$0xff]
        %v2214 = vld [vmem:[#allocation9 + $0x4e0] sm:$0xff]
        %v2215 = vld [vmem:[#allocation9 + $0x4e8] sm:$0xff]
        %v2216 = vld [vmem:[#allocation9 + $0x4f0] sm:$0xff]
        %v2217 = vld [vmem:[#allocation9 + $0x4f8] sm:$0xff]
        %v2218 = vld [vmem:[#allocation9 + $0x500] sm:$0xff]
        %v2219 = vld [vmem:[#allocation9 + $0x508] sm:$0xff]
        %v2220 = vld [vmem:[#allocation9 + $0x510] sm:$0xff]
        %v2221 = vld [vmem:[#allocation9 + $0x518] sm:$0xff]
        %v2222 = vld [vmem:[#allocation9 + $0x520] sm:$0xff]
        %v2223 = vld [vmem:[#allocation9 + $0x528] sm:$0xff]
        %v2224 = vld [vmem:[#allocation9 + $0x530] sm:$0xff]
        %v2225 = vld [vmem:[#allocation9 + $0x538] sm:$0xff]
        %v2226 = vld [vmem:[#allocation9 + $0x540] sm:$0xff]
        %v2227 = vld [vmem:[#allocation9 + $0x548] sm:$0xff]
        %v2228 = vld [vmem:[#allocation9 + $0x550] sm:$0xff]
        %v2229 = vld [vmem:[#allocation9 + $0x558] sm:$0xff]
        %v2230 = vld [vmem:[#allocation9 + $0x560] sm:$0xff]
        %v2231 = vld [vmem:[#allocation9 + $0x568] sm:$0xff]
        %v2232 = vld [vmem:[#allocation9 + $0x570] sm:$0xff]
        %v2233 = vld [vmem:[#allocation9 + $0x578] sm:$0xff]
        %v2234 = vld [vmem:[#allocation9 + $0x580] sm:$0xff]
        %v2235 = vld [vmem:[#allocation9 + $0x588] sm:$0xff]
        %v2236 = vld [vmem:[#allocation9 + $0x590] sm:$0xff]
        %v2237 = vld [vmem:[#allocation9 + $0x598] sm:$0xff]
        %v2238 = vld [vmem:[#allocation9 + $0x5a0] sm:$0xff]
        %v2239 = vld [vmem:[#allocation9 + $0x5a8] sm:$0xff]
        %v2240 = vld [vmem:[#allocation9 + $0x5b0] sm:$0xff]
        %v2241 = vld [vmem:[#allocation9 + $0x5b8] sm:$0xff]
        %v2242 = vld [vmem:[#allocation9 + $0x5c0] sm:$0xff]
        %v2243 = vld [vmem:[#allocation9 + $0x5c8] sm:$0xff]
        %v2244 = vld [vmem:[#allocation9 + $0x5d0] sm:$0xff]
        %v2245 = vld [vmem:[#allocation9 + $0x5d8] sm:$0xff]
        %v2246 = vld [vmem:[#allocation9 + $0x5e0] sm:$0xff]
        %v2247 = vld [vmem:[#allocation9 + $0x5e8] sm:$0xff]
        %v2248 = vld [vmem:[#allocation9 + $0x5f0] sm:$0xff]
        %v2249 = vld [vmem:[#allocation9 + $0x5f8] sm:$0xff]
        %v2250 = vld [vmem:[#allocation9 + $0x600] sm:$0xff]
        %v2251 = vld [vmem:[#allocation9 + $0x608] sm:$0xff]
        %v2252 = vld [vmem:[#allocation9 + $0x610] sm:$0xff]
        %v2253 = vld [vmem:[#allocation9 + $0x618] sm:$0xff]
        %v2254 = vld [vmem:[#allocation9 + $0x620] sm:$0xff]
        %v2255 = vld [vmem:[#allocation9 + $0x628] sm:$0xff]
        %v2256 = vld [vmem:[#allocation9 + $0x630] sm:$0xff]
        %v2257 = vld [vmem:[#allocation9 + $0x638] sm:$0xff]
        %v2258 = vld [vmem:[#allocation9 + $0x640] sm:$0xff]
        %v2259 = vld [vmem:[#allocation9 + $0x648] sm:$0xff]
        %v2260 = vld [vmem:[#allocation9 + $0x650] sm:$0xff]
        %v2261 = vld [vmem:[#allocation9 + $0x658] sm:$0xff]
        %v2262 = vld [vmem:[#allocation9 + $0x660] sm:$0xff]
        %v2263 = vld [vmem:[#allocation9 + $0x668] sm:$0xff]
        %v2264 = vld [vmem:[#allocation9 + $0x670] sm:$0xff]
        %v2265 = vld [vmem:[#allocation9 + $0x678] sm:$0xff]
        %v2266 = vld [vmem:[#allocation9 + $0x680] sm:$0xff]
        %v2267 = vld [vmem:[#allocation9 + $0x688] sm:$0xff]
        %v2268 = vld [vmem:[#allocation9 + $0x690] sm:$0xff]
        %v2269 = vld [vmem:[#allocation9 + $0x698] sm:$0xff]
        %v2270 = vld [vmem:[#allocation9 + $0x6a0] sm:$0xff]
        %v2271 = vld [vmem:[#allocation9 + $0x6a8] sm:$0xff]
        %v2272 = vld [vmem:[#allocation9 + $0x6b0] sm:$0xff]
        %v2273 = vld [vmem:[#allocation9 + $0x6b8] sm:$0xff]
        %v2274 = vld [vmem:[#allocation9 + $0x6c0] sm:$0xff]
        %v2275 = vld [vmem:[#allocation9 + $0x6c8] sm:$0xff]
        %v2276 = vld [vmem:[#allocation9 + $0x6d0] sm:$0xff]
        %v2277 = vld [vmem:[#allocation9 + $0x6d8] sm:$0xff]
        %v2278 = vld [vmem:[#allocation9 + $0x6e0] sm:$0xff]
        %v2279 = vld [vmem:[#allocation9 + $0x6e8] sm:$0xff]
        %v2280 = vld [vmem:[#allocation9 + $0x6f0] sm:$0xff]
        %v2281 = vld [vmem:[#allocation9 + $0x6f8] sm:$0xff]
        %v2282 = vld [vmem:[#allocation9 + $0x700] sm:$0xff]
        %v2283 = vld [vmem:[#allocation9 + $0x708] sm:$0xff]
        %v2284 = vld [vmem:[#allocation9 + $0x710] sm:$0xff]
        %v2285 = vld [vmem:[#allocation9 + $0x718] sm:$0xff]
        %v2286 = vld [vmem:[#allocation9 + $0x720] sm:$0xff]
        %v2287 = vld [vmem:[#allocation9 + $0x728] sm:$0xff]
        %v2288 = vld [vmem:[#allocation9 + $0x730] sm:$0xff]
        %v2289 = vld [vmem:[#allocation9 + $0x738] sm:$0xff]
        %v2290 = vld [vmem:[#allocation9 + $0x740] sm:$0xff]
        %v2291 = vld [vmem:[#allocation9 + $0x748] sm:$0xff]
        %v2292 = vld [vmem:[#allocation9 + $0x750] sm:$0xff]
        %v2293 = vld [vmem:[#allocation9 + $0x758] sm:$0xff]
        %v2294 = vld [vmem:[#allocation9 + $0x760] sm:$0xff]
        %v2295 = vld [vmem:[#allocation9 + $0x768] sm:$0xff]
        %v2296 = vld [vmem:[#allocation9 + $0x770] sm:$0xff]
        %v2297 = vld [vmem:[#allocation9 + $0x778] sm:$0xff]
        %v2298 = vld [vmem:[#allocation9 + $0x780] sm:$0xff]
        %v2299 = vld [vmem:[#allocation9 + $0x788] sm:$0xff]
        %v2300 = vld [vmem:[#allocation9 + $0x790] sm:$0xff]
        %v2301 = vld [vmem:[#allocation9 + $0x798] sm:$0xff]
        %v2302 = vld [vmem:[#allocation9 + $0x7a0] sm:$0xff]
        %v2303 = vld [vmem:[#allocation9 + $0x7a8] sm:$0xff]
        %v2304 = vld [vmem:[#allocation9 + $0x7b0] sm:$0xff]
        %v2305 = vld [vmem:[#allocation9 + $0x7b8] sm:$0xff]
        %v2306 = vld [vmem:[#allocation9 + $0x7c0] sm:$0xff]
        %v2307 = vld [vmem:[#allocation9 + $0x7c8] sm:$0xff]
        %v2308 = vld [vmem:[#allocation9 + $0x7d0] sm:$0xff]
        %v2309 = vld [vmem:[#allocation9 + $0x7d8] sm:$0xff]
        %v2310 = vld [vmem:[#allocation9 + $0x7e0] sm:$0xff]
        %v2311 = vld [vmem:[#allocation9 + $0x7e8] sm:$0xff]
        %v2312 = vld [vmem:[#allocation9 + $0x7f0] sm:$0xff]
        %v2313 = vld [vmem:[#allocation9 + $0x7f8] sm:$0xff]
        %v2314 = vld [vmem:[#allocation11] sm:$0xff]
        %v2315 = vld [vmem:[#allocation11 + $0x8] sm:$0xff]
        %v2318 = vperm.slane %v2314, 0
        %v2319 = vperm.slane %v2314, 1
        %v2320 = vperm.slane %v2314, 2
        %v2321 = vperm.slane %v2314, 3
        %v2322 = vperm.slane %v2314, 4
        %v2323 = vperm.slane %v2314, 5
        %v2324 = vperm.slane %v2314, 6
        %v2325 = vperm.slane %v2314, 7
        %v2326 = vperm.slane %v2315, 0
        %v2327 = vperm.slane %v2315, 1
        %v2328 = vperm.slane %v2315, 2
        %v2329 = vperm.slane %v2315, 3
        %v2330 = vperm.slane %v2315, 4
        %v2331 = vperm.slane %v2315, 5
        %v2332 = vperm.slane %v2315, 6
        %v2333 = vperm.slane %v2315, 7
        %v2606 = vunpack.c.l.b16 %v2058
        %v2607 = vunpack.c.h.b16 %v2058
        %v2608 = vunpack.c.l.b16 %v2059
        %v2609 = vunpack.c.h.b16 %v2059
        %v2610 = vunpack.c.l.b16 %v2060
        %v2611 = vunpack.c.h.b16 %v2060
        %v2612 = vunpack.c.l.b16 %v2061
        %v2613 = vunpack.c.h.b16 %v2061
        %v2614 = vunpack.c.l.b16 %v2062
        %v2615 = vunpack.c.h.b16 %v2062
        %v2616 = vunpack.c.l.b16 %v2063
        %v2617 = vunpack.c.h.b16 %v2063
        %v2618 = vunpack.c.l.b16 %v2064
        %v2619 = vunpack.c.h.b16 %v2064
        %v2620 = vunpack.c.l.b16 %v2065
        %v2621 = vunpack.c.h.b16 %v2065
        %v2622 = vunpack.c.l.b16 %v2066
        %v2623 = vunpack.c.h.b16 %v2066
        %v2624 = vunpack.c.l.b16 %v2067
        %v2625 = vunpack.c.h.b16 %v2067
        %v2626 = vunpack.c.l.b16 %v2068
        %v2627 = vunpack.c.h.b16 %v2068
        %v2628 = vunpack.c.l.b16 %v2069
        %v2629 = vunpack.c.h.b16 %v2069
        %v2630 = vunpack.c.l.b16 %v2070
        %v2631 = vunpack.c.h.b16 %v2070
        %v2632 = vunpack.c.l.b16 %v2071
        %v2633 = vunpack.c.h.b16 %v2071
        %v2634 = vunpack.c.l.b16 %v2072
        %v2635 = vunpack.c.h.b16 %v2072
        %v2636 = vunpack.c.l.b16 %v2073
        %v2637 = vunpack.c.h.b16 %v2073
        %v2638 = vunpack.c.l.b16 %v2074
        %v2639 = vunpack.c.h.b16 %v2074
        %v2640 = vunpack.c.l.b16 %v2075
        %v2641 = vunpack.c.h.b16 %v2075
        %v2642 = vunpack.c.l.b16 %v2076
        %v2643 = vunpack.c.h.b16 %v2076
        %v2644 = vunpack.c.l.b16 %v2077
        %v2645 = vunpack.c.h.b16 %v2077
        %v2646 = vunpack.c.l.b16 %v2078
        %v2647 = vunpack.c.h.b16 %v2078
        %v2648 = vunpack.c.l.b16 %v2079
        %v2649 = vunpack.c.h.b16 %v2079
        %v2650 = vunpack.c.l.b16 %v2080
        %v2651 = vunpack.c.h.b16 %v2080
        %v2652 = vunpack.c.l.b16 %v2081
        %v2653 = vunpack.c.h.b16 %v2081
        %v2654 = vunpack.c.l.b16 %v2082
        %v2655 = vunpack.c.h.b16 %v2082
        %v2656 = vunpack.c.l.b16 %v2083
        %v2657 = vunpack.c.h.b16 %v2083
        %v2658 = vunpack.c.l.b16 %v2084
        %v2659 = vunpack.c.h.b16 %v2084
        %v2660 = vunpack.c.l.b16 %v2085
        %v2661 = vunpack.c.h.b16 %v2085
        %v2662 = vunpack.c.l.b16 %v2086
        %v2663 = vunpack.c.h.b16 %v2086
        %v2664 = vunpack.c.l.b16 %v2087
        %v2665 = vunpack.c.h.b16 %v2087
        %v2666 = vunpack.c.l.b16 %v2088
        %v2667 = vunpack.c.h.b16 %v2088
        %v2668 = vunpack.c.l.b16 %v2089
        %v2669 = vunpack.c.h.b16 %v2089
        %v2670 = vunpack.c.l.b16 %v2090
        %v2671 = vunpack.c.h.b16 %v2090
        %v2672 = vunpack.c.l.b16 %v2091
        %v2673 = vunpack.c.h.b16 %v2091
        %v2674 = vunpack.c.l.b16 %v2092
        %v2675 = vunpack.c.h.b16 %v2092
        %v2676 = vunpack.c.l.b16 %v2093
        %v2677 = vunpack.c.h.b16 %v2093
        %v2678 = vunpack.c.l.b16 %v2094
        %v2679 = vunpack.c.h.b16 %v2094
        %v2680 = vunpack.c.l.b16 %v2095
        %v2681 = vunpack.c.h.b16 %v2095
        %v2682 = vunpack.c.l.b16 %v2096
        %v2683 = vunpack.c.h.b16 %v2096
        %v2684 = vunpack.c.l.b16 %v2097
        %v2685 = vunpack.c.h.b16 %v2097
        %v2686 = vunpack.c.l.b16 %v2098
        %v2687 = vunpack.c.h.b16 %v2098
        %v2688 = vunpack.c.l.b16 %v2099
        %v2689 = vunpack.c.h.b16 %v2099
        %v2690 = vunpack.c.l.b16 %v2100
        %v2691 = vunpack.c.h.b16 %v2100
        %v2692 = vunpack.c.l.b16 %v2101
        %v2693 = vunpack.c.h.b16 %v2101
        %v2694 = vunpack.c.l.b16 %v2102
        %v2695 = vunpack.c.h.b16 %v2102
        %v2696 = vunpack.c.l.b16 %v2103
        %v2697 = vunpack.c.h.b16 %v2103
        %v2698 = vunpack.c.l.b16 %v2104
        %v2699 = vunpack.c.h.b16 %v2104
        %v2700 = vunpack.c.l.b16 %v2105
        %v2701 = vunpack.c.h.b16 %v2105
        %v2702 = vunpack.c.l.b16 %v2106
        %v2703 = vunpack.c.h.b16 %v2106
        %v2704 = vunpack.c.l.b16 %v2107
        %v2705 = vunpack.c.h.b16 %v2107
        %v2706 = vunpack.c.l.b16 %v2108
        %v2707 = vunpack.c.h.b16 %v2108
        %v2708 = vunpack.c.l.b16 %v2109
        %v2709 = vunpack.c.h.b16 %v2109
        %v2710 = vunpack.c.l.b16 %v2110
        %v2711 = vunpack.c.h.b16 %v2110
        %v2712 = vunpack.c.l.b16 %v2111
        %v2713 = vunpack.c.h.b16 %v2111
        %v2714 = vunpack.c.l.b16 %v2112
        %v2715 = vunpack.c.h.b16 %v2112
        %v2716 = vunpack.c.l.b16 %v2113
        %v2717 = vunpack.c.h.b16 %v2113
        %v2718 = vunpack.c.l.b16 %v2114
        %v2719 = vunpack.c.h.b16 %v2114
        %v2720 = vunpack.c.l.b16 %v2115
        %v2721 = vunpack.c.h.b16 %v2115
        %v2722 = vunpack.c.l.b16 %v2116
        %v2723 = vunpack.c.h.b16 %v2116
        %v2724 = vunpack.c.l.b16 %v2117
        %v2725 = vunpack.c.h.b16 %v2117
        %v2726 = vunpack.c.l.b16 %v2118
        %v2727 = vunpack.c.h.b16 %v2118
        %v2728 = vunpack.c.l.b16 %v2119
        %v2729 = vunpack.c.h.b16 %v2119
        %v2730 = vunpack.c.l.b16 %v2120
        %v2731 = vunpack.c.h.b16 %v2120
        %v2732 = vunpack.c.l.b16 %v2121
        %v2733 = vunpack.c.h.b16 %v2121
        %v2734 = vunpack.c.l.b16 %v2122
        %v2735 = vunpack.c.h.b16 %v2122
        %v2736 = vunpack.c.l.b16 %v2123
        %v2737 = vunpack.c.h.b16 %v2123
        %v2738 = vunpack.c.l.b16 %v2124
        %v2739 = vunpack.c.h.b16 %v2124
        %v2740 = vunpack.c.l.b16 %v2125
        %v2741 = vunpack.c.h.b16 %v2125
        %v2742 = vunpack.c.l.b16 %v2126
        %v2743 = vunpack.c.h.b16 %v2126
        %v2744 = vunpack.c.l.b16 %v2127
        %v2745 = vunpack.c.h.b16 %v2127
        %v2746 = vunpack.c.l.b16 %v2128
        %v2747 = vunpack.c.h.b16 %v2128
        %v2748 = vunpack.c.l.b16 %v2129
        %v2749 = vunpack.c.h.b16 %v2129
        %v2750 = vunpack.c.l.b16 %v2130
        %v2751 = vunpack.c.h.b16 %v2130
        %v2752 = vunpack.c.l.b16 %v2131
        %v2753 = vunpack.c.h.b16 %v2131
        %v2754 = vunpack.c.l.b16 %v2132
        %v2755 = vunpack.c.h.b16 %v2132
        %v2756 = vunpack.c.l.b16 %v2133
        %v2757 = vunpack.c.h.b16 %v2133
        %v2758 = vunpack.c.l.b16 %v2134
        %v2759 = vunpack.c.h.b16 %v2134
        %v2760 = vunpack.c.l.b16 %v2135
        %v2761 = vunpack.c.h.b16 %v2135
        %v2762 = vunpack.c.l.b16 %v2136
        %v2763 = vunpack.c.h.b16 %v2136
        %v2764 = vunpack.c.l.b16 %v2137
        %v2765 = vunpack.c.h.b16 %v2137
        %v2766 = vunpack.c.l.b16 %v2138
        %v2767 = vunpack.c.h.b16 %v2138
        %v2768 = vunpack.c.l.b16 %v2139
        %v2769 = vunpack.c.h.b16 %v2139
        %v2770 = vunpack.c.l.b16 %v2140
        %v2771 = vunpack.c.h.b16 %v2140
        %v2772 = vunpack.c.l.b16 %v2141
        %v2773 = vunpack.c.h.b16 %v2141
        %v2774 = vunpack.c.l.b16 %v2142
        %v2775 = vunpack.c.h.b16 %v2142
        %v2776 = vunpack.c.l.b16 %v2143
        %v2777 = vunpack.c.h.b16 %v2143
        %v2778 = vunpack.c.l.b16 %v2144
        %v2779 = vunpack.c.h.b16 %v2144
        %v2780 = vunpack.c.l.b16 %v2145
        %v2781 = vunpack.c.h.b16 %v2145
        %v2782 = vunpack.c.l.b16 %v2146
        %v2783 = vunpack.c.h.b16 %v2146
        %v2784 = vunpack.c.l.b16 %v2147
        %v2785 = vunpack.c.h.b16 %v2147
        %v2786 = vunpack.c.l.b16 %v2148
        %v2787 = vunpack.c.h.b16 %v2148
        %v2788 = vunpack.c.l.b16 %v2149
        %v2789 = vunpack.c.h.b16 %v2149
        %v2790 = vunpack.c.l.b16 %v2150
        %v2791 = vunpack.c.h.b16 %v2150
        %v2792 = vunpack.c.l.b16 %v2151
        %v2793 = vunpack.c.h.b16 %v2151
        %v2794 = vunpack.c.l.b16 %v2152
        %v2795 = vunpack.c.h.b16 %v2152
        %v2796 = vunpack.c.l.b16 %v2153
        %v2797 = vunpack.c.h.b16 %v2153
        %v2798 = vunpack.c.l.b16 %v2154
        %v2799 = vunpack.c.h.b16 %v2154
        %v2800 = vunpack.c.l.b16 %v2155
        %v2801 = vunpack.c.h.b16 %v2155
        %v2802 = vunpack.c.l.b16 %v2156
        %v2803 = vunpack.c.h.b16 %v2156
        %v2804 = vunpack.c.l.b16 %v2157
        %v2805 = vunpack.c.h.b16 %v2157
        %v2806 = vunpack.c.l.b16 %v2158
        %v2807 = vunpack.c.h.b16 %v2158
        %v2808 = vunpack.c.l.b16 %v2159
        %v2809 = vunpack.c.h.b16 %v2159
        %v2810 = vunpack.c.l.b16 %v2160
        %v2811 = vunpack.c.h.b16 %v2160
        %v2812 = vunpack.c.l.b16 %v2161
        %v2813 = vunpack.c.h.b16 %v2161
        %v2814 = vunpack.c.l.b16 %v2162
        %v2815 = vunpack.c.h.b16 %v2162
        %v2816 = vunpack.c.l.b16 %v2163
        %v2817 = vunpack.c.h.b16 %v2163
        %v2818 = vunpack.c.l.b16 %v2164
        %v2819 = vunpack.c.h.b16 %v2164
        %v2820 = vunpack.c.l.b16 %v2165
        %v2821 = vunpack.c.h.b16 %v2165
        %v2822 = vunpack.c.l.b16 %v2166
        %v2823 = vunpack.c.h.b16 %v2166
        %v2824 = vunpack.c.l.b16 %v2167
        %v2825 = vunpack.c.h.b16 %v2167
        %v2826 = vunpack.c.l.b16 %v2168
        %v2827 = vunpack.c.h.b16 %v2168
        %v2828 = vunpack.c.l.b16 %v2169
        %v2829 = vunpack.c.h.b16 %v2169
        %v2830 = vunpack.c.l.b16 %v2170
        %v2831 = vunpack.c.h.b16 %v2170
        %v2832 = vunpack.c.l.b16 %v2171
        %v2833 = vunpack.c.h.b16 %v2171
        %v2834 = vunpack.c.l.b16 %v2172
        %v2835 = vunpack.c.h.b16 %v2172
        %v2836 = vunpack.c.l.b16 %v2173
        %v2837 = vunpack.c.h.b16 %v2173
        %v2838 = vunpack.c.l.b16 %v2174
        %v2839 = vunpack.c.h.b16 %v2174
        %v2840 = vunpack.c.l.b16 %v2175
        %v2841 = vunpack.c.h.b16 %v2175
        %v2842 = vunpack.c.l.b16 %v2176
        %v2843 = vunpack.c.h.b16 %v2176
        %v2844 = vunpack.c.l.b16 %v2177
        %v2845 = vunpack.c.h.b16 %v2177
        %v2846 = vunpack.c.l.b16 %v2178
        %v2847 = vunpack.c.h.b16 %v2178
        %v2848 = vunpack.c.l.b16 %v2179
        %v2849 = vunpack.c.h.b16 %v2179
        %v2850 = vunpack.c.l.b16 %v2180
        %v2851 = vunpack.c.h.b16 %v2180
        %v2852 = vunpack.c.l.b16 %v2181
        %v2853 = vunpack.c.h.b16 %v2181
        %v2854 = vunpack.c.l.b16 %v2182
        %v2855 = vunpack.c.h.b16 %v2182
        %v2856 = vunpack.c.l.b16 %v2183
        %v2857 = vunpack.c.h.b16 %v2183
        %v2858 = vunpack.c.l.b16 %v2184
        %v2859 = vunpack.c.h.b16 %v2184
        %v2860 = vunpack.c.l.b16 %v2185
        %v2861 = vunpack.c.h.b16 %v2185
        %v2862 = vunpack.c.l.b16 %v2186
        %v2863 = vunpack.c.h.b16 %v2186
        %v2864 = vunpack.c.l.b16 %v2187
        %v2865 = vunpack.c.h.b16 %v2187
        %v2866 = vunpack.c.l.b16 %v2188
        %v2867 = vunpack.c.h.b16 %v2188
        %v2868 = vunpack.c.l.b16 %v2189
        %v2869 = vunpack.c.h.b16 %v2189
        %v2870 = vunpack.c.l.b16 %v2190
        %v2871 = vunpack.c.h.b16 %v2190
        %v2872 = vunpack.c.l.b16 %v2191
        %v2873 = vunpack.c.h.b16 %v2191
        %v2874 = vunpack.c.l.b16 %v2192
        %v2875 = vunpack.c.h.b16 %v2192
        %v2876 = vunpack.c.l.b16 %v2193
        %v2877 = vunpack.c.h.b16 %v2193
        %v2878 = vunpack.c.l.b16 %v2194
        %v2879 = vunpack.c.h.b16 %v2194
        %v2880 = vunpack.c.l.b16 %v2195
        %v2881 = vunpack.c.h.b16 %v2195
        %v2882 = vunpack.c.l.b16 %v2196
        %v2883 = vunpack.c.h.b16 %v2196
        %v2884 = vunpack.c.l.b16 %v2197
        %v2885 = vunpack.c.h.b16 %v2197
        %v2886 = vunpack.c.l.b16 %v2198
        %v2887 = vunpack.c.h.b16 %v2198
        %v2888 = vunpack.c.l.b16 %v2199
        %v2889 = vunpack.c.h.b16 %v2199
        %v2890 = vunpack.c.l.b16 %v2200
        %v2891 = vunpack.c.h.b16 %v2200
        %v2892 = vunpack.c.l.b16 %v2201
        %v2893 = vunpack.c.h.b16 %v2201
        %v2894 = vunpack.c.l.b16 %v2202
        %v2895 = vunpack.c.h.b16 %v2202
        %v2896 = vunpack.c.l.b16 %v2203
        %v2897 = vunpack.c.h.b16 %v2203
        %v2898 = vunpack.c.l.b16 %v2204
        %v2899 = vunpack.c.h.b16 %v2204
        %v2900 = vunpack.c.l.b16 %v2205
        %v2901 = vunpack.c.h.b16 %v2205
        %v2902 = vunpack.c.l.b16 %v2206
        %v2903 = vunpack.c.h.b16 %v2206
        %v2904 = vunpack.c.l.b16 %v2207
        %v2905 = vunpack.c.h.b16 %v2207
        %v2906 = vunpack.c.l.b16 %v2208
        %v2907 = vunpack.c.h.b16 %v2208
        %v2908 = vunpack.c.l.b16 %v2209
        %v2909 = vunpack.c.h.b16 %v2209
        %v2910 = vunpack.c.l.b16 %v2210
        %v2911 = vunpack.c.h.b16 %v2210
        %v2912 = vunpack.c.l.b16 %v2211
        %v2913 = vunpack.c.h.b16 %v2211
        %v2914 = vunpack.c.l.b16 %v2212
        %v2915 = vunpack.c.h.b16 %v2212
        %v2916 = vunpack.c.l.b16 %v2213
        %v2917 = vunpack.c.h.b16 %v2213
        %v2918 = vunpack.c.l.b16 %v2214
        %v2919 = vunpack.c.h.b16 %v2214
        %v2920 = vunpack.c.l.b16 %v2215
        %v2921 = vunpack.c.h.b16 %v2215
        %v2922 = vunpack.c.l.b16 %v2216
        %v2923 = vunpack.c.h.b16 %v2216
        %v2924 = vunpack.c.l.b16 %v2217
        %v2925 = vunpack.c.h.b16 %v2217
        %v2926 = vunpack.c.l.b16 %v2218
        %v2927 = vunpack.c.h.b16 %v2218
        %v2928 = vunpack.c.l.b16 %v2219
        %v2929 = vunpack.c.h.b16 %v2219
        %v2930 = vunpack.c.l.b16 %v2220
        %v2931 = vunpack.c.h.b16 %v2220
        %v2932 = vunpack.c.l.b16 %v2221
        %v2933 = vunpack.c.h.b16 %v2221
        %v2934 = vunpack.c.l.b16 %v2222
        %v2935 = vunpack.c.h.b16 %v2222
        %v2936 = vunpack.c.l.b16 %v2223
        %v2937 = vunpack.c.h.b16 %v2223
        %v2938 = vunpack.c.l.b16 %v2224
        %v2939 = vunpack.c.h.b16 %v2224
        %v2940 = vunpack.c.l.b16 %v2225
        %v2941 = vunpack.c.h.b16 %v2225
        %v2942 = vunpack.c.l.b16 %v2226
        %v2943 = vunpack.c.h.b16 %v2226
        %v2944 = vunpack.c.l.b16 %v2227
        %v2945 = vunpack.c.h.b16 %v2227
        %v2946 = vunpack.c.l.b16 %v2228
        %v2947 = vunpack.c.h.b16 %v2228
        %v2948 = vunpack.c.l.b16 %v2229
        %v2949 = vunpack.c.h.b16 %v2229
        %v2950 = vunpack.c.l.b16 %v2230
        %v2951 = vunpack.c.h.b16 %v2230
        %v2952 = vunpack.c.l.b16 %v2231
        %v2953 = vunpack.c.h.b16 %v2231
        %v2954 = vunpack.c.l.b16 %v2232
        %v2955 = vunpack.c.h.b16 %v2232
        %v2956 = vunpack.c.l.b16 %v2233
        %v2957 = vunpack.c.h.b16 %v2233
        %v2958 = vunpack.c.l.b16 %v2234
        %v2959 = vunpack.c.h.b16 %v2234
        %v2960 = vunpack.c.l.b16 %v2235
        %v2961 = vunpack.c.h.b16 %v2235
        %v2962 = vunpack.c.l.b16 %v2236
        %v2963 = vunpack.c.h.b16 %v2236
        %v2964 = vunpack.c.l.b16 %v2237
        %v2965 = vunpack.c.h.b16 %v2237
        %v2966 = vunpack.c.l.b16 %v2238
        %v2967 = vunpack.c.h.b16 %v2238
        %v2968 = vunpack.c.l.b16 %v2239
        %v2969 = vunpack.c.h.b16 %v2239
        %v2970 = vunpack.c.l.b16 %v2240
        %v2971 = vunpack.c.h.b16 %v2240
        %v2972 = vunpack.c.l.b16 %v2241
        %v2973 = vunpack.c.h.b16 %v2241
        %v2974 = vunpack.c.l.b16 %v2242
        %v2975 = vunpack.c.h.b16 %v2242
        %v2976 = vunpack.c.l.b16 %v2243
        %v2977 = vunpack.c.h.b16 %v2243
        %v2978 = vunpack.c.l.b16 %v2244
        %v2979 = vunpack.c.h.b16 %v2244
        %v2980 = vunpack.c.l.b16 %v2245
        %v2981 = vunpack.c.h.b16 %v2245
        %v2982 = vunpack.c.l.b16 %v2246
        %v2983 = vunpack.c.h.b16 %v2246
        %v2984 = vunpack.c.l.b16 %v2247
        %v2985 = vunpack.c.h.b16 %v2247
        %v2986 = vunpack.c.l.b16 %v2248
        %v2987 = vunpack.c.h.b16 %v2248
        %v2988 = vunpack.c.l.b16 %v2249
        %v2989 = vunpack.c.h.b16 %v2249
        %v2990 = vunpack.c.l.b16 %v2250
        %v2991 = vunpack.c.h.b16 %v2250
        %v2992 = vunpack.c.l.b16 %v2251
        %v2993 = vunpack.c.h.b16 %v2251
        %v2994 = vunpack.c.l.b16 %v2252
        %v2995 = vunpack.c.h.b16 %v2252
        %v2996 = vunpack.c.l.b16 %v2253
        %v2997 = vunpack.c.h.b16 %v2253
        %v2998 = vunpack.c.l.b16 %v2254
        %v2999 = vunpack.c.h.b16 %v2254
        %v3000 = vunpack.c.l.b16 %v2255
        %v3001 = vunpack.c.h.b16 %v2255
        %v3002 = vunpack.c.l.b16 %v2256
        %v3003 = vunpack.c.h.b16 %v2256
        %v3004 = vunpack.c.l.b16 %v2257
        %v3005 = vunpack.c.h.b16 %v2257
        %v3006 = vunpack.c.l.b16 %v2258
        %v3007 = vunpack.c.h.b16 %v2258
        %v3008 = vunpack.c.l.b16 %v2259
        %v3009 = vunpack.c.h.b16 %v2259
        %v3010 = vunpack.c.l.b16 %v2260
        %v3011 = vunpack.c.h.b16 %v2260
        %v3012 = vunpack.c.l.b16 %v2261
        %v3013 = vunpack.c.h.b16 %v2261
        %v3014 = vunpack.c.l.b16 %v2262
        %v3015 = vunpack.c.h.b16 %v2262
        %v3016 = vunpack.c.l.b16 %v2263
        %v3017 = vunpack.c.h.b16 %v2263
        %v3018 = vunpack.c.l.b16 %v2264
        %v3019 = vunpack.c.h.b16 %v2264
        %v3020 = vunpack.c.l.b16 %v2265
        %v3021 = vunpack.c.h.b16 %v2265
        %v3022 = vunpack.c.l.b16 %v2266
        %v3023 = vunpack.c.h.b16 %v2266
        %v3024 = vunpack.c.l.b16 %v2267
        %v3025 = vunpack.c.h.b16 %v2267
        %v3026 = vunpack.c.l.b16 %v2268
        %v3027 = vunpack.c.h.b16 %v2268
        %v3028 = vunpack.c.l.b16 %v2269
        %v3029 = vunpack.c.h.b16 %v2269
        %v3030 = vunpack.c.l.b16 %v2270
        %v3031 = vunpack.c.h.b16 %v2270
        %v3032 = vunpack.c.l.b16 %v2271
        %v3033 = vunpack.c.h.b16 %v2271
        %v3034 = vunpack.c.l.b16 %v2272
        %v3035 = vunpack.c.h.b16 %v2272
        %v3036 = vunpack.c.l.b16 %v2273
        %v3037 = vunpack.c.h.b16 %v2273
        %v3038 = vunpack.c.l.b16 %v2274
        %v3039 = vunpack.c.h.b16 %v2274
        %v3040 = vunpack.c.l.b16 %v2275
        %v3041 = vunpack.c.h.b16 %v2275
        %v3042 = vunpack.c.l.b16 %v2276
        %v3043 = vunpack.c.h.b16 %v2276
        %v3044 = vunpack.c.l.b16 %v2277
        %v3045 = vunpack.c.h.b16 %v2277
        %v3046 = vunpack.c.l.b16 %v2278
        %v3047 = vunpack.c.h.b16 %v2278
        %v3048 = vunpack.c.l.b16 %v2279
        %v3049 = vunpack.c.h.b16 %v2279
        %v3050 = vunpack.c.l.b16 %v2280
        %v3051 = vunpack.c.h.b16 %v2280
        %v3052 = vunpack.c.l.b16 %v2281
        %v3053 = vunpack.c.h.b16 %v2281
        %v3054 = vunpack.c.l.b16 %v2282
        %v3055 = vunpack.c.h.b16 %v2282
        %v3056 = vunpack.c.l.b16 %v2283
        %v3057 = vunpack.c.h.b16 %v2283
        %v3058 = vunpack.c.l.b16 %v2284
        %v3059 = vunpack.c.h.b16 %v2284
        %v3060 = vunpack.c.l.b16 %v2285
        %v3061 = vunpack.c.h.b16 %v2285
        %v3062 = vunpack.c.l.b16 %v2286
        %v3063 = vunpack.c.h.b16 %v2286
        %v3064 = vunpack.c.l.b16 %v2287
        %v3065 = vunpack.c.h.b16 %v2287
        %v3066 = vunpack.c.l.b16 %v2288
        %v3067 = vunpack.c.h.b16 %v2288
        %v3068 = vunpack.c.l.b16 %v2289
        %v3069 = vunpack.c.h.b16 %v2289
        %v3070 = vunpack.c.l.b16 %v2290
        %v3071 = vunpack.c.h.b16 %v2290
        %v3072 = vunpack.c.l.b16 %v2291
        %v3073 = vunpack.c.h.b16 %v2291
        %v3074 = vunpack.c.l.b16 %v2292
        %v3075 = vunpack.c.h.b16 %v2292
        %v3076 = vunpack.c.l.b16 %v2293
        %v3077 = vunpack.c.h.b16 %v2293
        %v3078 = vunpack.c.l.b16 %v2294
        %v3079 = vunpack.c.h.b16 %v2294
        %v3080 = vunpack.c.l.b16 %v2295
        %v3081 = vunpack.c.h.b16 %v2295
        %v3082 = vunpack.c.l.b16 %v2296
        %v3083 = vunpack.c.h.b16 %v2296
        %v3084 = vunpack.c.l.b16 %v2297
        %v3085 = vunpack.c.h.b16 %v2297
        %v3086 = vunpack.c.l.b16 %v2298
        %v3087 = vunpack.c.h.b16 %v2298
        %v3088 = vunpack.c.l.b16 %v2299
        %v3089 = vunpack.c.h.b16 %v2299
        %v3090 = vunpack.c.l.b16 %v2300
        %v3091 = vunpack.c.h.b16 %v2300
        %v3092 = vunpack.c.l.b16 %v2301
        %v3093 = vunpack.c.h.b16 %v2301
        %v3094 = vunpack.c.l.b16 %v2302
        %v3095 = vunpack.c.h.b16 %v2302
        %v3096 = vunpack.c.l.b16 %v2303
        %v3097 = vunpack.c.h.b16 %v2303
        %v3098 = vunpack.c.l.b16 %v2304
        %v3099 = vunpack.c.h.b16 %v2304
        %v3100 = vunpack.c.l.b16 %v2305
        %v3101 = vunpack.c.h.b16 %v2305
        %v3102 = vunpack.c.l.b16 %v2306
        %v3103 = vunpack.c.h.b16 %v2306
        %v3104 = vunpack.c.l.b16 %v2307
        %v3105 = vunpack.c.h.b16 %v2307
        %v3106 = vunpack.c.l.b16 %v2308
        %v3107 = vunpack.c.h.b16 %v2308
        %v3108 = vunpack.c.l.b16 %v2309
        %v3109 = vunpack.c.h.b16 %v2309
        %v3110 = vunpack.c.l.b16 %v2310
        %v3111 = vunpack.c.h.b16 %v2310
        %v3112 = vunpack.c.l.b16 %v2311
        %v3113 = vunpack.c.h.b16 %v2311
        %v3114 = vunpack.c.l.b16 %v2312
        %v3115 = vunpack.c.h.b16 %v2312
        %v3116 = vunpack.c.l.b16 %v2313
        %v3117 = vunpack.c.h.b16 %v2313
        %v3118 = vpack.c.b16 %v2622, %v2606
        %v3119 = vpack.c.b16 %v2623, %v2607
        %v3120 = vpack.c.b16 %v2624, %v2608
        %v3121 = vpack.c.b16 %v2625, %v2609
        %v3122 = vpack.c.b16 %v2626, %v2610
        %v3123 = vpack.c.b16 %v2627, %v2611
        %v3124 = vpack.c.b16 %v2628, %v2612
        %v3125 = vpack.c.b16 %v2629, %v2613
        %v3126 = vpack.c.b16 %v2630, %v2614
        %v3127 = vpack.c.b16 %v2631, %v2615
        %v3128 = vpack.c.b16 %v2632, %v2616
        %v3129 = vpack.c.b16 %v2633, %v2617
        %v3130 = vpack.c.b16 %v2634, %v2618
        %v3131 = vpack.c.b16 %v2635, %v2619
        %v3132 = vpack.c.b16 %v2636, %v2620
        %v3133 = vpack.c.b16 %v2637, %v2621
        %v3134 = vpack.c.b16 %v2654, %v2638
        %v3135 = vpack.c.b16 %v2655, %v2639
        %v3136 = vpack.c.b16 %v2656, %v2640
        %v3137 = vpack.c.b16 %v2657, %v2641
        %v3138 = vpack.c.b16 %v2658, %v2642
        %v3139 = vpack.c.b16 %v2659, %v2643
        %v3140 = vpack.c.b16 %v2660, %v2644
        %v3141 = vpack.c.b16 %v2661, %v2645
        %v3142 = vpack.c.b16 %v2662, %v2646
        %v3143 = vpack.c.b16 %v2663, %v2647
        %v3144 = vpack.c.b16 %v2664, %v2648
        %v3145 = vpack.c.b16 %v2665, %v2649
        %v3146 = vpack.c.b16 %v2666, %v2650
        %v3147 = vpack.c.b16 %v2667, %v2651
        %v3148 = vpack.c.b16 %v2668, %v2652
        %v3149 = vpack.c.b16 %v2669, %v2653
        %v3150 = vpack.c.b16 %v2686, %v2670
        %v3151 = vpack.c.b16 %v2687, %v2671
        %v3152 = vpack.c.b16 %v2688, %v2672
        %v3153 = vpack.c.b16 %v2689, %v2673
        %v3154 = vpack.c.b16 %v2690, %v2674
        %v3155 = vpack.c.b16 %v2691, %v2675
        %v3156 = vpack.c.b16 %v2692, %v2676
        %v3157 = vpack.c.b16 %v2693, %v2677
        %v3158 = vpack.c.b16 %v2694, %v2678
        %v3159 = vpack.c.b16 %v2695, %v2679
        %v3160 = vpack.c.b16 %v2696, %v2680
        %v3161 = vpack.c.b16 %v2697, %v2681
        %v3162 = vpack.c.b16 %v2698, %v2682
        %v3163 = vpack.c.b16 %v2699, %v2683
        %v3164 = vpack.c.b16 %v2700, %v2684
        %v3165 = vpack.c.b16 %v2701, %v2685
        %v3166 = vpack.c.b16 %v2718, %v2702
        %v3167 = vpack.c.b16 %v2719, %v2703
        %v3168 = vpack.c.b16 %v2720, %v2704
        %v3169 = vpack.c.b16 %v2721, %v2705
        %v3170 = vpack.c.b16 %v2722, %v2706
        %v3171 = vpack.c.b16 %v2723, %v2707
        %v3172 = vpack.c.b16 %v2724, %v2708
        %v3173 = vpack.c.b16 %v2725, %v2709
        %v3174 = vpack.c.b16 %v2726, %v2710
        %v3175 = vpack.c.b16 %v2727, %v2711
        %v3176 = vpack.c.b16 %v2728, %v2712
        %v3177 = vpack.c.b16 %v2729, %v2713
        %v3178 = vpack.c.b16 %v2730, %v2714
        %v3179 = vpack.c.b16 %v2731, %v2715
        %v3180 = vpack.c.b16 %v2732, %v2716
        %v3181 = vpack.c.b16 %v2733, %v2717
        %v3182 = vpack.c.b16 %v2750, %v2734
        %v3183 = vpack.c.b16 %v2751, %v2735
        %v3184 = vpack.c.b16 %v2752, %v2736
        %v3185 = vpack.c.b16 %v2753, %v2737
        %v3186 = vpack.c.b16 %v2754, %v2738
        %v3187 = vpack.c.b16 %v2755, %v2739
        %v3188 = vpack.c.b16 %v2756, %v2740
        %v3189 = vpack.c.b16 %v2757, %v2741
        %v3190 = vpack.c.b16 %v2758, %v2742
        %v3191 = vpack.c.b16 %v2759, %v2743
        %v3192 = vpack.c.b16 %v2760, %v2744
        %v3193 = vpack.c.b16 %v2761, %v2745
        %v3194 = vpack.c.b16 %v2762, %v2746
        %v3195 = vpack.c.b16 %v2763, %v2747
        %v3196 = vpack.c.b16 %v2764, %v2748
        %v3197 = vpack.c.b16 %v2765, %v2749
        %v3198 = vpack.c.b16 %v2782, %v2766
        %v3199 = vpack.c.b16 %v2783, %v2767
        %v3200 = vpack.c.b16 %v2784, %v2768
        %v3201 = vpack.c.b16 %v2785, %v2769
        %v3202 = vpack.c.b16 %v2786, %v2770
        %v3203 = vpack.c.b16 %v2787, %v2771
        %v3204 = vpack.c.b16 %v2788, %v2772
        %v3205 = vpack.c.b16 %v2789, %v2773
        %v3206 = vpack.c.b16 %v2790, %v2774
        %v3207 = vpack.c.b16 %v2791, %v2775
        %v3208 = vpack.c.b16 %v2792, %v2776
        %v3209 = vpack.c.b16 %v2793, %v2777
        %v3210 = vpack.c.b16 %v2794, %v2778
        %v3211 = vpack.c.b16 %v2795, %v2779
        %v3212 = vpack.c.b16 %v2796, %v2780
        %v3213 = vpack.c.b16 %v2797, %v2781
        %v3214 = vpack.c.b16 %v2814, %v2798
        %v3215 = vpack.c.b16 %v2815, %v2799
        %v3216 = vpack.c.b16 %v2816, %v2800
        %v3217 = vpack.c.b16 %v2817, %v2801
        %v3218 = vpack.c.b16 %v2818, %v2802
        %v3219 = vpack.c.b16 %v2819, %v2803
        %v3220 = vpack.c.b16 %v2820, %v2804
        %v3221 = vpack.c.b16 %v2821, %v2805
        %v3222 = vpack.c.b16 %v2822, %v2806
        %v3223 = vpack.c.b16 %v2823, %v2807
        %v3224 = vpack.c.b16 %v2824, %v2808
        %v3225 = vpack.c.b16 %v2825, %v2809
        %v3226 = vpack.c.b16 %v2826, %v2810
        %v3227 = vpack.c.b16 %v2827, %v2811
        %v3228 = vpack.c.b16 %v2828, %v2812
        %v3229 = vpack.c.b16 %v2829, %v2813
        %v3230 = vpack.c.b16 %v2846, %v2830
        %v3231 = vpack.c.b16 %v2847, %v2831
        %v3232 = vpack.c.b16 %v2848, %v2832
        %v3233 = vpack.c.b16 %v2849, %v2833
        %v3234 = vpack.c.b16 %v2850, %v2834
        %v3235 = vpack.c.b16 %v2851, %v2835
        %v3236 = vpack.c.b16 %v2852, %v2836
        %v3237 = vpack.c.b16 %v2853, %v2837
        %v3238 = vpack.c.b16 %v2854, %v2838
        %v3239 = vpack.c.b16 %v2855, %v2839
        %v3240 = vpack.c.b16 %v2856, %v2840
        %v3241 = vpack.c.b16 %v2857, %v2841
        %v3242 = vpack.c.b16 %v2858, %v2842
        %v3243 = vpack.c.b16 %v2859, %v2843
        %v3244 = vpack.c.b16 %v2860, %v2844
        %v3245 = vpack.c.b16 %v2861, %v2845
        %v3246 = vpack.c.b16 %v2878, %v2862
        %v3247 = vpack.c.b16 %v2879, %v2863
        %v3248 = vpack.c.b16 %v2880, %v2864
        %v3249 = vpack.c.b16 %v2881, %v2865
        %v3250 = vpack.c.b16 %v2882, %v2866
        %v3251 = vpack.c.b16 %v2883, %v2867
        %v3252 = vpack.c.b16 %v2884, %v2868
        %v3253 = vpack.c.b16 %v2885, %v2869
        %v3254 = vpack.c.b16 %v2886, %v2870
        %v3255 = vpack.c.b16 %v2887, %v2871
        %v3256 = vpack.c.b16 %v2888, %v2872
        %v3257 = vpack.c.b16 %v2889, %v2873
        %v3258 = vpack.c.b16 %v2890, %v2874
        %v3259 = vpack.c.b16 %v2891, %v2875
        %v3260 = vpack.c.b16 %v2892, %v2876
        %v3261 = vpack.c.b16 %v2893, %v2877
        %v3262 = vpack.c.b16 %v2910, %v2894
        %v3263 = vpack.c.b16 %v2911, %v2895
        %v3264 = vpack.c.b16 %v2912, %v2896
        %v3265 = vpack.c.b16 %v2913, %v2897
        %v3266 = vpack.c.b16 %v2914, %v2898
        %v3267 = vpack.c.b16 %v2915, %v2899
        %v3268 = vpack.c.b16 %v2916, %v2900
        %v3269 = vpack.c.b16 %v2917, %v2901
        %v3270 = vpack.c.b16 %v2918, %v2902
        %v3271 = vpack.c.b16 %v2919, %v2903
        %v3272 = vpack.c.b16 %v2920, %v2904
        %v3273 = vpack.c.b16 %v2921, %v2905
        %v3274 = vpack.c.b16 %v2922, %v2906
        %v3275 = vpack.c.b16 %v2923, %v2907
        %v3276 = vpack.c.b16 %v2924, %v2908
        %v3277 = vpack.c.b16 %v2925, %v2909
        %v3278 = vpack.c.b16 %v2942, %v2926
        %v3279 = vpack.c.b16 %v2943, %v2927
        %v3280 = vpack.c.b16 %v2944, %v2928
        %v3281 = vpack.c.b16 %v2945, %v2929
        %v3282 = vpack.c.b16 %v2946, %v2930
        %v3283 = vpack.c.b16 %v2947, %v2931
        %v3284 = vpack.c.b16 %v2948, %v2932
        %v3285 = vpack.c.b16 %v2949, %v2933
        %v3286 = vpack.c.b16 %v2950, %v2934
        %v3287 = vpack.c.b16 %v2951, %v2935
        %v3288 = vpack.c.b16 %v2952, %v2936
        %v3289 = vpack.c.b16 %v2953, %v2937
        %v3290 = vpack.c.b16 %v2954, %v2938
        %v3291 = vpack.c.b16 %v2955, %v2939
        %v3292 = vpack.c.b16 %v2956, %v2940
        %v3293 = vpack.c.b16 %v2957, %v2941
        %v3294 = vpack.c.b16 %v2974, %v2958
        %v3295 = vpack.c.b16 %v2975, %v2959
        %v3296 = vpack.c.b16 %v2976, %v2960
        %v3297 = vpack.c.b16 %v2977, %v2961
        %v3298 = vpack.c.b16 %v2978, %v2962
        %v3299 = vpack.c.b16 %v2979, %v2963
        %v3300 = vpack.c.b16 %v2980, %v2964
        %v3301 = vpack.c.b16 %v2981, %v2965
        %v3302 = vpack.c.b16 %v2982, %v2966
        %v3303 = vpack.c.b16 %v2983, %v2967
        %v3304 = vpack.c.b16 %v2984, %v2968
        %v3305 = vpack.c.b16 %v2985, %v2969
        %v3306 = vpack.c.b16 %v2986, %v2970
        %v3307 = vpack.c.b16 %v2987, %v2971
        %v3308 = vpack.c.b16 %v2988, %v2972
        %v3309 = vpack.c.b16 %v2989, %v2973
        %v3310 = vpack.c.b16 %v3006, %v2990
        %v3311 = vpack.c.b16 %v3007, %v2991
        %v3312 = vpack.c.b16 %v3008, %v2992
        %v3313 = vpack.c.b16 %v3009, %v2993
        %v3314 = vpack.c.b16 %v3010, %v2994
        %v3315 = vpack.c.b16 %v3011, %v2995
        %v3316 = vpack.c.b16 %v3012, %v2996
        %v3317 = vpack.c.b16 %v3013, %v2997
        %v3318 = vpack.c.b16 %v3014, %v2998
        %v3319 = vpack.c.b16 %v3015, %v2999
        %v3320 = vpack.c.b16 %v3016, %v3000
        %v3321 = vpack.c.b16 %v3017, %v3001
        %v3322 = vpack.c.b16 %v3018, %v3002
        %v3323 = vpack.c.b16 %v3019, %v3003
        %v3324 = vpack.c.b16 %v3020, %v3004
        %v3325 = vpack.c.b16 %v3021, %v3005
        %v3326 = vpack.c.b16 %v3038, %v3022
        %v3327 = vpack.c.b16 %v3039, %v3023
        %v3328 = vpack.c.b16 %v3040, %v3024
        %v3329 = vpack.c.b16 %v3041, %v3025
        %v3330 = vpack.c.b16 %v3042, %v3026
        %v3331 = vpack.c.b16 %v3043, %v3027
        %v3332 = vpack.c.b16 %v3044, %v3028
        %v3333 = vpack.c.b16 %v3045, %v3029
        %v3334 = vpack.c.b16 %v3046, %v3030
        %v3335 = vpack.c.b16 %v3047, %v3031
        %v3336 = vpack.c.b16 %v3048, %v3032
        %v3337 = vpack.c.b16 %v3049, %v3033
        %v3338 = vpack.c.b16 %v3050, %v3034
        %v3339 = vpack.c.b16 %v3051, %v3035
        %v3340 = vpack.c.b16 %v3052, %v3036
        %v3341 = vpack.c.b16 %v3053, %v3037
        %v3342 = vpack.c.b16 %v3070, %v3054
        %v3343 = vpack.c.b16 %v3071, %v3055
        %v3344 = vpack.c.b16 %v3072, %v3056
        %v3345 = vpack.c.b16 %v3073, %v3057
        %v3346 = vpack.c.b16 %v3074, %v3058
        %v3347 = vpack.c.b16 %v3075, %v3059
        %v3348 = vpack.c.b16 %v3076, %v3060
        %v3349 = vpack.c.b16 %v3077, %v3061
        %v3350 = vpack.c.b16 %v3078, %v3062
        %v3351 = vpack.c.b16 %v3079, %v3063
        %v3352 = vpack.c.b16 %v3080, %v3064
        %v3353 = vpack.c.b16 %v3081, %v3065
        %v3354 = vpack.c.b16 %v3082, %v3066
        %v3355 = vpack.c.b16 %v3083, %v3067
        %v3356 = vpack.c.b16 %v3084, %v3068
        %v3357 = vpack.c.b16 %v3085, %v3069
        %v3358 = vpack.c.b16 %v3102, %v3086
        %v3359 = vpack.c.b16 %v3103, %v3087
        %v3360 = vpack.c.b16 %v3104, %v3088
        %v3361 = vpack.c.b16 %v3105, %v3089
        %v3362 = vpack.c.b16 %v3106, %v3090
        %v3363 = vpack.c.b16 %v3107, %v3091
        %v3364 = vpack.c.b16 %v3108, %v3092
        %v3365 = vpack.c.b16 %v3109, %v3093
        %v3366 = vpack.c.b16 %v3110, %v3094
        %v3367 = vpack.c.b16 %v3111, %v3095
        %v3368 = vpack.c.b16 %v3112, %v3096
        %v3369 = vpack.c.b16 %v3113, %v3097
        %v3370 = vpack.c.b16 %v3114, %v3098
        %v3371 = vpack.c.b16 %v3115, %v3099
        %v3372 = vpack.c.b16 %v3116, %v3100
        %v3373 = vpack.c.b16 %v3117, %v3101
        %3630 = vmatpush.bf16.msra.mxu0 %v3230
        %3631 = vmatpush.bf16.msra.mxu0 %v3214
        %3632 = vmatpush.bf16.msra.mxu0 %v3198
        %3633 = vmatpush.bf16.msra.mxu0 %v3182
        %3634 = vmatpush.bf16.msra.mxu0 %v3166
        %3635 = vmatpush.bf16.msra.mxu0 %v3150
        %3636 = vmatpush.bf16.msra.mxu0 %v3134
        %3637 = vmatpush.bf16.msra.mxu0 %v3118
        %3638 = vmatmul.bf16.gmra.mxu0 %v2056
        %v3639 = vpop.f32.mrf.mxu0
        %v3640 = vadd.f32 %v2318, %v3639
        %v3641 = vpop.f32.mrf.mxu0
        %v3642 = vadd.f32 %v2318, %v3641
        %3643 = vdwg.mxu0
        %3644 = vmatpush.bf16.msra.mxu0 %v3358
        %3645 = vmatpush.bf16.msra.mxu0 %v3342
        %3646 = vmatpush.bf16.msra.mxu0 %v3326
        %3647 = vmatpush.bf16.msra.mxu0 %v3310
        %3648 = vmatpush.bf16.msra.mxu0 %v3294
        %3649 = vmatpush.bf16.msra.mxu0 %v3278
        %3650 = vmatpush.bf16.msra.mxu0 %v3262
        %3651 = vmatpush.bf16.msra.mxu0 %v3246
        %3652 = vmatmul.bf16.gmra.mxu0 %v2057
        %v3653 = vpop.f32.mrf.mxu0
        %v3654 = vadd.f32 %v3640, %v3653
        %v3655 = vpop.f32.mrf.mxu0
        %v3656 = vadd.f32 %v3642, %v3655
        %3657 = vdwg.mxu0
        %3658 = vmatpush.bf16.msra.mxu0 %v3231
        %3659 = vmatpush.bf16.msra.mxu0 %v3215
        %3660 = vmatpush.bf16.msra.mxu0 %v3199
        %3661 = vmatpush.bf16.msra.mxu0 %v3183
        %3662 = vmatpush.bf16.msra.mxu0 %v3167
        %3663 = vmatpush.bf16.msra.mxu0 %v3151
        %3664 = vmatpush.bf16.msra.mxu0 %v3135
        %3665 = vmatpush.bf16.msra.mxu0 %v3119
        %3666 = vmatmul.bf16.gmra.mxu0 %v2056
        %v3667 = vpop.f32.mrf.mxu0
        %v3668 = vadd.f32 %v2319, %v3667
        %v3669 = vpop.f32.mrf.mxu0
        %v3670 = vadd.f32 %v2319, %v3669
        %3671 = vdwg.mxu0
        %3672 = vmatpush.bf16.msra.mxu0 %v3359
        %3673 = vmatpush.bf16.msra.mxu0 %v3343
        %3674 = vmatpush.bf16.msra.mxu0 %v3327
        %3675 = vmatpush.bf16.msra.mxu0 %v3311
        %3676 = vmatpush.bf16.msra.mxu0 %v3295
        %3677 = vmatpush.bf16.msra.mxu0 %v3279
        %3678 = vmatpush.bf16.msra.mxu0 %v3263
        %3679 = vmatpush.bf16.msra.mxu0 %v3247
        %3680 = vmatmul.bf16.gmra.mxu0 %v2057
        %v3681 = vpop.f32.mrf.mxu0
        %v3682 = vadd.f32 %v3668, %v3681
        %v3683 = vpop.f32.mrf.mxu0
        %v3684 = vadd.f32 %v3670, %v3683
        %3685 = vdwg.mxu0
        %3686 = vmatpush.bf16.msra.mxu0 %v3232
        %3687 = vmatpush.bf16.msra.mxu0 %v3216
        %3688 = vmatpush.bf16.msra.mxu0 %v3200
        %3689 = vmatpush.bf16.msra.mxu0 %v3184
        %3690 = vmatpush.bf16.msra.mxu0 %v3168
        %3691 = vmatpush.bf16.msra.mxu0 %v3152
        %3692 = vmatpush.bf16.msra.mxu0 %v3136
        %3693 = vmatpush.bf16.msra.mxu0 %v3120
        %3694 = vmatmul.bf16.gmra.mxu0 %v2056
        %v3695 = vpop.f32.mrf.mxu0
        %v3696 = vadd.f32 %v2320, %v3695
        %v3697 = vpop.f32.mrf.mxu0
        %v3698 = vadd.f32 %v2320, %v3697
        %3699 = vdwg.mxu0
        %3700 = vmatpush.bf16.msra.mxu0 %v3360
        %3701 = vmatpush.bf16.msra.mxu0 %v3344
        %3702 = vmatpush.bf16.msra.mxu0 %v3328
        %3703 = vmatpush.bf16.msra.mxu0 %v3312
        %3704 = vmatpush.bf16.msra.mxu0 %v3296
        %3705 = vmatpush.bf16.msra.mxu0 %v3280
        %3706 = vmatpush.bf16.msra.mxu0 %v3264
        %3707 = vmatpush.bf16.msra.mxu0 %v3248
        %3708 = vmatmul.bf16.gmra.mxu0 %v2057
        %v3709 = vpop.f32.mrf.mxu0
        %v3710 = vadd.f32 %v3696, %v3709
        %v3711 = vpop.f32.mrf.mxu0
        %v3712 = vadd.f32 %v3698, %v3711
        %3713 = vdwg.mxu0
        %3714 = vmatpush.bf16.msra.mxu0 %v3233
        %3715 = vmatpush.bf16.msra.mxu0 %v3217
        %3716 = vmatpush.bf16.msra.mxu0 %v3201
        %3717 = vmatpush.bf16.msra.mxu0 %v3185
        %3718 = vmatpush.bf16.msra.mxu0 %v3169
        %3719 = vmatpush.bf16.msra.mxu0 %v3153
        %3720 = vmatpush.bf16.msra.mxu0 %v3137
        %3721 = vmatpush.bf16.msra.mxu0 %v3121
        %3722 = vmatmul.bf16.gmra.mxu0 %v2056
        %v3723 = vpop.f32.mrf.mxu0
        %v3724 = vadd.f32 %v2321, %v3723
        %v3725 = vpop.f32.mrf.mxu0
        %v3726 = vadd.f32 %v2321, %v3725
        %3727 = vdwg.mxu0
        %3728 = vmatpush.bf16.msra.mxu0 %v3361
        %3729 = vmatpush.bf16.msra.mxu0 %v3345
        %3730 = vmatpush.bf16.msra.mxu0 %v3329
        %3731 = vmatpush.bf16.msra.mxu0 %v3313
        %3732 = vmatpush.bf16.msra.mxu0 %v3297
        %3733 = vmatpush.bf16.msra.mxu0 %v3281
        %3734 = vmatpush.bf16.msra.mxu0 %v3265
        %3735 = vmatpush.bf16.msra.mxu0 %v3249
        %3736 = vmatmul.bf16.gmra.mxu0 %v2057
        %v3737 = vpop.f32.mrf.mxu0
        %v3738 = vadd.f32 %v3724, %v3737
        %v3739 = vpop.f32.mrf.mxu0
        %v3740 = vadd.f32 %v3726, %v3739
        %3741 = vdwg.mxu0
        %3742 = vmatpush.bf16.msra.mxu0 %v3234
        %3743 = vmatpush.bf16.msra.mxu0 %v3218
        %3744 = vmatpush.bf16.msra.mxu0 %v3202
        %3745 = vmatpush.bf16.msra.mxu0 %v3186
        %3746 = vmatpush.bf16.msra.mxu0 %v3170
        %3747 = vmatpush.bf16.msra.mxu0 %v3154
        %3748 = vmatpush.bf16.msra.mxu0 %v3138
        %3749 = vmatpush.bf16.msra.mxu0 %v3122
        %3750 = vmatmul.bf16.gmra.mxu0 %v2056
        %v3751 = vpop.f32.mrf.mxu0
        %v3752 = vadd.f32 %v2322, %v3751
        %v3753 = vpop.f32.mrf.mxu0
        %v3754 = vadd.f32 %v2322, %v3753
        %3755 = vdwg.mxu0
        %3756 = vmatpush.bf16.msra.mxu0 %v3362
        %3757 = vmatpush.bf16.msra.mxu0 %v3346
        %3758 = vmatpush.bf16.msra.mxu0 %v3330
        %3759 = vmatpush.bf16.msra.mxu0 %v3314
        %3760 = vmatpush.bf16.msra.mxu0 %v3298
        %3761 = vmatpush.bf16.msra.mxu0 %v3282
        %3762 = vmatpush.bf16.msra.mxu0 %v3266
        %3763 = vmatpush.bf16.msra.mxu0 %v3250
        %3764 = vmatmul.bf16.gmra.mxu0 %v2057
        %v3765 = vpop.f32.mrf.mxu0
        %v3766 = vadd.f32 %v3752, %v3765
        %v3767 = vpop.f32.mrf.mxu0
        %v3768 = vadd.f32 %v3754, %v3767
        %3769 = vdwg.mxu0
        %3770 = vmatpush.bf16.msra.mxu0 %v3235
        %3771 = vmatpush.bf16.msra.mxu0 %v3219
        %3772 = vmatpush.bf16.msra.mxu0 %v3203
        %3773 = vmatpush.bf16.msra.mxu0 %v3187
        %3774 = vmatpush.bf16.msra.mxu0 %v3171
        %3775 = vmatpush.bf16.msra.mxu0 %v3155
        %3776 = vmatpush.bf16.msra.mxu0 %v3139
        %3777 = vmatpush.bf16.msra.mxu0 %v3123
        %3778 = vmatmul.bf16.gmra.mxu0 %v2056
        %v3779 = vpop.f32.mrf.mxu0
        %v3780 = vadd.f32 %v2323, %v3779
        %v3781 = vpop.f32.mrf.mxu0
        %v3782 = vadd.f32 %v2323, %v3781
        %3783 = vdwg.mxu0
        %3784 = vmatpush.bf16.msra.mxu0 %v3363
        %3785 = vmatpush.bf16.msra.mxu0 %v3347
        %3786 = vmatpush.bf16.msra.mxu0 %v3331
        %3787 = vmatpush.bf16.msra.mxu0 %v3315
        %3788 = vmatpush.bf16.msra.mxu0 %v3299
        %3789 = vmatpush.bf16.msra.mxu0 %v3283
        %3790 = vmatpush.bf16.msra.mxu0 %v3267
        %3791 = vmatpush.bf16.msra.mxu0 %v3251
        %3792 = vmatmul.bf16.gmra.mxu0 %v2057
        %v3793 = vpop.f32.mrf.mxu0
        %v3794 = vadd.f32 %v3780, %v3793
        %v3795 = vpop.f32.mrf.mxu0
        %v3796 = vadd.f32 %v3782, %v3795
        %3797 = vdwg.mxu0
        %3798 = vmatpush.bf16.msra.mxu0 %v3236
        %3799 = vmatpush.bf16.msra.mxu0 %v3220
        %3800 = vmatpush.bf16.msra.mxu0 %v3204
        %3801 = vmatpush.bf16.msra.mxu0 %v3188
        %3802 = vmatpush.bf16.msra.mxu0 %v3172
        %3803 = vmatpush.bf16.msra.mxu0 %v3156
        %3804 = vmatpush.bf16.msra.mxu0 %v3140
        %3805 = vmatpush.bf16.msra.mxu0 %v3124
        %3806 = vmatmul.bf16.gmra.mxu0 %v2056
        %v3807 = vpop.f32.mrf.mxu0
        %v3808 = vadd.f32 %v2324, %v3807
        %v3809 = vpop.f32.mrf.mxu0
        %v3810 = vadd.f32 %v2324, %v3809
        %3811 = vdwg.mxu0
        %3812 = vmatpush.bf16.msra.mxu0 %v3364
        %3813 = vmatpush.bf16.msra.mxu0 %v3348
        %3814 = vmatpush.bf16.msra.mxu0 %v3332
        %3815 = vmatpush.bf16.msra.mxu0 %v3316
        %3816 = vmatpush.bf16.msra.mxu0 %v3300
        %3817 = vmatpush.bf16.msra.mxu0 %v3284
        %3818 = vmatpush.bf16.msra.mxu0 %v3268
        %3819 = vmatpush.bf16.msra.mxu0 %v3252
        %3820 = vmatmul.bf16.gmra.mxu0 %v2057
        %v3821 = vpop.f32.mrf.mxu0
        %v3822 = vadd.f32 %v3808, %v3821
        %v3823 = vpop.f32.mrf.mxu0
        %v3824 = vadd.f32 %v3810, %v3823
        %3825 = vdwg.mxu0
        %3826 = vmatpush.bf16.msra.mxu0 %v3237
        %3827 = vmatpush.bf16.msra.mxu0 %v3221
        %3828 = vmatpush.bf16.msra.mxu0 %v3205
        %3829 = vmatpush.bf16.msra.mxu0 %v3189
        %3830 = vmatpush.bf16.msra.mxu0 %v3173
        %3831 = vmatpush.bf16.msra.mxu0 %v3157
        %3832 = vmatpush.bf16.msra.mxu0 %v3141
        %3833 = vmatpush.bf16.msra.mxu0 %v3125
        %3834 = vmatmul.bf16.gmra.mxu0 %v2056
        %v3835 = vpop.f32.mrf.mxu0
        %v3836 = vadd.f32 %v2325, %v3835
        %v3837 = vpop.f32.mrf.mxu0
        %v3838 = vadd.f32 %v2325, %v3837
        %3839 = vdwg.mxu0
        %3840 = vmatpush.bf16.msra.mxu0 %v3365
        %3841 = vmatpush.bf16.msra.mxu0 %v3349
        %3842 = vmatpush.bf16.msra.mxu0 %v3333
        %3843 = vmatpush.bf16.msra.mxu0 %v3317
        %3844 = vmatpush.bf16.msra.mxu0 %v3301
        %3845 = vmatpush.bf16.msra.mxu0 %v3285
        %3846 = vmatpush.bf16.msra.mxu0 %v3269
        %3847 = vmatpush.bf16.msra.mxu0 %v3253
        %3848 = vmatmul.bf16.gmra.mxu0 %v2057
        %v3849 = vpop.f32.mrf.mxu0
        %v3850 = vadd.f32 %v3836, %v3849
        %v3851 = vpop.f32.mrf.mxu0
        %v3852 = vadd.f32 %v3838, %v3851
        %3853 = vdwg.mxu0
        %3854 = vmatpush.bf16.msra.mxu0 %v3238
        %3855 = vmatpush.bf16.msra.mxu0 %v3222
        %3856 = vmatpush.bf16.msra.mxu0 %v3206
        %3857 = vmatpush.bf16.msra.mxu0 %v3190
        %3858 = vmatpush.bf16.msra.mxu0 %v3174
        %3859 = vmatpush.bf16.msra.mxu0 %v3158
        %3860 = vmatpush.bf16.msra.mxu0 %v3142
        %3861 = vmatpush.bf16.msra.mxu0 %v3126
        %3862 = vmatmul.bf16.gmra.mxu0 %v2056
        %v3863 = vpop.f32.mrf.mxu0
        %v3864 = vadd.f32 %v2326, %v3863
        %v3865 = vpop.f32.mrf.mxu0
        %v3866 = vadd.f32 %v2326, %v3865
        %3867 = vdwg.mxu0
        %3868 = vmatpush.bf16.msra.mxu0 %v3366
        %3869 = vmatpush.bf16.msra.mxu0 %v3350
        %3870 = vmatpush.bf16.msra.mxu0 %v3334
        %3871 = vmatpush.bf16.msra.mxu0 %v3318
        %3872 = vmatpush.bf16.msra.mxu0 %v3302
        %3873 = vmatpush.bf16.msra.mxu0 %v3286
        %3874 = vmatpush.bf16.msra.mxu0 %v3270
        %3875 = vmatpush.bf16.msra.mxu0 %v3254
        %3876 = vmatmul.bf16.gmra.mxu0 %v2057
        %v3877 = vpop.f32.mrf.mxu0
        %v3878 = vadd.f32 %v3864, %v3877
        %v3879 = vpop.f32.mrf.mxu0
        %v3880 = vadd.f32 %v3866, %v3879
        %3881 = vdwg.mxu0
        %3882 = vmatpush.bf16.msra.mxu0 %v3239
        %3883 = vmatpush.bf16.msra.mxu0 %v3223
        %3884 = vmatpush.bf16.msra.mxu0 %v3207
        %3885 = vmatpush.bf16.msra.mxu0 %v3191
        %3886 = vmatpush.bf16.msra.mxu0 %v3175
        %3887 = vmatpush.bf16.msra.mxu0 %v3159
        %3888 = vmatpush.bf16.msra.mxu0 %v3143
        %3889 = vmatpush.bf16.msra.mxu0 %v3127
        %3890 = vmatmul.bf16.gmra.mxu0 %v2056
        %v3891 = vpop.f32.mrf.mxu0
        %v3892 = vadd.f32 %v2327, %v3891
        %v3893 = vpop.f32.mrf.mxu0
        %v3894 = vadd.f32 %v2327, %v3893
        %3895 = vdwg.mxu0
        %3896 = vmatpush.bf16.msra.mxu0 %v3367
        %3897 = vmatpush.bf16.msra.mxu0 %v3351
        %3898 = vmatpush.bf16.msra.mxu0 %v3335
        %3899 = vmatpush.bf16.msra.mxu0 %v3319
        %3900 = vmatpush.bf16.msra.mxu0 %v3303
        %3901 = vmatpush.bf16.msra.mxu0 %v3287
        %3902 = vmatpush.bf16.msra.mxu0 %v3271
        %3903 = vmatpush.bf16.msra.mxu0 %v3255
        %3904 = vmatmul.bf16.gmra.mxu0 %v2057
        %v3905 = vpop.f32.mrf.mxu0
        %v3906 = vadd.f32 %v3892, %v3905
        %v3907 = vpop.f32.mrf.mxu0
        %v3908 = vadd.f32 %v3894, %v3907
        %3909 = vdwg.mxu0
        %3910 = vmatpush.bf16.msra.mxu0 %v3240
        %3911 = vmatpush.bf16.msra.mxu0 %v3224
        %3912 = vmatpush.bf16.msra.mxu0 %v3208
        %3913 = vmatpush.bf16.msra.mxu0 %v3192
        %3914 = vmatpush.bf16.msra.mxu0 %v3176
        %3915 = vmatpush.bf16.msra.mxu0 %v3160
        %3916 = vmatpush.bf16.msra.mxu0 %v3144
        %3917 = vmatpush.bf16.msra.mxu0 %v3128
        %3918 = vmatmul.bf16.gmra.mxu0 %v2056
        %v3919 = vpop.f32.mrf.mxu0
        %v3920 = vadd.f32 %v2328, %v3919
        %v3921 = vpop.f32.mrf.mxu0
        %v3922 = vadd.f32 %v2328, %v3921
        %3923 = vdwg.mxu0
        %3924 = vmatpush.bf16.msra.mxu0 %v3368
        %3925 = vmatpush.bf16.msra.mxu0 %v3352
        %3926 = vmatpush.bf16.msra.mxu0 %v3336
        %3927 = vmatpush.bf16.msra.mxu0 %v3320
        %3928 = vmatpush.bf16.msra.mxu0 %v3304
        %3929 = vmatpush.bf16.msra.mxu0 %v3288
        %3930 = vmatpush.bf16.msra.mxu0 %v3272
        %3931 = vmatpush.bf16.msra.mxu0 %v3256
        %3932 = vmatmul.bf16.gmra.mxu0 %v2057
        %v3933 = vpop.f32.mrf.mxu0
        %v3934 = vadd.f32 %v3920, %v3933
        %v3935 = vpop.f32.mrf.mxu0
        %v3936 = vadd.f32 %v3922, %v3935
        %3937 = vdwg.mxu0
        %3938 = vmatpush.bf16.msra.mxu0 %v3241
        %3939 = vmatpush.bf16.msra.mxu0 %v3225
        %3940 = vmatpush.bf16.msra.mxu0 %v3209
        %3941 = vmatpush.bf16.msra.mxu0 %v3193
        %3942 = vmatpush.bf16.msra.mxu0 %v3177
        %3943 = vmatpush.bf16.msra.mxu0 %v3161
        %3944 = vmatpush.bf16.msra.mxu0 %v3145
        %3945 = vmatpush.bf16.msra.mxu0 %v3129
        %3946 = vmatmul.bf16.gmra.mxu0 %v2056
        %v3947 = vpop.f32.mrf.mxu0
        %v3948 = vadd.f32 %v2329, %v3947
        %v3949 = vpop.f32.mrf.mxu0
        %v3950 = vadd.f32 %v2329, %v3949
        %3951 = vdwg.mxu0
        %3952 = vmatpush.bf16.msra.mxu0 %v3369
        %3953 = vmatpush.bf16.msra.mxu0 %v3353
        %3954 = vmatpush.bf16.msra.mxu0 %v3337
        %3955 = vmatpush.bf16.msra.mxu0 %v3321
        %3956 = vmatpush.bf16.msra.mxu0 %v3305
        %3957 = vmatpush.bf16.msra.mxu0 %v3289
        %3958 = vmatpush.bf16.msra.mxu0 %v3273
        %3959 = vmatpush.bf16.msra.mxu0 %v3257
        %3960 = vmatmul.bf16.gmra.mxu0 %v2057
        %v3961 = vpop.f32.mrf.mxu0
        %v3962 = vadd.f32 %v3948, %v3961
        %v3963 = vpop.f32.mrf.mxu0
        %v3964 = vadd.f32 %v3950, %v3963
        %3965 = vdwg.mxu0
        %3966 = vmatpush.bf16.msra.mxu0 %v3242
        %3967 = vmatpush.bf16.msra.mxu0 %v3226
        %3968 = vmatpush.bf16.msra.mxu0 %v3210
        %3969 = vmatpush.bf16.msra.mxu0 %v3194
        %3970 = vmatpush.bf16.msra.mxu0 %v3178
        %3971 = vmatpush.bf16.msra.mxu0 %v3162
        %3972 = vmatpush.bf16.msra.mxu0 %v3146
        %3973 = vmatpush.bf16.msra.mxu0 %v3130
        %3974 = vmatmul.bf16.gmra.mxu0 %v2056
        %v3975 = vpop.f32.mrf.mxu0
        %v3976 = vadd.f32 %v2330, %v3975
        %v3977 = vpop.f32.mrf.mxu0
        %v3978 = vadd.f32 %v2330, %v3977
        %3979 = vdwg.mxu0
        %3980 = vmatpush.bf16.msra.mxu0 %v3370
        %3981 = vmatpush.bf16.msra.mxu0 %v3354
        %3982 = vmatpush.bf16.msra.mxu0 %v3338
        %3983 = vmatpush.bf16.msra.mxu0 %v3322
        %3984 = vmatpush.bf16.msra.mxu0 %v3306
        %3985 = vmatpush.bf16.msra.mxu0 %v3290
        %3986 = vmatpush.bf16.msra.mxu0 %v3274
        %3987 = vmatpush.bf16.msra.mxu0 %v3258
        %3988 = vmatmul.bf16.gmra.mxu0 %v2057
        %v3989 = vpop.f32.mrf.mxu0
        %v3990 = vadd.f32 %v3976, %v3989
        %v3991 = vpop.f32.mrf.mxu0
        %v3992 = vadd.f32 %v3978, %v3991
        %3993 = vdwg.mxu0
        %3994 = vmatpush.bf16.msra.mxu0 %v3243
        %3995 = vmatpush.bf16.msra.mxu0 %v3227
        %3996 = vmatpush.bf16.msra.mxu0 %v3211
        %3997 = vmatpush.bf16.msra.mxu0 %v3195
        %3998 = vmatpush.bf16.msra.mxu0 %v3179
        %3999 = vmatpush.bf16.msra.mxu0 %v3163
        %4000 = vmatpush.bf16.msra.mxu0 %v3147
        %4001 = vmatpush.bf16.msra.mxu0 %v3131
        %4002 = vmatmul.bf16.gmra.mxu0 %v2056
        %v4003 = vpop.f32.mrf.mxu0
        %v4004 = vadd.f32 %v2331, %v4003
        %v4005 = vpop.f32.mrf.mxu0
        %v4006 = vadd.f32 %v2331, %v4005
        %4007 = vdwg.mxu0
        %4008 = vmatpush.bf16.msra.mxu0 %v3371
        %4009 = vmatpush.bf16.msra.mxu0 %v3355
        %4010 = vmatpush.bf16.msra.mxu0 %v3339
        %4011 = vmatpush.bf16.msra.mxu0 %v3323
        %4012 = vmatpush.bf16.msra.mxu0 %v3307
        %4013 = vmatpush.bf16.msra.mxu0 %v3291
        %4014 = vmatpush.bf16.msra.mxu0 %v3275
        %4015 = vmatpush.bf16.msra.mxu0 %v3259
        %4016 = vmatmul.bf16.gmra.mxu0 %v2057
        %v4017 = vpop.f32.mrf.mxu0
        %v4018 = vadd.f32 %v4004, %v4017
        %v4019 = vpop.f32.mrf.mxu0
        %v4020 = vadd.f32 %v4006, %v4019
        %4021 = vdwg.mxu0
        %4022 = vmatpush.bf16.msra.mxu0 %v3244
        %4023 = vmatpush.bf16.msra.mxu0 %v3228
        %4024 = vmatpush.bf16.msra.mxu0 %v3212
        %4025 = vmatpush.bf16.msra.mxu0 %v3196
        %4026 = vmatpush.bf16.msra.mxu0 %v3180
        %4027 = vmatpush.bf16.msra.mxu0 %v3164
        %4028 = vmatpush.bf16.msra.mxu0 %v3148
        %4029 = vmatpush.bf16.msra.mxu0 %v3132
        %4030 = vmatmul.bf16.gmra.mxu0 %v2056
        %v4031 = vpop.f32.mrf.mxu0
        %v4032 = vadd.f32 %v2332, %v4031
        %v4033 = vpop.f32.mrf.mxu0
        %v4034 = vadd.f32 %v2332, %v4033
        %4035 = vdwg.mxu0
        %4036 = vmatpush.bf16.msra.mxu0 %v3372
        %4037 = vmatpush.bf16.msra.mxu0 %v3356
        %4038 = vmatpush.bf16.msra.mxu0 %v3340
        %4039 = vmatpush.bf16.msra.mxu0 %v3324
        %4040 = vmatpush.bf16.msra.mxu0 %v3308
        %4041 = vmatpush.bf16.msra.mxu0 %v3292
        %4042 = vmatpush.bf16.msra.mxu0 %v3276
        %4043 = vmatpush.bf16.msra.mxu0 %v3260
        %4044 = vmatmul.bf16.gmra.mxu0 %v2057
        %v4045 = vpop.f32.mrf.mxu0
        %v4046 = vadd.f32 %v4032, %v4045
        %v4047 = vpop.f32.mrf.mxu0
        %v4048 = vadd.f32 %v4034, %v4047
        %4049 = vdwg.mxu0
        %4050 = vmatpush.bf16.msra.mxu0 %v3245
        %4051 = vmatpush.bf16.msra.mxu0 %v3229
        %4052 = vmatpush.bf16.msra.mxu0 %v3213
        %4053 = vmatpush.bf16.msra.mxu0 %v3197
        %4054 = vmatpush.bf16.msra.mxu0 %v3181
        %4055 = vmatpush.bf16.msra.mxu0 %v3165
        %4056 = vmatpush.bf16.msra.mxu0 %v3149
        %4057 = vmatpush.bf16.msra.mxu0 %v3133
        %4058 = vmatmul.bf16.gmra.mxu0 %v2056
        %v4059 = vpop.f32.mrf.mxu0
        %v4060 = vadd.f32 %v2333, %v4059
        %v4061 = vpop.f32.mrf.mxu0
        %v4062 = vadd.f32 %v2333, %v4061
        %4063 = vdwg.mxu0
        %4064 = vmatpush.bf16.msra.mxu0 %v3373
        %4065 = vmatpush.bf16.msra.mxu0 %v3357
        %4066 = vmatpush.bf16.msra.mxu0 %v3341
        %4067 = vmatpush.bf16.msra.mxu0 %v3325
        %4068 = vmatpush.bf16.msra.mxu0 %v3309
        %4069 = vmatpush.bf16.msra.mxu0 %v3293
        %4070 = vmatpush.bf16.msra.mxu0 %v3277
        %4071 = vmatpush.bf16.msra.mxu0 %v3261
        %4072 = vmatmul.bf16.gmra.mxu0 %v2057
        %v4073 = vpop.f32.mrf.mxu0
        %v4074 = vadd.f32 %v4060, %v4073
        %v4075 = vpop.f32.mrf.mxu0
        %v4076 = vadd.f32 %v4062, %v4075
        %4077 = vdwg.mxu0
        %vm4078 = vcmp.gt.f32.partialorder %v3654, 0.0
        %vm4079 = vcmp.gt.f32.partialorder %v3682, 0.0
        %vm4080 = vcmp.gt.f32.partialorder %v3710, 0.0
        %vm4081 = vcmp.gt.f32.partialorder %v3738, 0.0
        %vm4082 = vcmp.gt.f32.partialorder %v3766, 0.0
        %vm4083 = vcmp.gt.f32.partialorder %v3794, 0.0
        %vm4084 = vcmp.gt.f32.partialorder %v3822, 0.0
        %vm4085 = vcmp.gt.f32.partialorder %v3850, 0.0
        %vm4086 = vcmp.gt.f32.partialorder %v3878, 0.0
        %vm4087 = vcmp.gt.f32.partialorder %v3906, 0.0
        %vm4088 = vcmp.gt.f32.partialorder %v3934, 0.0
        %vm4089 = vcmp.gt.f32.partialorder %v3962, 0.0
        %vm4090 = vcmp.gt.f32.partialorder %v3990, 0.0
        %vm4091 = vcmp.gt.f32.partialorder %v4018, 0.0
        %vm4092 = vcmp.gt.f32.partialorder %v4046, 0.0
        %vm4093 = vcmp.gt.f32.partialorder %v4074, 0.0
        %vm4094 = vcmp.gt.f32.partialorder %v3656, 0.0
        %vm4095 = vcmp.gt.f32.partialorder %v3684, 0.0
        %vm4096 = vcmp.gt.f32.partialorder %v3712, 0.0
        %vm4097 = vcmp.gt.f32.partialorder %v3740, 0.0
        %vm4098 = vcmp.gt.f32.partialorder %v3768, 0.0
        %vm4099 = vcmp.gt.f32.partialorder %v3796, 0.0
        %vm4100 = vcmp.gt.f32.partialorder %v3824, 0.0
        %vm4101 = vcmp.gt.f32.partialorder %v3852, 0.0
        %vm4102 = vcmp.gt.f32.partialorder %v3880, 0.0
        %vm4103 = vcmp.gt.f32.partialorder %v3908, 0.0
        %vm4104 = vcmp.gt.f32.partialorder %v3936, 0.0
        %vm4105 = vcmp.gt.f32.partialorder %v3964, 0.0
        %vm4106 = vcmp.gt.f32.partialorder %v3992, 0.0
        %vm4107 = vcmp.gt.f32.partialorder %v4020, 0.0
        %vm4108 = vcmp.gt.f32.partialorder %v4048, 0.0
        %vm4109 = vcmp.gt.f32.partialorder %v4076, 0.0
        %v4110 = vmul.f32 %v3654, 0.2
        %v4111 = vmul.f32 %v3682, 0.2
        %v4112 = vmul.f32 %v3710, 0.2
        %v4113 = vmul.f32 %v3738, 0.2
        %v4114 = vmul.f32 %v3766, 0.2
        %v4115 = vmul.f32 %v3794, 0.2
        %v4116 = vmul.f32 %v3822, 0.2
        %v4117 = vmul.f32 %v3850, 0.2
        %v4118 = vmul.f32 %v3878, 0.2
        %v4119 = vmul.f32 %v3906, 0.2
        %v4120 = vmul.f32 %v3934, 0.2
        %v4121 = vmul.f32 %v3962, 0.2
        %v4122 = vmul.f32 %v3990, 0.2
        %v4123 = vmul.f32 %v4018, 0.2
        %v4124 = vmul.f32 %v4046, 0.2
        %v4125 = vmul.f32 %v4074, 0.2
        %v4126 = vmul.f32 %v3656, 0.2
        %v4127 = vmul.f32 %v3684, 0.2
        %v4128 = vmul.f32 %v3712, 0.2
        %v4129 = vmul.f32 %v3740, 0.2
        %v4130 = vmul.f32 %v3768, 0.2
        %v4131 = vmul.f32 %v3796, 0.2
        %v4132 = vmul.f32 %v3824, 0.2
        %v4133 = vmul.f32 %v3852, 0.2
        %v4134 = vmul.f32 %v3880, 0.2
        %v4135 = vmul.f32 %v3908, 0.2
        %v4136 = vmul.f32 %v3936, 0.2
        %v4137 = vmul.f32 %v3964, 0.2
        %v4138 = vmul.f32 %v3992, 0.2
        %v4139 = vmul.f32 %v4020, 0.2
        %v4140 = vmul.f32 %v4048, 0.2
        %v4141 = vmul.f32 %v4076, 0.2
        %v4142 = vsel %vm4078, %v3654, %v4110
        %v4143 = vsel %vm4079, %v3682, %v4111
        %v4144 = vsel %vm4080, %v3710, %v4112
        %v4145 = vsel %vm4081, %v3738, %v4113
        %v4146 = vsel %vm4082, %v3766, %v4114
        %v4147 = vsel %vm4083, %v3794, %v4115
        %v4148 = vsel %vm4084, %v3822, %v4116
        %v4149 = vsel %vm4085, %v3850, %v4117
        %v4150 = vsel %vm4086, %v3878, %v4118
        %v4151 = vsel %vm4087, %v3906, %v4119
        %v4152 = vsel %vm4088, %v3934, %v4120
        %v4153 = vsel %vm4089, %v3962, %v4121
        %v4154 = vsel %vm4090, %v3990, %v4122
        %v4155 = vsel %vm4091, %v4018, %v4123
        %v4156 = vsel %vm4092, %v4046, %v4124
        %v4157 = vsel %vm4093, %v4074, %v4125
        %v4158 = vsel %vm4094, %v3656, %v4126
        %v4159 = vsel %vm4095, %v3684, %v4127
        %v4160 = vsel %vm4096, %v3712, %v4128
        %v4161 = vsel %vm4097, %v3740, %v4129
        %v4162 = vsel %vm4098, %v3768, %v4130
        %v4163 = vsel %vm4099, %v3796, %v4131
        %v4164 = vsel %vm4100, %v3824, %v4132
        %v4165 = vsel %vm4101, %v3852, %v4133
        %v4166 = vsel %vm4102, %v3880, %v4134
        %v4167 = vsel %vm4103, %v3908, %v4135
        %v4168 = vsel %vm4104, %v3936, %v4136
        %v4169 = vsel %vm4105, %v3964, %v4137
        %v4170 = vsel %vm4106, %v3992, %v4138
        %v4171 = vsel %vm4107, %v4020, %v4139
        %v4172 = vsel %vm4108, %v4048, %v4140
        %v4173 = vsel %vm4109, %v4076, %v4141
        %4174 = vst [vmem:[#allocation3] sm:$0xff] %v4142
        %4175 = vst [vmem:[#allocation3 + $0x8] sm:$0xff] %v4158
        %4176 = vst [vmem:[#allocation3 + $0x10] sm:$0xff] %v4143
        %4177 = vst [vmem:[#allocation3 + $0x18] sm:$0xff] %v4159
        %4178 = vst [vmem:[#allocation3 + $0x20] sm:$0xff] %v4144
        %4179 = vst [vmem:[#allocation3 + $0x28] sm:$0xff] %v4160
        %4180 = vst [vmem:[#allocation3 + $0x30] sm:$0xff] %v4145
        %4181 = vst [vmem:[#allocation3 + $0x38] sm:$0xff] %v4161
        %4182 = vst [vmem:[#allocation3 + $0x40] sm:$0xff] %v4146
        %4183 = vst [vmem:[#allocation3 + $0x48] sm:$0xff] %v4162
        %4184 = vst [vmem:[#allocation3 + $0x50] sm:$0xff] %v4147
        %4185 = vst [vmem:[#allocation3 + $0x58] sm:$0xff] %v4163
        %4186 = vst [vmem:[#allocation3 + $0x60] sm:$0xff] %v4148
        %4187 = vst [vmem:[#allocation3 + $0x68] sm:$0xff] %v4164
        %4188 = vst [vmem:[#allocation3 + $0x70] sm:$0xff] %v4149
        %4189 = vst [vmem:[#allocation3 + $0x78] sm:$0xff] %v4165
        %4190 = vst [vmem:[#allocation3 + $0x80] sm:$0xff] %v4150
        %4191 = vst [vmem:[#allocation3 + $0x88] sm:$0xff] %v4166
        %4192 = vst [vmem:[#allocation3 + $0x90] sm:$0xff] %v4151
        %4193 = vst [vmem:[#allocation3 + $0x98] sm:$0xff] %v4167
        %4194 = vst [vmem:[#allocation3 + $0xa0] sm:$0xff] %v4152
        %4195 = vst [vmem:[#allocation3 + $0xa8] sm:$0xff] %v4168
        %4196 = vst [vmem:[#allocation3 + $0xb0] sm:$0xff] %v4153
        %4197 = vst [vmem:[#allocation3 + $0xb8] sm:$0xff] %v4169
        %4198 = vst [vmem:[#allocation3 + $0xc0] sm:$0xff] %v4154
        %4199 = vst [vmem:[#allocation3 + $0xc8] sm:$0xff] %v4170
        %4200 = vst [vmem:[#allocation3 + $0xd0] sm:$0xff] %v4155
        %4201 = vst [vmem:[#allocation3 + $0xd8] sm:$0xff] %v4171
        %4202 = vst [vmem:[#allocation3 + $0xe0] sm:$0xff] %v4156
        %4203 = vst [vmem:[#allocation3 + $0xe8] sm:$0xff] %v4172
        %4204 = vst [vmem:[#allocation3 + $0xf0] sm:$0xff] %v4157
        %4205 = vst [vmem:[#allocation3 + $0xf8] sm:$0xff] %v4173
        %v4206 = vld [vmem:[#allocation3] sm:$0xff]
        %v4207 = vld [vmem:[#allocation3 + $0x8] sm:$0xff]
        %v4208 = vld [vmem:[#allocation3 + $0x10] sm:$0xff]
        %v4209 = vld [vmem:[#allocation3 + $0x18] sm:$0xff]
        %v4210 = vld [vmem:[#allocation3 + $0x20] sm:$0xff]
        %v4211 = vld [vmem:[#allocation3 + $0x28] sm:$0xff]
        %v4212 = vld [vmem:[#allocation3 + $0x30] sm:$0xff]
        %v4213 = vld [vmem:[#allocation3 + $0x38] sm:$0xff]
        %v4214 = vld [vmem:[#allocation3 + $0x40] sm:$0xff]
        %v4215 = vld [vmem:[#allocation3 + $0x48] sm:$0xff]
        %v4216 = vld [vmem:[#allocation3 + $0x50] sm:$0xff]
        %v4217 = vld [vmem:[#allocation3 + $0x58] sm:$0xff]
        %v4218 = vld [vmem:[#allocation3 + $0x60] sm:$0xff]
        %v4219 = vld [vmem:[#allocation3 + $0x68] sm:$0xff]
        %v4220 = vld [vmem:[#allocation3 + $0x70] sm:$0xff]
        %v4221 = vld [vmem:[#allocation3 + $0x78] sm:$0xff]
        %v4222 = vld [vmem:[#allocation3 + $0x80] sm:$0xff]
        %v4223 = vld [vmem:[#allocation3 + $0x88] sm:$0xff]
        %v4224 = vld [vmem:[#allocation3 + $0x90] sm:$0xff]
        %v4225 = vld [vmem:[#allocation3 + $0x98] sm:$0xff]
        %v4226 = vld [vmem:[#allocation3 + $0xa0] sm:$0xff]
        %v4227 = vld [vmem:[#allocation3 + $0xa8] sm:$0xff]
        %v4228 = vld [vmem:[#allocation3 + $0xb0] sm:$0xff]
        %v4229 = vld [vmem:[#allocation3 + $0xb8] sm:$0xff]
        %v4230 = vld [vmem:[#allocation3 + $0xc0] sm:$0xff]
        %v4231 = vld [vmem:[#allocation3 + $0xc8] sm:$0xff]
        %v4232 = vld [vmem:[#allocation3 + $0xd0] sm:$0xff]
        %v4233 = vld [vmem:[#allocation3 + $0xd8] sm:$0xff]
        %v4234 = vld [vmem:[#allocation3 + $0xe0] sm:$0xff]
        %v4235 = vld [vmem:[#allocation3 + $0xe8] sm:$0xff]
        %v4236 = vld [vmem:[#allocation3 + $0xf0] sm:$0xff]
        %v4237 = vld [vmem:[#allocation3 + $0xf8] sm:$0xff]
        %v4238 = vpack.c.bf16 %v4207, %v4206
        %v4239 = vpack.c.bf16 %v4209, %v4208
        %v4240 = vpack.c.bf16 %v4211, %v4210
        %v4241 = vpack.c.bf16 %v4213, %v4212
        %v4242 = vpack.c.bf16 %v4215, %v4214
        %v4243 = vpack.c.bf16 %v4217, %v4216
        %v4244 = vpack.c.bf16 %v4219, %v4218
        %v4245 = vpack.c.bf16 %v4221, %v4220
        %v4246 = vpack.c.bf16 %v4223, %v4222
        %v4247 = vpack.c.bf16 %v4225, %v4224
        %v4248 = vpack.c.bf16 %v4227, %v4226
        %v4249 = vpack.c.bf16 %v4229, %v4228
        %v4250 = vpack.c.bf16 %v4231, %v4230
        %v4251 = vpack.c.bf16 %v4233, %v4232
        %v4252 = vpack.c.bf16 %v4235, %v4234
        %v4253 = vpack.c.bf16 %v4237, %v4236
        %v4254 = vld [vmem:[#allocation12] sm:$0xff]
        %v4255 = vld [vmem:[#allocation12 + $0x8] sm:$0xff]
        %v4256 = vld [vmem:[#allocation12 + $0x10] sm:$0xff]
        %v4257 = vld [vmem:[#allocation12 + $0x18] sm:$0xff]
        %v4258 = vld [vmem:[#allocation12 + $0x20] sm:$0xff]
        %v4259 = vld [vmem:[#allocation12 + $0x28] sm:$0xff]
        %v4260 = vld [vmem:[#allocation12 + $0x30] sm:$0xff]
        %v4261 = vld [vmem:[#allocation12 + $0x38] sm:$0xff]
        %v4262 = vld [vmem:[#allocation12 + $0x40] sm:$0xff]
        %v4263 = vld [vmem:[#allocation12 + $0x48] sm:$0xff]
        %v4264 = vld [vmem:[#allocation12 + $0x50] sm:$0xff]
        %v4265 = vld [vmem:[#allocation12 + $0x58] sm:$0xff]
        %v4266 = vld [vmem:[#allocation12 + $0x60] sm:$0xff]
        %v4267 = vld [vmem:[#allocation12 + $0x68] sm:$0xff]
        %v4268 = vld [vmem:[#allocation12 + $0x70] sm:$0xff]
        %v4269 = vld [vmem:[#allocation12 + $0x78] sm:$0xff]
        %v4270 = vld [vmem:[#allocation14] sm:$0x3]
        %v4272 = vperm.slane %v4270, 0
        %v4273 = vperm.slane %v4270, 1
        %v4292 = vunpack.c.l.b16 %v4254
        %v4293 = vunpack.c.h.b16 %v4254
        %v4294 = vunpack.c.l.b16 %v4255
        %v4295 = vunpack.c.h.b16 %v4255
        %v4296 = vunpack.c.l.b16 %v4256
        %v4297 = vunpack.c.h.b16 %v4256
        %v4298 = vunpack.c.l.b16 %v4257
        %v4299 = vunpack.c.h.b16 %v4257
        %v4300 = vunpack.c.l.b16 %v4258
        %v4301 = vunpack.c.h.b16 %v4258
        %v4302 = vunpack.c.l.b16 %v4259
        %v4303 = vunpack.c.h.b16 %v4259
        %v4304 = vunpack.c.l.b16 %v4260
        %v4305 = vunpack.c.h.b16 %v4260
        %v4306 = vunpack.c.l.b16 %v4261
        %v4307 = vunpack.c.h.b16 %v4261
        %v4308 = vunpack.c.l.b16 %v4262
        %v4309 = vunpack.c.h.b16 %v4262
        %v4310 = vunpack.c.l.b16 %v4263
        %v4311 = vunpack.c.h.b16 %v4263
        %v4312 = vunpack.c.l.b16 %v4264
        %v4313 = vunpack.c.h.b16 %v4264
        %v4314 = vunpack.c.l.b16 %v4265
        %v4315 = vunpack.c.h.b16 %v4265
        %v4316 = vunpack.c.l.b16 %v4266
        %v4317 = vunpack.c.h.b16 %v4266
        %v4318 = vunpack.c.l.b16 %v4267
        %v4319 = vunpack.c.h.b16 %v4267
        %v4320 = vunpack.c.l.b16 %v4268
        %v4321 = vunpack.c.h.b16 %v4268
        %v4322 = vunpack.c.l.b16 %v4269
        %v4323 = vunpack.c.h.b16 %v4269
        %v4324 = vpack.c.b16 %v4294, %v4292
        %v4325 = vpack.c.b16 %v4295, %v4293
        %v4326 = vpack.c.b16 %v4298, %v4296
        %v4327 = vpack.c.b16 %v4299, %v4297
        %v4328 = vpack.c.b16 %v4302, %v4300
        %v4329 = vpack.c.b16 %v4303, %v4301
        %v4330 = vpack.c.b16 %v4306, %v4304
        %v4331 = vpack.c.b16 %v4307, %v4305
        %v4332 = vpack.c.b16 %v4310, %v4308
        %v4333 = vpack.c.b16 %v4311, %v4309
        %v4334 = vpack.c.b16 %v4314, %v4312
        %v4335 = vpack.c.b16 %v4315, %v4313
        %v4336 = vpack.c.b16 %v4318, %v4316
        %v4337 = vpack.c.b16 %v4319, %v4317
        %v4338 = vpack.c.b16 %v4322, %v4320
        %v4339 = vpack.c.b16 %v4323, %v4321
        %4356 = vmatpush.bf16.msra.mxu0 %v4338
        %4357 = vmatpush.bf16.msra.mxu0 %v4336
        %4358 = vmatpush.bf16.msra.mxu0 %v4334
        %4359 = vmatpush.bf16.msra.mxu0 %v4332
        %4360 = vmatpush.bf16.msra.mxu0 %v4330
        %4361 = vmatpush.bf16.msra.mxu0 %v4328
        %4362 = vmatpush.bf16.msra.mxu0 %v4326
        %4363 = vmatpush.bf16.msra.mxu0 %v4324
        %4364 = vmatmul.bf16.gmra.mxu0 %v4238
        %v4365 = vpop.f32.mrf.mxu0
        %v4366 = vadd.f32 %v4272, %v4365
        %v4367 = vpop.f32.mrf.mxu0
        %v4368 = vadd.f32 %v4272, %v4367
        %4369 = vmatmul.bf16.gmra.mxu0 %v4239
        %v4370 = vpop.f32.mrf.mxu0
        %v4371 = vadd.f32 %v4272, %v4370
        %v4372 = vpop.f32.mrf.mxu0
        %v4373 = vadd.f32 %v4272, %v4372
        %4374 = vmatmul.bf16.gmra.mxu0 %v4240
        %v4375 = vpop.f32.mrf.mxu0
        %v4376 = vadd.f32 %v4272, %v4375
        %v4377 = vpop.f32.mrf.mxu0
        %v4378 = vadd.f32 %v4272, %v4377
        %4379 = vmatmul.bf16.gmra.mxu0 %v4241
        %v4380 = vpop.f32.mrf.mxu0
        %v4381 = vadd.f32 %v4272, %v4380
        %v4382 = vpop.f32.mrf.mxu0
        %v4383 = vadd.f32 %v4272, %v4382
        %4384 = vmatmul.bf16.gmra.mxu0 %v4242
        %v4385 = vpop.f32.mrf.mxu0
        %v4386 = vadd.f32 %v4272, %v4385
        %v4387 = vpop.f32.mrf.mxu0
        %v4388 = vadd.f32 %v4272, %v4387
        %4389 = vmatmul.bf16.gmra.mxu0 %v4243
        %v4390 = vpop.f32.mrf.mxu0
        %v4391 = vadd.f32 %v4272, %v4390
        %v4392 = vpop.f32.mrf.mxu0
        %v4393 = vadd.f32 %v4272, %v4392
        %4394 = vmatmul.bf16.gmra.mxu0 %v4244
        %v4395 = vpop.f32.mrf.mxu0
        %v4396 = vadd.f32 %v4272, %v4395
        %v4397 = vpop.f32.mrf.mxu0
        %v4398 = vadd.f32 %v4272, %v4397
        %4399 = vmatmul.bf16.gmra.mxu0 %v4245
        %v4400 = vpop.f32.mrf.mxu0
        %v4401 = vadd.f32 %v4272, %v4400
        %v4402 = vpop.f32.mrf.mxu0
        %v4403 = vadd.f32 %v4272, %v4402
        %4404 = vmatmul.bf16.gmra.mxu0 %v4246
        %v4405 = vpop.f32.mrf.mxu0
        %v4406 = vadd.f32 %v4272, %v4405
        %v4407 = vpop.f32.mrf.mxu0
        %v4408 = vadd.f32 %v4272, %v4407
        %4409 = vmatmul.bf16.gmra.mxu0 %v4247
        %v4410 = vpop.f32.mrf.mxu0
        %v4411 = vadd.f32 %v4272, %v4410
        %v4412 = vpop.f32.mrf.mxu0
        %v4413 = vadd.f32 %v4272, %v4412
        %4414 = vmatmul.bf16.gmra.mxu0 %v4248
        %v4415 = vpop.f32.mrf.mxu0
        %v4416 = vadd.f32 %v4272, %v4415
        %v4417 = vpop.f32.mrf.mxu0
        %v4418 = vadd.f32 %v4272, %v4417
        %4419 = vmatmul.bf16.gmra.mxu0 %v4249
        %v4420 = vpop.f32.mrf.mxu0
        %v4421 = vadd.f32 %v4272, %v4420
        %v4422 = vpop.f32.mrf.mxu0
        %v4423 = vadd.f32 %v4272, %v4422
        %4424 = vmatmul.bf16.gmra.mxu0 %v4250
        %v4425 = vpop.f32.mrf.mxu0
        %v4426 = vadd.f32 %v4272, %v4425
        %v4427 = vpop.f32.mrf.mxu0
        %v4428 = vadd.f32 %v4272, %v4427
        %4429 = vmatmul.bf16.gmra.mxu0 %v4251
        %v4430 = vpop.f32.mrf.mxu0
        %v4431 = vadd.f32 %v4272, %v4430
        %v4432 = vpop.f32.mrf.mxu0
        %v4433 = vadd.f32 %v4272, %v4432
        %4434 = vmatmul.bf16.gmra.mxu0 %v4252
        %v4435 = vpop.f32.mrf.mxu0
        %v4436 = vadd.f32 %v4272, %v4435
        %v4437 = vpop.f32.mrf.mxu0
        %v4438 = vadd.f32 %v4272, %v4437
        %4439 = vmatmul.bf16.gmra.mxu0 %v4253
        %v4440 = vpop.f32.mrf.mxu0
        %v4441 = vadd.f32 %v4272, %v4440
        %v4442 = vpop.f32.mrf.mxu0
        %v4443 = vadd.f32 %v4272, %v4442
        %4444 = vdwg.mxu0
        %4445 = vmatpush.bf16.msra.mxu0 %v4339
        %4446 = vmatpush.bf16.msra.mxu0 %v4337
        %4447 = vmatpush.bf16.msra.mxu0 %v4335
        %4448 = vmatpush.bf16.msra.mxu0 %v4333
        %4449 = vmatpush.bf16.msra.mxu0 %v4331
        %4450 = vmatpush.bf16.msra.mxu0 %v4329
        %4451 = vmatpush.bf16.msra.mxu0 %v4327
        %4452 = vmatpush.bf16.msra.mxu0 %v4325
        %4453 = vmatmul.bf16.gmra.mxu0 %v4238
        %v4454 = vpop.f32.mrf.mxu0
        %v4455 = vadd.f32 %v4273, %v4454
        %v4456 = vpop.f32.mrf.mxu0
        %v4457 = vadd.f32 %v4273, %v4456
        %4458 = vmatmul.bf16.gmra.mxu0 %v4239
        %v4459 = vpop.f32.mrf.mxu0
        %v4460 = vadd.f32 %v4273, %v4459
        %v4461 = vpop.f32.mrf.mxu0
        %v4462 = vadd.f32 %v4273, %v4461
        %4463 = vmatmul.bf16.gmra.mxu0 %v4240
        %v4464 = vpop.f32.mrf.mxu0
        %v4465 = vadd.f32 %v4273, %v4464
        %v4466 = vpop.f32.mrf.mxu0
        %v4467 = vadd.f32 %v4273, %v4466
        %4468 = vmatmul.bf16.gmra.mxu0 %v4241
        %v4469 = vpop.f32.mrf.mxu0
        %v4470 = vadd.f32 %v4273, %v4469
        %v4471 = vpop.f32.mrf.mxu0
        %v4472 = vadd.f32 %v4273, %v4471
        %4473 = vmatmul.bf16.gmra.mxu0 %v4242
        %v4474 = vpop.f32.mrf.mxu0
        %v4475 = vadd.f32 %v4273, %v4474
        %v4476 = vpop.f32.mrf.mxu0
        %v4477 = vadd.f32 %v4273, %v4476
        %4478 = vmatmul.bf16.gmra.mxu0 %v4243
        %v4479 = vpop.f32.mrf.mxu0
        %v4480 = vadd.f32 %v4273, %v4479
        %v4481 = vpop.f32.mrf.mxu0
        %v4482 = vadd.f32 %v4273, %v4481
        %4483 = vmatmul.bf16.gmra.mxu0 %v4244
        %v4484 = vpop.f32.mrf.mxu0
        %v4485 = vadd.f32 %v4273, %v4484
        %v4486 = vpop.f32.mrf.mxu0
        %v4487 = vadd.f32 %v4273, %v4486
        %4488 = vmatmul.bf16.gmra.mxu0 %v4245
        %v4489 = vpop.f32.mrf.mxu0
        %v4490 = vadd.f32 %v4273, %v4489
        %v4491 = vpop.f32.mrf.mxu0
        %v4492 = vadd.f32 %v4273, %v4491
        %4493 = vmatmul.bf16.gmra.mxu0 %v4246
        %v4494 = vpop.f32.mrf.mxu0
        %v4495 = vadd.f32 %v4273, %v4494
        %v4496 = vpop.f32.mrf.mxu0
        %v4497 = vadd.f32 %v4273, %v4496
        %4498 = vmatmul.bf16.gmra.mxu0 %v4247
        %v4499 = vpop.f32.mrf.mxu0
        %v4500 = vadd.f32 %v4273, %v4499
        %v4501 = vpop.f32.mrf.mxu0
        %v4502 = vadd.f32 %v4273, %v4501
        %4503 = vmatmul.bf16.gmra.mxu0 %v4248
        %v4504 = vpop.f32.mrf.mxu0
        %v4505 = vadd.f32 %v4273, %v4504
        %v4506 = vpop.f32.mrf.mxu0
        %v4507 = vadd.f32 %v4273, %v4506
        %4508 = vmatmul.bf16.gmra.mxu0 %v4249
        %v4509 = vpop.f32.mrf.mxu0
        %v4510 = vadd.f32 %v4273, %v4509
        %v4511 = vpop.f32.mrf.mxu0
        %v4512 = vadd.f32 %v4273, %v4511
        %4513 = vmatmul.bf16.gmra.mxu0 %v4250
        %v4514 = vpop.f32.mrf.mxu0
        %v4515 = vadd.f32 %v4273, %v4514
        %v4516 = vpop.f32.mrf.mxu0
        %v4517 = vadd.f32 %v4273, %v4516
        %4518 = vmatmul.bf16.gmra.mxu0 %v4251
        %v4519 = vpop.f32.mrf.mxu0
        %v4520 = vadd.f32 %v4273, %v4519
        %v4521 = vpop.f32.mrf.mxu0
        %v4522 = vadd.f32 %v4273, %v4521
        %4523 = vmatmul.bf16.gmra.mxu0 %v4252
        %v4524 = vpop.f32.mrf.mxu0
        %v4525 = vadd.f32 %v4273, %v4524
        %v4526 = vpop.f32.mrf.mxu0
        %v4527 = vadd.f32 %v4273, %v4526
        %4528 = vmatmul.bf16.gmra.mxu0 %v4253
        %v4529 = vpop.f32.mrf.mxu0
        %v4530 = vadd.f32 %v4273, %v4529
        %v4531 = vpop.f32.mrf.mxu0
        %v4532 = vadd.f32 %v4273, %v4531
        %4533 = vdwg.mxu0
        %vm4534 = vcmp.gt.f32.partialorder %v4366, 0.0
        %vm4535 = vcmp.gt.f32.partialorder %v4455, 0.0
        %vm4536 = vcmp.gt.f32.partialorder %v4368, 0.0
        %vm4537 = vcmp.gt.f32.partialorder %v4457, 0.0
        %vm4538 = vcmp.gt.f32.partialorder %v4371, 0.0
        %vm4539 = vcmp.gt.f32.partialorder %v4460, 0.0
        %vm4540 = vcmp.gt.f32.partialorder %v4373, 0.0
        %vm4541 = vcmp.gt.f32.partialorder %v4462, 0.0
        %vm4542 = vcmp.gt.f32.partialorder %v4376, 0.0
        %vm4543 = vcmp.gt.f32.partialorder %v4465, 0.0
        %vm4544 = vcmp.gt.f32.partialorder %v4378, 0.0
        %vm4545 = vcmp.gt.f32.partialorder %v4467, 0.0
        %vm4546 = vcmp.gt.f32.partialorder %v4381, 0.0
        %vm4547 = vcmp.gt.f32.partialorder %v4470, 0.0
        %vm4548 = vcmp.gt.f32.partialorder %v4383, 0.0
        %vm4549 = vcmp.gt.f32.partialorder %v4472, 0.0
        %vm4550 = vcmp.gt.f32.partialorder %v4386, 0.0
        %vm4551 = vcmp.gt.f32.partialorder %v4475, 0.0
        %vm4552 = vcmp.gt.f32.partialorder %v4388, 0.0
        %vm4553 = vcmp.gt.f32.partialorder %v4477, 0.0
        %vm4554 = vcmp.gt.f32.partialorder %v4391, 0.0
        %vm4555 = vcmp.gt.f32.partialorder %v4480, 0.0
        %vm4556 = vcmp.gt.f32.partialorder %v4393, 0.0
        %vm4557 = vcmp.gt.f32.partialorder %v4482, 0.0
        %vm4558 = vcmp.gt.f32.partialorder %v4396, 0.0
        %vm4559 = vcmp.gt.f32.partialorder %v4485, 0.0
        %vm4560 = vcmp.gt.f32.partialorder %v4398, 0.0
        %vm4561 = vcmp.gt.f32.partialorder %v4487, 0.0
        %vm4562 = vcmp.gt.f32.partialorder %v4401, 0.0
        %vm4563 = vcmp.gt.f32.partialorder %v4490, 0.0
        %vm4564 = vcmp.gt.f32.partialorder %v4403, 0.0
        %vm4565 = vcmp.gt.f32.partialorder %v4492, 0.0
        %vm4566 = vcmp.gt.f32.partialorder %v4406, 0.0
        %vm4567 = vcmp.gt.f32.partialorder %v4495, 0.0
        %vm4568 = vcmp.gt.f32.partialorder %v4408, 0.0
        %vm4569 = vcmp.gt.f32.partialorder %v4497, 0.0
        %vm4570 = vcmp.gt.f32.partialorder %v4411, 0.0
        %vm4571 = vcmp.gt.f32.partialorder %v4500, 0.0
        %vm4572 = vcmp.gt.f32.partialorder %v4413, 0.0
        %vm4573 = vcmp.gt.f32.partialorder %v4502, 0.0
        %vm4574 = vcmp.gt.f32.partialorder %v4416, 0.0
        %vm4575 = vcmp.gt.f32.partialorder %v4505, 0.0
        %vm4576 = vcmp.gt.f32.partialorder %v4418, 0.0
        %vm4577 = vcmp.gt.f32.partialorder %v4507, 0.0
        %vm4578 = vcmp.gt.f32.partialorder %v4421, 0.0
        %vm4579 = vcmp.gt.f32.partialorder %v4510, 0.0
        %vm4580 = vcmp.gt.f32.partialorder %v4423, 0.0
        %vm4581 = vcmp.gt.f32.partialorder %v4512, 0.0
        %vm4582 = vcmp.gt.f32.partialorder %v4426, 0.0
        %vm4583 = vcmp.gt.f32.partialorder %v4515, 0.0
        %vm4584 = vcmp.gt.f32.partialorder %v4428, 0.0
        %vm4585 = vcmp.gt.f32.partialorder %v4517, 0.0
        %vm4586 = vcmp.gt.f32.partialorder %v4431, 0.0
        %vm4587 = vcmp.gt.f32.partialorder %v4520, 0.0
        %vm4588 = vcmp.gt.f32.partialorder %v4433, 0.0
        %vm4589 = vcmp.gt.f32.partialorder %v4522, 0.0
        %vm4590 = vcmp.gt.f32.partialorder %v4436, 0.0
        %vm4591 = vcmp.gt.f32.partialorder %v4525, 0.0
        %vm4592 = vcmp.gt.f32.partialorder %v4438, 0.0
        %vm4593 = vcmp.gt.f32.partialorder %v4527, 0.0
        %vm4594 = vcmp.gt.f32.partialorder %v4441, 0.0
        %vm4595 = vcmp.gt.f32.partialorder %v4530, 0.0
        %vm4596 = vcmp.gt.f32.partialorder %v4443, 0.0
        %vm4597 = vcmp.gt.f32.partialorder %v4532, 0.0
        %v4598 = vmul.f32 %v4366, 0.2
        %v4599 = vmul.f32 %v4455, 0.2
        %v4600 = vmul.f32 %v4368, 0.2
        %v4601 = vmul.f32 %v4457, 0.2
        %v4602 = vmul.f32 %v4371, 0.2
        %v4603 = vmul.f32 %v4460, 0.2
        %v4604 = vmul.f32 %v4373, 0.2
        %v4605 = vmul.f32 %v4462, 0.2
        %v4606 = vmul.f32 %v4376, 0.2
        %v4607 = vmul.f32 %v4465, 0.2
        %v4608 = vmul.f32 %v4378, 0.2
        %v4609 = vmul.f32 %v4467, 0.2
        %v4610 = vmul.f32 %v4381, 0.2
        %v4611 = vmul.f32 %v4470, 0.2
        %v4612 = vmul.f32 %v4383, 0.2
        %v4613 = vmul.f32 %v4472, 0.2
        %v4614 = vmul.f32 %v4386, 0.2
        %v4615 = vmul.f32 %v4475, 0.2
        %v4616 = vmul.f32 %v4388, 0.2
        %v4617 = vmul.f32 %v4477, 0.2
        %v4618 = vmul.f32 %v4391, 0.2
        %v4619 = vmul.f32 %v4480, 0.2
        %v4620 = vmul.f32 %v4393, 0.2
        %v4621 = vmul.f32 %v4482, 0.2
        %v4622 = vmul.f32 %v4396, 0.2
        %v4623 = vmul.f32 %v4485, 0.2
        %v4624 = vmul.f32 %v4398, 0.2
        %v4625 = vmul.f32 %v4487, 0.2
        %v4626 = vmul.f32 %v4401, 0.2
        %v4627 = vmul.f32 %v4490, 0.2
        %v4628 = vmul.f32 %v4403, 0.2
        %v4629 = vmul.f32 %v4492, 0.2
        %v4630 = vmul.f32 %v4406, 0.2
        %v4631 = vmul.f32 %v4495, 0.2
        %v4632 = vmul.f32 %v4408, 0.2
        %v4633 = vmul.f32 %v4497, 0.2
        %v4634 = vmul.f32 %v4411, 0.2
        %v4635 = vmul.f32 %v4500, 0.2
        %v4636 = vmul.f32 %v4413, 0.2
        %v4637 = vmul.f32 %v4502, 0.2
        %v4638 = vmul.f32 %v4416, 0.2
        %v4639 = vmul.f32 %v4505, 0.2
        %v4640 = vmul.f32 %v4418, 0.2
        %v4641 = vmul.f32 %v4507, 0.2
        %v4642 = vmul.f32 %v4421, 0.2
        %v4643 = vmul.f32 %v4510, 0.2
        %v4644 = vmul.f32 %v4423, 0.2
        %v4645 = vmul.f32 %v4512, 0.2
        %v4646 = vmul.f32 %v4426, 0.2
        %v4647 = vmul.f32 %v4515, 0.2
        %v4648 = vmul.f32 %v4428, 0.2
        %v4649 = vmul.f32 %v4517, 0.2
        %v4650 = vmul.f32 %v4431, 0.2
        %v4651 = vmul.f32 %v4520, 0.2
        %v4652 = vmul.f32 %v4433, 0.2
        %v4653 = vmul.f32 %v4522, 0.2
        %v4654 = vmul.f32 %v4436, 0.2
        %v4655 = vmul.f32 %v4525, 0.2
        %v4656 = vmul.f32 %v4438, 0.2
        %v4657 = vmul.f32 %v4527, 0.2
        %v4658 = vmul.f32 %v4441, 0.2
        %v4659 = vmul.f32 %v4530, 0.2
        %v4660 = vmul.f32 %v4443, 0.2
        %v4661 = vmul.f32 %v4532, 0.2
        %v4662 = vsel %vm4534, %v4366, %v4598
        %v4663 = vsel %vm4535, %v4455, %v4599
        %v4664 = vsel %vm4536, %v4368, %v4600
        %v4665 = vsel %vm4537, %v4457, %v4601
        %v4666 = vsel %vm4538, %v4371, %v4602
        %v4667 = vsel %vm4539, %v4460, %v4603
        %v4668 = vsel %vm4540, %v4373, %v4604
        %v4669 = vsel %vm4541, %v4462, %v4605
        %v4670 = vsel %vm4542, %v4376, %v4606
        %v4671 = vsel %vm4543, %v4465, %v4607
        %v4672 = vsel %vm4544, %v4378, %v4608
        %v4673 = vsel %vm4545, %v4467, %v4609
        %v4674 = vsel %vm4546, %v4381, %v4610
        %v4675 = vsel %vm4547, %v4470, %v4611
        %v4676 = vsel %vm4548, %v4383, %v4612
        %v4677 = vsel %vm4549, %v4472, %v4613
        %v4678 = vsel %vm4550, %v4386, %v4614
        %v4679 = vsel %vm4551, %v4475, %v4615
        %v4680 = vsel %vm4552, %v4388, %v4616
        %v4681 = vsel %vm4553, %v4477, %v4617
        %v4682 = vsel %vm4554, %v4391, %v4618
        %v4683 = vsel %vm4555, %v4480, %v4619
        %v4684 = vsel %vm4556, %v4393, %v4620
        %v4685 = vsel %vm4557, %v4482, %v4621
        %v4686 = vsel %vm4558, %v4396, %v4622
        %v4687 = vsel %vm4559, %v4485, %v4623
        %v4688 = vsel %vm4560, %v4398, %v4624
        %v4689 = vsel %vm4561, %v4487, %v4625
        %v4690 = vsel %vm4562, %v4401, %v4626
        %v4691 = vsel %vm4563, %v4490, %v4627
        %v4692 = vsel %vm4564, %v4403, %v4628
        %v4693 = vsel %vm4565, %v4492, %v4629
        %v4694 = vsel %vm4566, %v4406, %v4630
        %v4695 = vsel %vm4567, %v4495, %v4631
        %v4696 = vsel %vm4568, %v4408, %v4632
        %v4697 = vsel %vm4569, %v4497, %v4633
        %v4698 = vsel %vm4570, %v4411, %v4634
        %v4699 = vsel %vm4571, %v4500, %v4635
        %v4700 = vsel %vm4572, %v4413, %v4636
        %v4701 = vsel %vm4573, %v4502, %v4637
        %v4702 = vsel %vm4574, %v4416, %v4638
        %v4703 = vsel %vm4575, %v4505, %v4639
        %v4704 = vsel %vm4576, %v4418, %v4640
        %v4705 = vsel %vm4577, %v4507, %v4641
        %v4706 = vsel %vm4578, %v4421, %v4642
        %v4707 = vsel %vm4579, %v4510, %v4643
        %v4708 = vsel %vm4580, %v4423, %v4644
        %v4709 = vsel %vm4581, %v4512, %v4645
        %v4710 = vsel %vm4582, %v4426, %v4646
        %v4711 = vsel %vm4583, %v4515, %v4647
        %v4712 = vsel %vm4584, %v4428, %v4648
        %v4713 = vsel %vm4585, %v4517, %v4649
        %v4714 = vsel %vm4586, %v4431, %v4650
        %v4715 = vsel %vm4587, %v4520, %v4651
        %v4716 = vsel %vm4588, %v4433, %v4652
        %v4717 = vsel %vm4589, %v4522, %v4653
        %v4718 = vsel %vm4590, %v4436, %v4654
        %v4719 = vsel %vm4591, %v4525, %v4655
        %v4720 = vsel %vm4592, %v4438, %v4656
        %v4721 = vsel %vm4593, %v4527, %v4657
        %v4722 = vsel %vm4594, %v4441, %v4658
        %v4723 = vsel %vm4595, %v4530, %v4659
        %v4724 = vsel %vm4596, %v4443, %v4660
        %v4725 = vsel %vm4597, %v4532, %v4661
        %v4726 = vpack.c.bf16 %v4664, %v4662
        %v4727 = vpack.c.bf16 %v4665, %v4663
        %v4728 = vpack.c.bf16 %v4668, %v4666
        %v4729 = vpack.c.bf16 %v4669, %v4667
        %v4730 = vpack.c.bf16 %v4672, %v4670
        %v4731 = vpack.c.bf16 %v4673, %v4671
        %v4732 = vpack.c.bf16 %v4676, %v4674
        %v4733 = vpack.c.bf16 %v4677, %v4675
        %v4734 = vpack.c.bf16 %v4680, %v4678
        %v4735 = vpack.c.bf16 %v4681, %v4679
        %v4736 = vpack.c.bf16 %v4684, %v4682
        %v4737 = vpack.c.bf16 %v4685, %v4683
        %v4738 = vpack.c.bf16 %v4688, %v4686
        %v4739 = vpack.c.bf16 %v4689, %v4687
        %v4740 = vpack.c.bf16 %v4692, %v4690
        %v4741 = vpack.c.bf16 %v4693, %v4691
        %v4742 = vpack.c.bf16 %v4696, %v4694
        %v4743 = vpack.c.bf16 %v4697, %v4695
        %v4744 = vpack.c.bf16 %v4700, %v4698
        %v4745 = vpack.c.bf16 %v4701, %v4699
        %v4746 = vpack.c.bf16 %v4704, %v4702
        %v4747 = vpack.c.bf16 %v4705, %v4703
        %v4748 = vpack.c.bf16 %v4708, %v4706
        %v4749 = vpack.c.bf16 %v4709, %v4707
        %v4750 = vpack.c.bf16 %v4712, %v4710
        %v4751 = vpack.c.bf16 %v4713, %v4711
        %v4752 = vpack.c.bf16 %v4716, %v4714
        %v4753 = vpack.c.bf16 %v4717, %v4715
        %v4754 = vpack.c.bf16 %v4720, %v4718
        %v4755 = vpack.c.bf16 %v4721, %v4719
        %v4756 = vpack.c.bf16 %v4724, %v4722
        %v4757 = vpack.c.bf16 %v4725, %v4723
        %v4758 = vld [vmem:[#allocation15] sm:$0xff]
        %v4759 = vld [vmem:[#allocation15 + $0x8] sm:$0xff]
        %v4760 = vld [vmem:[#allocation15 + $0x10] sm:$0xff]
        %v4761 = vld [vmem:[#allocation15 + $0x18] sm:$0xff]
        %v4762 = vld [vmem:[#allocation15 + $0x20] sm:$0xff]
        %v4763 = vld [vmem:[#allocation15 + $0x28] sm:$0xff]
        %v4764 = vld [vmem:[#allocation15 + $0x30] sm:$0xff]
        %v4765 = vld [vmem:[#allocation15 + $0x38] sm:$0xff]
        %v4766 = vld [vmem:[#allocation15 + $0x40] sm:$0xff]
        %v4767 = vld [vmem:[#allocation15 + $0x48] sm:$0xff]
        %v4768 = vld [vmem:[#allocation15 + $0x50] sm:$0xff]
        %v4769 = vld [vmem:[#allocation15 + $0x58] sm:$0xff]
        %v4770 = vld [vmem:[#allocation15 + $0x60] sm:$0xff]
        %v4771 = vld [vmem:[#allocation15 + $0x68] sm:$0xff]
        %v4772 = vld [vmem:[#allocation15 + $0x70] sm:$0xff]
        %v4773 = vld [vmem:[#allocation15 + $0x78] sm:$0xff]
        %v4774 = vld [vmem:[#allocation15 + $0x80] sm:$0xff]
        %v4775 = vld [vmem:[#allocation15 + $0x88] sm:$0xff]
        %v4776 = vld [vmem:[#allocation15 + $0x90] sm:$0xff]
        %v4777 = vld [vmem:[#allocation15 + $0x98] sm:$0xff]
        %v4778 = vld [vmem:[#allocation15 + $0xa0] sm:$0xff]
        %v4779 = vld [vmem:[#allocation15 + $0xa8] sm:$0xff]
        %v4780 = vld [vmem:[#allocation15 + $0xb0] sm:$0xff]
        %v4781 = vld [vmem:[#allocation15 + $0xb8] sm:$0xff]
        %v4782 = vld [vmem:[#allocation15 + $0xc0] sm:$0xff]
        %v4783 = vld [vmem:[#allocation15 + $0xc8] sm:$0xff]
        %v4784 = vld [vmem:[#allocation15 + $0xd0] sm:$0xff]
        %v4785 = vld [vmem:[#allocation15 + $0xd8] sm:$0xff]
        %v4786 = vld [vmem:[#allocation15 + $0xe0] sm:$0xff]
        %v4787 = vld [vmem:[#allocation15 + $0xe8] sm:$0xff]
        %v4788 = vld [vmem:[#allocation15 + $0xf0] sm:$0xff]
        %v4789 = vld [vmem:[#allocation15 + $0xf8] sm:$0xff]
        %v4790 = vld [vmem:[#allocation15 + $0x100] sm:$0xff]
        %v4791 = vld [vmem:[#allocation15 + $0x108] sm:$0xff]
        %v4792 = vld [vmem:[#allocation15 + $0x110] sm:$0xff]
        %v4793 = vld [vmem:[#allocation15 + $0x118] sm:$0xff]
        %v4794 = vld [vmem:[#allocation15 + $0x120] sm:$0xff]
        %v4795 = vld [vmem:[#allocation15 + $0x128] sm:$0xff]
        %v4796 = vld [vmem:[#allocation15 + $0x130] sm:$0xff]
        %v4797 = vld [vmem:[#allocation15 + $0x138] sm:$0xff]
        %v4798 = vld [vmem:[#allocation15 + $0x140] sm:$0xff]
        %v4799 = vld [vmem:[#allocation15 + $0x148] sm:$0xff]
        %v4800 = vld [vmem:[#allocation15 + $0x150] sm:$0xff]
        %v4801 = vld [vmem:[#allocation15 + $0x158] sm:$0xff]
        %v4802 = vld [vmem:[#allocation15 + $0x160] sm:$0xff]
        %v4803 = vld [vmem:[#allocation15 + $0x168] sm:$0xff]
        %v4804 = vld [vmem:[#allocation15 + $0x170] sm:$0xff]
        %v4805 = vld [vmem:[#allocation15 + $0x178] sm:$0xff]
        %v4806 = vld [vmem:[#allocation15 + $0x180] sm:$0xff]
        %v4807 = vld [vmem:[#allocation15 + $0x188] sm:$0xff]
        %v4808 = vld [vmem:[#allocation15 + $0x190] sm:$0xff]
        %v4809 = vld [vmem:[#allocation15 + $0x198] sm:$0xff]
        %v4810 = vld [vmem:[#allocation15 + $0x1a0] sm:$0xff]
        %v4811 = vld [vmem:[#allocation15 + $0x1a8] sm:$0xff]
        %v4812 = vld [vmem:[#allocation15 + $0x1b0] sm:$0xff]
        %v4813 = vld [vmem:[#allocation15 + $0x1b8] sm:$0xff]
        %v4814 = vld [vmem:[#allocation15 + $0x1c0] sm:$0xff]
        %v4815 = vld [vmem:[#allocation15 + $0x1c8] sm:$0xff]
        %v4816 = vld [vmem:[#allocation15 + $0x1d0] sm:$0xff]
        %v4817 = vld [vmem:[#allocation15 + $0x1d8] sm:$0xff]
        %v4818 = vld [vmem:[#allocation15 + $0x1e0] sm:$0xff]
        %v4819 = vld [vmem:[#allocation15 + $0x1e8] sm:$0xff]
        %v4820 = vld [vmem:[#allocation15 + $0x1f0] sm:$0xff]
        %v4821 = vld [vmem:[#allocation15 + $0x1f8] sm:$0xff]
        %v4822 = vld [vmem:[#allocation17] sm:$0xf]
        %v4824 = vperm.slane %v4822, 0
        %v4825 = vperm.slane %v4822, 1
        %v4826 = vperm.slane %v4822, 2
        %v4827 = vperm.slane %v4822, 3
        %v4896 = vunpack.c.l.b16 %v4758
        %v4897 = vunpack.c.h.b16 %v4758
        %v4898 = vunpack.c.l.b16 %v4759
        %v4899 = vunpack.c.h.b16 %v4759
        %v4900 = vunpack.c.l.b16 %v4760
        %v4901 = vunpack.c.h.b16 %v4760
        %v4902 = vunpack.c.l.b16 %v4761
        %v4903 = vunpack.c.h.b16 %v4761
        %v4904 = vunpack.c.l.b16 %v4762
        %v4905 = vunpack.c.h.b16 %v4762
        %v4906 = vunpack.c.l.b16 %v4763
        %v4907 = vunpack.c.h.b16 %v4763
        %v4908 = vunpack.c.l.b16 %v4764
        %v4909 = vunpack.c.h.b16 %v4764
        %v4910 = vunpack.c.l.b16 %v4765
        %v4911 = vunpack.c.h.b16 %v4765
        %v4912 = vunpack.c.l.b16 %v4766
        %v4913 = vunpack.c.h.b16 %v4766
        %v4914 = vunpack.c.l.b16 %v4767
        %v4915 = vunpack.c.h.b16 %v4767
        %v4916 = vunpack.c.l.b16 %v4768
        %v4917 = vunpack.c.h.b16 %v4768
        %v4918 = vunpack.c.l.b16 %v4769
        %v4919 = vunpack.c.h.b16 %v4769
        %v4920 = vunpack.c.l.b16 %v4770
        %v4921 = vunpack.c.h.b16 %v4770
        %v4922 = vunpack.c.l.b16 %v4771
        %v4923 = vunpack.c.h.b16 %v4771
        %v4924 = vunpack.c.l.b16 %v4772
        %v4925 = vunpack.c.h.b16 %v4772
        %v4926 = vunpack.c.l.b16 %v4773
        %v4927 = vunpack.c.h.b16 %v4773
        %v4928 = vunpack.c.l.b16 %v4774
        %v4929 = vunpack.c.h.b16 %v4774
        %v4930 = vunpack.c.l.b16 %v4775
        %v4931 = vunpack.c.h.b16 %v4775
        %v4932 = vunpack.c.l.b16 %v4776
        %v4933 = vunpack.c.h.b16 %v4776
        %v4934 = vunpack.c.l.b16 %v4777
        %v4935 = vunpack.c.h.b16 %v4777
        %v4936 = vunpack.c.l.b16 %v4778
        %v4937 = vunpack.c.h.b16 %v4778
        %v4938 = vunpack.c.l.b16 %v4779
        %v4939 = vunpack.c.h.b16 %v4779
        %v4940 = vunpack.c.l.b16 %v4780
        %v4941 = vunpack.c.h.b16 %v4780
        %v4942 = vunpack.c.l.b16 %v4781
        %v4943 = vunpack.c.h.b16 %v4781
        %v4944 = vunpack.c.l.b16 %v4782
        %v4945 = vunpack.c.h.b16 %v4782
        %v4946 = vunpack.c.l.b16 %v4783
        %v4947 = vunpack.c.h.b16 %v4783
        %v4948 = vunpack.c.l.b16 %v4784
        %v4949 = vunpack.c.h.b16 %v4784
        %v4950 = vunpack.c.l.b16 %v4785
        %v4951 = vunpack.c.h.b16 %v4785
        %v4952 = vunpack.c.l.b16 %v4786
        %v4953 = vunpack.c.h.b16 %v4786
        %v4954 = vunpack.c.l.b16 %v4787
        %v4955 = vunpack.c.h.b16 %v4787
        %v4956 = vunpack.c.l.b16 %v4788
        %v4957 = vunpack.c.h.b16 %v4788
        %v4958 = vunpack.c.l.b16 %v4789
        %v4959 = vunpack.c.h.b16 %v4789
        %v4960 = vunpack.c.l.b16 %v4790
        %v4961 = vunpack.c.h.b16 %v4790
        %v4962 = vunpack.c.l.b16 %v4791
        %v4963 = vunpack.c.h.b16 %v4791
        %v4964 = vunpack.c.l.b16 %v4792
        %v4965 = vunpack.c.h.b16 %v4792
        %v4966 = vunpack.c.l.b16 %v4793
        %v4967 = vunpack.c.h.b16 %v4793
        %v4968 = vunpack.c.l.b16 %v4794
        %v4969 = vunpack.c.h.b16 %v4794
        %v4970 = vunpack.c.l.b16 %v4795
        %v4971 = vunpack.c.h.b16 %v4795
        %v4972 = vunpack.c.l.b16 %v4796
        %v4973 = vunpack.c.h.b16 %v4796
        %v4974 = vunpack.c.l.b16 %v4797
        %v4975 = vunpack.c.h.b16 %v4797
        %v4976 = vunpack.c.l.b16 %v4798
        %v4977 = vunpack.c.h.b16 %v4798
        %v4978 = vunpack.c.l.b16 %v4799
        %v4979 = vunpack.c.h.b16 %v4799
        %v4980 = vunpack.c.l.b16 %v4800
        %v4981 = vunpack.c.h.b16 %v4800
        %v4982 = vunpack.c.l.b16 %v4801
        %v4983 = vunpack.c.h.b16 %v4801
        %v4984 = vunpack.c.l.b16 %v4802
        %v4985 = vunpack.c.h.b16 %v4802
        %v4986 = vunpack.c.l.b16 %v4803
        %v4987 = vunpack.c.h.b16 %v4803
        %v4988 = vunpack.c.l.b16 %v4804
        %v4989 = vunpack.c.h.b16 %v4804
        %v4990 = vunpack.c.l.b16 %v4805
        %v4991 = vunpack.c.h.b16 %v4805
        %v4992 = vunpack.c.l.b16 %v4806
        %v4993 = vunpack.c.h.b16 %v4806
        %v4994 = vunpack.c.l.b16 %v4807
        %v4995 = vunpack.c.h.b16 %v4807
        %v4996 = vunpack.c.l.b16 %v4808
        %v4997 = vunpack.c.h.b16 %v4808
        %v4998 = vunpack.c.l.b16 %v4809
        %v4999 = vunpack.c.h.b16 %v4809
        %v5000 = vunpack.c.l.b16 %v4810
        %v5001 = vunpack.c.h.b16 %v4810
        %v5002 = vunpack.c.l.b16 %v4811
        %v5003 = vunpack.c.h.b16 %v4811
        %v5004 = vunpack.c.l.b16 %v4812
        %v5005 = vunpack.c.h.b16 %v4812
        %v5006 = vunpack.c.l.b16 %v4813
        %v5007 = vunpack.c.h.b16 %v4813
        %v5008 = vunpack.c.l.b16 %v4814
        %v5009 = vunpack.c.h.b16 %v4814
        %v5010 = vunpack.c.l.b16 %v4815
        %v5011 = vunpack.c.h.b16 %v4815
        %v5012 = vunpack.c.l.b16 %v4816
        %v5013 = vunpack.c.h.b16 %v4816
        %v5014 = vunpack.c.l.b16 %v4817
        %v5015 = vunpack.c.h.b16 %v4817
        %v5016 = vunpack.c.l.b16 %v4818
        %v5017 = vunpack.c.h.b16 %v4818
        %v5018 = vunpack.c.l.b16 %v4819
        %v5019 = vunpack.c.h.b16 %v4819
        %v5020 = vunpack.c.l.b16 %v4820
        %v5021 = vunpack.c.h.b16 %v4820
        %v5022 = vunpack.c.l.b16 %v4821
        %v5023 = vunpack.c.h.b16 %v4821
        %v5024 = vpack.c.b16 %v4900, %v4896
        %v5025 = vpack.c.b16 %v4901, %v4897
        %v5026 = vpack.c.b16 %v4902, %v4898
        %v5027 = vpack.c.b16 %v4903, %v4899
        %v5028 = vpack.c.b16 %v4908, %v4904
        %v5029 = vpack.c.b16 %v4909, %v4905
        %v5030 = vpack.c.b16 %v4910, %v4906
        %v5031 = vpack.c.b16 %v4911, %v4907
        %v5032 = vpack.c.b16 %v4916, %v4912
        %v5033 = vpack.c.b16 %v4917, %v4913
        %v5034 = vpack.c.b16 %v4918, %v4914
        %v5035 = vpack.c.b16 %v4919, %v4915
        %v5036 = vpack.c.b16 %v4924, %v4920
        %v5037 = vpack.c.b16 %v4925, %v4921
        %v5038 = vpack.c.b16 %v4926, %v4922
        %v5039 = vpack.c.b16 %v4927, %v4923
        %v5040 = vpack.c.b16 %v4932, %v4928
        %v5041 = vpack.c.b16 %v4933, %v4929
        %v5042 = vpack.c.b16 %v4934, %v4930
        %v5043 = vpack.c.b16 %v4935, %v4931
        %v5044 = vpack.c.b16 %v4940, %v4936
        %v5045 = vpack.c.b16 %v4941, %v4937
        %v5046 = vpack.c.b16 %v4942, %v4938
        %v5047 = vpack.c.b16 %v4943, %v4939
        %v5048 = vpack.c.b16 %v4948, %v4944
        %v5049 = vpack.c.b16 %v4949, %v4945
        %v5050 = vpack.c.b16 %v4950, %v4946
        %v5051 = vpack.c.b16 %v4951, %v4947
        %v5052 = vpack.c.b16 %v4956, %v4952
        %v5053 = vpack.c.b16 %v4957, %v4953
        %v5054 = vpack.c.b16 %v4958, %v4954
        %v5055 = vpack.c.b16 %v4959, %v4955
        %v5056 = vpack.c.b16 %v4964, %v4960
        %v5057 = vpack.c.b16 %v4965, %v4961
        %v5058 = vpack.c.b16 %v4966, %v4962
        %v5059 = vpack.c.b16 %v4967, %v4963
        %v5060 = vpack.c.b16 %v4972, %v4968
        %v5061 = vpack.c.b16 %v4973, %v4969
        %v5062 = vpack.c.b16 %v4974, %v4970
        %v5063 = vpack.c.b16 %v4975, %v4971
        %v5064 = vpack.c.b16 %v4980, %v4976
        %v5065 = vpack.c.b16 %v4981, %v4977
        %v5066 = vpack.c.b16 %v4982, %v4978
        %v5067 = vpack.c.b16 %v4983, %v4979
        %v5068 = vpack.c.b16 %v4988, %v4984
        %v5069 = vpack.c.b16 %v4989, %v4985
        %v5070 = vpack.c.b16 %v4990, %v4986
        %v5071 = vpack.c.b16 %v4991, %v4987
        %v5072 = vpack.c.b16 %v4996, %v4992
        %v5073 = vpack.c.b16 %v4997, %v4993
        %v5074 = vpack.c.b16 %v4998, %v4994
        %v5075 = vpack.c.b16 %v4999, %v4995
        %v5076 = vpack.c.b16 %v5004, %v5000
        %v5077 = vpack.c.b16 %v5005, %v5001
        %v5078 = vpack.c.b16 %v5006, %v5002
        %v5079 = vpack.c.b16 %v5007, %v5003
        %v5080 = vpack.c.b16 %v5012, %v5008
        %v5081 = vpack.c.b16 %v5013, %v5009
        %v5082 = vpack.c.b16 %v5014, %v5010
        %v5083 = vpack.c.b16 %v5015, %v5011
        %v5084 = vpack.c.b16 %v5020, %v5016
        %v5085 = vpack.c.b16 %v5021, %v5017
        %v5086 = vpack.c.b16 %v5022, %v5018
        %v5087 = vpack.c.b16 %v5023, %v5019
        %5152 = vmatpush.bf16.msra.mxu0 %v5052
        %5153 = vmatpush.bf16.msra.mxu0 %v5048
        %5154 = vmatpush.bf16.msra.mxu0 %v5044
        %5155 = vmatpush.bf16.msra.mxu0 %v5040
        %5156 = vmatpush.bf16.msra.mxu0 %v5036
        %5157 = vmatpush.bf16.msra.mxu0 %v5032
        %5158 = vmatpush.bf16.msra.mxu0 %v5028
        %5159 = vmatpush.bf16.msra.mxu0 %v5024
        %5160 = vmatmul.bf16.gmra.mxu0 %v4726
        %v5161 = vpop.f32.mrf.mxu0
        %v5162 = vadd.f32 %v4824, %v5161
        %v5163 = vpop.f32.mrf.mxu0
        %v5164 = vadd.f32 %v4824, %v5163
        %5165 = vmatmul.bf16.gmra.mxu0 %v4728
        %v5166 = vpop.f32.mrf.mxu0
        %v5167 = vadd.f32 %v4824, %v5166
        %v5168 = vpop.f32.mrf.mxu0
        %v5169 = vadd.f32 %v4824, %v5168
        %5170 = vmatmul.bf16.gmra.mxu0 %v4730
        %v5171 = vpop.f32.mrf.mxu0
        %v5172 = vadd.f32 %v4824, %v5171
        %v5173 = vpop.f32.mrf.mxu0
        %v5174 = vadd.f32 %v4824, %v5173
        %5175 = vmatmul.bf16.gmra.mxu0 %v4732
        %v5176 = vpop.f32.mrf.mxu0
        %v5177 = vadd.f32 %v4824, %v5176
        %v5178 = vpop.f32.mrf.mxu0
        %v5179 = vadd.f32 %v4824, %v5178
        %5180 = vmatmul.bf16.gmra.mxu0 %v4734
        %v5181 = vpop.f32.mrf.mxu0
        %v5182 = vadd.f32 %v4824, %v5181
        %v5183 = vpop.f32.mrf.mxu0
        %v5184 = vadd.f32 %v4824, %v5183
        %5185 = vmatmul.bf16.gmra.mxu0 %v4736
        %v5186 = vpop.f32.mrf.mxu0
        %v5187 = vadd.f32 %v4824, %v5186
        %v5188 = vpop.f32.mrf.mxu0
        %v5189 = vadd.f32 %v4824, %v5188
        %5190 = vmatmul.bf16.gmra.mxu0 %v4738
        %v5191 = vpop.f32.mrf.mxu0
        %v5192 = vadd.f32 %v4824, %v5191
        %v5193 = vpop.f32.mrf.mxu0
        %v5194 = vadd.f32 %v4824, %v5193
        %5195 = vmatmul.bf16.gmra.mxu0 %v4740
        %v5196 = vpop.f32.mrf.mxu0
        %v5197 = vadd.f32 %v4824, %v5196
        %v5198 = vpop.f32.mrf.mxu0
        %v5199 = vadd.f32 %v4824, %v5198
        %5200 = vmatmul.bf16.gmra.mxu0 %v4742
        %v5201 = vpop.f32.mrf.mxu0
        %v5202 = vadd.f32 %v4824, %v5201
        %v5203 = vpop.f32.mrf.mxu0
        %v5204 = vadd.f32 %v4824, %v5203
        %5205 = vmatmul.bf16.gmra.mxu0 %v4744
        %v5206 = vpop.f32.mrf.mxu0
        %v5207 = vadd.f32 %v4824, %v5206
        %v5208 = vpop.f32.mrf.mxu0
        %v5209 = vadd.f32 %v4824, %v5208
        %5210 = vmatmul.bf16.gmra.mxu0 %v4746
        %v5211 = vpop.f32.mrf.mxu0
        %v5212 = vadd.f32 %v4824, %v5211
        %v5213 = vpop.f32.mrf.mxu0
        %v5214 = vadd.f32 %v4824, %v5213
        %5215 = vmatmul.bf16.gmra.mxu0 %v4748
        %v5216 = vpop.f32.mrf.mxu0
        %v5217 = vadd.f32 %v4824, %v5216
        %v5218 = vpop.f32.mrf.mxu0
        %v5219 = vadd.f32 %v4824, %v5218
        %5220 = vmatmul.bf16.gmra.mxu0 %v4750
        %v5221 = vpop.f32.mrf.mxu0
        %v5222 = vadd.f32 %v4824, %v5221
        %v5223 = vpop.f32.mrf.mxu0
        %v5224 = vadd.f32 %v4824, %v5223
        %5225 = vmatmul.bf16.gmra.mxu0 %v4752
        %v5226 = vpop.f32.mrf.mxu0
        %v5227 = vadd.f32 %v4824, %v5226
        %v5228 = vpop.f32.mrf.mxu0
        %v5229 = vadd.f32 %v4824, %v5228
        %5230 = vmatmul.bf16.gmra.mxu0 %v4754
        %v5231 = vpop.f32.mrf.mxu0
        %v5232 = vadd.f32 %v4824, %v5231
        %v5233 = vpop.f32.mrf.mxu0
        %v5234 = vadd.f32 %v4824, %v5233
        %5235 = vmatmul.bf16.gmra.mxu0 %v4756
        %v5236 = vpop.f32.mrf.mxu0
        %v5237 = vadd.f32 %v4824, %v5236
        %v5238 = vpop.f32.mrf.mxu0
        %v5239 = vadd.f32 %v4824, %v5238
        %5240 = vdwg.mxu0
        %5241 = vmatpush.bf16.msra.mxu0 %v5084
        %5242 = vmatpush.bf16.msra.mxu0 %v5080
        %5243 = vmatpush.bf16.msra.mxu0 %v5076
        %5244 = vmatpush.bf16.msra.mxu0 %v5072
        %5245 = vmatpush.bf16.msra.mxu0 %v5068
        %5246 = vmatpush.bf16.msra.mxu0 %v5064
        %5247 = vmatpush.bf16.msra.mxu0 %v5060
        %5248 = vmatpush.bf16.msra.mxu0 %v5056
        %5249 = vmatmul.bf16.gmra.mxu0 %v4727
        %v5250 = vpop.f32.mrf.mxu0
        %v5251 = vadd.f32 %v5162, %v5250
        %v5252 = vpop.f32.mrf.mxu0
        %v5253 = vadd.f32 %v5164, %v5252
        %5254 = vmatmul.bf16.gmra.mxu0 %v4729
        %v5255 = vpop.f32.mrf.mxu0
        %v5256 = vadd.f32 %v5167, %v5255
        %v5257 = vpop.f32.mrf.mxu0
        %v5258 = vadd.f32 %v5169, %v5257
        %5259 = vmatmul.bf16.gmra.mxu0 %v4731
        %v5260 = vpop.f32.mrf.mxu0
        %v5261 = vadd.f32 %v5172, %v5260
        %v5262 = vpop.f32.mrf.mxu0
        %v5263 = vadd.f32 %v5174, %v5262
        %5264 = vmatmul.bf16.gmra.mxu0 %v4733
        %v5265 = vpop.f32.mrf.mxu0
        %v5266 = vadd.f32 %v5177, %v5265
        %v5267 = vpop.f32.mrf.mxu0
        %v5268 = vadd.f32 %v5179, %v5267
        %5269 = vmatmul.bf16.gmra.mxu0 %v4735
        %v5270 = vpop.f32.mrf.mxu0
        %v5271 = vadd.f32 %v5182, %v5270
        %v5272 = vpop.f32.mrf.mxu0
        %v5273 = vadd.f32 %v5184, %v5272
        %5274 = vmatmul.bf16.gmra.mxu0 %v4737
        %v5275 = vpop.f32.mrf.mxu0
        %v5276 = vadd.f32 %v5187, %v5275
        %v5277 = vpop.f32.mrf.mxu0
        %v5278 = vadd.f32 %v5189, %v5277
        %5279 = vmatmul.bf16.gmra.mxu0 %v4739
        %v5280 = vpop.f32.mrf.mxu0
        %v5281 = vadd.f32 %v5192, %v5280
        %v5282 = vpop.f32.mrf.mxu0
        %v5283 = vadd.f32 %v5194, %v5282
        %5284 = vmatmul.bf16.gmra.mxu0 %v4741
        %v5285 = vpop.f32.mrf.mxu0
        %v5286 = vadd.f32 %v5197, %v5285
        %v5287 = vpop.f32.mrf.mxu0
        %v5288 = vadd.f32 %v5199, %v5287
        %5289 = vmatmul.bf16.gmra.mxu0 %v4743
        %v5290 = vpop.f32.mrf.mxu0
        %v5291 = vadd.f32 %v5202, %v5290
        %v5292 = vpop.f32.mrf.mxu0
        %v5293 = vadd.f32 %v5204, %v5292
        %5294 = vmatmul.bf16.gmra.mxu0 %v4745
        %v5295 = vpop.f32.mrf.mxu0
        %v5296 = vadd.f32 %v5207, %v5295
        %v5297 = vpop.f32.mrf.mxu0
        %v5298 = vadd.f32 %v5209, %v5297
        %5299 = vmatmul.bf16.gmra.mxu0 %v4747
        %v5300 = vpop.f32.mrf.mxu0
        %v5301 = vadd.f32 %v5212, %v5300
        %v5302 = vpop.f32.mrf.mxu0
        %v5303 = vadd.f32 %v5214, %v5302
        %5304 = vmatmul.bf16.gmra.mxu0 %v4749
        %v5305 = vpop.f32.mrf.mxu0
        %v5306 = vadd.f32 %v5217, %v5305
        %v5307 = vpop.f32.mrf.mxu0
        %v5308 = vadd.f32 %v5219, %v5307
        %5309 = vmatmul.bf16.gmra.mxu0 %v4751
        %v5310 = vpop.f32.mrf.mxu0
        %v5311 = vadd.f32 %v5222, %v5310
        %v5312 = vpop.f32.mrf.mxu0
        %v5313 = vadd.f32 %v5224, %v5312
        %5314 = vmatmul.bf16.gmra.mxu0 %v4753
        %v5315 = vpop.f32.mrf.mxu0
        %v5316 = vadd.f32 %v5227, %v5315
        %v5317 = vpop.f32.mrf.mxu0
        %v5318 = vadd.f32 %v5229, %v5317
        %5319 = vmatmul.bf16.gmra.mxu0 %v4755
        %v5320 = vpop.f32.mrf.mxu0
        %v5321 = vadd.f32 %v5232, %v5320
        %v5322 = vpop.f32.mrf.mxu0
        %v5323 = vadd.f32 %v5234, %v5322
        %5324 = vmatmul.bf16.gmra.mxu0 %v4757
        %v5325 = vpop.f32.mrf.mxu0
        %v5326 = vadd.f32 %v5237, %v5325
        %v5327 = vpop.f32.mrf.mxu0
        %v5328 = vadd.f32 %v5239, %v5327
        %5329 = vdwg.mxu0
        %5330 = vmatpush.bf16.msra.mxu0 %v5053
        %5331 = vmatpush.bf16.msra.mxu0 %v5049
        %5332 = vmatpush.bf16.msra.mxu0 %v5045
        %5333 = vmatpush.bf16.msra.mxu0 %v5041
        %5334 = vmatpush.bf16.msra.mxu0 %v5037
        %5335 = vmatpush.bf16.msra.mxu0 %v5033
        %5336 = vmatpush.bf16.msra.mxu0 %v5029
        %5337 = vmatpush.bf16.msra.mxu0 %v5025
        %5338 = vmatmul.bf16.gmra.mxu0 %v4726
        %v5339 = vpop.f32.mrf.mxu0
        %v5340 = vadd.f32 %v4825, %v5339
        %v5341 = vpop.f32.mrf.mxu0
        %v5342 = vadd.f32 %v4825, %v5341
        %5343 = vmatmul.bf16.gmra.mxu0 %v4728
        %v5344 = vpop.f32.mrf.mxu0
        %v5345 = vadd.f32 %v4825, %v5344
        %v5346 = vpop.f32.mrf.mxu0
        %v5347 = vadd.f32 %v4825, %v5346
        %5348 = vmatmul.bf16.gmra.mxu0 %v4730
        %v5349 = vpop.f32.mrf.mxu0
        %v5350 = vadd.f32 %v4825, %v5349
        %v5351 = vpop.f32.mrf.mxu0
        %v5352 = vadd.f32 %v4825, %v5351
        %5353 = vmatmul.bf16.gmra.mxu0 %v4732
        %v5354 = vpop.f32.mrf.mxu0
        %v5355 = vadd.f32 %v4825, %v5354
        %v5356 = vpop.f32.mrf.mxu0
        %v5357 = vadd.f32 %v4825, %v5356
        %5358 = vmatmul.bf16.gmra.mxu0 %v4734
        %v5359 = vpop.f32.mrf.mxu0
        %v5360 = vadd.f32 %v4825, %v5359
        %v5361 = vpop.f32.mrf.mxu0
        %v5362 = vadd.f32 %v4825, %v5361
        %5363 = vmatmul.bf16.gmra.mxu0 %v4736
        %v5364 = vpop.f32.mrf.mxu0
        %v5365 = vadd.f32 %v4825, %v5364
        %v5366 = vpop.f32.mrf.mxu0
        %v5367 = vadd.f32 %v4825, %v5366
        %5368 = vmatmul.bf16.gmra.mxu0 %v4738
        %v5369 = vpop.f32.mrf.mxu0
        %v5370 = vadd.f32 %v4825, %v5369
        %v5371 = vpop.f32.mrf.mxu0
        %v5372 = vadd.f32 %v4825, %v5371
        %5373 = vmatmul.bf16.gmra.mxu0 %v4740
        %v5374 = vpop.f32.mrf.mxu0
        %v5375 = vadd.f32 %v4825, %v5374
        %v5376 = vpop.f32.mrf.mxu0
        %v5377 = vadd.f32 %v4825, %v5376
        %5378 = vmatmul.bf16.gmra.mxu0 %v4742
        %v5379 = vpop.f32.mrf.mxu0
        %v5380 = vadd.f32 %v4825, %v5379
        %v5381 = vpop.f32.mrf.mxu0
        %v5382 = vadd.f32 %v4825, %v5381
        %5383 = vmatmul.bf16.gmra.mxu0 %v4744
        %v5384 = vpop.f32.mrf.mxu0
        %v5385 = vadd.f32 %v4825, %v5384
        %v5386 = vpop.f32.mrf.mxu0
        %v5387 = vadd.f32 %v4825, %v5386
        %5388 = vmatmul.bf16.gmra.mxu0 %v4746
        %v5389 = vpop.f32.mrf.mxu0
        %v5390 = vadd.f32 %v4825, %v5389
        %v5391 = vpop.f32.mrf.mxu0
        %v5392 = vadd.f32 %v4825, %v5391
        %5393 = vmatmul.bf16.gmra.mxu0 %v4748
        %v5394 = vpop.f32.mrf.mxu0
        %v5395 = vadd.f32 %v4825, %v5394
        %v5396 = vpop.f32.mrf.mxu0
        %v5397 = vadd.f32 %v4825, %v5396
        %5398 = vmatmul.bf16.gmra.mxu0 %v4750
        %v5399 = vpop.f32.mrf.mxu0
        %v5400 = vadd.f32 %v4825, %v5399
        %v5401 = vpop.f32.mrf.mxu0
        %v5402 = vadd.f32 %v4825, %v5401
        %5403 = vmatmul.bf16.gmra.mxu0 %v4752
        %v5404 = vpop.f32.mrf.mxu0
        %v5405 = vadd.f32 %v4825, %v5404
        %v5406 = vpop.f32.mrf.mxu0
        %v5407 = vadd.f32 %v4825, %v5406
        %5408 = vmatmul.bf16.gmra.mxu0 %v4754
        %v5409 = vpop.f32.mrf.mxu0
        %v5410 = vadd.f32 %v4825, %v5409
        %v5411 = vpop.f32.mrf.mxu0
        %v5412 = vadd.f32 %v4825, %v5411
        %5413 = vmatmul.bf16.gmra.mxu0 %v4756
        %v5414 = vpop.f32.mrf.mxu0
        %v5415 = vadd.f32 %v4825, %v5414
        %v5416 = vpop.f32.mrf.mxu0
        %v5417 = vadd.f32 %v4825, %v5416
        %5418 = vdwg.mxu0
        %5419 = vmatpush.bf16.msra.mxu0 %v5085
        %5420 = vmatpush.bf16.msra.mxu0 %v5081
        %5421 = vmatpush.bf16.msra.mxu0 %v5077
        %5422 = vmatpush.bf16.msra.mxu0 %v5073
        %5423 = vmatpush.bf16.msra.mxu0 %v5069
        %5424 = vmatpush.bf16.msra.mxu0 %v5065
        %5425 = vmatpush.bf16.msra.mxu0 %v5061
        %5426 = vmatpush.bf16.msra.mxu0 %v5057
        %5427 = vmatmul.bf16.gmra.mxu0 %v4727
        %v5428 = vpop.f32.mrf.mxu0
        %v5429 = vadd.f32 %v5340, %v5428
        %v5430 = vpop.f32.mrf.mxu0
        %v5431 = vadd.f32 %v5342, %v5430
        %5432 = vmatmul.bf16.gmra.mxu0 %v4729
        %v5433 = vpop.f32.mrf.mxu0
        %v5434 = vadd.f32 %v5345, %v5433
        %v5435 = vpop.f32.mrf.mxu0
        %v5436 = vadd.f32 %v5347, %v5435
        %5437 = vmatmul.bf16.gmra.mxu0 %v4731
        %v5438 = vpop.f32.mrf.mxu0
        %v5439 = vadd.f32 %v5350, %v5438
        %v5440 = vpop.f32.mrf.mxu0
        %v5441 = vadd.f32 %v5352, %v5440
        %5442 = vmatmul.bf16.gmra.mxu0 %v4733
        %v5443 = vpop.f32.mrf.mxu0
        %v5444 = vadd.f32 %v5355, %v5443
        %v5445 = vpop.f32.mrf.mxu0
        %v5446 = vadd.f32 %v5357, %v5445
        %5447 = vmatmul.bf16.gmra.mxu0 %v4735
        %v5448 = vpop.f32.mrf.mxu0
        %v5449 = vadd.f32 %v5360, %v5448
        %v5450 = vpop.f32.mrf.mxu0
        %v5451 = vadd.f32 %v5362, %v5450
        %5452 = vmatmul.bf16.gmra.mxu0 %v4737
        %v5453 = vpop.f32.mrf.mxu0
        %v5454 = vadd.f32 %v5365, %v5453
        %v5455 = vpop.f32.mrf.mxu0
        %v5456 = vadd.f32 %v5367, %v5455
        %5457 = vmatmul.bf16.gmra.mxu0 %v4739
        %v5458 = vpop.f32.mrf.mxu0
        %v5459 = vadd.f32 %v5370, %v5458
        %v5460 = vpop.f32.mrf.mxu0
        %v5461 = vadd.f32 %v5372, %v5460
        %5462 = vmatmul.bf16.gmra.mxu0 %v4741
        %v5463 = vpop.f32.mrf.mxu0
        %v5464 = vadd.f32 %v5375, %v5463
        %v5465 = vpop.f32.mrf.mxu0
        %v5466 = vadd.f32 %v5377, %v5465
        %5467 = vmatmul.bf16.gmra.mxu0 %v4743
        %v5468 = vpop.f32.mrf.mxu0
        %v5469 = vadd.f32 %v5380, %v5468
        %v5470 = vpop.f32.mrf.mxu0
        %v5471 = vadd.f32 %v5382, %v5470
        %5472 = vmatmul.bf16.gmra.mxu0 %v4745
        %v5473 = vpop.f32.mrf.mxu0
        %v5474 = vadd.f32 %v5385, %v5473
        %v5475 = vpop.f32.mrf.mxu0
        %v5476 = vadd.f32 %v5387, %v5475
        %5477 = vmatmul.bf16.gmra.mxu0 %v4747
        %v5478 = vpop.f32.mrf.mxu0
        %v5479 = vadd.f32 %v5390, %v5478
        %v5480 = vpop.f32.mrf.mxu0
        %v5481 = vadd.f32 %v5392, %v5480
        %5482 = vmatmul.bf16.gmra.mxu0 %v4749
        %v5483 = vpop.f32.mrf.mxu0
        %v5484 = vadd.f32 %v5395, %v5483
        %v5485 = vpop.f32.mrf.mxu0
        %v5486 = vadd.f32 %v5397, %v5485
        %5487 = vmatmul.bf16.gmra.mxu0 %v4751
        %v5488 = vpop.f32.mrf.mxu0
        %v5489 = vadd.f32 %v5400, %v5488
        %v5490 = vpop.f32.mrf.mxu0
        %v5491 = vadd.f32 %v5402, %v5490
        %5492 = vmatmul.bf16.gmra.mxu0 %v4753
        %v5493 = vpop.f32.mrf.mxu0
        %v5494 = vadd.f32 %v5405, %v5493
        %v5495 = vpop.f32.mrf.mxu0
        %v5496 = vadd.f32 %v5407, %v5495
        %5497 = vmatmul.bf16.gmra.mxu0 %v4755
        %v5498 = vpop.f32.mrf.mxu0
        %v5499 = vadd.f32 %v5410, %v5498
        %v5500 = vpop.f32.mrf.mxu0
        %v5501 = vadd.f32 %v5412, %v5500
        %5502 = vmatmul.bf16.gmra.mxu0 %v4757
        %v5503 = vpop.f32.mrf.mxu0
        %v5504 = vadd.f32 %v5415, %v5503
        %v5505 = vpop.f32.mrf.mxu0
        %v5506 = vadd.f32 %v5417, %v5505
        %5507 = vdwg.mxu0
        %5508 = vmatpush.bf16.msra.mxu0 %v5054
        %5509 = vmatpush.bf16.msra.mxu0 %v5050
        %5510 = vmatpush.bf16.msra.mxu0 %v5046
        %5511 = vmatpush.bf16.msra.mxu0 %v5042
        %5512 = vmatpush.bf16.msra.mxu0 %v5038
        %5513 = vmatpush.bf16.msra.mxu0 %v5034
        %5514 = vmatpush.bf16.msra.mxu0 %v5030
        %5515 = vmatpush.bf16.msra.mxu0 %v5026
        %5516 = vmatmul.bf16.gmra.mxu0 %v4726
        %v5517 = vpop.f32.mrf.mxu0
        %v5518 = vadd.f32 %v4826, %v5517
        %v5519 = vpop.f32.mrf.mxu0
        %v5520 = vadd.f32 %v4826, %v5519
        %5521 = vmatmul.bf16.gmra.mxu0 %v4728
        %v5522 = vpop.f32.mrf.mxu0
        %v5523 = vadd.f32 %v4826, %v5522
        %v5524 = vpop.f32.mrf.mxu0
        %v5525 = vadd.f32 %v4826, %v5524
        %5526 = vmatmul.bf16.gmra.mxu0 %v4730
        %v5527 = vpop.f32.mrf.mxu0
        %v5528 = vadd.f32 %v4826, %v5527
        %v5529 = vpop.f32.mrf.mxu0
        %v5530 = vadd.f32 %v4826, %v5529
        %5531 = vmatmul.bf16.gmra.mxu0 %v4732
        %v5532 = vpop.f32.mrf.mxu0
        %v5533 = vadd.f32 %v4826, %v5532
        %v5534 = vpop.f32.mrf.mxu0
        %v5535 = vadd.f32 %v4826, %v5534
        %5536 = vmatmul.bf16.gmra.mxu0 %v4734
        %v5537 = vpop.f32.mrf.mxu0
        %v5538 = vadd.f32 %v4826, %v5537
        %v5539 = vpop.f32.mrf.mxu0
        %v5540 = vadd.f32 %v4826, %v5539
        %5541 = vmatmul.bf16.gmra.mxu0 %v4736
        %v5542 = vpop.f32.mrf.mxu0
        %v5543 = vadd.f32 %v4826, %v5542
        %v5544 = vpop.f32.mrf.mxu0
        %v5545 = vadd.f32 %v4826, %v5544
        %5546 = vmatmul.bf16.gmra.mxu0 %v4738
        %v5547 = vpop.f32.mrf.mxu0
        %v5548 = vadd.f32 %v4826, %v5547
        %v5549 = vpop.f32.mrf.mxu0
        %v5550 = vadd.f32 %v4826, %v5549
        %5551 = vmatmul.bf16.gmra.mxu0 %v4740
        %v5552 = vpop.f32.mrf.mxu0
        %v5553 = vadd.f32 %v4826, %v5552
        %v5554 = vpop.f32.mrf.mxu0
        %v5555 = vadd.f32 %v4826, %v5554
        %5556 = vmatmul.bf16.gmra.mxu0 %v4742
        %v5557 = vpop.f32.mrf.mxu0
        %v5558 = vadd.f32 %v4826, %v5557
        %v5559 = vpop.f32.mrf.mxu0
        %v5560 = vadd.f32 %v4826, %v5559
        %5561 = vmatmul.bf16.gmra.mxu0 %v4744
        %v5562 = vpop.f32.mrf.mxu0
        %v5563 = vadd.f32 %v4826, %v5562
        %v5564 = vpop.f32.mrf.mxu0
        %v5565 = vadd.f32 %v4826, %v5564
        %5566 = vmatmul.bf16.gmra.mxu0 %v4746
        %v5567 = vpop.f32.mrf.mxu0
        %v5568 = vadd.f32 %v4826, %v5567
        %v5569 = vpop.f32.mrf.mxu0
        %v5570 = vadd.f32 %v4826, %v5569
        %5571 = vmatmul.bf16.gmra.mxu0 %v4748
        %v5572 = vpop.f32.mrf.mxu0
        %v5573 = vadd.f32 %v4826, %v5572
        %v5574 = vpop.f32.mrf.mxu0
        %v5575 = vadd.f32 %v4826, %v5574
        %5576 = vmatmul.bf16.gmra.mxu0 %v4750
        %v5577 = vpop.f32.mrf.mxu0
        %v5578 = vadd.f32 %v4826, %v5577
        %v5579 = vpop.f32.mrf.mxu0
        %v5580 = vadd.f32 %v4826, %v5579
        %5581 = vmatmul.bf16.gmra.mxu0 %v4752
        %v5582 = vpop.f32.mrf.mxu0
        %v5583 = vadd.f32 %v4826, %v5582
        %v5584 = vpop.f32.mrf.mxu0
        %v5585 = vadd.f32 %v4826, %v5584
        %5586 = vmatmul.bf16.gmra.mxu0 %v4754
        %v5587 = vpop.f32.mrf.mxu0
        %v5588 = vadd.f32 %v4826, %v5587
        %v5589 = vpop.f32.mrf.mxu0
        %v5590 = vadd.f32 %v4826, %v5589
        %5591 = vmatmul.bf16.gmra.mxu0 %v4756
        %v5592 = vpop.f32.mrf.mxu0
        %v5593 = vadd.f32 %v4826, %v5592
        %v5594 = vpop.f32.mrf.mxu0
        %v5595 = vadd.f32 %v4826, %v5594
        %5596 = vdwg.mxu0
        %5597 = vmatpush.bf16.msra.mxu0 %v5086
        %5598 = vmatpush.bf16.msra.mxu0 %v5082
        %5599 = vmatpush.bf16.msra.mxu0 %v5078
        %5600 = vmatpush.bf16.msra.mxu0 %v5074
        %5601 = vmatpush.bf16.msra.mxu0 %v5070
        %5602 = vmatpush.bf16.msra.mxu0 %v5066
        %5603 = vmatpush.bf16.msra.mxu0 %v5062
        %5604 = vmatpush.bf16.msra.mxu0 %v5058
        %5605 = vmatmul.bf16.gmra.mxu0 %v4727
        %v5606 = vpop.f32.mrf.mxu0
        %v5607 = vadd.f32 %v5518, %v5606
        %v5608 = vpop.f32.mrf.mxu0
        %v5609 = vadd.f32 %v5520, %v5608
        %5610 = vmatmul.bf16.gmra.mxu0 %v4729
        %v5611 = vpop.f32.mrf.mxu0
        %v5612 = vadd.f32 %v5523, %v5611
        %v5613 = vpop.f32.mrf.mxu0
        %v5614 = vadd.f32 %v5525, %v5613
        %5615 = vmatmul.bf16.gmra.mxu0 %v4731
        %v5616 = vpop.f32.mrf.mxu0
        %v5617 = vadd.f32 %v5528, %v5616
        %v5618 = vpop.f32.mrf.mxu0
        %v5619 = vadd.f32 %v5530, %v5618
        %5620 = vmatmul.bf16.gmra.mxu0 %v4733
        %v5621 = vpop.f32.mrf.mxu0
        %v5622 = vadd.f32 %v5533, %v5621
        %v5623 = vpop.f32.mrf.mxu0
        %v5624 = vadd.f32 %v5535, %v5623
        %5625 = vmatmul.bf16.gmra.mxu0 %v4735
        %v5626 = vpop.f32.mrf.mxu0
        %v5627 = vadd.f32 %v5538, %v5626
        %v5628 = vpop.f32.mrf.mxu0
        %v5629 = vadd.f32 %v5540, %v5628
        %5630 = vmatmul.bf16.gmra.mxu0 %v4737
        %v5631 = vpop.f32.mrf.mxu0
        %v5632 = vadd.f32 %v5543, %v5631
        %v5633 = vpop.f32.mrf.mxu0
        %v5634 = vadd.f32 %v5545, %v5633
        %5635 = vmatmul.bf16.gmra.mxu0 %v4739
        %v5636 = vpop.f32.mrf.mxu0
        %v5637 = vadd.f32 %v5548, %v5636
        %v5638 = vpop.f32.mrf.mxu0
        %v5639 = vadd.f32 %v5550, %v5638
        %5640 = vmatmul.bf16.gmra.mxu0 %v4741
        %v5641 = vpop.f32.mrf.mxu0
        %v5642 = vadd.f32 %v5553, %v5641
        %v5643 = vpop.f32.mrf.mxu0
        %v5644 = vadd.f32 %v5555, %v5643
        %5645 = vmatmul.bf16.gmra.mxu0 %v4743
        %v5646 = vpop.f32.mrf.mxu0
        %v5647 = vadd.f32 %v5558, %v5646
        %v5648 = vpop.f32.mrf.mxu0
        %v5649 = vadd.f32 %v5560, %v5648
        %5650 = vmatmul.bf16.gmra.mxu0 %v4745
        %v5651 = vpop.f32.mrf.mxu0
        %v5652 = vadd.f32 %v5563, %v5651
        %v5653 = vpop.f32.mrf.mxu0
        %v5654 = vadd.f32 %v5565, %v5653
        %5655 = vmatmul.bf16.gmra.mxu0 %v4747
        %v5656 = vpop.f32.mrf.mxu0
        %v5657 = vadd.f32 %v5568, %v5656
        %v5658 = vpop.f32.mrf.mxu0
        %v5659 = vadd.f32 %v5570, %v5658
        %5660 = vmatmul.bf16.gmra.mxu0 %v4749
        %v5661 = vpop.f32.mrf.mxu0
        %v5662 = vadd.f32 %v5573, %v5661
        %v5663 = vpop.f32.mrf.mxu0
        %v5664 = vadd.f32 %v5575, %v5663
        %5665 = vmatmul.bf16.gmra.mxu0 %v4751
        %v5666 = vpop.f32.mrf.mxu0
        %v5667 = vadd.f32 %v5578, %v5666
        %v5668 = vpop.f32.mrf.mxu0
        %v5669 = vadd.f32 %v5580, %v5668
        %5670 = vmatmul.bf16.gmra.mxu0 %v4753
        %v5671 = vpop.f32.mrf.mxu0
        %v5672 = vadd.f32 %v5583, %v5671
        %v5673 = vpop.f32.mrf.mxu0
        %v5674 = vadd.f32 %v5585, %v5673
        %5675 = vmatmul.bf16.gmra.mxu0 %v4755
        %v5676 = vpop.f32.mrf.mxu0
        %v5677 = vadd.f32 %v5588, %v5676
        %v5678 = vpop.f32.mrf.mxu0
        %v5679 = vadd.f32 %v5590, %v5678
        %5680 = vmatmul.bf16.gmra.mxu0 %v4757
        %v5681 = vpop.f32.mrf.mxu0
        %v5682 = vadd.f32 %v5593, %v5681
        %v5683 = vpop.f32.mrf.mxu0
        %v5684 = vadd.f32 %v5595, %v5683
        %5685 = vdwg.mxu0
        %5686 = vmatpush.bf16.msra.mxu0 %v5055
        %5687 = vmatpush.bf16.msra.mxu0 %v5051
        %5688 = vmatpush.bf16.msra.mxu0 %v5047
        %5689 = vmatpush.bf16.msra.mxu0 %v5043
        %5690 = vmatpush.bf16.msra.mxu0 %v5039
        %5691 = vmatpush.bf16.msra.mxu0 %v5035
        %5692 = vmatpush.bf16.msra.mxu0 %v5031
        %5693 = vmatpush.bf16.msra.mxu0 %v5027
        %5694 = vmatmul.bf16.gmra.mxu0 %v4726
        %v5695 = vpop.f32.mrf.mxu0
        %v5696 = vadd.f32 %v4827, %v5695
        %v5697 = vpop.f32.mrf.mxu0
        %v5698 = vadd.f32 %v4827, %v5697
        %5699 = vmatmul.bf16.gmra.mxu0 %v4728
        %v5700 = vpop.f32.mrf.mxu0
        %v5701 = vadd.f32 %v4827, %v5700
        %v5702 = vpop.f32.mrf.mxu0
        %v5703 = vadd.f32 %v4827, %v5702
        %5704 = vmatmul.bf16.gmra.mxu0 %v4730
        %v5705 = vpop.f32.mrf.mxu0
        %v5706 = vadd.f32 %v4827, %v5705
        %v5707 = vpop.f32.mrf.mxu0
        %v5708 = vadd.f32 %v4827, %v5707
        %5709 = vmatmul.bf16.gmra.mxu0 %v4732
        %v5710 = vpop.f32.mrf.mxu0
        %v5711 = vadd.f32 %v4827, %v5710
        %v5712 = vpop.f32.mrf.mxu0
        %v5713 = vadd.f32 %v4827, %v5712
        %5714 = vmatmul.bf16.gmra.mxu0 %v4734
        %v5715 = vpop.f32.mrf.mxu0
        %v5716 = vadd.f32 %v4827, %v5715
        %v5717 = vpop.f32.mrf.mxu0
        %v5718 = vadd.f32 %v4827, %v5717
        %5719 = vmatmul.bf16.gmra.mxu0 %v4736
        %v5720 = vpop.f32.mrf.mxu0
        %v5721 = vadd.f32 %v4827, %v5720
        %v5722 = vpop.f32.mrf.mxu0
        %v5723 = vadd.f32 %v4827, %v5722
        %5724 = vmatmul.bf16.gmra.mxu0 %v4738
        %v5725 = vpop.f32.mrf.mxu0
        %v5726 = vadd.f32 %v4827, %v5725
        %v5727 = vpop.f32.mrf.mxu0
        %v5728 = vadd.f32 %v4827, %v5727
        %5729 = vmatmul.bf16.gmra.mxu0 %v4740
        %v5730 = vpop.f32.mrf.mxu0
        %v5731 = vadd.f32 %v4827, %v5730
        %v5732 = vpop.f32.mrf.mxu0
        %v5733 = vadd.f32 %v4827, %v5732
        %5734 = vmatmul.bf16.gmra.mxu0 %v4742
        %v5735 = vpop.f32.mrf.mxu0
        %v5736 = vadd.f32 %v4827, %v5735
        %v5737 = vpop.f32.mrf.mxu0
        %v5738 = vadd.f32 %v4827, %v5737
        %5739 = vmatmul.bf16.gmra.mxu0 %v4744
        %v5740 = vpop.f32.mrf.mxu0
        %v5741 = vadd.f32 %v4827, %v5740
        %v5742 = vpop.f32.mrf.mxu0
        %v5743 = vadd.f32 %v4827, %v5742
        %5744 = vmatmul.bf16.gmra.mxu0 %v4746
        %v5745 = vpop.f32.mrf.mxu0
        %v5746 = vadd.f32 %v4827, %v5745
        %v5747 = vpop.f32.mrf.mxu0
        %v5748 = vadd.f32 %v4827, %v5747
        %5749 = vmatmul.bf16.gmra.mxu0 %v4748
        %v5750 = vpop.f32.mrf.mxu0
        %v5751 = vadd.f32 %v4827, %v5750
        %v5752 = vpop.f32.mrf.mxu0
        %v5753 = vadd.f32 %v4827, %v5752
        %5754 = vmatmul.bf16.gmra.mxu0 %v4750
        %v5755 = vpop.f32.mrf.mxu0
        %v5756 = vadd.f32 %v4827, %v5755
        %v5757 = vpop.f32.mrf.mxu0
        %v5758 = vadd.f32 %v4827, %v5757
        %5759 = vmatmul.bf16.gmra.mxu0 %v4752
        %v5760 = vpop.f32.mrf.mxu0
        %v5761 = vadd.f32 %v4827, %v5760
        %v5762 = vpop.f32.mrf.mxu0
        %v5763 = vadd.f32 %v4827, %v5762
        %5764 = vmatmul.bf16.gmra.mxu0 %v4754
        %v5765 = vpop.f32.mrf.mxu0
        %v5766 = vadd.f32 %v4827, %v5765
        %v5767 = vpop.f32.mrf.mxu0
        %v5768 = vadd.f32 %v4827, %v5767
        %5769 = vmatmul.bf16.gmra.mxu0 %v4756
        %v5770 = vpop.f32.mrf.mxu0
        %v5771 = vadd.f32 %v4827, %v5770
        %v5772 = vpop.f32.mrf.mxu0
        %v5773 = vadd.f32 %v4827, %v5772
        %5774 = vdwg.mxu0
        %5775 = vmatpush.bf16.msra.mxu0 %v5087
        %5776 = vmatpush.bf16.msra.mxu0 %v5083
        %5777 = vmatpush.bf16.msra.mxu0 %v5079
        %5778 = vmatpush.bf16.msra.mxu0 %v5075
        %5779 = vmatpush.bf16.msra.mxu0 %v5071
        %5780 = vmatpush.bf16.msra.mxu0 %v5067
        %5781 = vmatpush.bf16.msra.mxu0 %v5063
        %5782 = vmatpush.bf16.msra.mxu0 %v5059
        %5783 = vmatmul.bf16.gmra.mxu0 %v4727
        %v5784 = vpop.f32.mrf.mxu0
        %v5785 = vadd.f32 %v5696, %v5784
        %v5786 = vpop.f32.mrf.mxu0
        %v5787 = vadd.f32 %v5698, %v5786
        %5788 = vmatmul.bf16.gmra.mxu0 %v4729
        %v5789 = vpop.f32.mrf.mxu0
        %v5790 = vadd.f32 %v5701, %v5789
        %v5791 = vpop.f32.mrf.mxu0
        %v5792 = vadd.f32 %v5703, %v5791
        %5793 = vmatmul.bf16.gmra.mxu0 %v4731
        %v5794 = vpop.f32.mrf.mxu0
        %v5795 = vadd.f32 %v5706, %v5794
        %v5796 = vpop.f32.mrf.mxu0
        %v5797 = vadd.f32 %v5708, %v5796
        %5798 = vmatmul.bf16.gmra.mxu0 %v4733
        %v5799 = vpop.f32.mrf.mxu0
        %v5800 = vadd.f32 %v5711, %v5799
        %v5801 = vpop.f32.mrf.mxu0
        %v5802 = vadd.f32 %v5713, %v5801
        %5803 = vmatmul.bf16.gmra.mxu0 %v4735
        %v5804 = vpop.f32.mrf.mxu0
        %v5805 = vadd.f32 %v5716, %v5804
        %v5806 = vpop.f32.mrf.mxu0
        %v5807 = vadd.f32 %v5718, %v5806
        %5808 = vmatmul.bf16.gmra.mxu0 %v4737
        %v5809 = vpop.f32.mrf.mxu0
        %v5810 = vadd.f32 %v5721, %v5809
        %v5811 = vpop.f32.mrf.mxu0
        %v5812 = vadd.f32 %v5723, %v5811
        %5813 = vmatmul.bf16.gmra.mxu0 %v4739
        %v5814 = vpop.f32.mrf.mxu0
        %v5815 = vadd.f32 %v5726, %v5814
        %v5816 = vpop.f32.mrf.mxu0
        %v5817 = vadd.f32 %v5728, %v5816
        %5818 = vmatmul.bf16.gmra.mxu0 %v4741
        %v5819 = vpop.f32.mrf.mxu0
        %v5820 = vadd.f32 %v5731, %v5819
        %v5821 = vpop.f32.mrf.mxu0
        %v5822 = vadd.f32 %v5733, %v5821
        %5823 = vmatmul.bf16.gmra.mxu0 %v4743
        %v5824 = vpop.f32.mrf.mxu0
        %v5825 = vadd.f32 %v5736, %v5824
        %v5826 = vpop.f32.mrf.mxu0
        %v5827 = vadd.f32 %v5738, %v5826
        %5828 = vmatmul.bf16.gmra.mxu0 %v4745
        %v5829 = vpop.f32.mrf.mxu0
        %v5830 = vadd.f32 %v5741, %v5829
        %v5831 = vpop.f32.mrf.mxu0
        %v5832 = vadd.f32 %v5743, %v5831
        %5833 = vmatmul.bf16.gmra.mxu0 %v4747
        %v5834 = vpop.f32.mrf.mxu0
        %v5835 = vadd.f32 %v5746, %v5834
        %v5836 = vpop.f32.mrf.mxu0
        %v5837 = vadd.f32 %v5748, %v5836
        %5838 = vmatmul.bf16.gmra.mxu0 %v4749
        %v5839 = vpop.f32.mrf.mxu0
        %v5840 = vadd.f32 %v5751, %v5839
        %v5841 = vpop.f32.mrf.mxu0
        %v5842 = vadd.f32 %v5753, %v5841
        %5843 = vmatmul.bf16.gmra.mxu0 %v4751
        %v5844 = vpop.f32.mrf.mxu0
        %v5845 = vadd.f32 %v5756, %v5844
        %v5846 = vpop.f32.mrf.mxu0
        %v5847 = vadd.f32 %v5758, %v5846
        %5848 = vmatmul.bf16.gmra.mxu0 %v4753
        %v5849 = vpop.f32.mrf.mxu0
        %v5850 = vadd.f32 %v5761, %v5849
        %v5851 = vpop.f32.mrf.mxu0
        %v5852 = vadd.f32 %v5763, %v5851
        %5853 = vmatmul.bf16.gmra.mxu0 %v4755
        %v5854 = vpop.f32.mrf.mxu0
        %v5855 = vadd.f32 %v5766, %v5854
        %v5856 = vpop.f32.mrf.mxu0
        %v5857 = vadd.f32 %v5768, %v5856
        %5858 = vmatmul.bf16.gmra.mxu0 %v4757
        %v5859 = vpop.f32.mrf.mxu0
        %v5860 = vadd.f32 %v5771, %v5859
        %v5861 = vpop.f32.mrf.mxu0
        %v5862 = vadd.f32 %v5773, %v5861
        %5863 = vdwg.mxu0
        %vm5864 = vcmp.gt.f32.partialorder %v5251, 0.0
        %vm5865 = vcmp.gt.f32.partialorder %v5429, 0.0
        %vm5866 = vcmp.gt.f32.partialorder %v5607, 0.0
        %vm5867 = vcmp.gt.f32.partialorder %v5785, 0.0
        %vm5868 = vcmp.gt.f32.partialorder %v5253, 0.0
        %vm5869 = vcmp.gt.f32.partialorder %v5431, 0.0
        %vm5870 = vcmp.gt.f32.partialorder %v5609, 0.0
        %vm5871 = vcmp.gt.f32.partialorder %v5787, 0.0
        %vm5872 = vcmp.gt.f32.partialorder %v5256, 0.0
        %vm5873 = vcmp.gt.f32.partialorder %v5434, 0.0
        %vm5874 = vcmp.gt.f32.partialorder %v5612, 0.0
        %vm5875 = vcmp.gt.f32.partialorder %v5790, 0.0
        %vm5876 = vcmp.gt.f32.partialorder %v5258, 0.0
        %vm5877 = vcmp.gt.f32.partialorder %v5436, 0.0
        %vm5878 = vcmp.gt.f32.partialorder %v5614, 0.0
        %vm5879 = vcmp.gt.f32.partialorder %v5792, 0.0
        %vm5880 = vcmp.gt.f32.partialorder %v5261, 0.0
        %vm5881 = vcmp.gt.f32.partialorder %v5439, 0.0
        %vm5882 = vcmp.gt.f32.partialorder %v5617, 0.0
        %vm5883 = vcmp.gt.f32.partialorder %v5795, 0.0
        %vm5884 = vcmp.gt.f32.partialorder %v5263, 0.0
        %vm5885 = vcmp.gt.f32.partialorder %v5441, 0.0
        %vm5886 = vcmp.gt.f32.partialorder %v5619, 0.0
        %vm5887 = vcmp.gt.f32.partialorder %v5797, 0.0
        %vm5888 = vcmp.gt.f32.partialorder %v5266, 0.0
        %vm5889 = vcmp.gt.f32.partialorder %v5444, 0.0
        %vm5890 = vcmp.gt.f32.partialorder %v5622, 0.0
        %vm5891 = vcmp.gt.f32.partialorder %v5800, 0.0
        %vm5892 = vcmp.gt.f32.partialorder %v5268, 0.0
        %vm5893 = vcmp.gt.f32.partialorder %v5446, 0.0
        %vm5894 = vcmp.gt.f32.partialorder %v5624, 0.0
        %vm5895 = vcmp.gt.f32.partialorder %v5802, 0.0
        %vm5896 = vcmp.gt.f32.partialorder %v5271, 0.0
        %vm5897 = vcmp.gt.f32.partialorder %v5449, 0.0
        %vm5898 = vcmp.gt.f32.partialorder %v5627, 0.0
        %vm5899 = vcmp.gt.f32.partialorder %v5805, 0.0
        %vm5900 = vcmp.gt.f32.partialorder %v5273, 0.0
        %vm5901 = vcmp.gt.f32.partialorder %v5451, 0.0
        %vm5902 = vcmp.gt.f32.partialorder %v5629, 0.0
        %vm5903 = vcmp.gt.f32.partialorder %v5807, 0.0
        %vm5904 = vcmp.gt.f32.partialorder %v5276, 0.0
        %vm5905 = vcmp.gt.f32.partialorder %v5454, 0.0
        %vm5906 = vcmp.gt.f32.partialorder %v5632, 0.0
        %vm5907 = vcmp.gt.f32.partialorder %v5810, 0.0
        %vm5908 = vcmp.gt.f32.partialorder %v5278, 0.0
        %vm5909 = vcmp.gt.f32.partialorder %v5456, 0.0
        %vm5910 = vcmp.gt.f32.partialorder %v5634, 0.0
        %vm5911 = vcmp.gt.f32.partialorder %v5812, 0.0
        %vm5912 = vcmp.gt.f32.partialorder %v5281, 0.0
        %vm5913 = vcmp.gt.f32.partialorder %v5459, 0.0
        %vm5914 = vcmp.gt.f32.partialorder %v5637, 0.0
        %vm5915 = vcmp.gt.f32.partialorder %v5815, 0.0
        %vm5916 = vcmp.gt.f32.partialorder %v5283, 0.0
        %vm5917 = vcmp.gt.f32.partialorder %v5461, 0.0
        %vm5918 = vcmp.gt.f32.partialorder %v5639, 0.0
        %vm5919 = vcmp.gt.f32.partialorder %v5817, 0.0
        %vm5920 = vcmp.gt.f32.partialorder %v5286, 0.0
        %vm5921 = vcmp.gt.f32.partialorder %v5464, 0.0
        %vm5922 = vcmp.gt.f32.partialorder %v5642, 0.0
        %vm5923 = vcmp.gt.f32.partialorder %v5820, 0.0
        %vm5924 = vcmp.gt.f32.partialorder %v5288, 0.0
        %vm5925 = vcmp.gt.f32.partialorder %v5466, 0.0
        %vm5926 = vcmp.gt.f32.partialorder %v5644, 0.0
        %vm5927 = vcmp.gt.f32.partialorder %v5822, 0.0
        %vm5928 = vcmp.gt.f32.partialorder %v5291, 0.0
        %vm5929 = vcmp.gt.f32.partialorder %v5469, 0.0
        %vm5930 = vcmp.gt.f32.partialorder %v5647, 0.0
        %vm5931 = vcmp.gt.f32.partialorder %v5825, 0.0
        %vm5932 = vcmp.gt.f32.partialorder %v5293, 0.0
        %vm5933 = vcmp.gt.f32.partialorder %v5471, 0.0
        %vm5934 = vcmp.gt.f32.partialorder %v5649, 0.0
        %vm5935 = vcmp.gt.f32.partialorder %v5827, 0.0
        %vm5936 = vcmp.gt.f32.partialorder %v5296, 0.0
        %vm5937 = vcmp.gt.f32.partialorder %v5474, 0.0
        %vm5938 = vcmp.gt.f32.partialorder %v5652, 0.0
        %vm5939 = vcmp.gt.f32.partialorder %v5830, 0.0
        %vm5940 = vcmp.gt.f32.partialorder %v5298, 0.0
        %vm5941 = vcmp.gt.f32.partialorder %v5476, 0.0
        %vm5942 = vcmp.gt.f32.partialorder %v5654, 0.0
        %vm5943 = vcmp.gt.f32.partialorder %v5832, 0.0
        %vm5944 = vcmp.gt.f32.partialorder %v5301, 0.0
        %vm5945 = vcmp.gt.f32.partialorder %v5479, 0.0
        %vm5946 = vcmp.gt.f32.partialorder %v5657, 0.0
        %vm5947 = vcmp.gt.f32.partialorder %v5835, 0.0
        %vm5948 = vcmp.gt.f32.partialorder %v5303, 0.0
        %vm5949 = vcmp.gt.f32.partialorder %v5481, 0.0
        %vm5950 = vcmp.gt.f32.partialorder %v5659, 0.0
        %vm5951 = vcmp.gt.f32.partialorder %v5837, 0.0
        %vm5952 = vcmp.gt.f32.partialorder %v5306, 0.0
        %vm5953 = vcmp.gt.f32.partialorder %v5484, 0.0
        %vm5954 = vcmp.gt.f32.partialorder %v5662, 0.0
        %vm5955 = vcmp.gt.f32.partialorder %v5840, 0.0
        %vm5956 = vcmp.gt.f32.partialorder %v5308, 0.0
        %vm5957 = vcmp.gt.f32.partialorder %v5486, 0.0
        %vm5958 = vcmp.gt.f32.partialorder %v5664, 0.0
        %vm5959 = vcmp.gt.f32.partialorder %v5842, 0.0
        %vm5960 = vcmp.gt.f32.partialorder %v5311, 0.0
        %vm5961 = vcmp.gt.f32.partialorder %v5489, 0.0
        %vm5962 = vcmp.gt.f32.partialorder %v5667, 0.0
        %vm5963 = vcmp.gt.f32.partialorder %v5845, 0.0
        %vm5964 = vcmp.gt.f32.partialorder %v5313, 0.0
        %vm5965 = vcmp.gt.f32.partialorder %v5491, 0.0
        %vm5966 = vcmp.gt.f32.partialorder %v5669, 0.0
        %vm5967 = vcmp.gt.f32.partialorder %v5847, 0.0
        %vm5968 = vcmp.gt.f32.partialorder %v5316, 0.0
        %vm5969 = vcmp.gt.f32.partialorder %v5494, 0.0
        %vm5970 = vcmp.gt.f32.partialorder %v5672, 0.0
        %vm5971 = vcmp.gt.f32.partialorder %v5850, 0.0
        %vm5972 = vcmp.gt.f32.partialorder %v5318, 0.0
        %vm5973 = vcmp.gt.f32.partialorder %v5496, 0.0
        %vm5974 = vcmp.gt.f32.partialorder %v5674, 0.0
        %vm5975 = vcmp.gt.f32.partialorder %v5852, 0.0
        %vm5976 = vcmp.gt.f32.partialorder %v5321, 0.0
        %vm5977 = vcmp.gt.f32.partialorder %v5499, 0.0
        %vm5978 = vcmp.gt.f32.partialorder %v5677, 0.0
        %vm5979 = vcmp.gt.f32.partialorder %v5855, 0.0
        %vm5980 = vcmp.gt.f32.partialorder %v5323, 0.0
        %vm5981 = vcmp.gt.f32.partialorder %v5501, 0.0
        %vm5982 = vcmp.gt.f32.partialorder %v5679, 0.0
        %vm5983 = vcmp.gt.f32.partialorder %v5857, 0.0
        %vm5984 = vcmp.gt.f32.partialorder %v5326, 0.0
        %vm5985 = vcmp.gt.f32.partialorder %v5504, 0.0
        %vm5986 = vcmp.gt.f32.partialorder %v5682, 0.0
        %vm5987 = vcmp.gt.f32.partialorder %v5860, 0.0
        %vm5988 = vcmp.gt.f32.partialorder %v5328, 0.0
        %vm5989 = vcmp.gt.f32.partialorder %v5506, 0.0
        %vm5990 = vcmp.gt.f32.partialorder %v5684, 0.0
        %vm5991 = vcmp.gt.f32.partialorder %v5862, 0.0
        %v5992 = vmul.f32 %v5251, 0.2
        %v5993 = vmul.f32 %v5429, 0.2
        %v5994 = vmul.f32 %v5607, 0.2
        %v5995 = vmul.f32 %v5785, 0.2
        %v5996 = vmul.f32 %v5253, 0.2
        %v5997 = vmul.f32 %v5431, 0.2
        %v5998 = vmul.f32 %v5609, 0.2
        %v5999 = vmul.f32 %v5787, 0.2
        %v6000 = vmul.f32 %v5256, 0.2
        %v6001 = vmul.f32 %v5434, 0.2
        %v6002 = vmul.f32 %v5612, 0.2
        %v6003 = vmul.f32 %v5790, 0.2
        %v6004 = vmul.f32 %v5258, 0.2
        %v6005 = vmul.f32 %v5436, 0.2
        %v6006 = vmul.f32 %v5614, 0.2
        %v6007 = vmul.f32 %v5792, 0.2
        %v6008 = vmul.f32 %v5261, 0.2
        %v6009 = vmul.f32 %v5439, 0.2
        %v6010 = vmul.f32 %v5617, 0.2
        %v6011 = vmul.f32 %v5795, 0.2
        %v6012 = vmul.f32 %v5263, 0.2
        %v6013 = vmul.f32 %v5441, 0.2
        %v6014 = vmul.f32 %v5619, 0.2
        %v6015 = vmul.f32 %v5797, 0.2
        %v6016 = vmul.f32 %v5266, 0.2
        %v6017 = vmul.f32 %v5444, 0.2
        %v6018 = vmul.f32 %v5622, 0.2
        %v6019 = vmul.f32 %v5800, 0.2
        %v6020 = vmul.f32 %v5268, 0.2
        %v6021 = vmul.f32 %v5446, 0.2
        %v6022 = vmul.f32 %v5624, 0.2
        %v6023 = vmul.f32 %v5802, 0.2
        %v6024 = vmul.f32 %v5271, 0.2
        %v6025 = vmul.f32 %v5449, 0.2
        %v6026 = vmul.f32 %v5627, 0.2
        %v6027 = vmul.f32 %v5805, 0.2
        %v6028 = vmul.f32 %v5273, 0.2
        %v6029 = vmul.f32 %v5451, 0.2
        %v6030 = vmul.f32 %v5629, 0.2
        %v6031 = vmul.f32 %v5807, 0.2
        %v6032 = vmul.f32 %v5276, 0.2
        %v6033 = vmul.f32 %v5454, 0.2
        %v6034 = vmul.f32 %v5632, 0.2
        %v6035 = vmul.f32 %v5810, 0.2
        %v6036 = vmul.f32 %v5278, 0.2
        %v6037 = vmul.f32 %v5456, 0.2
        %v6038 = vmul.f32 %v5634, 0.2
        %v6039 = vmul.f32 %v5812, 0.2
        %v6040 = vmul.f32 %v5281, 0.2
        %v6041 = vmul.f32 %v5459, 0.2
        %v6042 = vmul.f32 %v5637, 0.2
        %v6043 = vmul.f32 %v5815, 0.2
        %v6044 = vmul.f32 %v5283, 0.2
        %v6045 = vmul.f32 %v5461, 0.2
        %v6046 = vmul.f32 %v5639, 0.2
        %v6047 = vmul.f32 %v5817, 0.2
        %v6048 = vmul.f32 %v5286, 0.2
        %v6049 = vmul.f32 %v5464, 0.2
        %v6050 = vmul.f32 %v5642, 0.2
        %v6051 = vmul.f32 %v5820, 0.2
        %v6052 = vmul.f32 %v5288, 0.2
        %v6053 = vmul.f32 %v5466, 0.2
        %v6054 = vmul.f32 %v5644, 0.2
        %v6055 = vmul.f32 %v5822, 0.2
        %v6056 = vmul.f32 %v5291, 0.2
        %v6057 = vmul.f32 %v5469, 0.2
        %v6058 = vmul.f32 %v5647, 0.2
        %v6059 = vmul.f32 %v5825, 0.2
        %v6060 = vmul.f32 %v5293, 0.2
        %v6061 = vmul.f32 %v5471, 0.2
        %v6062 = vmul.f32 %v5649, 0.2
        %v6063 = vmul.f32 %v5827, 0.2
        %v6064 = vmul.f32 %v5296, 0.2
        %v6065 = vmul.f32 %v5474, 0.2
        %v6066 = vmul.f32 %v5652, 0.2
        %v6067 = vmul.f32 %v5830, 0.2
        %v6068 = vmul.f32 %v5298, 0.2
        %v6069 = vmul.f32 %v5476, 0.2
        %v6070 = vmul.f32 %v5654, 0.2
        %v6071 = vmul.f32 %v5832, 0.2
        %v6072 = vmul.f32 %v5301, 0.2
        %v6073 = vmul.f32 %v5479, 0.2
        %v6074 = vmul.f32 %v5657, 0.2
        %v6075 = vmul.f32 %v5835, 0.2
        %v6076 = vmul.f32 %v5303, 0.2
        %v6077 = vmul.f32 %v5481, 0.2
        %v6078 = vmul.f32 %v5659, 0.2
        %v6079 = vmul.f32 %v5837, 0.2
        %v6080 = vmul.f32 %v5306, 0.2
        %v6081 = vmul.f32 %v5484, 0.2
        %v6082 = vmul.f32 %v5662, 0.2
        %v6083 = vmul.f32 %v5840, 0.2
        %v6084 = vmul.f32 %v5308, 0.2
        %v6085 = vmul.f32 %v5486, 0.2
        %v6086 = vmul.f32 %v5664, 0.2
        %v6087 = vmul.f32 %v5842, 0.2
        %v6088 = vmul.f32 %v5311, 0.2
        %v6089 = vmul.f32 %v5489, 0.2
        %v6090 = vmul.f32 %v5667, 0.2
        %v6091 = vmul.f32 %v5845, 0.2
        %v6092 = vmul.f32 %v5313, 0.2
        %v6093 = vmul.f32 %v5491, 0.2
        %v6094 = vmul.f32 %v5669, 0.2
        %v6095 = vmul.f32 %v5847, 0.2
        %v6096 = vmul.f32 %v5316, 0.2
        %v6097 = vmul.f32 %v5494, 0.2
        %v6098 = vmul.f32 %v5672, 0.2
        %v6099 = vmul.f32 %v5850, 0.2
        %v6100 = vmul.f32 %v5318, 0.2
        %v6101 = vmul.f32 %v5496, 0.2
        %v6102 = vmul.f32 %v5674, 0.2
        %v6103 = vmul.f32 %v5852, 0.2
        %v6104 = vmul.f32 %v5321, 0.2
        %v6105 = vmul.f32 %v5499, 0.2
        %v6106 = vmul.f32 %v5677, 0.2
        %v6107 = vmul.f32 %v5855, 0.2
        %v6108 = vmul.f32 %v5323, 0.2
        %v6109 = vmul.f32 %v5501, 0.2
        %v6110 = vmul.f32 %v5679, 0.2
        %v6111 = vmul.f32 %v5857, 0.2
        %v6112 = vmul.f32 %v5326, 0.2
        %v6113 = vmul.f32 %v5504, 0.2
        %v6114 = vmul.f32 %v5682, 0.2
        %v6115 = vmul.f32 %v5860, 0.2
        %v6116 = vmul.f32 %v5328, 0.2
        %v6117 = vmul.f32 %v5506, 0.2
        %v6118 = vmul.f32 %v5684, 0.2
        %v6119 = vmul.f32 %v5862, 0.2
        %v6120 = vsel %vm5864, %v5251, %v5992
        %v6121 = vsel %vm5865, %v5429, %v5993
        %v6122 = vsel %vm5866, %v5607, %v5994
        %v6123 = vsel %vm5867, %v5785, %v5995
        %v6124 = vsel %vm5868, %v5253, %v5996
        %v6125 = vsel %vm5869, %v5431, %v5997
        %v6126 = vsel %vm5870, %v5609, %v5998
        %v6127 = vsel %vm5871, %v5787, %v5999
        %v6128 = vsel %vm5872, %v5256, %v6000
        %v6129 = vsel %vm5873, %v5434, %v6001
        %v6130 = vsel %vm5874, %v5612, %v6002
        %v6131 = vsel %vm5875, %v5790, %v6003
        %v6132 = vsel %vm5876, %v5258, %v6004
        %v6133 = vsel %vm5877, %v5436, %v6005
        %v6134 = vsel %vm5878, %v5614, %v6006
        %v6135 = vsel %vm5879, %v5792, %v6007
        %v6136 = vsel %vm5880, %v5261, %v6008
        %v6137 = vsel %vm5881, %v5439, %v6009
        %v6138 = vsel %vm5882, %v5617, %v6010
        %v6139 = vsel %vm5883, %v5795, %v6011
        %v6140 = vsel %vm5884, %v5263, %v6012
        %v6141 = vsel %vm5885, %v5441, %v6013
        %v6142 = vsel %vm5886, %v5619, %v6014
        %v6143 = vsel %vm5887, %v5797, %v6015
        %v6144 = vsel %vm5888, %v5266, %v6016
        %v6145 = vsel %vm5889, %v5444, %v6017
        %v6146 = vsel %vm5890, %v5622, %v6018
        %v6147 = vsel %vm5891, %v5800, %v6019
        %v6148 = vsel %vm5892, %v5268, %v6020
        %v6149 = vsel %vm5893, %v5446, %v6021
        %v6150 = vsel %vm5894, %v5624, %v6022
        %v6151 = vsel %vm5895, %v5802, %v6023
        %v6152 = vsel %vm5896, %v5271, %v6024
        %v6153 = vsel %vm5897, %v5449, %v6025
        %v6154 = vsel %vm5898, %v5627, %v6026
        %v6155 = vsel %vm5899, %v5805, %v6027
        %v6156 = vsel %vm5900, %v5273, %v6028
        %v6157 = vsel %vm5901, %v5451, %v6029
        %v6158 = vsel %vm5902, %v5629, %v6030
        %v6159 = vsel %vm5903, %v5807, %v6031
        %v6160 = vsel %vm5904, %v5276, %v6032
        %v6161 = vsel %vm5905, %v5454, %v6033
        %v6162 = vsel %vm5906, %v5632, %v6034
        %v6163 = vsel %vm5907, %v5810, %v6035
        %v6164 = vsel %vm5908, %v5278, %v6036
        %v6165 = vsel %vm5909, %v5456, %v6037
        %v6166 = vsel %vm5910, %v5634, %v6038
        %v6167 = vsel %vm5911, %v5812, %v6039
        %v6168 = vsel %vm5912, %v5281, %v6040
        %v6169 = vsel %vm5913, %v5459, %v6041
        %v6170 = vsel %vm5914, %v5637, %v6042
        %v6171 = vsel %vm5915, %v5815, %v6043
        %v6172 = vsel %vm5916, %v5283, %v6044
        %v6173 = vsel %vm5917, %v5461, %v6045
        %v6174 = vsel %vm5918, %v5639, %v6046
        %v6175 = vsel %vm5919, %v5817, %v6047
        %v6176 = vsel %vm5920, %v5286, %v6048
        %v6177 = vsel %vm5921, %v5464, %v6049
        %v6178 = vsel %vm5922, %v5642, %v6050
        %v6179 = vsel %vm5923, %v5820, %v6051
        %v6180 = vsel %vm5924, %v5288, %v6052
        %v6181 = vsel %vm5925, %v5466, %v6053
        %v6182 = vsel %vm5926, %v5644, %v6054
        %v6183 = vsel %vm5927, %v5822, %v6055
        %v6184 = vsel %vm5928, %v5291, %v6056
        %v6185 = vsel %vm5929, %v5469, %v6057
        %v6186 = vsel %vm5930, %v5647, %v6058
        %v6187 = vsel %vm5931, %v5825, %v6059
        %v6188 = vsel %vm5932, %v5293, %v6060
        %v6189 = vsel %vm5933, %v5471, %v6061
        %v6190 = vsel %vm5934, %v5649, %v6062
        %v6191 = vsel %vm5935, %v5827, %v6063
        %v6192 = vsel %vm5936, %v5296, %v6064
        %v6193 = vsel %vm5937, %v5474, %v6065
        %v6194 = vsel %vm5938, %v5652, %v6066
        %v6195 = vsel %vm5939, %v5830, %v6067
        %v6196 = vsel %vm5940, %v5298, %v6068
        %v6197 = vsel %vm5941, %v5476, %v6069
        %v6198 = vsel %vm5942, %v5654, %v6070
        %v6199 = vsel %vm5943, %v5832, %v6071
        %v6200 = vsel %vm5944, %v5301, %v6072
        %v6201 = vsel %vm5945, %v5479, %v6073
        %v6202 = vsel %vm5946, %v5657, %v6074
        %v6203 = vsel %vm5947, %v5835, %v6075
        %v6204 = vsel %vm5948, %v5303, %v6076
        %v6205 = vsel %vm5949, %v5481, %v6077
        %v6206 = vsel %vm5950, %v5659, %v6078
        %v6207 = vsel %vm5951, %v5837, %v6079
        %v6208 = vsel %vm5952, %v5306, %v6080
        %v6209 = vsel %vm5953, %v5484, %v6081
        %v6210 = vsel %vm5954, %v5662, %v6082
        %v6211 = vsel %vm5955, %v5840, %v6083
        %v6212 = vsel %vm5956, %v5308, %v6084
        %v6213 = vsel %vm5957, %v5486, %v6085
        %v6214 = vsel %vm5958, %v5664, %v6086
        %v6215 = vsel %vm5959, %v5842, %v6087
        %v6216 = vsel %vm5960, %v5311, %v6088
        %v6217 = vsel %vm5961, %v5489, %v6089
        %v6218 = vsel %vm5962, %v5667, %v6090
        %v6219 = vsel %vm5963, %v5845, %v6091
        %v6220 = vsel %vm5964, %v5313, %v6092
        %v6221 = vsel %vm5965, %v5491, %v6093
        %v6222 = vsel %vm5966, %v5669, %v6094
        %v6223 = vsel %vm5967, %v5847, %v6095
        %v6224 = vsel %vm5968, %v5316, %v6096
        %v6225 = vsel %vm5969, %v5494, %v6097
        %v6226 = vsel %vm5970, %v5672, %v6098
        %v6227 = vsel %vm5971, %v5850, %v6099
        %v6228 = vsel %vm5972, %v5318, %v6100
        %v6229 = vsel %vm5973, %v5496, %v6101
        %v6230 = vsel %vm5974, %v5674, %v6102
        %v6231 = vsel %vm5975, %v5852, %v6103
        %v6232 = vsel %vm5976, %v5321, %v6104
        %v6233 = vsel %vm5977, %v5499, %v6105
        %v6234 = vsel %vm5978, %v5677, %v6106
        %v6235 = vsel %vm5979, %v5855, %v6107
        %v6236 = vsel %vm5980, %v5323, %v6108
        %v6237 = vsel %vm5981, %v5501, %v6109
        %v6238 = vsel %vm5982, %v5679, %v6110
        %v6239 = vsel %vm5983, %v5857, %v6111
        %v6240 = vsel %vm5984, %v5326, %v6112
        %v6241 = vsel %vm5985, %v5504, %v6113
        %v6242 = vsel %vm5986, %v5682, %v6114
        %v6243 = vsel %vm5987, %v5860, %v6115
        %v6244 = vsel %vm5988, %v5328, %v6116
        %v6245 = vsel %vm5989, %v5506, %v6117
        %v6246 = vsel %vm5990, %v5684, %v6118
        %v6247 = vsel %vm5991, %v5862, %v6119
        %v6248 = vpack.c.bf16 %v6124, %v6120
        %v6249 = vpack.c.bf16 %v6125, %v6121
        %v6250 = vpack.c.bf16 %v6126, %v6122
        %v6251 = vpack.c.bf16 %v6127, %v6123
        %v6252 = vpack.c.bf16 %v6132, %v6128
        %v6253 = vpack.c.bf16 %v6133, %v6129
        %v6254 = vpack.c.bf16 %v6134, %v6130
        %v6255 = vpack.c.bf16 %v6135, %v6131
        %v6256 = vpack.c.bf16 %v6140, %v6136
        %v6257 = vpack.c.bf16 %v6141, %v6137
        %v6258 = vpack.c.bf16 %v6142, %v6138
        %v6259 = vpack.c.bf16 %v6143, %v6139
        %v6260 = vpack.c.bf16 %v6148, %v6144
        %v6261 = vpack.c.bf16 %v6149, %v6145
        %v6262 = vpack.c.bf16 %v6150, %v6146
        %v6263 = vpack.c.bf16 %v6151, %v6147
        %v6264 = vpack.c.bf16 %v6156, %v6152
        %v6265 = vpack.c.bf16 %v6157, %v6153
        %v6266 = vpack.c.bf16 %v6158, %v6154
        %v6267 = vpack.c.bf16 %v6159, %v6155
        %v6268 = vpack.c.bf16 %v6164, %v6160
        %v6269 = vpack.c.bf16 %v6165, %v6161
        %v6270 = vpack.c.bf16 %v6166, %v6162
        %v6271 = vpack.c.bf16 %v6167, %v6163
        %v6272 = vpack.c.bf16 %v6172, %v6168
        %v6273 = vpack.c.bf16 %v6173, %v6169
        %v6274 = vpack.c.bf16 %v6174, %v6170
        %v6275 = vpack.c.bf16 %v6175, %v6171
        %v6276 = vpack.c.bf16 %v6180, %v6176
        %v6277 = vpack.c.bf16 %v6181, %v6177
        %v6278 = vpack.c.bf16 %v6182, %v6178
        %v6279 = vpack.c.bf16 %v6183, %v6179
        %v6280 = vpack.c.bf16 %v6188, %v6184
        %v6281 = vpack.c.bf16 %v6189, %v6185
        %v6282 = vpack.c.bf16 %v6190, %v6186
        %v6283 = vpack.c.bf16 %v6191, %v6187
        %v6284 = vpack.c.bf16 %v6196, %v6192
        %v6285 = vpack.c.bf16 %v6197, %v6193
        %v6286 = vpack.c.bf16 %v6198, %v6194
        %v6287 = vpack.c.bf16 %v6199, %v6195
        %v6288 = vpack.c.bf16 %v6204, %v6200
        %v6289 = vpack.c.bf16 %v6205, %v6201
        %v6290 = vpack.c.bf16 %v6206, %v6202
        %v6291 = vpack.c.bf16 %v6207, %v6203
        %v6292 = vpack.c.bf16 %v6212, %v6208
        %v6293 = vpack.c.bf16 %v6213, %v6209
        %v6294 = vpack.c.bf16 %v6214, %v6210
        %v6295 = vpack.c.bf16 %v6215, %v6211
        %v6296 = vpack.c.bf16 %v6220, %v6216
        %v6297 = vpack.c.bf16 %v6221, %v6217
        %v6298 = vpack.c.bf16 %v6222, %v6218
        %v6299 = vpack.c.bf16 %v6223, %v6219
        %v6300 = vpack.c.bf16 %v6228, %v6224
        %v6301 = vpack.c.bf16 %v6229, %v6225
        %v6302 = vpack.c.bf16 %v6230, %v6226
        %v6303 = vpack.c.bf16 %v6231, %v6227
        %v6304 = vpack.c.bf16 %v6236, %v6232
        %v6305 = vpack.c.bf16 %v6237, %v6233
        %v6306 = vpack.c.bf16 %v6238, %v6234
        %v6307 = vpack.c.bf16 %v6239, %v6235
        %v6308 = vpack.c.bf16 %v6244, %v6240
        %v6309 = vpack.c.bf16 %v6245, %v6241
        %v6310 = vpack.c.bf16 %v6246, %v6242
        %v6311 = vpack.c.bf16 %v6247, %v6243
        %v6312 = vld [vmem:[#allocation18] sm:$0xf]
        %v6313 = vld [vmem:[#allocation18 + $0x4] sm:$0xf]
        %v6314 = vld [vmem:[#allocation18 + $0x8] sm:$0xf]
        %v6315 = vld [vmem:[#allocation18 + $0xc] sm:$0xf]
        %v6316 = vld [vmem:[#allocation18 + $0x10] sm:$0xf]
        %v6317 = vld [vmem:[#allocation18 + $0x14] sm:$0xf]
        %v6318 = vld [vmem:[#allocation18 + $0x18] sm:$0xf]
        %v6319 = vld [vmem:[#allocation18 + $0x1c] sm:$0xf]
        %v6320 = vld [vmem:[#allocation18 + $0x20] sm:$0xf]
        %v6321 = vld [vmem:[#allocation18 + $0x24] sm:$0xf]
        %v6322 = vld [vmem:[#allocation18 + $0x28] sm:$0xf]
        %v6323 = vld [vmem:[#allocation18 + $0x2c] sm:$0xf]
        %v6324 = vld [vmem:[#allocation18 + $0x30] sm:$0xf]
        %v6325 = vld [vmem:[#allocation18 + $0x34] sm:$0xf]
        %v6326 = vld [vmem:[#allocation18 + $0x38] sm:$0xf]
        %v6327 = vld [vmem:[#allocation18 + $0x3c] sm:$0xf]
        %v6328 = vld [vmem:[#allocation18 + $0x40] sm:$0xf]
        %v6329 = vld [vmem:[#allocation18 + $0x44] sm:$0xf]
        %v6330 = vld [vmem:[#allocation18 + $0x48] sm:$0xf]
        %v6331 = vld [vmem:[#allocation18 + $0x4c] sm:$0xf]
        %v6332 = vld [vmem:[#allocation18 + $0x50] sm:$0xf]
        %v6333 = vld [vmem:[#allocation18 + $0x54] sm:$0xf]
        %v6334 = vld [vmem:[#allocation18 + $0x58] sm:$0xf]
        %v6335 = vld [vmem:[#allocation18 + $0x5c] sm:$0xf]
        %v6336 = vld [vmem:[#allocation18 + $0x60] sm:$0xf]
        %v6337 = vld [vmem:[#allocation18 + $0x64] sm:$0xf]
        %v6338 = vld [vmem:[#allocation18 + $0x68] sm:$0xf]
        %v6339 = vld [vmem:[#allocation18 + $0x6c] sm:$0xf]
        %v6340 = vld [vmem:[#allocation18 + $0x70] sm:$0xf]
        %v6341 = vld [vmem:[#allocation18 + $0x74] sm:$0xf]
        %v6342 = vld [vmem:[#allocation18 + $0x78] sm:$0xf]
        %v6343 = vld [vmem:[#allocation18 + $0x7c] sm:$0xf]
        %v6344 = vld [vmem:[#allocation18 + $0x80] sm:$0xf]
        %v6345 = vld [vmem:[#allocation18 + $0x84] sm:$0xf]
        %v6346 = vld [vmem:[#allocation18 + $0x88] sm:$0xf]
        %v6347 = vld [vmem:[#allocation18 + $0x8c] sm:$0xf]
        %v6348 = vld [vmem:[#allocation18 + $0x90] sm:$0xf]
        %v6349 = vld [vmem:[#allocation18 + $0x94] sm:$0xf]
        %v6350 = vld [vmem:[#allocation18 + $0x98] sm:$0xf]
        %v6351 = vld [vmem:[#allocation18 + $0x9c] sm:$0xf]
        %v6352 = vld [vmem:[#allocation18 + $0xa0] sm:$0xf]
        %v6353 = vld [vmem:[#allocation18 + $0xa4] sm:$0xf]
        %v6354 = vld [vmem:[#allocation18 + $0xa8] sm:$0xf]
        %v6355 = vld [vmem:[#allocation18 + $0xac] sm:$0xf]
        %v6356 = vld [vmem:[#allocation18 + $0xb0] sm:$0xf]
        %v6357 = vld [vmem:[#allocation18 + $0xb4] sm:$0xf]
        %v6358 = vld [vmem:[#allocation18 + $0xb8] sm:$0xf]
        %v6359 = vld [vmem:[#allocation18 + $0xbc] sm:$0xf]
        %v6360 = vld [vmem:[#allocation18 + $0xc0] sm:$0xf]
        %v6361 = vld [vmem:[#allocation18 + $0xc4] sm:$0xf]
        %v6362 = vld [vmem:[#allocation18 + $0xc8] sm:$0xf]
        %v6363 = vld [vmem:[#allocation18 + $0xcc] sm:$0xf]
        %v6364 = vld [vmem:[#allocation18 + $0xd0] sm:$0xf]
        %v6365 = vld [vmem:[#allocation18 + $0xd4] sm:$0xf]
        %v6366 = vld [vmem:[#allocation18 + $0xd8] sm:$0xf]
        %v6367 = vld [vmem:[#allocation18 + $0xdc] sm:$0xf]
        %v6368 = vld [vmem:[#allocation18 + $0xe0] sm:$0xf]
        %v6369 = vld [vmem:[#allocation18 + $0xe4] sm:$0xf]
        %v6370 = vld [vmem:[#allocation18 + $0xe8] sm:$0xf]
        %v6371 = vld [vmem:[#allocation18 + $0xec] sm:$0xf]
        %v6372 = vld [vmem:[#allocation18 + $0xf0] sm:$0xf]
        %v6373 = vld [vmem:[#allocation18 + $0xf4] sm:$0xf]
        %v6374 = vld [vmem:[#allocation18 + $0xf8] sm:$0xf]
        %v6375 = vld [vmem:[#allocation18 + $0xfc] sm:$0xf]
        %v6376 = vld [vmem:[#allocation20] sm:$0x1]
        %v6378 = vperm.slane %v6376, 0
        %v6444 = vunpack.c.l.b16 %v6312
        %v6445 = vunpack.c.l.b16 %v6313
        %v6446 = vunpack.c.l.b16 %v6314
        %v6447 = vunpack.c.l.b16 %v6315
        %v6448 = vunpack.c.l.b16 %v6316
        %v6449 = vunpack.c.l.b16 %v6317
        %v6450 = vunpack.c.l.b16 %v6318
        %v6451 = vunpack.c.l.b16 %v6319
        %v6452 = vunpack.c.l.b16 %v6320
        %v6453 = vunpack.c.l.b16 %v6321
        %v6454 = vunpack.c.l.b16 %v6322
        %v6455 = vunpack.c.l.b16 %v6323
        %v6456 = vunpack.c.l.b16 %v6324
        %v6457 = vunpack.c.l.b16 %v6325
        %v6458 = vunpack.c.l.b16 %v6326
        %v6459 = vunpack.c.l.b16 %v6327
        %v6460 = vunpack.c.l.b16 %v6328
        %v6461 = vunpack.c.l.b16 %v6329
        %v6462 = vunpack.c.l.b16 %v6330
        %v6463 = vunpack.c.l.b16 %v6331
        %v6464 = vunpack.c.l.b16 %v6332
        %v6465 = vunpack.c.l.b16 %v6333
        %v6466 = vunpack.c.l.b16 %v6334
        %v6467 = vunpack.c.l.b16 %v6335
        %v6468 = vunpack.c.l.b16 %v6336
        %v6469 = vunpack.c.l.b16 %v6337
        %v6470 = vunpack.c.l.b16 %v6338
        %v6471 = vunpack.c.l.b16 %v6339
        %v6472 = vunpack.c.l.b16 %v6340
        %v6473 = vunpack.c.l.b16 %v6341
        %v6474 = vunpack.c.l.b16 %v6342
        %v6475 = vunpack.c.l.b16 %v6343
        %v6476 = vunpack.c.l.b16 %v6344
        %v6477 = vunpack.c.l.b16 %v6345
        %v6478 = vunpack.c.l.b16 %v6346
        %v6479 = vunpack.c.l.b16 %v6347
        %v6480 = vunpack.c.l.b16 %v6348
        %v6481 = vunpack.c.l.b16 %v6349
        %v6482 = vunpack.c.l.b16 %v6350
        %v6483 = vunpack.c.l.b16 %v6351
        %v6484 = vunpack.c.l.b16 %v6352
        %v6485 = vunpack.c.l.b16 %v6353
        %v6486 = vunpack.c.l.b16 %v6354
        %v6487 = vunpack.c.l.b16 %v6355
        %v6488 = vunpack.c.l.b16 %v6356
        %v6489 = vunpack.c.l.b16 %v6357
        %v6490 = vunpack.c.l.b16 %v6358
        %v6491 = vunpack.c.l.b16 %v6359
        %v6492 = vunpack.c.l.b16 %v6360
        %v6493 = vunpack.c.l.b16 %v6361
        %v6494 = vunpack.c.l.b16 %v6362
        %v6495 = vunpack.c.l.b16 %v6363
        %v6496 = vunpack.c.l.b16 %v6364
        %v6497 = vunpack.c.l.b16 %v6365
        %v6498 = vunpack.c.l.b16 %v6366
        %v6499 = vunpack.c.l.b16 %v6367
        %v6500 = vunpack.c.l.b16 %v6368
        %v6501 = vunpack.c.l.b16 %v6369
        %v6502 = vunpack.c.l.b16 %v6370
        %v6503 = vunpack.c.l.b16 %v6371
        %v6504 = vunpack.c.l.b16 %v6372
        %v6505 = vunpack.c.l.b16 %v6373
        %v6506 = vunpack.c.l.b16 %v6374
        %v6507 = vunpack.c.l.b16 %v6375
        %v6508 = vpack.c.b16 %v6445, %v6444
        %v6509 = vpack.c.b16 %v6447, %v6446
        %v6510 = vpack.c.b16 %v6449, %v6448
        %v6511 = vpack.c.b16 %v6451, %v6450
        %v6512 = vpack.c.b16 %v6453, %v6452
        %v6513 = vpack.c.b16 %v6455, %v6454
        %v6514 = vpack.c.b16 %v6457, %v6456
        %v6515 = vpack.c.b16 %v6459, %v6458
        %v6516 = vpack.c.b16 %v6461, %v6460
        %v6517 = vpack.c.b16 %v6463, %v6462
        %v6518 = vpack.c.b16 %v6465, %v6464
        %v6519 = vpack.c.b16 %v6467, %v6466
        %v6520 = vpack.c.b16 %v6469, %v6468
        %v6521 = vpack.c.b16 %v6471, %v6470
        %v6522 = vpack.c.b16 %v6473, %v6472
        %v6523 = vpack.c.b16 %v6475, %v6474
        %v6524 = vpack.c.b16 %v6477, %v6476
        %v6525 = vpack.c.b16 %v6479, %v6478
        %v6526 = vpack.c.b16 %v6481, %v6480
        %v6527 = vpack.c.b16 %v6483, %v6482
        %v6528 = vpack.c.b16 %v6485, %v6484
        %v6529 = vpack.c.b16 %v6487, %v6486
        %v6530 = vpack.c.b16 %v6489, %v6488
        %v6531 = vpack.c.b16 %v6491, %v6490
        %v6532 = vpack.c.b16 %v6493, %v6492
        %v6533 = vpack.c.b16 %v6495, %v6494
        %v6534 = vpack.c.b16 %v6497, %v6496
        %v6535 = vpack.c.b16 %v6499, %v6498
        %v6536 = vpack.c.b16 %v6501, %v6500
        %v6537 = vpack.c.b16 %v6503, %v6502
        %v6538 = vpack.c.b16 %v6505, %v6504
        %v6539 = vpack.c.b16 %v6507, %v6506
        %6572 = vmatpush.bf16.msra.mxu0 %v6515
        %6573 = vmatpush.bf16.msra.mxu0 %v6514
        %6574 = vmatpush.bf16.msra.mxu0 %v6513
        %6575 = vmatpush.bf16.msra.mxu0 %v6512
        %6576 = vmatpush.bf16.msra.mxu0 %v6511
        %6577 = vmatpush.bf16.msra.mxu0 %v6510
        %6578 = vmatpush.bf16.msra.mxu0 %v6509
        %6579 = vmatpush.bf16.msra.mxu0 %v6508
        %6580 = vmatmul.bf16.gmra.mxu0 %v6248
        %v6581 = vpop.f32.mrf.mxu0
        %v6582 = vadd.f32 %v6378, %v6581
        %v6583 = vpop.f32.mrf.mxu0
        %v6584 = vadd.f32 %v6378, %v6583
        %6585 = vmatmul.bf16.gmra.mxu0 %v6252
        %v6586 = vpop.f32.mrf.mxu0
        %v6587 = vadd.f32 %v6378, %v6586
        %v6588 = vpop.f32.mrf.mxu0
        %v6589 = vadd.f32 %v6378, %v6588
        %6590 = vmatmul.bf16.gmra.mxu0 %v6256
        %v6591 = vpop.f32.mrf.mxu0
        %v6592 = vadd.f32 %v6378, %v6591
        %v6593 = vpop.f32.mrf.mxu0
        %v6594 = vadd.f32 %v6378, %v6593
        %6595 = vmatmul.bf16.gmra.mxu0 %v6260
        %v6596 = vpop.f32.mrf.mxu0
        %v6597 = vadd.f32 %v6378, %v6596
        %v6598 = vpop.f32.mrf.mxu0
        %v6599 = vadd.f32 %v6378, %v6598
        %6600 = vmatmul.bf16.gmra.mxu0 %v6264
        %v6601 = vpop.f32.mrf.mxu0
        %v6602 = vadd.f32 %v6378, %v6601
        %v6603 = vpop.f32.mrf.mxu0
        %v6604 = vadd.f32 %v6378, %v6603
        %6605 = vmatmul.bf16.gmra.mxu0 %v6268
        %v6606 = vpop.f32.mrf.mxu0
        %v6607 = vadd.f32 %v6378, %v6606
        %v6608 = vpop.f32.mrf.mxu0
        %v6609 = vadd.f32 %v6378, %v6608
        %6610 = vmatmul.bf16.gmra.mxu0 %v6272
        %v6611 = vpop.f32.mrf.mxu0
        %v6612 = vadd.f32 %v6378, %v6611
        %v6613 = vpop.f32.mrf.mxu0
        %v6614 = vadd.f32 %v6378, %v6613
        %6615 = vmatmul.bf16.gmra.mxu0 %v6276
        %v6616 = vpop.f32.mrf.mxu0
        %v6617 = vadd.f32 %v6378, %v6616
        %v6618 = vpop.f32.mrf.mxu0
        %v6619 = vadd.f32 %v6378, %v6618
        %6620 = vmatmul.bf16.gmra.mxu0 %v6280
        %v6621 = vpop.f32.mrf.mxu0
        %v6622 = vadd.f32 %v6378, %v6621
        %v6623 = vpop.f32.mrf.mxu0
        %v6624 = vadd.f32 %v6378, %v6623
        %6625 = vmatmul.bf16.gmra.mxu0 %v6284
        %v6626 = vpop.f32.mrf.mxu0
        %v6627 = vadd.f32 %v6378, %v6626
        %v6628 = vpop.f32.mrf.mxu0
        %v6629 = vadd.f32 %v6378, %v6628
        %6630 = vmatmul.bf16.gmra.mxu0 %v6288
        %v6631 = vpop.f32.mrf.mxu0
        %v6632 = vadd.f32 %v6378, %v6631
        %v6633 = vpop.f32.mrf.mxu0
        %v6634 = vadd.f32 %v6378, %v6633
        %6635 = vmatmul.bf16.gmra.mxu0 %v6292
        %v6636 = vpop.f32.mrf.mxu0
        %v6637 = vadd.f32 %v6378, %v6636
        %v6638 = vpop.f32.mrf.mxu0
        %v6639 = vadd.f32 %v6378, %v6638
        %6640 = vmatmul.bf16.gmra.mxu0 %v6296
        %v6641 = vpop.f32.mrf.mxu0
        %v6642 = vadd.f32 %v6378, %v6641
        %v6643 = vpop.f32.mrf.mxu0
        %v6644 = vadd.f32 %v6378, %v6643
        %6645 = vmatmul.bf16.gmra.mxu0 %v6300
        %v6646 = vpop.f32.mrf.mxu0
        %v6647 = vadd.f32 %v6378, %v6646
        %v6648 = vpop.f32.mrf.mxu0
        %v6649 = vadd.f32 %v6378, %v6648
        %6650 = vmatmul.bf16.gmra.mxu0 %v6304
        %v6651 = vpop.f32.mrf.mxu0
        %v6652 = vadd.f32 %v6378, %v6651
        %v6653 = vpop.f32.mrf.mxu0
        %v6654 = vadd.f32 %v6378, %v6653
        %6655 = vmatmul.bf16.gmra.mxu0 %v6308
        %v6656 = vpop.f32.mrf.mxu0
        %v6657 = vadd.f32 %v6378, %v6656
        %v6658 = vpop.f32.mrf.mxu0
        %v6659 = vadd.f32 %v6378, %v6658
        %6660 = vdwg.mxu0
        %6661 = vmatpush.bf16.msra.mxu0 %v6523
        %6662 = vmatpush.bf16.msra.mxu0 %v6522
        %6663 = vmatpush.bf16.msra.mxu0 %v6521
        %6664 = vmatpush.bf16.msra.mxu0 %v6520
        %6665 = vmatpush.bf16.msra.mxu0 %v6519
        %6666 = vmatpush.bf16.msra.mxu0 %v6518
        %6667 = vmatpush.bf16.msra.mxu0 %v6517
        %6668 = vmatpush.bf16.msra.mxu0 %v6516
        %6669 = vmatmul.bf16.gmra.mxu0 %v6249
        %v6670 = vpop.f32.mrf.mxu0
        %v6671 = vadd.f32 %v6582, %v6670
        %v6672 = vpop.f32.mrf.mxu0
        %v6673 = vadd.f32 %v6584, %v6672
        %6674 = vmatmul.bf16.gmra.mxu0 %v6253
        %v6675 = vpop.f32.mrf.mxu0
        %v6676 = vadd.f32 %v6587, %v6675
        %v6677 = vpop.f32.mrf.mxu0
        %v6678 = vadd.f32 %v6589, %v6677
        %6679 = vmatmul.bf16.gmra.mxu0 %v6257
        %v6680 = vpop.f32.mrf.mxu0
        %v6681 = vadd.f32 %v6592, %v6680
        %v6682 = vpop.f32.mrf.mxu0
        %v6683 = vadd.f32 %v6594, %v6682
        %6684 = vmatmul.bf16.gmra.mxu0 %v6261
        %v6685 = vpop.f32.mrf.mxu0
        %v6686 = vadd.f32 %v6597, %v6685
        %v6687 = vpop.f32.mrf.mxu0
        %v6688 = vadd.f32 %v6599, %v6687
        %6689 = vmatmul.bf16.gmra.mxu0 %v6265
        %v6690 = vpop.f32.mrf.mxu0
        %v6691 = vadd.f32 %v6602, %v6690
        %v6692 = vpop.f32.mrf.mxu0
        %v6693 = vadd.f32 %v6604, %v6692
        %6694 = vmatmul.bf16.gmra.mxu0 %v6269
        %v6695 = vpop.f32.mrf.mxu0
        %v6696 = vadd.f32 %v6607, %v6695
        %v6697 = vpop.f32.mrf.mxu0
        %v6698 = vadd.f32 %v6609, %v6697
        %6699 = vmatmul.bf16.gmra.mxu0 %v6273
        %v6700 = vpop.f32.mrf.mxu0
        %v6701 = vadd.f32 %v6612, %v6700
        %v6702 = vpop.f32.mrf.mxu0
        %v6703 = vadd.f32 %v6614, %v6702
        %6704 = vmatmul.bf16.gmra.mxu0 %v6277
        %v6705 = vpop.f32.mrf.mxu0
        %v6706 = vadd.f32 %v6617, %v6705
        %v6707 = vpop.f32.mrf.mxu0
        %v6708 = vadd.f32 %v6619, %v6707
        %6709 = vmatmul.bf16.gmra.mxu0 %v6281
        %v6710 = vpop.f32.mrf.mxu0
        %v6711 = vadd.f32 %v6622, %v6710
        %v6712 = vpop.f32.mrf.mxu0
        %v6713 = vadd.f32 %v6624, %v6712
        %6714 = vmatmul.bf16.gmra.mxu0 %v6285
        %v6715 = vpop.f32.mrf.mxu0
        %v6716 = vadd.f32 %v6627, %v6715
        %v6717 = vpop.f32.mrf.mxu0
        %v6718 = vadd.f32 %v6629, %v6717
        %6719 = vmatmul.bf16.gmra.mxu0 %v6289
        %v6720 = vpop.f32.mrf.mxu0
        %v6721 = vadd.f32 %v6632, %v6720
        %v6722 = vpop.f32.mrf.mxu0
        %v6723 = vadd.f32 %v6634, %v6722
        %6724 = vmatmul.bf16.gmra.mxu0 %v6293
        %v6725 = vpop.f32.mrf.mxu0
        %v6726 = vadd.f32 %v6637, %v6725
        %v6727 = vpop.f32.mrf.mxu0
        %v6728 = vadd.f32 %v6639, %v6727
        %6729 = vmatmul.bf16.gmra.mxu0 %v6297
        %v6730 = vpop.f32.mrf.mxu0
        %v6731 = vadd.f32 %v6642, %v6730
        %v6732 = vpop.f32.mrf.mxu0
        %v6733 = vadd.f32 %v6644, %v6732
        %6734 = vmatmul.bf16.gmra.mxu0 %v6301
        %v6735 = vpop.f32.mrf.mxu0
        %v6736 = vadd.f32 %v6647, %v6735
        %v6737 = vpop.f32.mrf.mxu0
        %v6738 = vadd.f32 %v6649, %v6737
        %6739 = vmatmul.bf16.gmra.mxu0 %v6305
        %v6740 = vpop.f32.mrf.mxu0
        %v6741 = vadd.f32 %v6652, %v6740
        %v6742 = vpop.f32.mrf.mxu0
        %v6743 = vadd.f32 %v6654, %v6742
        %6744 = vmatmul.bf16.gmra.mxu0 %v6309
        %v6745 = vpop.f32.mrf.mxu0
        %v6746 = vadd.f32 %v6657, %v6745
        %v6747 = vpop.f32.mrf.mxu0
        %v6748 = vadd.f32 %v6659, %v6747
        %6749 = vdwg.mxu0
        %6750 = vmatpush.bf16.msra.mxu0 %v6531
        %6751 = vmatpush.bf16.msra.mxu0 %v6530
        %6752 = vmatpush.bf16.msra.mxu0 %v6529
        %6753 = vmatpush.bf16.msra.mxu0 %v6528
        %6754 = vmatpush.bf16.msra.mxu0 %v6527
        %6755 = vmatpush.bf16.msra.mxu0 %v6526
        %6756 = vmatpush.bf16.msra.mxu0 %v6525
        %6757 = vmatpush.bf16.msra.mxu0 %v6524
        %6758 = vmatmul.bf16.gmra.mxu0 %v6250
        %v6759 = vpop.f32.mrf.mxu0
        %v6760 = vadd.f32 %v6671, %v6759
        %v6761 = vpop.f32.mrf.mxu0
        %v6762 = vadd.f32 %v6673, %v6761
        %6763 = vmatmul.bf16.gmra.mxu0 %v6254
        %v6764 = vpop.f32.mrf.mxu0
        %v6765 = vadd.f32 %v6676, %v6764
        %v6766 = vpop.f32.mrf.mxu0
        %v6767 = vadd.f32 %v6678, %v6766
        %6768 = vmatmul.bf16.gmra.mxu0 %v6258
        %v6769 = vpop.f32.mrf.mxu0
        %v6770 = vadd.f32 %v6681, %v6769
        %v6771 = vpop.f32.mrf.mxu0
        %v6772 = vadd.f32 %v6683, %v6771
        %6773 = vmatmul.bf16.gmra.mxu0 %v6262
        %v6774 = vpop.f32.mrf.mxu0
        %v6775 = vadd.f32 %v6686, %v6774
        %v6776 = vpop.f32.mrf.mxu0
        %v6777 = vadd.f32 %v6688, %v6776
        %6778 = vmatmul.bf16.gmra.mxu0 %v6266
        %v6779 = vpop.f32.mrf.mxu0
        %v6780 = vadd.f32 %v6691, %v6779
        %v6781 = vpop.f32.mrf.mxu0
        %v6782 = vadd.f32 %v6693, %v6781
        %6783 = vmatmul.bf16.gmra.mxu0 %v6270
        %v6784 = vpop.f32.mrf.mxu0
        %v6785 = vadd.f32 %v6696, %v6784
        %v6786 = vpop.f32.mrf.mxu0
        %v6787 = vadd.f32 %v6698, %v6786
        %6788 = vmatmul.bf16.gmra.mxu0 %v6274
        %v6789 = vpop.f32.mrf.mxu0
        %v6790 = vadd.f32 %v6701, %v6789
        %v6791 = vpop.f32.mrf.mxu0
        %v6792 = vadd.f32 %v6703, %v6791
        %6793 = vmatmul.bf16.gmra.mxu0 %v6278
        %v6794 = vpop.f32.mrf.mxu0
        %v6795 = vadd.f32 %v6706, %v6794
        %v6796 = vpop.f32.mrf.mxu0
        %v6797 = vadd.f32 %v6708, %v6796
        %6798 = vmatmul.bf16.gmra.mxu0 %v6282
        %v6799 = vpop.f32.mrf.mxu0
        %v6800 = vadd.f32 %v6711, %v6799
        %v6801 = vpop.f32.mrf.mxu0
        %v6802 = vadd.f32 %v6713, %v6801
        %6803 = vmatmul.bf16.gmra.mxu0 %v6286
        %v6804 = vpop.f32.mrf.mxu0
        %v6805 = vadd.f32 %v6716, %v6804
        %v6806 = vpop.f32.mrf.mxu0
        %v6807 = vadd.f32 %v6718, %v6806
        %6808 = vmatmul.bf16.gmra.mxu0 %v6290
        %v6809 = vpop.f32.mrf.mxu0
        %v6810 = vadd.f32 %v6721, %v6809
        %v6811 = vpop.f32.mrf.mxu0
        %v6812 = vadd.f32 %v6723, %v6811
        %6813 = vmatmul.bf16.gmra.mxu0 %v6294
        %v6814 = vpop.f32.mrf.mxu0
        %v6815 = vadd.f32 %v6726, %v6814
        %v6816 = vpop.f32.mrf.mxu0
        %v6817 = vadd.f32 %v6728, %v6816
        %6818 = vmatmul.bf16.gmra.mxu0 %v6298
        %v6819 = vpop.f32.mrf.mxu0
        %v6820 = vadd.f32 %v6731, %v6819
        %v6821 = vpop.f32.mrf.mxu0
        %v6822 = vadd.f32 %v6733, %v6821
        %6823 = vmatmul.bf16.gmra.mxu0 %v6302
        %v6824 = vpop.f32.mrf.mxu0
        %v6825 = vadd.f32 %v6736, %v6824
        %v6826 = vpop.f32.mrf.mxu0
        %v6827 = vadd.f32 %v6738, %v6826
        %6828 = vmatmul.bf16.gmra.mxu0 %v6306
        %v6829 = vpop.f32.mrf.mxu0
        %v6830 = vadd.f32 %v6741, %v6829
        %v6831 = vpop.f32.mrf.mxu0
        %v6832 = vadd.f32 %v6743, %v6831
        %6833 = vmatmul.bf16.gmra.mxu0 %v6310
        %v6834 = vpop.f32.mrf.mxu0
        %v6835 = vadd.f32 %v6746, %v6834
        %v6836 = vpop.f32.mrf.mxu0
        %v6837 = vadd.f32 %v6748, %v6836
        %6838 = vdwg.mxu0
        %6839 = vmatpush.bf16.msra.mxu0 %v6539
        %6840 = vmatpush.bf16.msra.mxu0 %v6538
        %6841 = vmatpush.bf16.msra.mxu0 %v6537
        %6842 = vmatpush.bf16.msra.mxu0 %v6536
        %6843 = vmatpush.bf16.msra.mxu0 %v6535
        %6844 = vmatpush.bf16.msra.mxu0 %v6534
        %6845 = vmatpush.bf16.msra.mxu0 %v6533
        %6846 = vmatpush.bf16.msra.mxu0 %v6532
        %6847 = vmatmul.bf16.gmra.mxu0 %v6251
        %v6848 = vpop.f32.mrf.mxu0
        %v6849 = vadd.f32 %v6760, %v6848
        %v6850 = vpop.f32.mrf.mxu0
        %v6851 = vadd.f32 %v6762, %v6850
        %6852 = vmatmul.bf16.gmra.mxu0 %v6255
        %v6853 = vpop.f32.mrf.mxu0
        %v6854 = vadd.f32 %v6765, %v6853
        %v6855 = vpop.f32.mrf.mxu0
        %v6856 = vadd.f32 %v6767, %v6855
        %6857 = vmatmul.bf16.gmra.mxu0 %v6259
        %v6858 = vpop.f32.mrf.mxu0
        %v6859 = vadd.f32 %v6770, %v6858
        %v6860 = vpop.f32.mrf.mxu0
        %v6861 = vadd.f32 %v6772, %v6860
        %6862 = vmatmul.bf16.gmra.mxu0 %v6263
        %v6863 = vpop.f32.mrf.mxu0
        %v6864 = vadd.f32 %v6775, %v6863
        %v6865 = vpop.f32.mrf.mxu0
        %v6866 = vadd.f32 %v6777, %v6865
        %6867 = vmatmul.bf16.gmra.mxu0 %v6267
        %v6868 = vpop.f32.mrf.mxu0
        %v6869 = vadd.f32 %v6780, %v6868
        %v6870 = vpop.f32.mrf.mxu0
        %v6871 = vadd.f32 %v6782, %v6870
        %6872 = vmatmul.bf16.gmra.mxu0 %v6271
        %v6873 = vpop.f32.mrf.mxu0
        %v6874 = vadd.f32 %v6785, %v6873
        %v6875 = vpop.f32.mrf.mxu0
        %v6876 = vadd.f32 %v6787, %v6875
        %6877 = vmatmul.bf16.gmra.mxu0 %v6275
        %v6878 = vpop.f32.mrf.mxu0
        %v6879 = vadd.f32 %v6790, %v6878
        %v6880 = vpop.f32.mrf.mxu0
        %v6881 = vadd.f32 %v6792, %v6880
        %6882 = vmatmul.bf16.gmra.mxu0 %v6279
        %v6883 = vpop.f32.mrf.mxu0
        %v6884 = vadd.f32 %v6795, %v6883
        %v6885 = vpop.f32.mrf.mxu0
        %v6886 = vadd.f32 %v6797, %v6885
        %6887 = vmatmul.bf16.gmra.mxu0 %v6283
        %v6888 = vpop.f32.mrf.mxu0
        %v6889 = vadd.f32 %v6800, %v6888
        %v6890 = vpop.f32.mrf.mxu0
        %v6891 = vadd.f32 %v6802, %v6890
        %6892 = vmatmul.bf16.gmra.mxu0 %v6287
        %v6893 = vpop.f32.mrf.mxu0
        %v6894 = vadd.f32 %v6805, %v6893
        %v6895 = vpop.f32.mrf.mxu0
        %v6896 = vadd.f32 %v6807, %v6895
        %6897 = vmatmul.bf16.gmra.mxu0 %v6291
        %v6898 = vpop.f32.mrf.mxu0
        %v6899 = vadd.f32 %v6810, %v6898
        %v6900 = vpop.f32.mrf.mxu0
        %v6901 = vadd.f32 %v6812, %v6900
        %6902 = vmatmul.bf16.gmra.mxu0 %v6295
        %v6903 = vpop.f32.mrf.mxu0
        %v6904 = vadd.f32 %v6815, %v6903
        %v6905 = vpop.f32.mrf.mxu0
        %v6906 = vadd.f32 %v6817, %v6905
        %6907 = vmatmul.bf16.gmra.mxu0 %v6299
        %v6908 = vpop.f32.mrf.mxu0
        %v6909 = vadd.f32 %v6820, %v6908
        %v6910 = vpop.f32.mrf.mxu0
        %v6911 = vadd.f32 %v6822, %v6910
        %6912 = vmatmul.bf16.gmra.mxu0 %v6303
        %v6913 = vpop.f32.mrf.mxu0
        %v6914 = vadd.f32 %v6825, %v6913
        %v6915 = vpop.f32.mrf.mxu0
        %v6916 = vadd.f32 %v6827, %v6915
        %6917 = vmatmul.bf16.gmra.mxu0 %v6307
        %v6918 = vpop.f32.mrf.mxu0
        %v6919 = vadd.f32 %v6830, %v6918
        %v6920 = vpop.f32.mrf.mxu0
        %v6921 = vadd.f32 %v6832, %v6920
        %6922 = vmatmul.bf16.gmra.mxu0 %v6311
        %v6923 = vpop.f32.mrf.mxu0
        %v6924 = vadd.f32 %v6835, %v6923
        %v6925 = vpop.f32.mrf.mxu0
        %v6926 = vadd.f32 %v6837, %v6925
        %6927 = vdwg.mxu0
        %v6928 = vxor.u32 %v6849, 2147483648
        %v6929 = vxor.u32 %v6851, 2147483648
        %v6930 = vxor.u32 %v6854, 2147483648
        %v6931 = vxor.u32 %v6856, 2147483648
        %v6932 = vxor.u32 %v6859, 2147483648
        %v6933 = vxor.u32 %v6861, 2147483648
        %v6934 = vxor.u32 %v6864, 2147483648
        %v6935 = vxor.u32 %v6866, 2147483648
        %v6936 = vxor.u32 %v6869, 2147483648
        %v6937 = vxor.u32 %v6871, 2147483648
        %v6938 = vxor.u32 %v6874, 2147483648
        %v6939 = vxor.u32 %v6876, 2147483648
        %v6940 = vxor.u32 %v6879, 2147483648
        %v6941 = vxor.u32 %v6881, 2147483648
        %v6942 = vxor.u32 %v6884, 2147483648
        %v6943 = vxor.u32 %v6886, 2147483648
        %v6944 = vxor.u32 %v6889, 2147483648
        %v6945 = vxor.u32 %v6891, 2147483648
        %v6946 = vxor.u32 %v6894, 2147483648
        %v6947 = vxor.u32 %v6896, 2147483648
        %v6948 = vxor.u32 %v6899, 2147483648
        %v6949 = vxor.u32 %v6901, 2147483648
        %v6950 = vxor.u32 %v6904, 2147483648
        %v6951 = vxor.u32 %v6906, 2147483648
        %v6952 = vxor.u32 %v6909, 2147483648
        %v6953 = vxor.u32 %v6911, 2147483648
        %v6954 = vxor.u32 %v6914, 2147483648
        %v6955 = vxor.u32 %v6916, 2147483648
        %v6956 = vxor.u32 %v6919, 2147483648
        %v6957 = vxor.u32 %v6921, 2147483648
        %v6958 = vxor.u32 %v6924, 2147483648
        %v6959 = vxor.u32 %v6926, 2147483648
        %v6960 = vmul.f32 %v6928, 1.442695
        %v6961 = vpow.pop %v6960
        %v6962 = vmul.f32 %v6929, 1.442695
        %v6963 = vpow.pop %v6962
        %v6964 = vmul.f32 %v6930, 1.442695
        %v6965 = vpow.pop %v6964
        %v6966 = vmul.f32 %v6931, 1.442695
        %v6967 = vpow.pop %v6966
        %v6968 = vmul.f32 %v6932, 1.442695
        %v6969 = vpow.pop %v6968
        %v6970 = vmul.f32 %v6933, 1.442695
        %v6971 = vpow.pop %v6970
        %v6972 = vmul.f32 %v6934, 1.442695
        %v6973 = vpow.pop %v6972
        %v6974 = vmul.f32 %v6935, 1.442695
        %v6975 = vpow.pop %v6974
        %v6976 = vmul.f32 %v6936, 1.442695
        %v6977 = vpow.pop %v6976
        %v6978 = vmul.f32 %v6937, 1.442695
        %v6979 = vpow.pop %v6978
        %v6980 = vmul.f32 %v6938, 1.442695
        %v6981 = vpow.pop %v6980
        %v6982 = vmul.f32 %v6939, 1.442695
        %v6983 = vpow.pop %v6982
        %v6984 = vmul.f32 %v6940, 1.442695
        %v6985 = vpow.pop %v6984
        %v6986 = vmul.f32 %v6941, 1.442695
        %v6987 = vpow.pop %v6986
        %v6988 = vmul.f32 %v6942, 1.442695
        %v6989 = vpow.pop %v6988
        %v6990 = vmul.f32 %v6943, 1.442695
        %v6991 = vpow.pop %v6990
        %v6992 = vmul.f32 %v6944, 1.442695
        %v6993 = vpow.pop %v6992
        %v6994 = vmul.f32 %v6945, 1.442695
        %v6995 = vpow.pop %v6994
        %v6996 = vmul.f32 %v6946, 1.442695
        %v6997 = vpow.pop %v6996
        %v6998 = vmul.f32 %v6947, 1.442695
        %v6999 = vpow.pop %v6998
        %v7000 = vmul.f32 %v6948, 1.442695
        %v7001 = vpow.pop %v7000
        %v7002 = vmul.f32 %v6949, 1.442695
        %v7003 = vpow.pop %v7002
        %v7004 = vmul.f32 %v6950, 1.442695
        %v7005 = vpow.pop %v7004
        %v7006 = vmul.f32 %v6951, 1.442695
        %v7007 = vpow.pop %v7006
        %v7008 = vmul.f32 %v6952, 1.442695
        %v7009 = vpow.pop %v7008
        %v7010 = vmul.f32 %v6953, 1.442695
        %v7011 = vpow.pop %v7010
        %v7012 = vmul.f32 %v6954, 1.442695
        %v7013 = vpow.pop %v7012
        %v7014 = vmul.f32 %v6955, 1.442695
        %v7015 = vpow.pop %v7014
        %v7016 = vmul.f32 %v6956, 1.442695
        %v7017 = vpow.pop %v7016
        %v7018 = vmul.f32 %v6957, 1.442695
        %v7019 = vpow.pop %v7018
        %v7020 = vmul.f32 %v6958, 1.442695
        %v7021 = vpow.pop %v7020
        %v7022 = vmul.f32 %v6959, 1.442695
        %v7023 = vpow.pop %v7022
        %v7024 = vadd.f32 %v6961, 1.0
        %v7025 = vadd.f32 %v6963, 1.0
        %v7026 = vadd.f32 %v6965, 1.0
        %v7027 = vadd.f32 %v6967, 1.0
        %v7028 = vadd.f32 %v6969, 1.0
        %v7029 = vadd.f32 %v6971, 1.0
        %v7030 = vadd.f32 %v6973, 1.0
        %v7031 = vadd.f32 %v6975, 1.0
        %v7032 = vadd.f32 %v6977, 1.0
        %v7033 = vadd.f32 %v6979, 1.0
        %v7034 = vadd.f32 %v6981, 1.0
        %v7035 = vadd.f32 %v6983, 1.0
        %v7036 = vadd.f32 %v6985, 1.0
        %v7037 = vadd.f32 %v6987, 1.0
        %v7038 = vadd.f32 %v6989, 1.0
        %v7039 = vadd.f32 %v6991, 1.0
        %v7040 = vadd.f32 %v6993, 1.0
        %v7041 = vadd.f32 %v6995, 1.0
        %v7042 = vadd.f32 %v6997, 1.0
        %v7043 = vadd.f32 %v6999, 1.0
        %v7044 = vadd.f32 %v7001, 1.0
        %v7045 = vadd.f32 %v7003, 1.0
        %v7046 = vadd.f32 %v7005, 1.0
        %v7047 = vadd.f32 %v7007, 1.0
        %v7048 = vadd.f32 %v7009, 1.0
        %v7049 = vadd.f32 %v7011, 1.0
        %v7050 = vadd.f32 %v7013, 1.0
        %v7051 = vadd.f32 %v7015, 1.0
        %v7052 = vadd.f32 %v7017, 1.0
        %v7053 = vadd.f32 %v7019, 1.0
        %v7054 = vadd.f32 %v7021, 1.0
        %v7055 = vadd.f32 %v7023, 1.0
        %v7056 = vrcp.pop %v7024
        %v7057 = vmul.f32 %v7024, %v7056
        %v7058 = vsub.f32 1.0, %v7057
        %v7059 = vmul.f32 %v7056, %v7058
        %v7060 = vadd.f32 %v7056, %v7059
        %vm7061 = vweird.f32 %v7024
        %vm7062 = vweird.f32 %v7056
        %vm7063 = vmor %vm7061, %vm7062
        %v7064 = vsel %vm7063, %v7056, %v7060
        %v7065 = vand.u32 2147483647, %v7024
        %vm7066 = vcmp.eq.f32.partialorder %v7065, 8.507059e+37
        %v7067 = vand.u32 %v7024, 2147483648
        %v7068 = vor.u32 1.1754944e-38, %v7067
        %v7069 = vsel %vm7066, %v7068, %v7064
        %v7070 = vmul.f32 1.0, %v7069
        %v7071 = vrcp.pop %v7025
        %v7072 = vmul.f32 %v7025, %v7071
        %v7073 = vsub.f32 1.0, %v7072
        %v7074 = vmul.f32 %v7071, %v7073
        %v7075 = vadd.f32 %v7071, %v7074
        %vm7076 = vweird.f32 %v7025
        %vm7077 = vweird.f32 %v7071
        %vm7078 = vmor %vm7076, %vm7077
        %v7079 = vsel %vm7078, %v7071, %v7075
        %v7080 = vand.u32 2147483647, %v7025
        %vm7081 = vcmp.eq.f32.partialorder %v7080, 8.507059e+37
        %v7082 = vand.u32 %v7025, 2147483648
        %v7083 = vor.u32 1.1754944e-38, %v7082
        %v7084 = vsel %vm7081, %v7083, %v7079
        %v7085 = vmul.f32 1.0, %v7084
        %v7086 = vrcp.pop %v7026
        %v7087 = vmul.f32 %v7026, %v7086
        %v7088 = vsub.f32 1.0, %v7087
        %v7089 = vmul.f32 %v7086, %v7088
        %v7090 = vadd.f32 %v7086, %v7089
        %vm7091 = vweird.f32 %v7026
        %vm7092 = vweird.f32 %v7086
        %vm7093 = vmor %vm7091, %vm7092
        %v7094 = vsel %vm7093, %v7086, %v7090
        %v7095 = vand.u32 2147483647, %v7026
        %vm7096 = vcmp.eq.f32.partialorder %v7095, 8.507059e+37
        %v7097 = vand.u32 %v7026, 2147483648
        %v7098 = vor.u32 1.1754944e-38, %v7097
        %v7099 = vsel %vm7096, %v7098, %v7094
        %v7100 = vmul.f32 1.0, %v7099
        %v7101 = vrcp.pop %v7027
        %v7102 = vmul.f32 %v7027, %v7101
        %v7103 = vsub.f32 1.0, %v7102
        %v7104 = vmul.f32 %v7101, %v7103
        %v7105 = vadd.f32 %v7101, %v7104
        %vm7106 = vweird.f32 %v7027
        %vm7107 = vweird.f32 %v7101
        %vm7108 = vmor %vm7106, %vm7107
        %v7109 = vsel %vm7108, %v7101, %v7105
        %v7110 = vand.u32 2147483647, %v7027
        %vm7111 = vcmp.eq.f32.partialorder %v7110, 8.507059e+37
        %v7112 = vand.u32 %v7027, 2147483648
        %v7113 = vor.u32 1.1754944e-38, %v7112
        %v7114 = vsel %vm7111, %v7113, %v7109
        %v7115 = vmul.f32 1.0, %v7114
        %v7116 = vrcp.pop %v7028
        %v7117 = vmul.f32 %v7028, %v7116
        %v7118 = vsub.f32 1.0, %v7117
        %v7119 = vmul.f32 %v7116, %v7118
        %v7120 = vadd.f32 %v7116, %v7119
        %vm7121 = vweird.f32 %v7028
        %vm7122 = vweird.f32 %v7116
        %vm7123 = vmor %vm7121, %vm7122
        %v7124 = vsel %vm7123, %v7116, %v7120
        %v7125 = vand.u32 2147483647, %v7028
        %vm7126 = vcmp.eq.f32.partialorder %v7125, 8.507059e+37
        %v7127 = vand.u32 %v7028, 2147483648
        %v7128 = vor.u32 1.1754944e-38, %v7127
        %v7129 = vsel %vm7126, %v7128, %v7124
        %v7130 = vmul.f32 1.0, %v7129
        %v7131 = vrcp.pop %v7029
        %v7132 = vmul.f32 %v7029, %v7131
        %v7133 = vsub.f32 1.0, %v7132
        %v7134 = vmul.f32 %v7131, %v7133
        %v7135 = vadd.f32 %v7131, %v7134
        %vm7136 = vweird.f32 %v7029
        %vm7137 = vweird.f32 %v7131
        %vm7138 = vmor %vm7136, %vm7137
        %v7139 = vsel %vm7138, %v7131, %v7135
        %v7140 = vand.u32 2147483647, %v7029
        %vm7141 = vcmp.eq.f32.partialorder %v7140, 8.507059e+37
        %v7142 = vand.u32 %v7029, 2147483648
        %v7143 = vor.u32 1.1754944e-38, %v7142
        %v7144 = vsel %vm7141, %v7143, %v7139
        %v7145 = vmul.f32 1.0, %v7144
        %v7146 = vrcp.pop %v7030
        %v7147 = vmul.f32 %v7030, %v7146
        %v7148 = vsub.f32 1.0, %v7147
        %v7149 = vmul.f32 %v7146, %v7148
        %v7150 = vadd.f32 %v7146, %v7149
        %vm7151 = vweird.f32 %v7030
        %vm7152 = vweird.f32 %v7146
        %vm7153 = vmor %vm7151, %vm7152
        %v7154 = vsel %vm7153, %v7146, %v7150
        %v7155 = vand.u32 2147483647, %v7030
        %vm7156 = vcmp.eq.f32.partialorder %v7155, 8.507059e+37
        %v7157 = vand.u32 %v7030, 2147483648
        %v7158 = vor.u32 1.1754944e-38, %v7157
        %v7159 = vsel %vm7156, %v7158, %v7154
        %v7160 = vmul.f32 1.0, %v7159
        %v7161 = vrcp.pop %v7031
        %v7162 = vmul.f32 %v7031, %v7161
        %v7163 = vsub.f32 1.0, %v7162
        %v7164 = vmul.f32 %v7161, %v7163
        %v7165 = vadd.f32 %v7161, %v7164
        %vm7166 = vweird.f32 %v7031
        %vm7167 = vweird.f32 %v7161
        %vm7168 = vmor %vm7166, %vm7167
        %v7169 = vsel %vm7168, %v7161, %v7165
        %v7170 = vand.u32 2147483647, %v7031
        %vm7171 = vcmp.eq.f32.partialorder %v7170, 8.507059e+37
        %v7172 = vand.u32 %v7031, 2147483648
        %v7173 = vor.u32 1.1754944e-38, %v7172
        %v7174 = vsel %vm7171, %v7173, %v7169
        %v7175 = vmul.f32 1.0, %v7174
        %v7176 = vrcp.pop %v7032
        %v7177 = vmul.f32 %v7032, %v7176
        %v7178 = vsub.f32 1.0, %v7177
        %v7179 = vmul.f32 %v7176, %v7178
        %v7180 = vadd.f32 %v7176, %v7179
        %vm7181 = vweird.f32 %v7032
        %vm7182 = vweird.f32 %v7176
        %vm7183 = vmor %vm7181, %vm7182
        %v7184 = vsel %vm7183, %v7176, %v7180
        %v7185 = vand.u32 2147483647, %v7032
        %vm7186 = vcmp.eq.f32.partialorder %v7185, 8.507059e+37
        %v7187 = vand.u32 %v7032, 2147483648
        %v7188 = vor.u32 1.1754944e-38, %v7187
        %v7189 = vsel %vm7186, %v7188, %v7184
        %v7190 = vmul.f32 1.0, %v7189
        %v7191 = vrcp.pop %v7033
        %v7192 = vmul.f32 %v7033, %v7191
        %v7193 = vsub.f32 1.0, %v7192
        %v7194 = vmul.f32 %v7191, %v7193
        %v7195 = vadd.f32 %v7191, %v7194
        %vm7196 = vweird.f32 %v7033
        %vm7197 = vweird.f32 %v7191
        %vm7198 = vmor %vm7196, %vm7197
        %v7199 = vsel %vm7198, %v7191, %v7195
        %v7200 = vand.u32 2147483647, %v7033
        %vm7201 = vcmp.eq.f32.partialorder %v7200, 8.507059e+37
        %v7202 = vand.u32 %v7033, 2147483648
        %v7203 = vor.u32 1.1754944e-38, %v7202
        %v7204 = vsel %vm7201, %v7203, %v7199
        %v7205 = vmul.f32 1.0, %v7204
        %v7206 = vrcp.pop %v7034
        %v7207 = vmul.f32 %v7034, %v7206
        %v7208 = vsub.f32 1.0, %v7207
        %v7209 = vmul.f32 %v7206, %v7208
        %v7210 = vadd.f32 %v7206, %v7209
        %vm7211 = vweird.f32 %v7034
        %vm7212 = vweird.f32 %v7206
        %vm7213 = vmor %vm7211, %vm7212
        %v7214 = vsel %vm7213, %v7206, %v7210
        %v7215 = vand.u32 2147483647, %v7034
        %vm7216 = vcmp.eq.f32.partialorder %v7215, 8.507059e+37
        %v7217 = vand.u32 %v7034, 2147483648
        %v7218 = vor.u32 1.1754944e-38, %v7217
        %v7219 = vsel %vm7216, %v7218, %v7214
        %v7220 = vmul.f32 1.0, %v7219
        %v7221 = vrcp.pop %v7035
        %v7222 = vmul.f32 %v7035, %v7221
        %v7223 = vsub.f32 1.0, %v7222
        %v7224 = vmul.f32 %v7221, %v7223
        %v7225 = vadd.f32 %v7221, %v7224
        %vm7226 = vweird.f32 %v7035
        %vm7227 = vweird.f32 %v7221
        %vm7228 = vmor %vm7226, %vm7227
        %v7229 = vsel %vm7228, %v7221, %v7225
        %v7230 = vand.u32 2147483647, %v7035
        %vm7231 = vcmp.eq.f32.partialorder %v7230, 8.507059e+37
        %v7232 = vand.u32 %v7035, 2147483648
        %v7233 = vor.u32 1.1754944e-38, %v7232
        %v7234 = vsel %vm7231, %v7233, %v7229
        %v7235 = vmul.f32 1.0, %v7234
        %v7236 = vrcp.pop %v7036
        %v7237 = vmul.f32 %v7036, %v7236
        %v7238 = vsub.f32 1.0, %v7237
        %v7239 = vmul.f32 %v7236, %v7238
        %v7240 = vadd.f32 %v7236, %v7239
        %vm7241 = vweird.f32 %v7036
        %vm7242 = vweird.f32 %v7236
        %vm7243 = vmor %vm7241, %vm7242
        %v7244 = vsel %vm7243, %v7236, %v7240
        %v7245 = vand.u32 2147483647, %v7036
        %vm7246 = vcmp.eq.f32.partialorder %v7245, 8.507059e+37
        %v7247 = vand.u32 %v7036, 2147483648
        %v7248 = vor.u32 1.1754944e-38, %v7247
        %v7249 = vsel %vm7246, %v7248, %v7244
        %v7250 = vmul.f32 1.0, %v7249
        %v7251 = vrcp.pop %v7037
        %v7252 = vmul.f32 %v7037, %v7251
        %v7253 = vsub.f32 1.0, %v7252
        %v7254 = vmul.f32 %v7251, %v7253
        %v7255 = vadd.f32 %v7251, %v7254
        %vm7256 = vweird.f32 %v7037
        %vm7257 = vweird.f32 %v7251
        %vm7258 = vmor %vm7256, %vm7257
        %v7259 = vsel %vm7258, %v7251, %v7255
        %v7260 = vand.u32 2147483647, %v7037
        %vm7261 = vcmp.eq.f32.partialorder %v7260, 8.507059e+37
        %v7262 = vand.u32 %v7037, 2147483648
        %v7263 = vor.u32 1.1754944e-38, %v7262
        %v7264 = vsel %vm7261, %v7263, %v7259
        %v7265 = vmul.f32 1.0, %v7264
        %v7266 = vrcp.pop %v7038
        %v7267 = vmul.f32 %v7038, %v7266
        %v7268 = vsub.f32 1.0, %v7267
        %v7269 = vmul.f32 %v7266, %v7268
        %v7270 = vadd.f32 %v7266, %v7269
        %vm7271 = vweird.f32 %v7038
        %vm7272 = vweird.f32 %v7266
        %vm7273 = vmor %vm7271, %vm7272
        %v7274 = vsel %vm7273, %v7266, %v7270
        %v7275 = vand.u32 2147483647, %v7038
        %vm7276 = vcmp.eq.f32.partialorder %v7275, 8.507059e+37
        %v7277 = vand.u32 %v7038, 2147483648
        %v7278 = vor.u32 1.1754944e-38, %v7277
        %v7279 = vsel %vm7276, %v7278, %v7274
        %v7280 = vmul.f32 1.0, %v7279
        %v7281 = vrcp.pop %v7039
        %v7282 = vmul.f32 %v7039, %v7281
        %v7283 = vsub.f32 1.0, %v7282
        %v7284 = vmul.f32 %v7281, %v7283
        %v7285 = vadd.f32 %v7281, %v7284
        %vm7286 = vweird.f32 %v7039
        %vm7287 = vweird.f32 %v7281
        %vm7288 = vmor %vm7286, %vm7287
        %v7289 = vsel %vm7288, %v7281, %v7285
        %v7290 = vand.u32 2147483647, %v7039
        %vm7291 = vcmp.eq.f32.partialorder %v7290, 8.507059e+37
        %v7292 = vand.u32 %v7039, 2147483648
        %v7293 = vor.u32 1.1754944e-38, %v7292
        %v7294 = vsel %vm7291, %v7293, %v7289
        %v7295 = vmul.f32 1.0, %v7294
        %v7296 = vrcp.pop %v7040
        %v7297 = vmul.f32 %v7040, %v7296
        %v7298 = vsub.f32 1.0, %v7297
        %v7299 = vmul.f32 %v7296, %v7298
        %v7300 = vadd.f32 %v7296, %v7299
        %vm7301 = vweird.f32 %v7040
        %vm7302 = vweird.f32 %v7296
        %vm7303 = vmor %vm7301, %vm7302
        %v7304 = vsel %vm7303, %v7296, %v7300
        %v7305 = vand.u32 2147483647, %v7040
        %vm7306 = vcmp.eq.f32.partialorder %v7305, 8.507059e+37
        %v7307 = vand.u32 %v7040, 2147483648
        %v7308 = vor.u32 1.1754944e-38, %v7307
        %v7309 = vsel %vm7306, %v7308, %v7304
        %v7310 = vmul.f32 1.0, %v7309
        %v7311 = vrcp.pop %v7041
        %v7312 = vmul.f32 %v7041, %v7311
        %v7313 = vsub.f32 1.0, %v7312
        %v7314 = vmul.f32 %v7311, %v7313
        %v7315 = vadd.f32 %v7311, %v7314
        %vm7316 = vweird.f32 %v7041
        %vm7317 = vweird.f32 %v7311
        %vm7318 = vmor %vm7316, %vm7317
        %v7319 = vsel %vm7318, %v7311, %v7315
        %v7320 = vand.u32 2147483647, %v7041
        %vm7321 = vcmp.eq.f32.partialorder %v7320, 8.507059e+37
        %v7322 = vand.u32 %v7041, 2147483648
        %v7323 = vor.u32 1.1754944e-38, %v7322
        %v7324 = vsel %vm7321, %v7323, %v7319
        %v7325 = vmul.f32 1.0, %v7324
        %v7326 = vrcp.pop %v7042
        %v7327 = vmul.f32 %v7042, %v7326
        %v7328 = vsub.f32 1.0, %v7327
        %v7329 = vmul.f32 %v7326, %v7328
        %v7330 = vadd.f32 %v7326, %v7329
        %vm7331 = vweird.f32 %v7042
        %vm7332 = vweird.f32 %v7326
        %vm7333 = vmor %vm7331, %vm7332
        %v7334 = vsel %vm7333, %v7326, %v7330
        %v7335 = vand.u32 2147483647, %v7042
        %vm7336 = vcmp.eq.f32.partialorder %v7335, 8.507059e+37
        %v7337 = vand.u32 %v7042, 2147483648
        %v7338 = vor.u32 1.1754944e-38, %v7337
        %v7339 = vsel %vm7336, %v7338, %v7334
        %v7340 = vmul.f32 1.0, %v7339
        %v7341 = vrcp.pop %v7043
        %v7342 = vmul.f32 %v7043, %v7341
        %v7343 = vsub.f32 1.0, %v7342
        %v7344 = vmul.f32 %v7341, %v7343
        %v7345 = vadd.f32 %v7341, %v7344
        %vm7346 = vweird.f32 %v7043
        %vm7347 = vweird.f32 %v7341
        %vm7348 = vmor %vm7346, %vm7347
        %v7349 = vsel %vm7348, %v7341, %v7345
        %v7350 = vand.u32 2147483647, %v7043
        %vm7351 = vcmp.eq.f32.partialorder %v7350, 8.507059e+37
        %v7352 = vand.u32 %v7043, 2147483648
        %v7353 = vor.u32 1.1754944e-38, %v7352
        %v7354 = vsel %vm7351, %v7353, %v7349
        %v7355 = vmul.f32 1.0, %v7354
        %v7356 = vrcp.pop %v7044
        %v7357 = vmul.f32 %v7044, %v7356
        %v7358 = vsub.f32 1.0, %v7357
        %v7359 = vmul.f32 %v7356, %v7358
        %v7360 = vadd.f32 %v7356, %v7359
        %vm7361 = vweird.f32 %v7044
        %vm7362 = vweird.f32 %v7356
        %vm7363 = vmor %vm7361, %vm7362
        %v7364 = vsel %vm7363, %v7356, %v7360
        %v7365 = vand.u32 2147483647, %v7044
        %vm7366 = vcmp.eq.f32.partialorder %v7365, 8.507059e+37
        %v7367 = vand.u32 %v7044, 2147483648
        %v7368 = vor.u32 1.1754944e-38, %v7367
        %v7369 = vsel %vm7366, %v7368, %v7364
        %v7370 = vmul.f32 1.0, %v7369
        %v7371 = vrcp.pop %v7045
        %v7372 = vmul.f32 %v7045, %v7371
        %v7373 = vsub.f32 1.0, %v7372
        %v7374 = vmul.f32 %v7371, %v7373
        %v7375 = vadd.f32 %v7371, %v7374
        %vm7376 = vweird.f32 %v7045
        %vm7377 = vweird.f32 %v7371
        %vm7378 = vmor %vm7376, %vm7377
        %v7379 = vsel %vm7378, %v7371, %v7375
        %v7380 = vand.u32 2147483647, %v7045
        %vm7381 = vcmp.eq.f32.partialorder %v7380, 8.507059e+37
        %v7382 = vand.u32 %v7045, 2147483648
        %v7383 = vor.u32 1.1754944e-38, %v7382
        %v7384 = vsel %vm7381, %v7383, %v7379
        %v7385 = vmul.f32 1.0, %v7384
        %v7386 = vrcp.pop %v7046
        %v7387 = vmul.f32 %v7046, %v7386
        %v7388 = vsub.f32 1.0, %v7387
        %v7389 = vmul.f32 %v7386, %v7388
        %v7390 = vadd.f32 %v7386, %v7389
        %vm7391 = vweird.f32 %v7046
        %vm7392 = vweird.f32 %v7386
        %vm7393 = vmor %vm7391, %vm7392
        %v7394 = vsel %vm7393, %v7386, %v7390
        %v7395 = vand.u32 2147483647, %v7046
        %vm7396 = vcmp.eq.f32.partialorder %v7395, 8.507059e+37
        %v7397 = vand.u32 %v7046, 2147483648
        %v7398 = vor.u32 1.1754944e-38, %v7397
        %v7399 = vsel %vm7396, %v7398, %v7394
        %v7400 = vmul.f32 1.0, %v7399
        %v7401 = vrcp.pop %v7047
        %v7402 = vmul.f32 %v7047, %v7401
        %v7403 = vsub.f32 1.0, %v7402
        %v7404 = vmul.f32 %v7401, %v7403
        %v7405 = vadd.f32 %v7401, %v7404
        %vm7406 = vweird.f32 %v7047
        %vm7407 = vweird.f32 %v7401
        %vm7408 = vmor %vm7406, %vm7407
        %v7409 = vsel %vm7408, %v7401, %v7405
        %v7410 = vand.u32 2147483647, %v7047
        %vm7411 = vcmp.eq.f32.partialorder %v7410, 8.507059e+37
        %v7412 = vand.u32 %v7047, 2147483648
        %v7413 = vor.u32 1.1754944e-38, %v7412
        %v7414 = vsel %vm7411, %v7413, %v7409
        %v7415 = vmul.f32 1.0, %v7414
        %v7416 = vrcp.pop %v7048
        %v7417 = vmul.f32 %v7048, %v7416
        %v7418 = vsub.f32 1.0, %v7417
        %v7419 = vmul.f32 %v7416, %v7418
        %v7420 = vadd.f32 %v7416, %v7419
        %vm7421 = vweird.f32 %v7048
        %vm7422 = vweird.f32 %v7416
        %vm7423 = vmor %vm7421, %vm7422
        %v7424 = vsel %vm7423, %v7416, %v7420
        %v7425 = vand.u32 2147483647, %v7048
        %vm7426 = vcmp.eq.f32.partialorder %v7425, 8.507059e+37
        %v7427 = vand.u32 %v7048, 2147483648
        %v7428 = vor.u32 1.1754944e-38, %v7427
        %v7429 = vsel %vm7426, %v7428, %v7424
        %v7430 = vmul.f32 1.0, %v7429
        %v7431 = vrcp.pop %v7049
        %v7432 = vmul.f32 %v7049, %v7431
        %v7433 = vsub.f32 1.0, %v7432
        %v7434 = vmul.f32 %v7431, %v7433
        %v7435 = vadd.f32 %v7431, %v7434
        %vm7436 = vweird.f32 %v7049
        %vm7437 = vweird.f32 %v7431
        %vm7438 = vmor %vm7436, %vm7437
        %v7439 = vsel %vm7438, %v7431, %v7435
        %v7440 = vand.u32 2147483647, %v7049
        %vm7441 = vcmp.eq.f32.partialorder %v7440, 8.507059e+37
        %v7442 = vand.u32 %v7049, 2147483648
        %v7443 = vor.u32 1.1754944e-38, %v7442
        %v7444 = vsel %vm7441, %v7443, %v7439
        %v7445 = vmul.f32 1.0, %v7444
        %v7446 = vrcp.pop %v7050
        %v7447 = vmul.f32 %v7050, %v7446
        %v7448 = vsub.f32 1.0, %v7447
        %v7449 = vmul.f32 %v7446, %v7448
        %v7450 = vadd.f32 %v7446, %v7449
        %vm7451 = vweird.f32 %v7050
        %vm7452 = vweird.f32 %v7446
        %vm7453 = vmor %vm7451, %vm7452
        %v7454 = vsel %vm7453, %v7446, %v7450
        %v7455 = vand.u32 2147483647, %v7050
        %vm7456 = vcmp.eq.f32.partialorder %v7455, 8.507059e+37
        %v7457 = vand.u32 %v7050, 2147483648
        %v7458 = vor.u32 1.1754944e-38, %v7457
        %v7459 = vsel %vm7456, %v7458, %v7454
        %v7460 = vmul.f32 1.0, %v7459
        %v7461 = vrcp.pop %v7051
        %v7462 = vmul.f32 %v7051, %v7461
        %v7463 = vsub.f32 1.0, %v7462
        %v7464 = vmul.f32 %v7461, %v7463
        %v7465 = vadd.f32 %v7461, %v7464
        %vm7466 = vweird.f32 %v7051
        %vm7467 = vweird.f32 %v7461
        %vm7468 = vmor %vm7466, %vm7467
        %v7469 = vsel %vm7468, %v7461, %v7465
        %v7470 = vand.u32 2147483647, %v7051
        %vm7471 = vcmp.eq.f32.partialorder %v7470, 8.507059e+37
        %v7472 = vand.u32 %v7051, 2147483648
        %v7473 = vor.u32 1.1754944e-38, %v7472
        %v7474 = vsel %vm7471, %v7473, %v7469
        %v7475 = vmul.f32 1.0, %v7474
        %v7476 = vrcp.pop %v7052
        %v7477 = vmul.f32 %v7052, %v7476
        %v7478 = vsub.f32 1.0, %v7477
        %v7479 = vmul.f32 %v7476, %v7478
        %v7480 = vadd.f32 %v7476, %v7479
        %vm7481 = vweird.f32 %v7052
        %vm7482 = vweird.f32 %v7476
        %vm7483 = vmor %vm7481, %vm7482
        %v7484 = vsel %vm7483, %v7476, %v7480
        %v7485 = vand.u32 2147483647, %v7052
        %vm7486 = vcmp.eq.f32.partialorder %v7485, 8.507059e+37
        %v7487 = vand.u32 %v7052, 2147483648
        %v7488 = vor.u32 1.1754944e-38, %v7487
        %v7489 = vsel %vm7486, %v7488, %v7484
        %v7490 = vmul.f32 1.0, %v7489
        %v7491 = vrcp.pop %v7053
        %v7492 = vmul.f32 %v7053, %v7491
        %v7493 = vsub.f32 1.0, %v7492
        %v7494 = vmul.f32 %v7491, %v7493
        %v7495 = vadd.f32 %v7491, %v7494
        %vm7496 = vweird.f32 %v7053
        %vm7497 = vweird.f32 %v7491
        %vm7498 = vmor %vm7496, %vm7497
        %v7499 = vsel %vm7498, %v7491, %v7495
        %v7500 = vand.u32 2147483647, %v7053
        %vm7501 = vcmp.eq.f32.partialorder %v7500, 8.507059e+37
        %v7502 = vand.u32 %v7053, 2147483648
        %v7503 = vor.u32 1.1754944e-38, %v7502
        %v7504 = vsel %vm7501, %v7503, %v7499
        %v7505 = vmul.f32 1.0, %v7504
        %v7506 = vrcp.pop %v7054
        %v7507 = vmul.f32 %v7054, %v7506
        %v7508 = vsub.f32 1.0, %v7507
        %v7509 = vmul.f32 %v7506, %v7508
        %v7510 = vadd.f32 %v7506, %v7509
        %vm7511 = vweird.f32 %v7054
        %vm7512 = vweird.f32 %v7506
        %vm7513 = vmor %vm7511, %vm7512
        %v7514 = vsel %vm7513, %v7506, %v7510
        %v7515 = vand.u32 2147483647, %v7054
        %vm7516 = vcmp.eq.f32.partialorder %v7515, 8.507059e+37
        %v7517 = vand.u32 %v7054, 2147483648
        %v7518 = vor.u32 1.1754944e-38, %v7517
        %v7519 = vsel %vm7516, %v7518, %v7514
        %v7520 = vmul.f32 1.0, %v7519
        %v7521 = vrcp.pop %v7055
        %v7522 = vmul.f32 %v7055, %v7521
        %v7523 = vsub.f32 1.0, %v7522
        %v7524 = vmul.f32 %v7521, %v7523
        %v7525 = vadd.f32 %v7521, %v7524
        %vm7526 = vweird.f32 %v7055
        %vm7527 = vweird.f32 %v7521
        %vm7528 = vmor %vm7526, %vm7527
        %v7529 = vsel %vm7528, %v7521, %v7525
        %v7530 = vand.u32 2147483647, %v7055
        %vm7531 = vcmp.eq.f32.partialorder %v7530, 8.507059e+37
        %v7532 = vand.u32 %v7055, 2147483648
        %v7533 = vor.u32 1.1754944e-38, %v7532
        %v7534 = vsel %vm7531, %v7533, %v7529
        %v7535 = vmul.f32 1.0, %v7534
        %7536 = vst [vmem:[%s556] sm:$0xff] %v7070
        %7537 = vst [vmem:[%s556 + $0x8] sm:$0xff] %v7085
        %7538 = vst [vmem:[%s556 + $0x10] sm:$0xff] %v7100
        %7539 = vst [vmem:[%s556 + $0x18] sm:$0xff] %v7115
        %7540 = vst [vmem:[%s556 + $0x20] sm:$0xff] %v7130
        %7541 = vst [vmem:[%s556 + $0x28] sm:$0xff] %v7145
        %7542 = vst [vmem:[%s556 + $0x30] sm:$0xff] %v7160
        %7543 = vst [vmem:[%s556 + $0x38] sm:$0xff] %v7175
        %7544 = vst [vmem:[%s556 + $0x40] sm:$0xff] %v7190
        %7545 = vst [vmem:[%s556 + $0x48] sm:$0xff] %v7205
        %7546 = vst [vmem:[%s556 + $0x50] sm:$0xff] %v7220
        %7547 = vst [vmem:[%s556 + $0x58] sm:$0xff] %v7235
        %7548 = vst [vmem:[%s556 + $0x60] sm:$0xff] %v7250
        %7549 = vst [vmem:[%s556 + $0x68] sm:$0xff] %v7265
        %7550 = vst [vmem:[%s556 + $0x70] sm:$0xff] %v7280
        %7551 = vst [vmem:[%s556 + $0x78] sm:$0xff] %v7295
        %7552 = vst [vmem:[%s556 + $0x80] sm:$0xff] %v7310
        %7553 = vst [vmem:[%s556 + $0x88] sm:$0xff] %v7325
        %7554 = vst [vmem:[%s556 + $0x90] sm:$0xff] %v7340
        %7555 = vst [vmem:[%s556 + $0x98] sm:$0xff] %v7355
        %7556 = vst [vmem:[%s556 + $0xa0] sm:$0xff] %v7370
        %7557 = vst [vmem:[%s556 + $0xa8] sm:$0xff] %v7385
        %7558 = vst [vmem:[%s556 + $0xb0] sm:$0xff] %v7400
        %7559 = vst [vmem:[%s556 + $0xb8] sm:$0xff] %v7415
        %7560 = vst [vmem:[%s556 + $0xc0] sm:$0xff] %v7430
        %7561 = vst [vmem:[%s556 + $0xc8] sm:$0xff] %v7445
        %7562 = vst [vmem:[%s556 + $0xd0] sm:$0xff] %v7460
        %7563 = vst [vmem:[%s556 + $0xd8] sm:$0xff] %v7475
        %7564 = vst [vmem:[%s556 + $0xe0] sm:$0xff] %v7490
        %7565 = vst [vmem:[%s556 + $0xe8] sm:$0xff] %v7505
        %7566 = vst [vmem:[%s556 + $0xf0] sm:$0xff] %v7520
        %7567 = vst [vmem:[%s556 + $0xf8] sm:$0xff] %v7535
        %s7568 = smul.u32 32, %s30
        %p7569 = scmp.lt.s32.totalorder %s7568, 63
        %s7570 = scalar_select %p7569, %s7568, 63
        %s7571 = smul.addr %s7570, 8
        %s7572 = scalar_lea.vmem %s11, %s7571
        // Predicated region
        $region109: #{generator_forward.1} parent=63 // pred_check
          %p7573 = pneg %p284
        $region110: #{generator_forward.1} parent=63 // pred_check_branch
          %7575 = sbr.rel (%p7573) target = $region112
        $region111: #{generator_forward.1} parent=63 // pred_region
          %s7576 = smul.u32 32, %s30
        $region112: #{generator_forward.1} parent=63 // pred_fallthru
          _
      $region64: #{generator_forward.1} parent=5 // pred_fallthru
        _
      %p7577 = scmp.le.s32.totalorder 2, %s25
      // Predicated region
      $region113: #{generator_forward.1} parent=5 // pred_check
        %p7578 = pneg %p7577
      $region114: #{generator_forward.1} parent=5 // pred_check_branch
        %7580 = sbr.rel (%p7578) target = $region116
      $region115: #{generator_forward.1} parent=5 // pred_region
        %s7581 = ssub.s32 %s25, 2
        // Predicated region
        $region117: #{generator_forward.1} parent=115 // pred_check
          %p7582 = pneg %p290
        $region118: #{generator_forward.1} parent=115 // pred_check_branch
          %7584 = sbr.rel (%p7582) target = $region120
        $region119: #{generator_forward.1} parent=115 // pred_region
          %s7585 = smul.u32 32, %s31
          %p7586 = scmp.lt.s32.totalorder %s7585, 63
          %s7587 = scalar_select %p7586, %s7585, 63
          %s7588 = smul.addr %s7587, 8
          %s7589 = scalar_lea.vmem %s11, %s7588
        $region120: #{generator_forward.1} parent=115 // pred_fallthru
          _
      $region116: #{generator_forward.1} parent=5 // pred_fallthru
        _
    $region6: #{generator_forward.1} parent=1 // loop_footer
      %s29 = sadd.s32 1, %s25
    $region7: #{generator_forward.1} parent=1 // loop_footer_branch
      %24 = sbr.rel target = $region3
    $region8: #{generator_forward.1} parent=1 // loop_exit
      _
    %7590 = vsyncpa [#allocation5], 1
    %s7591 = scalar_lea.sflag [#allocation5], 1
    %7592 = vsyncpa %s7591, 1
    %7593 = vsyncpa [#allocation7], 1
    %7594 = vsyncpa [#allocation10], 1
    %7595 = vsyncpa [#allocation13], 1
    %7596 = vsyncpa [#allocation16], 1
    %7597 = vsyncpa [#allocation19], 1

</llo_original>
